<compile_context>
chip_gen: v5e
topology: v5e:2x2
jax: 0.10.0
libtpu: 0.0.40
codegen_flags: <defaults>
</compile_context>

<pallas_src>
import jax
import jax.numpy as jnp
from jax.experimental import pallas as pl
from jax.experimental.pallas import tpu as pltpu


def _round_up(x, m):
    return ((x + m - 1) // m) * m


def _pick_tile_m(M, cap=16384):
    """Lane-dense M tile that divides M exactly (no pad copy).

    Prefers >=2 grid blocks (v7x has 2 TensorCores) as long as tiles stay >=1024 lanes.
    If M is not a multiple of 128, take the whole extent in one block (block == full dim,
    so the (8,128) divisibility rule does not apply)."""
    if M % 128 != 0:
        return M
    q = M // 128
    tiles = [128 * d for d in range(1, q + 1) if q % d == 0 and 128 * d <= cap]
    tm = max(tiles)
    if tm == M:
        smaller = [t for t in tiles if t < M and t >= 1024]
        if smaller:
            tm = max(smaller)
    return tm


# ----------------------------------------------------------------------------
# Pallas kernel 1: transposed GEMM + bias + ELU  (the Conv3d hot path)
#   out[Cout, TM] = W[Cout, K] @ P_T[K, TM] + b ; ELU(alpha=1)
# ----------------------------------------------------------------------------
def _conv_gemm_elu_kernel(w_ref, b_ref, p_ref, o_ref):
    acc = jnp.dot(w_ref[...], p_ref[...], preferred_element_type=jnp.float32)
    acc = acc + b_ref[...]                       # (Cout, 1) broadcasts over lanes
    elu = jnp.where(acc > 0.0, acc, jnp.exp(jnp.minimum(acc, 0.0)) - 1.0)
    o_ref[...] = elu.astype(o_ref.dtype)         # bf16 store (f32 for the fallback tail)


def conv_gemm_elu(w_mat, b_col, patches_t, *, out_dtype=jnp.bfloat16, tm_cap=16384):
    """w_mat: (Cout, K) bf16; b_col: (Cout, 1) f32; patches_t: (K, M) bf16
       -> (Cout, M) out_dtype."""
    Cp, K = w_mat.shape
    M = patches_t.shape[1]
    TM = _pick_tile_m(M, cap=tm_cap)
    M_pad = _round_up(M, TM)
    if M_pad != M:                               # defensive only; TM divides M by design
        patches_t = jnp.pad(patches_t, ((0, 0), (0, M_pad - M)))

    out = pl.pallas_call(
        _conv_gemm_elu_kernel,
        out_shape=jax.ShapeDtypeStruct((Cp, M_pad), out_dtype),
        grid_spec=pltpu.PrefetchScalarGridSpec(
            num_scalar_prefetch=0,
            grid=(M_pad // TM,),
            in_specs=[
                pl.BlockSpec((Cp, K), lambda i: (0, 0)),    # weight, VMEM-resident
                pl.BlockSpec((Cp, 1), lambda i: (0, 0)),    # bias (f32)
                pl.BlockSpec((K, TM), lambda i: (0, i)),    # patch tile (lanes = M)
            ],
            out_specs=pl.BlockSpec((Cp, TM), lambda i: (0, i)),
        ),
        compiler_params=pltpu.CompilerParams(
            dimension_semantics=("parallel",),
            vmem_limit_bytes=32 * 1024 * 1024,
        ),
    )(w_mat, b_col, patches_t)
    return out if M_pad == M else out[:, :M]


# ----------------------------------------------------------------------------
# Pallas kernel 2: fused tail
#   layer-4 conv-as-GEMM (+bias, ELU) -> flatten -> Linear -> ReLU -> Linear
#   (used when the final conv's spatial output is 1x1x1, as for 24^3 inputs)
# ----------------------------------------------------------------------------
def _tail_kernel(p_ref, w4_ref, b4_ref, w1_ref, b1_ref, w2_ref, b2_ref, o_ref):
    f = jnp.dot(p_ref[...], w4_ref[...], preferred_element_type=jnp.float32) + b4_ref[...]
    f = jnp.where(f > 0.0, f, jnp.exp(jnp.minimum(f, 0.0)) - 1.0)   # Conv3d(32,16,3,p=0) + ELU
    h = jnp.maximum(jnp.dot(f, w1_ref[...],
                            preferred_element_type=jnp.float32) + b1_ref[...], 0.0)
    # TODO(synk): nn.Dropout(p=0.25) is stochastic; implemented as inference-mode identity.
    o_ref[...] = jnp.dot(h, w2_ref[...], preferred_element_type=jnp.float32) + b2_ref[...]


def fused_tail(patches4, conv4, head):
    """patches4: (N, K4) f32 -> logits (N, num_classes) f32, one pallas_call."""
    N, K4 = patches4.shape
    F = conv4["w_t"].shape[1]
    H = head["w1"].shape[1]
    C = head["w2"].shape[1]
    return pl.pallas_call(
        _tail_kernel,
        out_shape=jax.ShapeDtypeStruct((N, C), jnp.float32),
        grid_spec=pltpu.PrefetchScalarGridSpec(
            num_scalar_prefetch=0,
            grid=(1,),
            in_specs=[pl.BlockSpec((N, K4), lambda i: (0, 0)),
                      pl.BlockSpec((K4, F), lambda i: (0, 0)),
                      pl.BlockSpec((1, F), lambda i: (0, 0)),
                      pl.BlockSpec((F, H), lambda i: (0, 0)),
                      pl.BlockSpec((1, H), lambda i: (0, 0)),
                      pl.BlockSpec((H, C), lambda i: (0, 0)),
                      pl.BlockSpec((1, C), lambda i: (0, 0))],
            out_specs=pl.BlockSpec((N, C), lambda i: (0, 0)),
        ),
    )(patches4, conv4["w_t"], conv4["b_row"],
      head["w1"], head["b1"], head["w2"], head["b2"])


# ----------------------------------------------------------------------------
# Pallas kernel 3: standalone classifier (fallback when final spatial > 1)
# ----------------------------------------------------------------------------
def _classifier_kernel(x_ref, w1_ref, b1_ref, w2_ref, b2_ref, o_ref):
    h = jnp.maximum(jnp.dot(x_ref[...], w1_ref[...],
                            preferred_element_type=jnp.float32) + b1_ref[...], 0.0)
    o_ref[...] = jnp.dot(h, w2_ref[...], preferred_element_type=jnp.float32) + b2_ref[...]


def classify(feats, head):
    N, F = feats.shape
    H = head["w1"].shape[1]
    C = head["w2"].shape[1]
    return pl.pallas_call(
        _classifier_kernel,
        out_shape=jax.ShapeDtypeStruct((N, C), jnp.float32),
        grid_spec=pltpu.PrefetchScalarGridSpec(
            num_scalar_prefetch=0,
            grid=(1,),
            in_specs=[pl.BlockSpec((N, F), lambda i: (0, 0)),
                      pl.BlockSpec((F, H), lambda i: (0, 0)),
                      pl.BlockSpec((1, H), lambda i: (0, 0)),
                      pl.BlockSpec((H, C), lambda i: (0, 0)),
                      pl.BlockSpec((1, C), lambda i: (0, 0))],
            out_specs=pl.BlockSpec((N, C), lambda i: (0, 0)),
        ),
    )(feats, head["w1"], head["b1"], head["w2"], head["b2"])


# ----------------------------------------------------------------------------
# JAX glue: transposed im2col, maxpool, layer/forward assembly
# ----------------------------------------------------------------------------
def _im2col3d_T(x, k, pad):
    """x: (C, N, D, H, W) -> patches_T (C*k^3, N*Do*Ho*Wo).
       K index ordered (c, kd, kh, kw) to match weight.reshape(Cout, Cin*k^3);
       M index ordered (n, do, ho, wo).  All encoder convs are stride 1."""
    C, N, D, H, W = x.shape
    if pad > 0:
        x = jnp.pad(x, ((0, 0), (0, 0), (pad, pad), (pad, pad), (pad, pad)))
    Do = D + 2 * pad - k + 1
    Ho = H + 2 * pad - k + 1
    Wo = W + 2 * pad - k + 1
    taps = []
    for kd in range(k):
        for kh in range(k):
            for kw in range(k):
                taps.append(x[:, :, kd:kd + Do, kh:kh + Ho, kw:kw + Wo])
    p = jnp.stack(taps, axis=1)                              # (C, k^3, N, Do, Ho, Wo)
    return p.reshape(C * k ** 3, N * Do * Ho * Wo), (Do, Ho, Wo)


def conv3d_elu(x, w_mat, b_col, *, cout, k, pad, out_dtype=jnp.bfloat16):
    """x: (Cin, N, D, H, W) bf16 -> (Cout, N, Do, Ho, Wo) out_dtype."""
    N = x.shape[1]
    patches_t, (Do, Ho, Wo) = _im2col3d_T(x, k, pad)
    out = conv_gemm_elu(w_mat, b_col, patches_t, out_dtype=out_dtype)
    return out[:cout].reshape(cout, N, Do, Ho, Wo)


def maxpool3d_2(x):
    """MaxPool3d(kernel=2, stride=2), PyTorch floor semantics. x: (C, N, D, H, W)."""
    C, N, D, H, W = x.shape
    x = x[:, :, :(D // 2) * 2, :(H // 2) * 2, :(W // 2) * 2]
    x = x.reshape(C, N, D // 2, 2, H // 2, 2, W // 2, 2)
    return x.max(axis=(3, 5, 7))


# Static encoder config (default_encoder): (cin, cout, k, pad, maxpool_after)
ENCODER_CFG = [
    (1, 8, 3, 1, True),
    (8, 16, 3, 1, True),
    (16, 32, 3, 1, True),
    (32, 16, 3, 0, False),
]


def encoder_classifier_forward(x_ncdhw, params):
    # internal layout (C, N, D, H, W), bf16 activations for the conv pipeline
    x = jnp.transpose(x_ncdhw, (1, 0, 2, 3, 4)).astype(jnp.bfloat16)
    for (_, cout, k, pad, pool), layer in zip(ENCODER_CFG[:-1], params["encoder"]):
        x = conv3d_elu(x, layer["w_mat"], layer["b_col"], cout=cout, k=k, pad=pad)
        if pool:
            x = maxpool3d_2(x)

    # final conv + flatten + classifier
    cin4, cout4, k4, pad4, _ = ENCODER_CFG[-1]
    N = x.shape[1]
    patches4_t, (Do, Ho, Wo) = _im2col3d_T(x, k4, pad4)       # (K4, N*Do*Ho*Wo), tiny
    if Do * Ho * Wo == 1:
        # fused tail in f32 (keeps classifier features in full precision)
        patches4 = patches4_t.T.astype(jnp.float32)           # (N, K4)
        return fused_tail(patches4, params["conv4"], params["classifier"])
    # general fallback: un-fused layer-4 conv (f32 out) + torch-style flatten + classifier
    y = conv_gemm_elu(params["conv4"]["w_mat"], params["conv4"]["b_col"],
                      patches4_t, out_dtype=jnp.float32)
    y = y[:cout4].reshape(cout4, N, Do, Ho, Wo)
    feats = jnp.transpose(y, (1, 0, 2, 3, 4)).reshape(N, -1)
    return classify(feats, params["classifier"])


# ----------------------------------------------------------------------------
# Deterministic synthetic parameters, pre-reshaped/transposed/cast ONCE (outside jit)
# ----------------------------------------------------------------------------
def init_params(key, input_shape, num_classes=2):
    keys = iter(jax.random.split(key, 32))

    def conv_weights(cin, cout, k):
        fan_in = cin * k ** 3
        w = jax.random.normal(next(keys), (cout, cin, k, k, k), jnp.float32) / jnp.sqrt(fan_in)
        b = 0.01 * jax.random.normal(next(keys), (cout,), jnp.float32)
        return w, b

    encoder = []
    for (cin, cout, k, _, _) in ENCODER_CFG[:-1]:
        w, b = conv_weights(cin, cout, k)
        K = cin * k ** 3
        encoder.append(dict(w_mat=w.reshape(cout, K).astype(jnp.bfloat16),   # (Cout, K) bf16
                            b_col=b.reshape(cout, 1)))                       # (Cout, 1) f32

    cin4, cout4, k4, _, _ = ENCODER_CFG[-1]
    w4, b4 = conv_weights(cin4, cout4, k4)
    K4 = cin4 * k4 ** 3
    conv4 = dict(
        w_mat=w4.reshape(cout4, K4).astype(jnp.bfloat16),    # fallback orientation
        b_col=b4.reshape(cout4, 1),
        w_t=w4.reshape(cout4, K4).T.astype(jnp.float32),     # fused-tail orientation (K4, Cout)
        b_row=b4.reshape(1, cout4),
    )

    # infer num_features the same way get_num_ftrs() does (trace spatial dims)
    d = list(input_shape)
    for (_, cout, k, pad, pool) in ENCODER_CFG:
        d = [s + 2 * pad - k + 1 for s in d]
        if pool:
            d = [s // 2 for s in d]
    num_features = ENCODER_CFG[-1][1] * d[0] * d[1] * d[2]

    def linear(cin, cout_):
        w = jax.random.normal(next(keys), (cin, cout_), jnp.float32) / jnp.sqrt(cin)
        b = 0.01 * jax.random.normal(next(keys), (1, cout_), jnp.float32)
        return w, b

    w1, b1 = linear(num_features, 32)
    w2, b2 = linear(32, num_classes)
    return dict(encoder=encoder, conv4=conv4,
                classifier=dict(w1=w1, b1=b1, w2=w2, b2=b2))


# ----------------------------------------------------------------------------
if __name__ == "__main__":
    key = jax.random.PRNGKey(0)
    k_in, k_par = jax.random.split(key)

    input_shape = (24, 24, 24)   # survives 3x MaxPool3d(2) + final valid k=3 conv -> 1^3
    batch, num_classes = 2, 2
    x = jax.random.normal(k_in, (batch, 1) + input_shape, jnp.float32)
    params = init_params(k_par, input_shape, num_classes=num_classes)

    fwd = jax.jit(encoder_classifier_forward)
    out = jax.block_until_ready(fwd(x, params))

    assert out.shape == (batch, num_classes), out.shape
    assert jnp.all(jnp.isfinite(out))
    print("KERNEL_OK")
</pallas_src>

<mosaic_0001>
module attributes {stable_mosaic.version = 11 : i64} {
  func.func @_conv_gemm_elu_kernel(%arg0: i32, %arg1: memref<8x27xbf16, #tpu.memory_space<vmem>>, %arg2: memref<8x1xf32, #tpu.memory_space<vmem>>, %arg3: memref<27x13824xbf16, #tpu.memory_space<vmem>>, %arg4: memref<8x13824xbf16, #tpu.memory_space<vmem>>) attributes {dimension_semantics = [#tpu.dimension_semantics<parallel>], iteration_bounds = array<i64: 2>, scalar_prefetch = 0 : i64, scratch_operands = 0 : i64, tpu.core_type = #tpu.core_type<tc>, window_params = [{pipeline_mode = #tpu.pipeline_mode<synchronous>, transform_indices = @transform_0, window_bounds = array<i64: 8, 27>}, {pipeline_mode = #tpu.pipeline_mode<synchronous>, transform_indices = @transform_1, window_bounds = array<i64: 8, 1>}, {transform_indices = @transform_2, window_bounds = array<i64: 27, 13824>}, {transform_indices = @transform_3, window_bounds = array<i64: 8, 13824>}]} {
    %c0 = arith.constant 0 : index
    %c0_0 = arith.constant 0 : index
    %0 = vector.load %arg1[%c0, %c0_0] : memref<8x27xbf16, #tpu.memory_space<vmem>>, vector<8x27xbf16>
    %c0_1 = arith.constant 0 : index
    %c0_2 = arith.constant 0 : index
    %1 = vector.load %arg3[%c0_1, %c0_2] : memref<27x13824xbf16, #tpu.memory_space<vmem>>, vector<27x13824xbf16>
    %cst = arith.constant dense<0.000000e+00> : vector<8x13824xf32>
    %2 = tpu.matmul %0, %1, %cst {dimension_numbers = #tpu.dot_dimension_numbers<[1], [0], [0], [1], [0, 0, 1, 1], [], []>} : vector<8x27xbf16>, vector<27x13824xbf16>, vector<8x13824xf32> -> vector<8x13824xf32>
    %c0_3 = arith.constant 0 : index
    %c0_4 = arith.constant 0 : index
    %3 = vector.load %arg2[%c0_3, %c0_4] : memref<8x1xf32, #tpu.memory_space<vmem>>, vector<8x1xf32>
    %4 = vector.broadcast %3 : vector<8x1xf32> to vector<8x13824xf32>
    %5 = arith.addf %2, %4 : vector<8x13824xf32>
    %cst_5 = arith.constant 0.000000e+00 : f32
    %6 = vector.broadcast %cst_5 : f32 to vector<8x13824xf32>
    %7 = arith.cmpf ogt, %5, %6 : vector<8x13824xf32>
    %cst_6 = arith.constant 0.000000e+00 : f32
    %8 = vector.broadcast %cst_6 : f32 to vector<8x13824xf32>
    %9 = arith.minimumf %5, %8 : vector<8x13824xf32>
    %10 = math.exp %9 : vector<8x13824xf32>
    %cst_7 = arith.constant 1.000000e+00 : f32
    %11 = vector.broadcast %cst_7 : f32 to vector<8x13824xf32>
    %12 = arith.subf %10, %11 : vector<8x13824xf32>
    %13 = arith.select %7, %5, %12 : vector<8x13824xi1>, vector<8x13824xf32>
    %14 = arith.truncf %13 : vector<8x13824xf32> to vector<8x13824xbf16>
    %c0_8 = arith.constant 0 : index
    %c0_9 = arith.constant 0 : index
    %15 = vector.load %arg4[%c0_8, %c0_9] : memref<8x13824xbf16, #tpu.memory_space<vmem>>, vector<8x13824xbf16>
    tpu.vector_store %arg4[%c0_8, %c0_9], %14 {strides = array<i32>} : memref<8x13824xbf16, #tpu.memory_space<vmem>>, vector<8x13824xbf16>,
    return
  }
  func.func @transform_0(%arg0: i32) -> (i32, i32) {
    %c0_i32 = arith.constant 0 : i32
    %c0_i32_0 = arith.constant 0 : i32
    %c0_i32_1 = arith.constant 0 : i32
    return %c0_i32, %c0_i32_0 : i32, i32
  }
  func.func @transform_1(%arg0: i32) -> (i32, i32) {
    %c0_i32 = arith.constant 0 : i32
    %c0_i32_0 = arith.constant 0 : i32
    %c0_i32_1 = arith.constant 0 : i32
    return %c0_i32, %c0_i32_0 : i32, i32
  }
  func.func @transform_2(%arg0: i32) -> (i32, i32) {
    %c0_i32 = arith.constant 0 : i32
    %c0_i32_0 = arith.constant 0 : i32
    return %c0_i32, %arg0 : i32, i32
  }
  func.func @transform_3(%arg0: i32) -> (i32, i32) {
    %c0_i32 = arith.constant 0 : i32
    %c0_i32_0 = arith.constant 0 : i32
    return %c0_i32, %arg0 : i32, i32
  }
}

module attributes {stable_mosaic.version = 11 : i64} {
  func.func @_conv_gemm_elu_kernel(%arg0: i32, %arg1: memref<16x216xbf16, #tpu.memory_space<vmem>>, %arg2: memref<16x1xf32, #tpu.memory_space<vmem>>, %arg3: memref<216x1152xbf16, #tpu.memory_space<vmem>>, %arg4: memref<16x1152xbf16, #tpu.memory_space<vmem>>) attributes {dimension_semantics = [#tpu.dimension_semantics<parallel>], iteration_bounds = array<i64: 3>, scalar_prefetch = 0 : i64, scratch_operands = 0 : i64, tpu.core_type = #tpu.core_type<tc>, window_params = [{pipeline_mode = #tpu.pipeline_mode<synchronous>, transform_indices = @transform_0, window_bounds = array<i64: 16, 216>}, {pipeline_mode = #tpu.pipeline_mode<synchronous>, transform_indices = @transform_1, window_bounds = array<i64: 16, 1>}, {transform_indices = @transform_2, window_bounds = array<i64: 216, 1152>}, {transform_indices = @transform_3, window_bounds = array<i64: 16, 1152>}]} {
    %c0 = arith.constant 0 : index
    %c0_0 = arith.constant 0 : index
    %0 = vector.load %arg1[%c0, %c0_0] : memref<16x216xbf16, #tpu.memory_space<vmem>>, vector<16x216xbf16>
    %c0_1 = arith.constant 0 : index
    %c0_2 = arith.constant 0 : index
    %1 = vector.load %arg3[%c0_1, %c0_2] : memref<216x1152xbf16, #tpu.memory_space<vmem>>, vector<216x1152xbf16>
    %cst = arith.constant dense<0.000000e+00> : vector<16x1152xf32>
    %2 = tpu.matmul %0, %1, %cst {dimension_numbers = #tpu.dot_dimension_numbers<[1], [0], [0], [1], [0, 0, 1, 1], [], []>} : vector<16x216xbf16>, vector<216x1152xbf16>, vector<16x1152xf32> -> vector<16x1152xf32>
    %c0_3 = arith.constant 0 : index
    %c0_4 = arith.constant 0 : index
    %3 = vector.load %arg2[%c0_3, %c0_4] : memref<16x1xf32, #tpu.memory_space<vmem>>, vector<16x1xf32>
    %4 = vector.broadcast %3 : vector<16x1xf32> to vector<16x1152xf32>
    %5 = arith.addf %2, %4 : vector<16x1152xf32>
    %cst_5 = arith.constant 0.000000e+00 : f32
    %6 = vector.broadcast %cst_5 : f32 to vector<16x1152xf32>
    %7 = arith.cmpf ogt, %5, %6 : vector<16x1152xf32>
    %cst_6 = arith.constant 0.000000e+00 : f32
    %8 = vector.broadcast %cst_6 : f32 to vector<16x1152xf32>
    %9 = arith.minimumf %5, %8 : vector<16x1152xf32>
    %10 = math.exp %9 : vector<16x1152xf32>
    %cst_7 = arith.constant 1.000000e+00 : f32
    %11 = vector.broadcast %cst_7 : f32 to vector<16x1152xf32>
    %12 = arith.subf %10, %11 : vector<16x1152xf32>
    %13 = arith.select %7, %5, %12 : vector<16x1152xi1>, vector<16x1152xf32>
    %14 = arith.truncf %13 : vector<16x1152xf32> to vector<16x1152xbf16>
    %c0_8 = arith.constant 0 : index
    %c0_9 = arith.constant 0 : index
    %15 = vector.load %arg4[%c0_8, %c0_9] : memref<16x1152xbf16, #tpu.memory_space<vmem>>, vector<16x1152xbf16>
    tpu.vector_store %arg4[%c0_8, %c0_9], %14 {strides = array<i32>} : memref<16x1152xbf16, #tpu.memory_space<vmem>>, vector<16x1152xbf16>,
    return
  }
  func.func @transform_0(%arg0: i32) -> (i32, i32) {
    %c0_i32 = arith.constant 0 : i32
    %c0_i32_0 = arith.constant 0 : i32
    %c0_i32_1 = arith.constant 0 : i32
    return %c0_i32, %c0_i32_0 : i32, i32
  }
  func.func @transform_1(%arg0: i32) -> (i32, i32) {
    %c0_i32 = arith.constant 0 : i32
    %c0_i32_0 = arith.constant 0 : i32
    %c0_i32_1 = arith.constant 0 : i32
    return %c0_i32, %c0_i32_0 : i32, i32
  }
  func.func @transform_2(%arg0: i32) -> (i32, i32) {
    %c0_i32 = arith.constant 0 : i32
    %c0_i32_0 = arith.constant 0 : i32
    return %c0_i32, %arg0 : i32, i32
  }
  func.func @transform_3(%arg0: i32) -> (i32, i32) {
    %c0_i32 = arith.constant 0 : i32
    %c0_i32_0 = arith.constant 0 : i32
    return %c0_i32, %arg0 : i32, i32
  }
}

module attributes {stable_mosaic.version = 11 : i64} {
  func.func @_conv_gemm_elu_kernel(%arg0: i32, %arg1: memref<32x432xbf16, #tpu.memory_space<vmem>>, %arg2: memref<32x1xf32, #tpu.memory_space<vmem>>, %arg3: memref<432x432xbf16, #tpu.memory_space<vmem>>, %arg4: memref<32x432xbf16, #tpu.memory_space<vmem>>) attributes {dimension_semantics = [#tpu.dimension_semantics<parallel>], iteration_bounds = array<i64: 1>, scalar_prefetch = 0 : i64, scratch_operands = 0 : i64, tpu.core_type = #tpu.core_type<tc>, window_params = [{pipeline_mode = #tpu.pipeline_mode<synchronous>, transform_indices = @transform_0, window_bounds = array<i64: 32, 432>}, {pipeline_mode = #tpu.pipeline_mode<synchronous>, transform_indices = @transform_1, window_bounds = array<i64: 32, 1>}, {transform_indices = @transform_2, window_bounds = array<i64: 432, 432>}, {transform_indices = @transform_3, window_bounds = array<i64: 32, 432>}]} {
    %c0 = arith.constant 0 : index
    %c0_0 = arith.constant 0 : index
    %0 = vector.load %arg1[%c0, %c0_0] : memref<32x432xbf16, #tpu.memory_space<vmem>>, vector<32x432xbf16>
    %c0_1 = arith.constant 0 : index
    %c0_2 = arith.constant 0 : index
    %1 = vector.load %arg3[%c0_1, %c0_2] : memref<432x432xbf16, #tpu.memory_space<vmem>>, vector<432x432xbf16>
    %cst = arith.constant dense<0.000000e+00> : vector<32x432xf32>
    %2 = tpu.matmul %0, %1, %cst {dimension_numbers = #tpu.dot_dimension_numbers<[1], [0], [0], [1], [0, 0, 1, 1], [], []>} : vector<32x432xbf16>, vector<432x432xbf16>, vector<32x432xf32> -> vector<32x432xf32>
    %c0_3 = arith.constant 0 : index
    %c0_4 = arith.constant 0 : index
    %3 = vector.load %arg2[%c0_3, %c0_4] : memref<32x1xf32, #tpu.memory_space<vmem>>, vector<32x1xf32>
    %4 = vector.broadcast %3 : vector<32x1xf32> to vector<32x432xf32>
    %5 = arith.addf %2, %4 : vector<32x432xf32>
    %cst_5 = arith.constant 0.000000e+00 : f32
    %6 = vector.broadcast %cst_5 : f32 to vector<32x432xf32>
    %7 = arith.cmpf ogt, %5, %6 : vector<32x432xf32>
    %cst_6 = arith.constant 0.000000e+00 : f32
    %8 = vector.broadcast %cst_6 : f32 to vector<32x432xf32>
    %9 = arith.minimumf %5, %8 : vector<32x432xf32>
    %10 = math.exp %9 : vector<32x432xf32>
    %cst_7 = arith.constant 1.000000e+00 : f32
    %11 = vector.broadcast %cst_7 : f32 to vector<32x432xf32>
    %12 = arith.subf %10, %11 : vector<32x432xf32>
    %13 = arith.select %7, %5, %12 : vector<32x432xi1>, vector<32x432xf32>
    %14 = arith.truncf %13 : vector<32x432xf32> to vector<32x432xbf16>
    %c0_8 = arith.constant 0 : index
    %c0_9 = arith.constant 0 : index
    %15 = vector.load %arg4[%c0_8, %c0_9] : memref<32x432xbf16, #tpu.memory_space<vmem>>, vector<32x432xbf16>
    tpu.vector_store %arg4[%c0_8, %c0_9], %14 {strides = array<i32>} : memref<32x432xbf16, #tpu.memory_space<vmem>>, vector<32x432xbf16>,
    return
  }
  func.func @transform_0(%arg0: i32) -> (i32, i32) {
    %c0_i32 = arith.constant 0 : i32
    %c0_i32_0 = arith.constant 0 : i32
    %c0_i32_1 = arith.constant 0 : i32
    return %c0_i32, %c0_i32_0 : i32, i32
  }
  func.func @transform_1(%arg0: i32) -> (i32, i32) {
    %c0_i32 = arith.constant 0 : i32
    %c0_i32_0 = arith.constant 0 : i32
    %c0_i32_1 = arith.constant 0 : i32
    return %c0_i32, %c0_i32_0 : i32, i32
  }
  func.func @transform_2(%arg0: i32) -> (i32, i32) {
    %c0_i32 = arith.constant 0 : i32
    %c0_i32_0 = arith.constant 0 : i32
    return %c0_i32, %arg0 : i32, i32
  }
  func.func @transform_3(%arg0: i32) -> (i32, i32) {
    %c0_i32 = arith.constant 0 : i32
    %c0_i32_0 = arith.constant 0 : i32
    return %c0_i32, %arg0 : i32, i32
  }
}

module attributes {stable_mosaic.version = 11 : i64} {
  func.func @_tail_kernel(%arg0: i32, %arg1: memref<2x864xf32, #tpu.memory_space<vmem>>, %arg2: memref<864x16xf32, #tpu.memory_space<vmem>>, %arg3: memref<1x16xf32, #tpu.memory_space<vmem>>, %arg4: memref<16x32xf32, #tpu.memory_space<vmem>>, %arg5: memref<1x32xf32, #tpu.memory_space<vmem>>, %arg6: memref<32x2xf32, #tpu.memory_space<vmem>>, %arg7: memref<1x2xf32, #tpu.memory_space<vmem>>, %arg8: memref<2x2xf32, #tpu.memory_space<vmem>>) attributes {dimension_semantics = [#tpu.dimension_semantics<arbitrary>], iteration_bounds = array<i64: 1>, scalar_prefetch = 0 : i64, scratch_operands = 0 : i64, tpu.core_type = #tpu.core_type<tc>, window_params = [{pipeline_mode = #tpu.pipeline_mode<synchronous>, transform_indices = @transform_0, window_bounds = array<i64: 2, 864>}, {pipeline_mode = #tpu.pipeline_mode<synchronous>, transform_indices = @transform_1, window_bounds = array<i64: 864, 16>}, {pipeline_mode = #tpu.pipeline_mode<synchronous>, transform_indices = @transform_2, window_bounds = array<i64: 1, 16>}, {pipeline_mode = #tpu.pipeline_mode<synchronous>, transform_indices = @transform_3, window_bounds = array<i64: 16, 32>}, {pipeline_mode = #tpu.pipeline_mode<synchronous>, transform_indices = @transform_4, window_bounds = array<i64: 1, 32>}, {pipeline_mode = #tpu.pipeline_mode<synchronous>, transform_indices = @transform_5, window_bounds = array<i64: 32, 2>}, {pipeline_mode = #tpu.pipeline_mode<synchronous>, transform_indices = @transform_6, window_bounds = array<i64: 1, 2>}, {pipeline_mode = #tpu.pipeline_mode<synchronous>, transform_indices = @transform_7, window_bounds = array<i64: 2, 2>}]} {
    %c0 = arith.constant 0 : index
    %c0_0 = arith.constant 0 : index
    %0 = vector.load %arg1[%c0, %c0_0] : memref<2x864xf32, #tpu.memory_space<vmem>>, vector<2x864xf32>
    %c0_1 = arith.constant 0 : index
    %c0_2 = arith.constant 0 : index
    %1 = vector.load %arg2[%c0_1, %c0_2] : memref<864x16xf32, #tpu.memory_space<vmem>>, vector<864x16xf32>
    %cst = arith.constant dense<0.000000e+00> : vector<2x16xf32>
    %2 = tpu.matmul %0, %1, %cst {dimension_numbers = #tpu.dot_dimension_numbers<[1], [0], [0], [1], [0, 0, 1, 1], [], []>} : vector<2x864xf32>, vector<864x16xf32>, vector<2x16xf32> -> vector<2x16xf32>
    %c0_3 = arith.constant 0 : index
    %c0_4 = arith.constant 0 : index
    %3 = vector.load %arg3[%c0_3, %c0_4] : memref<1x16xf32, #tpu.memory_space<vmem>>, vector<1x16xf32>
    %4 = vector.broadcast %3 : vector<1x16xf32> to vector<2x16xf32>
    %5 = arith.addf %2, %4 : vector<2x16xf32>
    %cst_5 = arith.constant 0.000000e+00 : f32
    %6 = vector.broadcast %cst_5 : f32 to vector<2x16xf32>
    %7 = arith.cmpf ogt, %5, %6 : vector<2x16xf32>
    %cst_6 = arith.constant 0.000000e+00 : f32
    %8 = vector.broadcast %cst_6 : f32 to vector<2x16xf32>
    %9 = arith.minimumf %5, %8 : vector<2x16xf32>
    %10 = math.exp %9 : vector<2x16xf32>
    %cst_7 = arith.constant 1.000000e+00 : f32
    %11 = vector.broadcast %cst_7 : f32 to vector<2x16xf32>
    %12 = arith.subf %10, %11 : vector<2x16xf32>
    %13 = arith.select %7, %5, %12 : vector<2x16xi1>, vector<2x16xf32>
    %c0_8 = arith.constant 0 : index
    %c0_9 = arith.constant 0 : index
    %14 = vector.load %arg4[%c0_8, %c0_9] : memref<16x32xf32, #tpu.memory_space<vmem>>, vector<16x32xf32>
    %cst_10 = arith.constant dense<0.000000e+00> : vector<2x32xf32>
    %15 = tpu.matmul %13, %14, %cst_10 {dimension_numbers = #tpu.dot_dimension_numbers<[1], [0], [0], [1], [0, 0, 1, 1], [], []>} : vector<2x16xf32>, vector<16x32xf32>, vector<2x32xf32> -> vector<2x32xf32>
    %c0_11 = arith.constant 0 : index
    %c0_12 = arith.constant 0 : index
    %16 = vector.load %arg5[%c0_11, %c0_12] : memref<1x32xf32, #tpu.memory_space<vmem>>, vector<1x32xf32>
    %17 = vector.broadcast %16 : vector<1x32xf32> to vector<2x32xf32>
    %18 = arith.addf %15, %17 : vector<2x32xf32>
    %cst_13 = arith.constant 0.000000e+00 : f32
    %19 = vector.broadcast %cst_13 : f32 to vector<2x32xf32>
    %20 = arith.maximumf %18, %19 : vector<2x32xf32>
    %c0_14 = arith.constant 0 : index
    %c0_15 = arith.constant 0 : index
    %21 = vector.load %arg6[%c0_14, %c0_15] : memref<32x2xf32, #tpu.memory_space<vmem>>, vector<32x2xf32>
    %cst_16 = arith.constant dense<0.000000e+00> : vector<2x2xf32>
    %22 = tpu.matmul %20, %21, %cst_16 {dimension_numbers = #tpu.dot_dimension_numbers<[1], [0], [0], [1], [0, 0, 1, 1], [], []>} : vector<2x32xf32>, vector<32x2xf32>, vector<2x2xf32> -> vector<2x2xf32>
    %c0_17 = arith.constant 0 : index
    %c0_18 = arith.constant 0 : index
    %23 = vector.load %arg7[%c0_17, %c0_18] : memref<1x2xf32, #tpu.memory_space<vmem>>, vector<1x2xf32>
    %24 = vector.broadcast %23 : vector<1x2xf32> to vector<2x2xf32>
    %25 = arith.addf %22, %24 : vector<2x2xf32>
    %c0_19 = arith.constant 0 : index
    %c0_20 = arith.constant 0 : index
    %26 = vector.load %arg8[%c0_19, %c0_20] : memref<2x2xf32, #tpu.memory_space<vmem>>, vector<2x2xf32>
    tpu.vector_store %arg8[%c0_19, %c0_20], %25 {strides = array<i32>} : memref<2x2xf32, #tpu.memory_space<vmem>>, vector<2x2xf32>,
    return
  }
  func.func @transform_0(%arg0: i32) -> (i32, i32) {
    %c0_i32 = arith.constant 0 : i32
    %c0_i32_0 = arith.constant 0 : i32
    %c0_i32_1 = arith.constant 0 : i32
    return %c0_i32, %c0_i32_0 : i32, i32
  }
  func.func @transform_1(%arg0: i32) -> (i32, i32) {
    %c0_i32 = arith.constant 0 : i32
    %c0_i32_0 = arith.constant 0 : i32
    %c0_i32_1 = arith.constant 0 : i32
    return %c0_i32, %c0_i32_0 : i32, i32
  }
  func.func @transform_2(%arg0: i32) -> (i32, i32) {
    %c0_i32 = arith.constant 0 : i32
    %c0_i32_0 = arith.constant 0 : i32
    %c0_i32_1 = arith.constant 0 : i32
    return %c0_i32, %c0_i32_0 : i32, i32
  }
  func.func @transform_3(%arg0: i32) -> (i32, i32) {
    %c0_i32 = arith.constant 0 : i32
    %c0_i32_0 = arith.constant 0 : i32
    %c0_i32_1 = arith.constant 0 : i32
    return %c0_i32, %c0_i32_0 : i32, i32
  }
  func.func @transform_4(%arg0: i32) -> (i32, i32) {
    %c0_i32 = arith.constant 0 : i32
    %c0_i32_0 = arith.constant 0 : i32
    %c0_i32_1 = arith.constant 0 : i32
    return %c0_i32, %c0_i32_0 : i32, i32
  }
  func.func @transform_5(%arg0: i32) -> (i32, i32) {
    %c0_i32 = arith.constant 0 : i32
    %c0_i32_0 = arith.constant 0 : i32
    %c0_i32_1 = arith.constant 0 : i32
    return %c0_i32, %c0_i32_0 : i32, i32
  }
  func.func @transform_6(%arg0: i32) -> (i32, i32) {
    %c0_i32 = arith.constant 0 : i32
    %c0_i32_0 = arith.constant 0 : i32
    %c0_i32_1 = arith.constant 0 : i32
    return %c0_i32, %c0_i32_0 : i32, i32
  }
  func.func @transform_7(%arg0: i32) -> (i32, i32) {
    %c0_i32 = arith.constant 0 : i32
    %c0_i32_0 = arith.constant 0 : i32
    %c0_i32_1 = arith.constant 0 : i32
    return %c0_i32, %c0_i32_0 : i32, i32
  }
}

</mosaic_0001>

<llo_original>
// kernel: encoder_classifier_forward.4
$region0: #{encoder_classifier_forward.4}
  #allocation0 [shape = 'u32[]', space=smem, size = 0x4, offset = 0x4, fixed_abs, tag = 'smem constant byte address 0x4 - core index']
  #allocation1 [shape = 'u32[72,128]{1,0:T(1,128)}', space=vmem, size = 0x9000, scoped, tag = 'internal scratch']
  %s0 = inlined_call_operand.vmem [shape: bf16[8,27], index: 0, kind: input, shape index: {}]
  %s1 = inlined_call_operand.vmem [shape: f32[8,1], index: 1, kind: input, shape index: {}]
  %s2 = inlined_call_operand.vmem [shape: bf16[27,27648], index: 2, kind: input, shape index: {}]
  %s3 = inlined_call_operand.vmem [shape: bf16[8,27648], index: 3, kind: output, shape index: {}]
  %s4 = sld [smem:[#allocation0]]
  $region68: #{encoder_classifier_forward.4} parent=0
    _
  %s6 = ssub.s32 1, %s4
  %s7 = scalar_select 0, %s6, %s4
  $region1: #{encoder_classifier_forward.4} parent=0
    #allocation2 [shape = 'u8[1769472]{0}', space=vmem, size = 0x1b0000, scoped, tag = 'input window, operand 2']
    loop: start=0, step=1, limit=4
    $region2: #{encoder_classifier_forward.4} parent=1 // loop_pre_header
      _
    $region3: #{encoder_classifier_forward.4} parent=1 // loop_header
      %s9 = sphi 0, %s13
      %p10 = scmp.ge.s32.totalorder %s9, 4
      %s17 = sphi 0, %s17
      %s19 = sphi 0, %s17
      %s20 = sphi 0, %s19
      %s34 = sphi 0, %s20
      %s38 = sphi 0, %s38
      %s40 = sphi 0, %s38
      %s41 = sphi 0, %s40
      %s55 = sphi 0, %s41
      %s61 = sphi 0, %s63
      %s64 = sphi 0, %s61
      %s65 = sphi 0, %s64
      %s81 = sphi 0, %s65
      %s87 = sphi 0, %s89
      %s90 = sphi 0, %s87
      %s91 = sphi 0, %s90
      %s107 = sphi 0, %s91
    $region4: #{encoder_classifier_forward.4} parent=1 // loop_header_branch
      %12 = sbr.rel (%p10) target = $region8
    $region5: #{encoder_classifier_forward.4} parent=1 // loop_body
      %s14 = ssub.s32 %s9, 1
      %s15 = ssub.s32 %s9, 2
      %s16 = sadd.s32 %s9, 1
      %s18 = sadd.s32 %s17, 1
      %p21 = scmp.eq.s32.totalorder %s9, 1
      %p22 = scmp.ne.s32.totalorder %s17, %s19
      %p23 = scmp.eq.s32.totalorder %s9, 0
      %p24 = por %p22, %p23
      %p25 = scmp.ne.s32.totalorder %s17, %s19
      %p26 = scmp.eq.s32.totalorder %s14, 1
      %p27 = por %p25, %p26
      %p28 = scmp.ne.s32.totalorder %s19, %s20
      %p29 = scmp.eq.s32.totalorder %s14, 0
      %p30 = por %p28, %p29
      %p31 = scmp.ne.s32.totalorder %s19, %s20
      %p32 = scmp.eq.s32.totalorder %s15, 1
      %p33 = por %p31, %p32
      %p35 = scmp.ne.s32.totalorder %s20, %s34
      %p36 = scmp.eq.s32.totalorder %s15, 0
      %p37 = por %p35, %p36
      %s39 = sadd.s32 %s38, 1
      %p42 = scmp.eq.s32.totalorder %s9, 1
      %p43 = scmp.ne.s32.totalorder %s38, %s40
      %p44 = scmp.eq.s32.totalorder %s9, 0
      %p45 = por %p43, %p44
      %p46 = scmp.ne.s32.totalorder %s38, %s40
      %p47 = scmp.eq.s32.totalorder %s14, 1
      %p48 = por %p46, %p47
      %p49 = scmp.ne.s32.totalorder %s40, %s41
      %p50 = scmp.eq.s32.totalorder %s14, 0
      %p51 = por %p49, %p50
      %p52 = scmp.ne.s32.totalorder %s40, %s41
      %p53 = scmp.eq.s32.totalorder %s15, 1
      %p54 = por %p52, %p53
      %p56 = scmp.ne.s32.totalorder %s41, %s55
      %p57 = scmp.eq.s32.totalorder %s15, 0
      %p58 = por %p56, %p57
      %s59 = ssub.s32 %s9, %s16
      %p60 = scmp.eq.s32.totalorder %s59, 0
      %s62 = sadd.s32 %s61, 1
      %s63 = scalar_select %p60, %s61, %s62
      %p66 = pneg %p60
      %p67 = scmp.eq.s32.totalorder %s9, 1
      %p68 = por %p66, %p67
      %p69 = scmp.ne.s32.totalorder %s61, %s64
      %p70 = scmp.eq.s32.totalorder %s9, 0
      %p71 = por %p69, %p70
      %p72 = scmp.ne.s32.totalorder %s61, %s64
      %p73 = scmp.eq.s32.totalorder %s14, 1
      %p74 = por %p72, %p73
      %p75 = scmp.ne.s32.totalorder %s64, %s65
      %p76 = scmp.eq.s32.totalorder %s14, 0
      %p77 = por %p75, %p76
      %p78 = scmp.ne.s32.totalorder %s64, %s65
      %p79 = scmp.eq.s32.totalorder %s15, 1
      %p80 = por %p78, %p79
      %p82 = scmp.ne.s32.totalorder %s65, %s81
      %p83 = scmp.eq.s32.totalorder %s15, 0
      %p84 = por %p82, %p83
      %s85 = ssub.s32 %s9, %s16
      %p86 = scmp.eq.s32.totalorder %s85, 0
      %s88 = sadd.s32 %s87, 1
      %s89 = scalar_select %p86, %s87, %s88
      %p92 = pneg %p86
      %p93 = scmp.eq.s32.totalorder %s9, 1
      %p94 = por %p92, %p93
      %p95 = scmp.ne.s32.totalorder %s87, %s90
      %p96 = scmp.eq.s32.totalorder %s9, 0
      %p97 = por %p95, %p96
      %p98 = scmp.ne.s32.totalorder %s87, %s90
      %p99 = scmp.eq.s32.totalorder %s14, 1
      %p100 = por %p98, %p99
      %p101 = scmp.ne.s32.totalorder %s90, %s91
      %p102 = scmp.eq.s32.totalorder %s14, 0
      %p103 = por %p101, %p102
      %p104 = scmp.ne.s32.totalorder %s90, %s91
      %p105 = scmp.eq.s32.totalorder %s15, 1
      %p106 = por %p104, %p105
      %p108 = scmp.ne.s32.totalorder %s91, %s107
      %p109 = scmp.eq.s32.totalorder %s15, 0
      %p110 = por %p108, %p109
      %p111 = scmp.le.s32.totalorder 1, %s9
      %p112 = scmp.lt.s32.totalorder %s9, 3
      %p113 = pnand %p111, %p112
      %p114 = pneg %p113
      // Predicated region
      $region9: #{encoder_classifier_forward.4} parent=5 // pred_check
        _
      $region10: #{encoder_classifier_forward.4} parent=5 // pred_check_branch
        %116 = sbr.rel (%p113) target = $region12
      $region11: #{encoder_classifier_forward.4} parent=5 // pred_region
        %s117 = ssub.s32 %s9, 1
        // Predicated region
        $region13: #{encoder_classifier_forward.4} parent=11 // pred_check
          %p118 = pneg %p30
        $region14: #{encoder_classifier_forward.4} parent=11 // pred_check_branch
          %120 = sbr.rel (%p118) target = $region16
        $region15: #{encoder_classifier_forward.4} parent=11 // pred_region
          _
        $region16: #{encoder_classifier_forward.4} parent=11 // pred_fallthru
          _
        // Predicated region
        $region17: #{encoder_classifier_forward.4} parent=11 // pred_check
          %p121 = pneg %p51
        $region18: #{encoder_classifier_forward.4} parent=11 // pred_check_branch
          %123 = sbr.rel (%p121) target = $region20
        $region19: #{encoder_classifier_forward.4} parent=11 // pred_region
          _
        $region20: #{encoder_classifier_forward.4} parent=11 // pred_fallthru
          _
      $region12: #{encoder_classifier_forward.4} parent=5 // pred_fallthru
        _
      %p124 = scmp.lt.s32.totalorder %s9, 2
      // Predicated region
      $region21: #{encoder_classifier_forward.4} parent=5 // pred_check
        %p125 = pneg %p124
      $region22: #{encoder_classifier_forward.4} parent=5 // pred_check_branch
        %127 = sbr.rel (%p125) target = $region24
      $region23: #{encoder_classifier_forward.4} parent=5 // pred_region
        // Predicated region
        $region25: #{encoder_classifier_forward.4} parent=23 // pred_check
          %p128 = pneg %p71
        $region26: #{encoder_classifier_forward.4} parent=23 // pred_check_branch
          %130 = sbr.rel (%p128) target = $region28
        $region27: #{encoder_classifier_forward.4} parent=23 // pred_region
          %s131 = sand.u32 %s61, 1
          %s132 = sand.u32 %s61, 1
          %s133 = smul.addr %s132, 1728
          %s134 = scalar_lea.vmem [#allocation2], %s133
          %s135 = smul.u32 108, %s9
          %s136 = smul.addr %s135, 4
          %s137 = scalar_lea.vmem %s2, %s136
          // Predicated region
          $region29: #{encoder_classifier_forward.4} parent=27 // pred_check
            _
          $region30: #{encoder_classifier_forward.4} parent=27 // pred_check_branch
            %139 = sbr.rel (0) target = $region32
          $region31: #{encoder_classifier_forward.4} parent=27 // pred_region
            // Predicated region
            $region33: #{encoder_classifier_forward.4} parent=31 // pred_check
              _
            $region34: #{encoder_classifier_forward.4} parent=31 // pred_check_branch
              %141 = sbr.rel (0) target = $region36
            $region35: #{encoder_classifier_forward.4} parent=31 // pred_region
              loop: start=0, step=1, limit=1
              $region37: #{encoder_classifier_forward.4} parent=35 // loop_pre_header
                _
              $region38: #{encoder_classifier_forward.4} parent=35 // loop_header
                %s143 = sphi 0, %s147
                %p144 = scmp.ge.s32.totalorder %s143, 1
                %s148 = sphi %s137, %s137
                %s149 = sphi %s134, %s134
              $region39: #{encoder_classifier_forward.4} parent=35 // loop_header_branch
                %146 = sbr.rel (%p144) target = $region43
              $region40: #{encoder_classifier_forward.4} parent=35 // loop_body
                %v150 = vld [vmem:[%s148] sm:$0xff]
                %151 = vst [vmem:[%s149] sm:$0xff] %v150
                %v152 = vld [vmem:[%s148 + $0x8] sm:$0xff]
                %153 = vst [vmem:[%s149 + $0x8] sm:$0xff] %v152
                %v154 = vld [vmem:[%s148 + $0x10] sm:$0xff]
                %155 = vst [vmem:[%s149 + $0x10] sm:$0xff] %v154
                %v156 = vld [vmem:[%s148 + $0x18] sm:$0xff]
                %157 = vst [vmem:[%s149 + $0x18] sm:$0xff] %v156
                %v158 = vld [vmem:[%s148 + $0x20] sm:$0xff]
                %159 = vst [vmem:[%s149 + $0x20] sm:$0xff] %v158
                %v160 = vld [vmem:[%s148 + $0x28] sm:$0xff]
                %161 = vst [vmem:[%s149 + $0x28] sm:$0xff] %v160
                %v162 = vld [vmem:[%s148 + $0x30] sm:$0xff]
                %163 = vst [vmem:[%s149 + $0x30] sm:$0xff] %v162
                %v164 = vld [vmem:[%s148 + $0x38] sm:$0xff]
                %165 = vst [vmem:[%s149 + $0x38] sm:$0xff] %v164
                %v166 = vld [vmem:[%s148 + $0x40] sm:$0xff]
                %167 = vst [vmem:[%s149 + $0x40] sm:$0xff] %v166
                %v168 = vld [vmem:[%s148 + $0x48] sm:$0xff]
                %169 = vst [vmem:[%s149 + $0x48] sm:$0xff] %v168
                %v170 = vld [vmem:[%s148 + $0x50] sm:$0xff]
                %171 = vst [vmem:[%s149 + $0x50] sm:$0xff] %v170
                %v172 = vld [vmem:[%s148 + $0x58] sm:$0xff]
                %173 = vst [vmem:[%s149 + $0x58] sm:$0xff] %v172
                %v174 = vld [vmem:[%s148 + $0x60] sm:$0xff]
                %175 = vst [vmem:[%s149 + $0x60] sm:$0xff] %v174
                %v176 = vld [vmem:[%s148 + $0x68] sm:$0xff]
                %177 = vst [vmem:[%s149 + $0x68] sm:$0xff] %v176
                %v178 = vld [vmem:[%s148 + $0x70] sm:$0xff]
                %179 = vst [vmem:[%s149 + $0x70] sm:$0xff] %v178
                %v180 = vld [vmem:[%s148 + $0x78] sm:$0xff]
                %181 = vst [vmem:[%s149 + $0x78] sm:$0xff] %v180
                %v182 = vld [vmem:[%s148 + $0x80] sm:$0xff]
                %183 = vst [vmem:[%s149 + $0x80] sm:$0xff] %v182
                %v184 = vld [vmem:[%s148 + $0x88] sm:$0xff]
                %185 = vst [vmem:[%s149 + $0x88] sm:$0xff] %v184
                %v186 = vld [vmem:[%s148 + $0x90] sm:$0xff]
                %187 = vst [vmem:[%s149 + $0x90] sm:$0xff] %v186
                %v188 = vld [vmem:[%s148 + $0x98] sm:$0xff]
                %189 = vst [vmem:[%s149 + $0x98] sm:$0xff] %v188
                %v190 = vld [vmem:[%s148 + $0xa0] sm:$0xff]
                %191 = vst [vmem:[%s149 + $0xa0] sm:$0xff] %v190
                %v192 = vld [vmem:[%s148 + $0xa8] sm:$0xff]
                %193 = vst [vmem:[%s149 + $0xa8] sm:$0xff] %v192
                %v194 = vld [vmem:[%s148 + $0xb0] sm:$0xff]
                %195 = vst [vmem:[%s149 + $0xb0] sm:$0xff] %v194
                %v196 = vld [vmem:[%s148 + $0xb8] sm:$0xff]
                %197 = vst [vmem:[%s149 + $0xb8] sm:$0xff] %v196
                %v198 = vld [vmem:[%s148 + $0xc0] sm:$0xff]
                %199 = vst [vmem:[%s149 + $0xc0] sm:$0xff] %v198
                %v200 = vld [vmem:[%s148 + $0xc8] sm:$0xff]
                %201 = vst [vmem:[%s149 + $0xc8] sm:$0xff] %v200
                %v202 = vld [vmem:[%s148 + $0xd0] sm:$0xff]
                %203 = vst [vmem:[%s149 + $0xd0] sm:$0xff] %v202
                %v204 = vld [vmem:[%s148 + $0xd8] sm:$0xff]
                %205 = vst [vmem:[%s149 + $0xd8] sm:$0xff] %v204
                %v206 = vld [vmem:[%s148 + $0xe0] sm:$0xff]
                %207 = vst [vmem:[%s149 + $0xe0] sm:$0xff] %v206
                %v208 = vld [vmem:[%s148 + $0xe8] sm:$0xff]
                %209 = vst [vmem:[%s149 + $0xe8] sm:$0xff] %v208
                %v210 = vld [vmem:[%s148 + $0xf0] sm:$0xff]
                %211 = vst [vmem:[%s149 + $0xf0] sm:$0xff] %v210
                %v212 = vld [vmem:[%s148 + $0xf8] sm:$0xff]
                %213 = vst [vmem:[%s149 + $0xf8] sm:$0xff] %v212
                %v214 = vld [vmem:[%s148 + $0x100] sm:$0xff]
                %215 = vst [vmem:[%s149 + $0x100] sm:$0xff] %v214
                %v216 = vld [vmem:[%s148 + $0x108] sm:$0xff]
                %217 = vst [vmem:[%s149 + $0x108] sm:$0xff] %v216
                %v218 = vld [vmem:[%s148 + $0x110] sm:$0xff]
                %219 = vst [vmem:[%s149 + $0x110] sm:$0xff] %v218
                %v220 = vld [vmem:[%s148 + $0x118] sm:$0xff]
                %221 = vst [vmem:[%s149 + $0x118] sm:$0xff] %v220
                %v222 = vld [vmem:[%s148 + $0x120] sm:$0xff]
                %223 = vst [vmem:[%s149 + $0x120] sm:$0xff] %v222
                %v224 = vld [vmem:[%s148 + $0x128] sm:$0xff]
                %225 = vst [vmem:[%s149 + $0x128] sm:$0xff] %v224
                %v226 = vld [vmem:[%s148 + $0x130] sm:$0xff]
                %227 = vst [vmem:[%s149 + $0x130] sm:$0xff] %v226
                %v228 = vld [vmem:[%s148 + $0x138] sm:$0xff]
                %229 = vst [vmem:[%s149 + $0x138] sm:$0xff] %v228
                %v230 = vld [vmem:[%s148 + $0x140] sm:$0xff]
                %231 = vst [vmem:[%s149 + $0x140] sm:$0xff] %v230
                %v232 = vld [vmem:[%s148 + $0x148] sm:$0xff]
                %233 = vst [vmem:[%s149 + $0x148] sm:$0xff] %v232
                %v234 = vld [vmem:[%s148 + $0x150] sm:$0xff]
                %235 = vst [vmem:[%s149 + $0x150] sm:$0xff] %v234
                %v236 = vld [vmem:[%s148 + $0x158] sm:$0xff]
                %237 = vst [vmem:[%s149 + $0x158] sm:$0xff] %v236
                %v238 = vld [vmem:[%s148 + $0x160] sm:$0xff]
                %239 = vst [vmem:[%s149 + $0x160] sm:$0xff] %v238
                %v240 = vld [vmem:[%s148 + $0x168] sm:$0xff]
                %241 = vst [vmem:[%s149 + $0x168] sm:$0xff] %v240
                %v242 = vld [vmem:[%s148 + $0x170] sm:$0xff]
                %243 = vst [vmem:[%s149 + $0x170] sm:$0xff] %v242
                %v244 = vld [vmem:[%s148 + $0x178] sm:$0xff]
                %245 = vst [vmem:[%s149 + $0x178] sm:$0xff] %v244
                %v246 = vld [vmem:[%s148 + $0x180] sm:$0xff]
                %247 = vst [vmem:[%s149 + $0x180] sm:$0xff] %v246
                %v248 = vld [vmem:[%s148 + $0x188] sm:$0xff]
                %249 = vst [vmem:[%s149 + $0x188] sm:$0xff] %v248
                %v250 = vld [vmem:[%s148 + $0x190] sm:$0xff]
                %251 = vst [vmem:[%s149 + $0x190] sm:$0xff] %v250
                %v252 = vld [vmem:[%s148 + $0x198] sm:$0xff]
                %253 = vst [vmem:[%s149 + $0x198] sm:$0xff] %v252
                %v254 = vld [vmem:[%s148 + $0x1a0] sm:$0xff]
                %255 = vst [vmem:[%s149 + $0x1a0] sm:$0xff] %v254
                %v256 = vld [vmem:[%s148 + $0x1a8] sm:$0xff]
                %257 = vst [vmem:[%s149 + $0x1a8] sm:$0xff] %v256
                %v258 = vld [vmem:[%s148 + $0x360] sm:$0xff]
                %259 = vst [vmem:[%s149 + $0x1b0] sm:$0xff] %v258
                %v260 = vld [vmem:[%s148 + $0x368] sm:$0xff]
                %261 = vst [vmem:[%s149 + $0x1b8] sm:$0xff] %v260
                %v262 = vld [vmem:[%s148 + $0x370] sm:$0xff]
                %263 = vst [vmem:[%s149 + $0x1c0] sm:$0xff] %v262
                %v264 = vld [vmem:[%s148 + $0x378] sm:$0xff]
                %265 = vst [vmem:[%s149 + $0x1c8] sm:$0xff] %v264
                %v266 = vld [vmem:[%s148 + $0x380] sm:$0xff]
                %267 = vst [vmem:[%s149 + $0x1d0] sm:$0xff] %v266
                %v268 = vld [vmem:[%s148 + $0x388] sm:$0xff]
                %269 = vst [vmem:[%s149 + $0x1d8] sm:$0xff] %v268
                %v270 = vld [vmem:[%s148 + $0x390] sm:$0xff]
                %271 = vst [vmem:[%s149 + $0x1e0] sm:$0xff] %v270
                %v272 = vld [vmem:[%s148 + $0x398] sm:$0xff]
                %273 = vst [vmem:[%s149 + $0x1e8] sm:$0xff] %v272
                %v274 = vld [vmem:[%s148 + $0x3a0] sm:$0xff]
                %275 = vst [vmem:[%s149 + $0x1f0] sm:$0xff] %v274
                %v276 = vld [vmem:[%s148 + $0x3a8] sm:$0xff]
                %277 = vst [vmem:[%s149 + $0x1f8] sm:$0xff] %v276
                %v278 = vld [vmem:[%s148 + $0x3b0] sm:$0xff]
                %279 = vst [vmem:[%s149 + $0x200] sm:$0xff] %v278
                %v280 = vld [vmem:[%s148 + $0x3b8] sm:$0xff]
                %281 = vst [vmem:[%s149 + $0x208] sm:$0xff] %v280
                %v282 = vld [vmem:[%s148 + $0x3c0] sm:$0xff]
                %283 = vst [vmem:[%s149 + $0x210] sm:$0xff] %v282
                %v284 = vld [vmem:[%s148 + $0x3c8] sm:$0xff]
                %285 = vst [vmem:[%s149 + $0x218] sm:$0xff] %v284
                %v286 = vld [vmem:[%s148 + $0x3d0] sm:$0xff]
                %287 = vst [vmem:[%s149 + $0x220] sm:$0xff] %v286
                %v288 = vld [vmem:[%s148 + $0x3d8] sm:$0xff]
                %289 = vst [vmem:[%s149 + $0x228] sm:$0xff] %v288
                %v290 = vld [vmem:[%s148 + $0x3e0] sm:$0xff]
                %291 = vst [vmem:[%s149 + $0x230] sm:$0xff] %v290
                %v292 = vld [vmem:[%s148 + $0x3e8] sm:$0xff]
                %293 = vst [vmem:[%s149 + $0x238] sm:$0xff] %v292
                %v294 = vld [vmem:[%s148 + $0x3f0] sm:$0xff]
                %295 = vst [vmem:[%s149 + $0x240] sm:$0xff] %v294
                %v296 = vld [vmem:[%s148 + $0x3f8] sm:$0xff]
                %297 = vst [vmem:[%s149 + $0x248] sm:$0xff] %v296
                %v298 = vld [vmem:[%s148 + $0x400] sm:$0xff]
                %299 = vst [vmem:[%s149 + $0x250] sm:$0xff] %v298
                %v300 = vld [vmem:[%s148 + $0x408] sm:$0xff]
                %301 = vst [vmem:[%s149 + $0x258] sm:$0xff] %v300
                %v302 = vld [vmem:[%s148 + $0x410] sm:$0xff]
                %303 = vst [vmem:[%s149 + $0x260] sm:$0xff] %v302
                %v304 = vld [vmem:[%s148 + $0x418] sm:$0xff]
                %305 = vst [vmem:[%s149 + $0x268] sm:$0xff] %v304
                %v306 = vld [vmem:[%s148 + $0x420] sm:$0xff]
                %307 = vst [vmem:[%s149 + $0x270] sm:$0xff] %v306
                %v308 = vld [vmem:[%s148 + $0x428] sm:$0xff]
                %309 = vst [vmem:[%s149 + $0x278] sm:$0xff] %v308
                %v310 = vld [vmem:[%s148 + $0x430] sm:$0xff]
                %311 = vst [vmem:[%s149 + $0x280] sm:$0xff] %v310
                %v312 = vld [vmem:[%s148 + $0x438] sm:$0xff]
                %313 = vst [vmem:[%s149 + $0x288] sm:$0xff] %v312
                %v314 = vld [vmem:[%s148 + $0x440] sm:$0xff]
                %315 = vst [vmem:[%s149 + $0x290] sm:$0xff] %v314
                %v316 = vld [vmem:[%s148 + $0x448] sm:$0xff]
                %317 = vst [vmem:[%s149 + $0x298] sm:$0xff] %v316
                %v318 = vld [vmem:[%s148 + $0x450] sm:$0xff]
                %319 = vst [vmem:[%s149 + $0x2a0] sm:$0xff] %v318
                %v320 = vld [vmem:[%s148 + $0x458] sm:$0xff]
                %321 = vst [vmem:[%s149 + $0x2a8] sm:$0xff] %v320
                %v322 = vld [vmem:[%s148 + $0x460] sm:$0xff]
                %323 = vst [vmem:[%s149 + $0x2b0] sm:$0xff] %v322
                %v324 = vld [vmem:[%s148 + $0x468] sm:$0xff]
                %325 = vst [vmem:[%s149 + $0x2b8] sm:$0xff] %v324
                %v326 = vld [vmem:[%s148 + $0x470] sm:$0xff]
                %327 = vst [vmem:[%s149 + $0x2c0] sm:$0xff] %v326
                %v328 = vld [vmem:[%s148 + $0x478] sm:$0xff]
                %329 = vst [vmem:[%s149 + $0x2c8] sm:$0xff] %v328
                %v330 = vld [vmem:[%s148 + $0x480] sm:$0xff]
                %331 = vst [vmem:[%s149 + $0x2d0] sm:$0xff] %v330
                %v332 = vld [vmem:[%s148 + $0x488] sm:$0xff]
                %333 = vst [vmem:[%s149 + $0x2d8] sm:$0xff] %v332
                %v334 = vld [vmem:[%s148 + $0x490] sm:$0xff]
                %335 = vst [vmem:[%s149 + $0x2e0] sm:$0xff] %v334
                %v336 = vld [vmem:[%s148 + $0x498] sm:$0xff]
                %337 = vst [vmem:[%s149 + $0x2e8] sm:$0xff] %v336
                %v338 = vld [vmem:[%s148 + $0x4a0] sm:$0xff]
                %339 = vst [vmem:[%s149 + $0x2f0] sm:$0xff] %v338
                %v340 = vld [vmem:[%s148 + $0x4a8] sm:$0xff]
                %341 = vst [vmem:[%s149 + $0x2f8] sm:$0xff] %v340
                %v342 = vld [vmem:[%s148 + $0x4b0] sm:$0xff]
                %343 = vst [vmem:[%s149 + $0x300] sm:$0xff] %v342
                %v344 = vld [vmem:[%s148 + $0x4b8] sm:$0xff]
                %345 = vst [vmem:[%s149 + $0x308] sm:$0xff] %v344
                %v346 = vld [vmem:[%s148 + $0x4c0] sm:$0xff]
                %347 = vst [vmem:[%s149 + $0x310] sm:$0xff] %v346
                %v348 = vld [vmem:[%s148 + $0x4c8] sm:$0xff]
                %349 = vst [vmem:[%s149 + $0x318] sm:$0xff] %v348
                %v350 = vld [vmem:[%s148 + $0x4d0] sm:$0xff]
                %351 = vst [vmem:[%s149 + $0x320] sm:$0xff] %v350
                %v352 = vld [vmem:[%s148 + $0x4d8] sm:$0xff]
                %353 = vst [vmem:[%s149 + $0x328] sm:$0xff] %v352
                %v354 = vld [vmem:[%s148 + $0x4e0] sm:$0xff]
                %355 = vst [vmem:[%s149 + $0x330] sm:$0xff] %v354
                %v356 = vld [vmem:[%s148 + $0x4e8] sm:$0xff]
                %357 = vst [vmem:[%s149 + $0x338] sm:$0xff] %v356
                %v358 = vld [vmem:[%s148 + $0x4f0] sm:$0xff]
                %359 = vst [vmem:[%s149 + $0x340] sm:$0xff] %v358
                %v360 = vld [vmem:[%s148 + $0x4f8] sm:$0xff]
                %361 = vst [vmem:[%s149 + $0x348] sm:$0xff] %v360
                %v362 = vld [vmem:[%s148 + $0x500] sm:$0xff]
                %363 = vst [vmem:[%s149 + $0x350] sm:$0xff] %v362
                %v364 = vld [vmem:[%s148 + $0x508] sm:$0xff]
                %365 = vst [vmem:[%s149 + $0x358] sm:$0xff] %v364
                %v366 = vld [vmem:[%s148 + $0x6c0] sm:$0xff]
                %367 = vst [vmem:[%s149 + $0x360] sm:$0xff] %v366
                %v368 = vld [vmem:[%s148 + $0x6c8] sm:$0xff]
                %369 = vst [vmem:[%s149 + $0x368] sm:$0xff] %v368
                %v370 = vld [vmem:[%s148 + $0x6d0] sm:$0xff]
                %371 = vst [vmem:[%s149 + $0x370] sm:$0xff] %v370
                %v372 = vld [vmem:[%s148 + $0x6d8] sm:$0xff]
                %373 = vst [vmem:[%s149 + $0x378] sm:$0xff] %v372
                %v374 = vld [vmem:[%s148 + $0x6e0] sm:$0xff]
                %375 = vst [vmem:[%s149 + $0x380] sm:$0xff] %v374
                %v376 = vld [vmem:[%s148 + $0x6e8] sm:$0xff]
                %377 = vst [vmem:[%s149 + $0x388] sm:$0xff] %v376
                %v378 = vld [vmem:[%s148 + $0x6f0] sm:$0xff]
                %379 = vst [vmem:[%s149 + $0x390] sm:$0xff] %v378
                %v380 = vld [vmem:[%s148 + $0x6f8] sm:$0xff]
                %381 = vst [vmem:[%s149 + $0x398] sm:$0xff] %v380
                %v382 = vld [vmem:[%s148 + $0x700] sm:$0xff]
                %383 = vst [vmem:[%s149 + $0x3a0] sm:$0xff] %v382
                %v384 = vld [vmem:[%s148 + $0x708] sm:$0xff]
                %385 = vst [vmem:[%s149 + $0x3a8] sm:$0xff] %v384
                %v386 = vld [vmem:[%s148 + $0x710] sm:$0xff]
                %387 = vst [vmem:[%s149 + $0x3b0] sm:$0xff] %v386
                %v388 = vld [vmem:[%s148 + $0x718] sm:$0xff]
                %389 = vst [vmem:[%s149 + $0x3b8] sm:$0xff] %v388
                %v390 = vld [vmem:[%s148 + $0x720] sm:$0xff]
                %391 = vst [vmem:[%s149 + $0x3c0] sm:$0xff] %v390
                %v392 = vld [vmem:[%s148 + $0x728] sm:$0xff]
                %393 = vst [vmem:[%s149 + $0x3c8] sm:$0xff] %v392
                %v394 = vld [vmem:[%s148 + $0x730] sm:$0xff]
                %395 = vst [vmem:[%s149 + $0x3d0] sm:$0xff] %v394
                %v396 = vld [vmem:[%s148 + $0x738] sm:$0xff]
                %397 = vst [vmem:[%s149 + $0x3d8] sm:$0xff] %v396
                %v398 = vld [vmem:[%s148 + $0x740] sm:$0xff]
                %399 = vst [vmem:[%s149 + $0x3e0] sm:$0xff] %v398
                %v400 = vld [vmem:[%s148 + $0x748] sm:$0xff]
                %401 = vst [vmem:[%s149 + $0x3e8] sm:$0xff] %v400
                %v402 = vld [vmem:[%s148 + $0x750] sm:$0xff]
                %403 = vst [vmem:[%s149 + $0x3f0] sm:$0xff] %v402
                %v404 = vld [vmem:[%s148 + $0x758] sm:$0xff]
                %405 = vst [vmem:[%s149 + $0x3f8] sm:$0xff] %v404
                %v406 = vld [vmem:[%s148 + $0x760] sm:$0xff]
                %407 = vst [vmem:[%s149 + $0x400] sm:$0xff] %v406
                %v408 = vld [vmem:[%s148 + $0x768] sm:$0xff]
                %409 = vst [vmem:[%s149 + $0x408] sm:$0xff] %v408
                %v410 = vld [vmem:[%s148 + $0x770] sm:$0xff]
                %411 = vst [vmem:[%s149 + $0x410] sm:$0xff] %v410
                %v412 = vld [vmem:[%s148 + $0x778] sm:$0xff]
                %413 = vst [vmem:[%s149 + $0x418] sm:$0xff] %v412
                %v414 = vld [vmem:[%s148 + $0x780] sm:$0xff]
                %415 = vst [vmem:[%s149 + $0x420] sm:$0xff] %v414
                %v416 = vld [vmem:[%s148 + $0x788] sm:$0xff]
                %417 = vst [vmem:[%s149 + $0x428] sm:$0xff] %v416
                %v418 = vld [vmem:[%s148 + $0x790] sm:$0xff]
                %419 = vst [vmem:[%s149 + $0x430] sm:$0xff] %v418
                %v420 = vld [vmem:[%s148 + $0x798] sm:$0xff]
                %421 = vst [vmem:[%s149 + $0x438] sm:$0xff] %v420
                %v422 = vld [vmem:[%s148 + $0x7a0] sm:$0xff]
                %423 = vst [vmem:[%s149 + $0x440] sm:$0xff] %v422
                %v424 = vld [vmem:[%s148 + $0x7a8] sm:$0xff]
                %425 = vst [vmem:[%s149 + $0x448] sm:$0xff] %v424
                %v426 = vld [vmem:[%s148 + $0x7b0] sm:$0xff]
                %427 = vst [vmem:[%s149 + $0x450] sm:$0xff] %v426
                %v428 = vld [vmem:[%s148 + $0x7b8] sm:$0xff]
                %429 = vst [vmem:[%s149 + $0x458] sm:$0xff] %v428
                %v430 = vld [vmem:[%s148 + $0x7c0] sm:$0xff]
                %431 = vst [vmem:[%s149 + $0x460] sm:$0xff] %v430
                %v432 = vld [vmem:[%s148 + $0x7c8] sm:$0xff]
                %433 = vst [vmem:[%s149 + $0x468] sm:$0xff] %v432
                %v434 = vld [vmem:[%s148 + $0x7d0] sm:$0xff]
                %435 = vst [vmem:[%s149 + $0x470] sm:$0xff] %v434
                %v436 = vld [vmem:[%s148 + $0x7d8] sm:$0xff]
                %437 = vst [vmem:[%s149 + $0x478] sm:$0xff] %v436
                %v438 = vld [vmem:[%s148 + $0x7e0] sm:$0xff]
                %439 = vst [vmem:[%s149 + $0x480] sm:$0xff] %v438
                %v440 = vld [vmem:[%s148 + $0x7e8] sm:$0xff]
                %441 = vst [vmem:[%s149 + $0x488] sm:$0xff] %v440
                %v442 = vld [vmem:[%s148 + $0x7f0] sm:$0xff]
                %443 = vst [vmem:[%s149 + $0x490] sm:$0xff] %v442
                %v444 = vld [vmem:[%s148 + $0x7f8] sm:$0xff]
                %445 = vst [vmem:[%s149 + $0x498] sm:$0xff] %v444
                %v446 = vld [vmem:[%s148 + $0x800] sm:$0xff]
                %447 = vst [vmem:[%s149 + $0x4a0] sm:$0xff] %v446
                %v448 = vld [vmem:[%s148 + $0x808] sm:$0xff]
                %449 = vst [vmem:[%s149 + $0x4a8] sm:$0xff] %v448
                %v450 = vld [vmem:[%s148 + $0x810] sm:$0xff]
                %451 = vst [vmem:[%s149 + $0x4b0] sm:$0xff] %v450
                %v452 = vld [vmem:[%s148 + $0x818] sm:$0xff]
                %453 = vst [vmem:[%s149 + $0x4b8] sm:$0xff] %v452
                %v454 = vld [vmem:[%s148 + $0x820] sm:$0xff]
                %455 = vst [vmem:[%s149 + $0x4c0] sm:$0xff] %v454
                %v456 = vld [vmem:[%s148 + $0x828] sm:$0xff]
                %457 = vst [vmem:[%s149 + $0x4c8] sm:$0xff] %v456
                %v458 = vld [vmem:[%s148 + $0x830] sm:$0xff]
                %459 = vst [vmem:[%s149 + $0x4d0] sm:$0xff] %v458
                %v460 = vld [vmem:[%s148 + $0x838] sm:$0xff]
                %461 = vst [vmem:[%s149 + $0x4d8] sm:$0xff] %v460
                %v462 = vld [vmem:[%s148 + $0x840] sm:$0xff]
                %463 = vst [vmem:[%s149 + $0x4e0] sm:$0xff] %v462
                %v464 = vld [vmem:[%s148 + $0x848] sm:$0xff]
                %465 = vst [vmem:[%s149 + $0x4e8] sm:$0xff] %v464
                %v466 = vld [vmem:[%s148 + $0x850] sm:$0xff]
                %467 = vst [vmem:[%s149 + $0x4f0] sm:$0xff] %v466
                %v468 = vld [vmem:[%s148 + $0x858] sm:$0xff]
                %469 = vst [vmem:[%s149 + $0x4f8] sm:$0xff] %v468
                %v470 = vld [vmem:[%s148 + $0x860] sm:$0xff]
                %471 = vst [vmem:[%s149 + $0x500] sm:$0xff] %v470
                %v472 = vld [vmem:[%s148 + $0x868] sm:$0xff]
                %473 = vst [vmem:[%s149 + $0x508] sm:$0xff] %v472
                %v474 = vld [vmem:[%s148 + $0xa20] sm:$0xff]
                %475 = vst [vmem:[%s149 + $0x510] sm:$0xff] %v474
                %v476 = vld [vmem:[%s148 + $0xa28] sm:$0xff]
                %477 = vst [vmem:[%s149 + $0x518] sm:$0xff] %v476
                %v478 = vld [vmem:[%s148 + $0xa30] sm:$0xff]
                %479 = vst [vmem:[%s149 + $0x520] sm:$0xff] %v478
                %v480 = vld [vmem:[%s148 + $0xa38] sm:$0xff]
                %481 = vst [vmem:[%s149 + $0x528] sm:$0xff] %v480
                %v482 = vld [vmem:[%s148 + $0xa40] sm:$0xff]
                %483 = vst [vmem:[%s149 + $0x530] sm:$0xff] %v482
                %v484 = vld [vmem:[%s148 + $0xa48] sm:$0xff]
                %485 = vst [vmem:[%s149 + $0x538] sm:$0xff] %v484
                %v486 = vld [vmem:[%s148 + $0xa50] sm:$0xff]
                %487 = vst [vmem:[%s149 + $0x540] sm:$0xff] %v486
                %v488 = vld [vmem:[%s148 + $0xa58] sm:$0xff]
                %489 = vst [vmem:[%s149 + $0x548] sm:$0xff] %v488
                %v490 = vld [vmem:[%s148 + $0xa60] sm:$0xff]
                %491 = vst [vmem:[%s149 + $0x550] sm:$0xff] %v490
                %v492 = vld [vmem:[%s148 + $0xa68] sm:$0xff]
                %493 = vst [vmem:[%s149 + $0x558] sm:$0xff] %v492
                %v494 = vld [vmem:[%s148 + $0xa70] sm:$0xff]
                %495 = vst [vmem:[%s149 + $0x560] sm:$0xff] %v494
                %v496 = vld [vmem:[%s148 + $0xa78] sm:$0xff]
                %497 = vst [vmem:[%s149 + $0x568] sm:$0xff] %v496
                %v498 = vld [vmem:[%s148 + $0xa80] sm:$0xff]
                %499 = vst [vmem:[%s149 + $0x570] sm:$0xff] %v498
                %v500 = vld [vmem:[%s148 + $0xa88] sm:$0xff]
                %501 = vst [vmem:[%s149 + $0x578] sm:$0xff] %v500
                %v502 = vld [vmem:[%s148 + $0xa90] sm:$0xff]
                %503 = vst [vmem:[%s149 + $0x580] sm:$0xff] %v502
                %v504 = vld [vmem:[%s148 + $0xa98] sm:$0xff]
                %505 = vst [vmem:[%s149 + $0x588] sm:$0xff] %v504
                %v506 = vld [vmem:[%s148 + $0xaa0] sm:$0xff]
                %507 = vst [vmem:[%s149 + $0x590] sm:$0xff] %v506
                %v508 = vld [vmem:[%s148 + $0xaa8] sm:$0xff]
                %509 = vst [vmem:[%s149 + $0x598] sm:$0xff] %v508
                %v510 = vld [vmem:[%s148 + $0xab0] sm:$0xff]
                %511 = vst [vmem:[%s149 + $0x5a0] sm:$0xff] %v510
                %v512 = vld [vmem:[%s148 + $0xab8] sm:$0xff]
                %513 = vst [vmem:[%s149 + $0x5a8] sm:$0xff] %v512
                %v514 = vld [vmem:[%s148 + $0xac0] sm:$0xff]
                %515 = vst [vmem:[%s149 + $0x5b0] sm:$0xff] %v514
                %v516 = vld [vmem:[%s148 + $0xac8] sm:$0xff]
                %517 = vst [vmem:[%s149 + $0x5b8] sm:$0xff] %v516
                %v518 = vld [vmem:[%s148 + $0xad0] sm:$0xff]
                %519 = vst [vmem:[%s149 + $0x5c0] sm:$0xff] %v518
                %v520 = vld [vmem:[%s148 + $0xad8] sm:$0xff]
                %521 = vst [vmem:[%s149 + $0x5c8] sm:$0xff] %v520
                %v522 = vld [vmem:[%s148 + $0xae0] sm:$0xff]
                %523 = vst [vmem:[%s149 + $0x5d0] sm:$0xff] %v522
                %v524 = vld [vmem:[%s148 + $0xae8] sm:$0xff]
                %525 = vst [vmem:[%s149 + $0x5d8] sm:$0xff] %v524
                %v526 = vld [vmem:[%s148 + $0xaf0] sm:$0xff]
                %527 = vst [vmem:[%s149 + $0x5e0] sm:$0xff] %v526
                %v528 = vld [vmem:[%s148 + $0xaf8] sm:$0xff]
                %529 = vst [vmem:[%s149 + $0x5e8] sm:$0xff] %v528
                %v530 = vld [vmem:[%s148 + $0xb00] sm:$0xff]
                %531 = vst [vmem:[%s149 + $0x5f0] sm:$0xff] %v530
                %v532 = vld [vmem:[%s148 + $0xb08] sm:$0xff]
                %533 = vst [vmem:[%s149 + $0x5f8] sm:$0xff] %v532
                %v534 = vld [vmem:[%s148 + $0xb10] sm:$0xff]
                %535 = vst [vmem:[%s149 + $0x600] sm:$0xff] %v534
                %v536 = vld [vmem:[%s148 + $0xb18] sm:$0xff]
                %537 = vst [vmem:[%s149 + $0x608] sm:$0xff] %v536
                %v538 = vld [vmem:[%s148 + $0xb20] sm:$0xff]
                %539 = vst [vmem:[%s149 + $0x610] sm:$0xff] %v538
                %v540 = vld [vmem:[%s148 + $0xb28] sm:$0xff]
                %541 = vst [vmem:[%s149 + $0x618] sm:$0xff] %v540
                %v542 = vld [vmem:[%s148 + $0xb30] sm:$0xff]
                %543 = vst [vmem:[%s149 + $0x620] sm:$0xff] %v542
                %v544 = vld [vmem:[%s148 + $0xb38] sm:$0xff]
                %545 = vst [vmem:[%s149 + $0x628] sm:$0xff] %v544
                %v546 = vld [vmem:[%s148 + $0xb40] sm:$0xff]
                %547 = vst [vmem:[%s149 + $0x630] sm:$0xff] %v546
                %v548 = vld [vmem:[%s148 + $0xb48] sm:$0xff]
                %549 = vst [vmem:[%s149 + $0x638] sm:$0xff] %v548
                %v550 = vld [vmem:[%s148 + $0xb50] sm:$0xff]
                %551 = vst [vmem:[%s149 + $0x640] sm:$0xff] %v550
                %v552 = vld [vmem:[%s148 + $0xb58] sm:$0xff]
                %553 = vst [vmem:[%s149 + $0x648] sm:$0xff] %v552
                %v554 = vld [vmem:[%s148 + $0xb60] sm:$0xff]
                %555 = vst [vmem:[%s149 + $0x650] sm:$0xff] %v554
                %v556 = vld [vmem:[%s148 + $0xb68] sm:$0xff]
                %557 = vst [vmem:[%s149 + $0x658] sm:$0xff] %v556
                %v558 = vld [vmem:[%s148 + $0xb70] sm:$0xff]
                %559 = vst [vmem:[%s149 + $0x660] sm:$0xff] %v558
                %v560 = vld [vmem:[%s148 + $0xb78] sm:$0xff]
                %561 = vst [vmem:[%s149 + $0x668] sm:$0xff] %v560
                %v562 = vld [vmem:[%s148 + $0xb80] sm:$0xff]
                %563 = vst [vmem:[%s149 + $0x670] sm:$0xff] %v562
                %v564 = vld [vmem:[%s148 + $0xb88] sm:$0xff]
                %565 = vst [vmem:[%s149 + $0x678] sm:$0xff] %v564
                %v566 = vld [vmem:[%s148 + $0xb90] sm:$0xff]
                %567 = vst [vmem:[%s149 + $0x680] sm:$0xff] %v566
                %v568 = vld [vmem:[%s148 + $0xb98] sm:$0xff]
                %569 = vst [vmem:[%s149 + $0x688] sm:$0xff] %v568
                %v570 = vld [vmem:[%s148 + $0xba0] sm:$0xff]
                %571 = vst [vmem:[%s149 + $0x690] sm:$0xff] %v570
                %v572 = vld [vmem:[%s148 + $0xba8] sm:$0xff]
                %573 = vst [vmem:[%s149 + $0x698] sm:$0xff] %v572
                %v574 = vld [vmem:[%s148 + $0xbb0] sm:$0xff]
                %575 = vst [vmem:[%s149 + $0x6a0] sm:$0xff] %v574
                %v576 = vld [vmem:[%s148 + $0xbb8] sm:$0xff]
                %577 = vst [vmem:[%s149 + $0x6a8] sm:$0xff] %v576
                %v578 = vld [vmem:[%s148 + $0xbc0] sm:$0xff]
                %579 = vst [vmem:[%s149 + $0x6b0] sm:$0xff] %v578
                %v580 = vld [vmem:[%s148 + $0xbc8] sm:$0xff]
                %581 = vst [vmem:[%s149 + $0x6b8] sm:$0xff] %v580
              $region41: #{encoder_classifier_forward.4} parent=35 // loop_footer
                %s147 = sadd.s32 1, %s143
              $region42: #{encoder_classifier_forward.4} parent=35 // loop_footer_branch
                %142 = sbr.rel target = $region38
              $region43: #{encoder_classifier_forward.4} parent=35 // loop_exit
                _
            $region36: #{encoder_classifier_forward.4} parent=31 // pred_fallthru
              _
            // Predicated region
            $region44: #{encoder_classifier_forward.4} parent=31 // pred_check
              _
            $region45: #{encoder_classifier_forward.4} parent=31 // pred_check_branch
              %583 = sbr.rel target = $region47
            $region46: #{encoder_classifier_forward.4} parent=31 // pred_region
              _
            $region47: #{encoder_classifier_forward.4} parent=31 // pred_fallthru
              _
          $region32: #{encoder_classifier_forward.4} parent=27 // pred_fallthru
            _
          %584 = vnop
        $region28: #{encoder_classifier_forward.4} parent=23 // pred_fallthru
          _
      $region24: #{encoder_classifier_forward.4} parent=5 // pred_fallthru
        _
      %p585 = scmp.le.s32.totalorder 1, %s9
      %p586 = scmp.lt.s32.totalorder %s9, 3
      %p587 = pnand %p585, %p586
      %p588 = pneg %p587
      // Predicated region
      $region48: #{encoder_classifier_forward.4} parent=5 // pred_check
        _
      $region49: #{encoder_classifier_forward.4} parent=5 // pred_check_branch
        %590 = sbr.rel (%p587) target = $region51
      $region50: #{encoder_classifier_forward.4} parent=5 // pred_region
        %s591 = ssub.s32 %s9, 1
        %s592 = sand.u32 %s64, 1
        %s593 = sand.u32 %s64, 1
        %s594 = smul.addr %s593, 1728
        %s595 = scalar_lea.vmem [#allocation2], %s594
        // Predicated region
        $region52: #{encoder_classifier_forward.4} parent=50 // pred_check
          %p596 = pneg %p77
        $region53: #{encoder_classifier_forward.4} parent=50 // pred_check_branch
          %598 = sbr.rel (%p596) target = $region55
        $region54: #{encoder_classifier_forward.4} parent=50 // pred_region
          _
        $region55: #{encoder_classifier_forward.4} parent=50 // pred_fallthru
          _
        %p599 = pneg %p30
        %p600 = pneg %p27
        %p601 = pneg %p51
        %p602 = pneg %p48
        %s603 = sand.u32 %s64, 1
        %s604 = sand.u32 %s64, 1
        %s605 = smul.addr %s604, 1728
        %s606 = scalar_lea.vmem [#allocation2], %s605
        %p607 = pneg %p77
        %p608 = pneg %p74
        %p609 = pneg %p103
        %p610 = pneg %p100
        %s611 = smul.u32 108, %s14
        %p612 = scmp.lt.s32.totalorder %s611, 215
        %s613 = scalar_select %p612, %s611, 215
        %s614 = smul.addr %s613, 4
        %s615 = scalar_lea.vmem %s3, %s614
        %s616 = smul.u32 108, %s14
        %s617 = smul.u32 108, %s14
        %p618 = scmp.lt.s32.totalorder %s617, 215
        %s619 = scalar_select %p618, %s617, 215
        %s620 = smul.addr %s619, 4
        %s621 = scalar_lea.vmem %s3, %s620
        %s622 = smul.u32 108, %s14
        %v624 = vld [vmem:[%s0] sm:$0xf]
        %v625 = vld [vmem:[%s595] sm:$0xff]
        %v626 = vld [vmem:[%s595 + $0x8] sm:$0xff]
        %v627 = vld [vmem:[%s595 + $0x10] sm:$0xff]
        %v628 = vld [vmem:[%s595 + $0x18] sm:$0xff]
        %v629 = vld [vmem:[%s595 + $0x20] sm:$0xff]
        %v630 = vld [vmem:[%s595 + $0x28] sm:$0xff]
        %v631 = vld [vmem:[%s595 + $0x30] sm:$0xff]
        %v632 = vld [vmem:[%s595 + $0x38] sm:$0xff]
        %v633 = vld [vmem:[%s595 + $0x40] sm:$0xff]
        %v634 = vld [vmem:[%s595 + $0x48] sm:$0xff]
        %v635 = vld [vmem:[%s595 + $0x50] sm:$0xff]
        %v636 = vld [vmem:[%s595 + $0x58] sm:$0xff]
        %v637 = vld [vmem:[%s595 + $0x60] sm:$0xff]
        %v638 = vld [vmem:[%s595 + $0x68] sm:$0xff]
        %v639 = vld [vmem:[%s595 + $0x70] sm:$0xff]
        %v640 = vld [vmem:[%s595 + $0x78] sm:$0xff]
        %v641 = vld [vmem:[%s595 + $0x80] sm:$0xff]
        %v642 = vld [vmem:[%s595 + $0x88] sm:$0xff]
        %v643 = vld [vmem:[%s595 + $0x90] sm:$0xff]
        %v644 = vld [vmem:[%s595 + $0x98] sm:$0xff]
        %v645 = vld [vmem:[%s595 + $0xa0] sm:$0xff]
        %v646 = vld [vmem:[%s595 + $0xa8] sm:$0xff]
        %v647 = vld [vmem:[%s595 + $0xb0] sm:$0xff]
        %v648 = vld [vmem:[%s595 + $0xb8] sm:$0xff]
        %v649 = vld [vmem:[%s595 + $0xc0] sm:$0xff]
        %v650 = vld [vmem:[%s595 + $0xc8] sm:$0xff]
        %v651 = vld [vmem:[%s595 + $0xd0] sm:$0xff]
        %v652 = vld [vmem:[%s595 + $0xd8] sm:$0xff]
        %v653 = vld [vmem:[%s595 + $0xe0] sm:$0xff]
        %v654 = vld [vmem:[%s595 + $0xe8] sm:$0xff]
        %v655 = vld [vmem:[%s595 + $0xf0] sm:$0xff]
        %v656 = vld [vmem:[%s595 + $0xf8] sm:$0xff]
        %v657 = vld [vmem:[%s595 + $0x100] sm:$0xff]
        %v658 = vld [vmem:[%s595 + $0x108] sm:$0xff]
        %v659 = vld [vmem:[%s595 + $0x110] sm:$0xff]
        %v660 = vld [vmem:[%s595 + $0x118] sm:$0xff]
        %v661 = vld [vmem:[%s595 + $0x120] sm:$0xff]
        %v662 = vld [vmem:[%s595 + $0x128] sm:$0xff]
        %v663 = vld [vmem:[%s595 + $0x130] sm:$0xff]
        %v664 = vld [vmem:[%s595 + $0x138] sm:$0xff]
        %v665 = vld [vmem:[%s595 + $0x140] sm:$0xff]
        %v666 = vld [vmem:[%s595 + $0x148] sm:$0xff]
        %v667 = vld [vmem:[%s595 + $0x150] sm:$0xff]
        %v668 = vld [vmem:[%s595 + $0x158] sm:$0xff]
        %v669 = vld [vmem:[%s595 + $0x160] sm:$0xff]
        %v670 = vld [vmem:[%s595 + $0x168] sm:$0xff]
        %v671 = vld [vmem:[%s595 + $0x170] sm:$0xff]
        %v672 = vld [vmem:[%s595 + $0x178] sm:$0xff]
        %v673 = vld [vmem:[%s595 + $0x180] sm:$0xff]
        %v674 = vld [vmem:[%s595 + $0x188] sm:$0xff]
        %v675 = vld [vmem:[%s595 + $0x190] sm:$0xff]
        %v676 = vld [vmem:[%s595 + $0x198] sm:$0xff]
        %v677 = vld [vmem:[%s595 + $0x1a0] sm:$0xff]
        %v678 = vld [vmem:[%s595 + $0x1a8] sm:$0xff]
        %v679 = vld [vmem:[%s595 + $0x1b0] sm:$0xff]
        %v680 = vld [vmem:[%s595 + $0x1b8] sm:$0xff]
        %v681 = vld [vmem:[%s595 + $0x1c0] sm:$0xff]
        %v682 = vld [vmem:[%s595 + $0x1c8] sm:$0xff]
        %v683 = vld [vmem:[%s595 + $0x1d0] sm:$0xff]
        %v684 = vld [vmem:[%s595 + $0x1d8] sm:$0xff]
        %v685 = vld [vmem:[%s595 + $0x1e0] sm:$0xff]
        %v686 = vld [vmem:[%s595 + $0x1e8] sm:$0xff]
        %v687 = vld [vmem:[%s595 + $0x1f0] sm:$0xff]
        %v688 = vld [vmem:[%s595 + $0x1f8] sm:$0xff]
        %v689 = vld [vmem:[%s595 + $0x200] sm:$0xff]
        %v690 = vld [vmem:[%s595 + $0x208] sm:$0xff]
        %v691 = vld [vmem:[%s595 + $0x210] sm:$0xff]
        %v692 = vld [vmem:[%s595 + $0x218] sm:$0xff]
        %v693 = vld [vmem:[%s595 + $0x220] sm:$0xff]
        %v694 = vld [vmem:[%s595 + $0x228] sm:$0xff]
        %v695 = vld [vmem:[%s595 + $0x230] sm:$0xff]
        %v696 = vld [vmem:[%s595 + $0x238] sm:$0xff]
        %v697 = vld [vmem:[%s595 + $0x240] sm:$0xff]
        %v698 = vld [vmem:[%s595 + $0x248] sm:$0xff]
        %v699 = vld [vmem:[%s595 + $0x250] sm:$0xff]
        %v700 = vld [vmem:[%s595 + $0x258] sm:$0xff]
        %v701 = vld [vmem:[%s595 + $0x260] sm:$0xff]
        %v702 = vld [vmem:[%s595 + $0x268] sm:$0xff]
        %v703 = vld [vmem:[%s595 + $0x270] sm:$0xff]
        %v704 = vld [vmem:[%s595 + $0x278] sm:$0xff]
        %v705 = vld [vmem:[%s595 + $0x280] sm:$0xff]
        %v706 = vld [vmem:[%s595 + $0x288] sm:$0xff]
        %v707 = vld [vmem:[%s595 + $0x290] sm:$0xff]
        %v708 = vld [vmem:[%s595 + $0x298] sm:$0xff]
        %v709 = vld [vmem:[%s595 + $0x2a0] sm:$0xff]
        %v710 = vld [vmem:[%s595 + $0x2a8] sm:$0xff]
        %v711 = vld [vmem:[%s595 + $0x2b0] sm:$0xff]
        %v712 = vld [vmem:[%s595 + $0x2b8] sm:$0xff]
        %v713 = vld [vmem:[%s595 + $0x2c0] sm:$0xff]
        %v714 = vld [vmem:[%s595 + $0x2c8] sm:$0xff]
        %v715 = vld [vmem:[%s595 + $0x2d0] sm:$0xff]
        %v716 = vld [vmem:[%s595 + $0x2d8] sm:$0xff]
        %v717 = vld [vmem:[%s595 + $0x2e0] sm:$0xff]
        %v718 = vld [vmem:[%s595 + $0x2e8] sm:$0xff]
        %v719 = vld [vmem:[%s595 + $0x2f0] sm:$0xff]
        %v720 = vld [vmem:[%s595 + $0x2f8] sm:$0xff]
        %v721 = vld [vmem:[%s595 + $0x300] sm:$0xff]
        %v722 = vld [vmem:[%s595 + $0x308] sm:$0xff]
        %v723 = vld [vmem:[%s595 + $0x310] sm:$0xff]
        %v724 = vld [vmem:[%s595 + $0x318] sm:$0xff]
        %v725 = vld [vmem:[%s595 + $0x320] sm:$0xff]
        %v726 = vld [vmem:[%s595 + $0x328] sm:$0xff]
        %v727 = vld [vmem:[%s595 + $0x330] sm:$0xff]
        %v728 = vld [vmem:[%s595 + $0x338] sm:$0xff]
        %v729 = vld [vmem:[%s595 + $0x340] sm:$0xff]
        %v730 = vld [vmem:[%s595 + $0x348] sm:$0xff]
        %v731 = vld [vmem:[%s595 + $0x350] sm:$0xff]
        %v732 = vld [vmem:[%s595 + $0x358] sm:$0xff]
        %v733 = vld [vmem:[%s595 + $0x360] sm:$0xff]
        %v734 = vld [vmem:[%s595 + $0x368] sm:$0xff]
        %v735 = vld [vmem:[%s595 + $0x370] sm:$0xff]
        %v736 = vld [vmem:[%s595 + $0x378] sm:$0xff]
        %v737 = vld [vmem:[%s595 + $0x380] sm:$0xff]
        %v738 = vld [vmem:[%s595 + $0x388] sm:$0xff]
        %v739 = vld [vmem:[%s595 + $0x390] sm:$0xff]
        %v740 = vld [vmem:[%s595 + $0x398] sm:$0xff]
        %v741 = vld [vmem:[%s595 + $0x3a0] sm:$0xff]
        %v742 = vld [vmem:[%s595 + $0x3a8] sm:$0xff]
        %v743 = vld [vmem:[%s595 + $0x3b0] sm:$0xff]
        %v744 = vld [vmem:[%s595 + $0x3b8] sm:$0xff]
        %v745 = vld [vmem:[%s595 + $0x3c0] sm:$0xff]
        %v746 = vld [vmem:[%s595 + $0x3c8] sm:$0xff]
        %v747 = vld [vmem:[%s595 + $0x3d0] sm:$0xff]
        %v748 = vld [vmem:[%s595 + $0x3d8] sm:$0xff]
        %v749 = vld [vmem:[%s595 + $0x3e0] sm:$0xff]
        %v750 = vld [vmem:[%s595 + $0x3e8] sm:$0xff]
        %v751 = vld [vmem:[%s595 + $0x3f0] sm:$0xff]
        %v752 = vld [vmem:[%s595 + $0x3f8] sm:$0xff]
        %v753 = vld [vmem:[%s595 + $0x400] sm:$0xff]
        %v754 = vld [vmem:[%s595 + $0x408] sm:$0xff]
        %v755 = vld [vmem:[%s595 + $0x410] sm:$0xff]
        %v756 = vld [vmem:[%s595 + $0x418] sm:$0xff]
        %v757 = vld [vmem:[%s595 + $0x420] sm:$0xff]
        %v758 = vld [vmem:[%s595 + $0x428] sm:$0xff]
        %v759 = vld [vmem:[%s595 + $0x430] sm:$0xff]
        %v760 = vld [vmem:[%s595 + $0x438] sm:$0xff]
        %v761 = vld [vmem:[%s595 + $0x440] sm:$0xff]
        %v762 = vld [vmem:[%s595 + $0x448] sm:$0xff]
        %v763 = vld [vmem:[%s595 + $0x450] sm:$0xff]
        %v764 = vld [vmem:[%s595 + $0x458] sm:$0xff]
        %v765 = vld [vmem:[%s595 + $0x460] sm:$0xff]
        %v766 = vld [vmem:[%s595 + $0x468] sm:$0xff]
        %v767 = vld [vmem:[%s595 + $0x470] sm:$0xff]
        %v768 = vld [vmem:[%s595 + $0x478] sm:$0xff]
        %v769 = vld [vmem:[%s595 + $0x480] sm:$0xff]
        %v770 = vld [vmem:[%s595 + $0x488] sm:$0xff]
        %v771 = vld [vmem:[%s595 + $0x490] sm:$0xff]
        %v772 = vld [vmem:[%s595 + $0x498] sm:$0xff]
        %v773 = vld [vmem:[%s595 + $0x4a0] sm:$0xff]
        %v774 = vld [vmem:[%s595 + $0x4a8] sm:$0xff]
        %v775 = vld [vmem:[%s595 + $0x4b0] sm:$0xff]
        %v776 = vld [vmem:[%s595 + $0x4b8] sm:$0xff]
        %v777 = vld [vmem:[%s595 + $0x4c0] sm:$0xff]
        %v778 = vld [vmem:[%s595 + $0x4c8] sm:$0xff]
        %v779 = vld [vmem:[%s595 + $0x4d0] sm:$0xff]
        %v780 = vld [vmem:[%s595 + $0x4d8] sm:$0xff]
        %v781 = vld [vmem:[%s595 + $0x4e0] sm:$0xff]
        %v782 = vld [vmem:[%s595 + $0x4e8] sm:$0xff]
        %v783 = vld [vmem:[%s595 + $0x4f0] sm:$0xff]
        %v784 = vld [vmem:[%s595 + $0x4f8] sm:$0xff]
        %v785 = vld [vmem:[%s595 + $0x500] sm:$0xff]
        %v786 = vld [vmem:[%s595 + $0x508] sm:$0xff]
        %v787 = vld [vmem:[%s595 + $0x510] sm:$0x33]
        %v788 = vld [vmem:[%s595 + $0x518] sm:$0x33]
        %v789 = vld [vmem:[%s595 + $0x520] sm:$0x33]
        %v790 = vld [vmem:[%s595 + $0x528] sm:$0x33]
        %v791 = vld [vmem:[%s595 + $0x530] sm:$0x33]
        %v792 = vld [vmem:[%s595 + $0x538] sm:$0x33]
        %v793 = vld [vmem:[%s595 + $0x540] sm:$0x33]
        %v794 = vld [vmem:[%s595 + $0x548] sm:$0x33]
        %v795 = vld [vmem:[%s595 + $0x550] sm:$0x33]
        %v796 = vld [vmem:[%s595 + $0x558] sm:$0x33]
        %v797 = vld [vmem:[%s595 + $0x560] sm:$0x33]
        %v798 = vld [vmem:[%s595 + $0x568] sm:$0x33]
        %v799 = vld [vmem:[%s595 + $0x570] sm:$0x33]
        %v800 = vld [vmem:[%s595 + $0x578] sm:$0x33]
        %v801 = vld [vmem:[%s595 + $0x580] sm:$0x33]
        %v802 = vld [vmem:[%s595 + $0x588] sm:$0x33]
        %v803 = vld [vmem:[%s595 + $0x590] sm:$0x33]
        %v804 = vld [vmem:[%s595 + $0x598] sm:$0x33]
        %v805 = vld [vmem:[%s595 + $0x5a0] sm:$0x33]
        %v806 = vld [vmem:[%s595 + $0x5a8] sm:$0x33]
        %v807 = vld [vmem:[%s595 + $0x5b0] sm:$0x33]
        %v808 = vld [vmem:[%s595 + $0x5b8] sm:$0x33]
        %v809 = vld [vmem:[%s595 + $0x5c0] sm:$0x33]
        %v810 = vld [vmem:[%s595 + $0x5c8] sm:$0x33]
        %v811 = vld [vmem:[%s595 + $0x5d0] sm:$0x33]
        %v812 = vld [vmem:[%s595 + $0x5d8] sm:$0x33]
        %v813 = vld [vmem:[%s595 + $0x5e0] sm:$0x33]
        %v814 = vld [vmem:[%s595 + $0x5e8] sm:$0x33]
        %v815 = vld [vmem:[%s595 + $0x5f0] sm:$0x33]
        %v816 = vld [vmem:[%s595 + $0x5f8] sm:$0x33]
        %v817 = vld [vmem:[%s595 + $0x600] sm:$0x33]
        %v818 = vld [vmem:[%s595 + $0x608] sm:$0x33]
        %v819 = vld [vmem:[%s595 + $0x610] sm:$0x33]
        %v820 = vld [vmem:[%s595 + $0x618] sm:$0x33]
        %v821 = vld [vmem:[%s595 + $0x620] sm:$0x33]
        %v822 = vld [vmem:[%s595 + $0x628] sm:$0x33]
        %v823 = vld [vmem:[%s595 + $0x630] sm:$0x33]
        %v824 = vld [vmem:[%s595 + $0x638] sm:$0x33]
        %v825 = vld [vmem:[%s595 + $0x640] sm:$0x33]
        %v826 = vld [vmem:[%s595 + $0x648] sm:$0x33]
        %v827 = vld [vmem:[%s595 + $0x650] sm:$0x33]
        %v828 = vld [vmem:[%s595 + $0x658] sm:$0x33]
        %v829 = vld [vmem:[%s595 + $0x660] sm:$0x33]
        %v830 = vld [vmem:[%s595 + $0x668] sm:$0x33]
        %v831 = vld [vmem:[%s595 + $0x670] sm:$0x33]
        %v832 = vld [vmem:[%s595 + $0x678] sm:$0x33]
        %v833 = vld [vmem:[%s595 + $0x680] sm:$0x33]
        %v834 = vld [vmem:[%s595 + $0x688] sm:$0x33]
        %v835 = vld [vmem:[%s595 + $0x690] sm:$0x33]
        %v836 = vld [vmem:[%s595 + $0x698] sm:$0x33]
        %v837 = vld [vmem:[%s595 + $0x6a0] sm:$0x33]
        %v838 = vld [vmem:[%s595 + $0x6a8] sm:$0x33]
        %v839 = vld [vmem:[%s595 + $0x6b0] sm:$0x33]
        %v840 = vld [vmem:[%s595 + $0x6b8] sm:$0x33]
        %v841 = vld [vmem:[%s1] sm:$0xff]
        %843 = vset.pattern.permute.xlu0 0
        %844 = vperm.xlu0 %843, %v841
        %v845 = vpop.permute.xlu0 %844
        %v1063 = vunpack.c.l.b16 %v625
        %v1064 = vunpack.c.h.b16 %v625
        %v1065 = vunpack.c.l.b16 %v626
        %v1066 = vunpack.c.h.b16 %v626
        %v1067 = vunpack.c.l.b16 %v627
        %v1068 = vunpack.c.h.b16 %v627
        %v1069 = vunpack.c.l.b16 %v628
        %v1070 = vunpack.c.h.b16 %v628
        %v1071 = vunpack.c.l.b16 %v629
        %v1072 = vunpack.c.h.b16 %v629
        %v1073 = vunpack.c.l.b16 %v630
        %v1074 = vunpack.c.h.b16 %v630
        %v1075 = vunpack.c.l.b16 %v631
        %v1076 = vunpack.c.h.b16 %v631
        %v1077 = vunpack.c.l.b16 %v632
        %v1078 = vunpack.c.h.b16 %v632
        %v1079 = vunpack.c.l.b16 %v633
        %v1080 = vunpack.c.h.b16 %v633
        %v1081 = vunpack.c.l.b16 %v634
        %v1082 = vunpack.c.h.b16 %v634
        %v1083 = vunpack.c.l.b16 %v635
        %v1084 = vunpack.c.h.b16 %v635
        %v1085 = vunpack.c.l.b16 %v636
        %v1086 = vunpack.c.h.b16 %v636
        %v1087 = vunpack.c.l.b16 %v637
        %v1088 = vunpack.c.h.b16 %v637
        %v1089 = vunpack.c.l.b16 %v638
        %v1090 = vunpack.c.h.b16 %v638
        %v1091 = vunpack.c.l.b16 %v639
        %v1092 = vunpack.c.h.b16 %v639
        %v1093 = vunpack.c.l.b16 %v640
        %v1094 = vunpack.c.h.b16 %v640
        %v1095 = vunpack.c.l.b16 %v641
        %v1096 = vunpack.c.h.b16 %v641
        %v1097 = vunpack.c.l.b16 %v642
        %v1098 = vunpack.c.h.b16 %v642
        %v1099 = vunpack.c.l.b16 %v643
        %v1100 = vunpack.c.h.b16 %v643
        %v1101 = vunpack.c.l.b16 %v644
        %v1102 = vunpack.c.h.b16 %v644
        %v1103 = vunpack.c.l.b16 %v645
        %v1104 = vunpack.c.h.b16 %v645
        %v1105 = vunpack.c.l.b16 %v646
        %v1106 = vunpack.c.h.b16 %v646
        %v1107 = vunpack.c.l.b16 %v647
        %v1108 = vunpack.c.h.b16 %v647
        %v1109 = vunpack.c.l.b16 %v648
        %v1110 = vunpack.c.h.b16 %v648
        %v1111 = vunpack.c.l.b16 %v649
        %v1112 = vunpack.c.h.b16 %v649
        %v1113 = vunpack.c.l.b16 %v650
        %v1114 = vunpack.c.h.b16 %v650
        %v1115 = vunpack.c.l.b16 %v651
        %v1116 = vunpack.c.h.b16 %v651
        %v1117 = vunpack.c.l.b16 %v652
        %v1118 = vunpack.c.h.b16 %v652
        %v1119 = vunpack.c.l.b16 %v653
        %v1120 = vunpack.c.h.b16 %v653
        %v1121 = vunpack.c.l.b16 %v654
        %v1122 = vunpack.c.h.b16 %v654
        %v1123 = vunpack.c.l.b16 %v655
        %v1124 = vunpack.c.h.b16 %v655
        %v1125 = vunpack.c.l.b16 %v656
        %v1126 = vunpack.c.h.b16 %v656
        %v1127 = vunpack.c.l.b16 %v657
        %v1128 = vunpack.c.h.b16 %v657
        %v1129 = vunpack.c.l.b16 %v658
        %v1130 = vunpack.c.h.b16 %v658
        %v1131 = vunpack.c.l.b16 %v659
        %v1132 = vunpack.c.h.b16 %v659
        %v1133 = vunpack.c.l.b16 %v660
        %v1134 = vunpack.c.h.b16 %v660
        %v1135 = vunpack.c.l.b16 %v661
        %v1136 = vunpack.c.h.b16 %v661
        %v1137 = vunpack.c.l.b16 %v662
        %v1138 = vunpack.c.h.b16 %v662
        %v1139 = vunpack.c.l.b16 %v663
        %v1140 = vunpack.c.h.b16 %v663
        %v1141 = vunpack.c.l.b16 %v664
        %v1142 = vunpack.c.h.b16 %v664
        %v1143 = vunpack.c.l.b16 %v665
        %v1144 = vunpack.c.h.b16 %v665
        %v1145 = vunpack.c.l.b16 %v666
        %v1146 = vunpack.c.h.b16 %v666
        %v1147 = vunpack.c.l.b16 %v667
        %v1148 = vunpack.c.h.b16 %v667
        %v1149 = vunpack.c.l.b16 %v668
        %v1150 = vunpack.c.h.b16 %v668
        %v1151 = vunpack.c.l.b16 %v669
        %v1152 = vunpack.c.h.b16 %v669
        %v1153 = vunpack.c.l.b16 %v670
        %v1154 = vunpack.c.h.b16 %v670
        %v1155 = vunpack.c.l.b16 %v671
        %v1156 = vunpack.c.h.b16 %v671
        %v1157 = vunpack.c.l.b16 %v672
        %v1158 = vunpack.c.h.b16 %v672
        %v1159 = vunpack.c.l.b16 %v673
        %v1160 = vunpack.c.h.b16 %v673
        %v1161 = vunpack.c.l.b16 %v674
        %v1162 = vunpack.c.h.b16 %v674
        %v1163 = vunpack.c.l.b16 %v675
        %v1164 = vunpack.c.h.b16 %v675
        %v1165 = vunpack.c.l.b16 %v676
        %v1166 = vunpack.c.h.b16 %v676
        %v1167 = vunpack.c.l.b16 %v677
        %v1168 = vunpack.c.h.b16 %v677
        %v1169 = vunpack.c.l.b16 %v678
        %v1170 = vunpack.c.h.b16 %v678
        %v1171 = vunpack.c.l.b16 %v679
        %v1172 = vunpack.c.h.b16 %v679
        %v1173 = vunpack.c.l.b16 %v680
        %v1174 = vunpack.c.h.b16 %v680
        %v1175 = vunpack.c.l.b16 %v681
        %v1176 = vunpack.c.h.b16 %v681
        %v1177 = vunpack.c.l.b16 %v682
        %v1178 = vunpack.c.h.b16 %v682
        %v1179 = vunpack.c.l.b16 %v683
        %v1180 = vunpack.c.h.b16 %v683
        %v1181 = vunpack.c.l.b16 %v684
        %v1182 = vunpack.c.h.b16 %v684
        %v1183 = vunpack.c.l.b16 %v685
        %v1184 = vunpack.c.h.b16 %v685
        %v1185 = vunpack.c.l.b16 %v686
        %v1186 = vunpack.c.h.b16 %v686
        %v1187 = vunpack.c.l.b16 %v687
        %v1188 = vunpack.c.h.b16 %v687
        %v1189 = vunpack.c.l.b16 %v688
        %v1190 = vunpack.c.h.b16 %v688
        %v1191 = vunpack.c.l.b16 %v689
        %v1192 = vunpack.c.h.b16 %v689
        %v1193 = vunpack.c.l.b16 %v690
        %v1194 = vunpack.c.h.b16 %v690
        %v1195 = vunpack.c.l.b16 %v691
        %v1196 = vunpack.c.h.b16 %v691
        %v1197 = vunpack.c.l.b16 %v692
        %v1198 = vunpack.c.h.b16 %v692
        %v1199 = vunpack.c.l.b16 %v693
        %v1200 = vunpack.c.h.b16 %v693
        %v1201 = vunpack.c.l.b16 %v694
        %v1202 = vunpack.c.h.b16 %v694
        %v1203 = vunpack.c.l.b16 %v695
        %v1204 = vunpack.c.h.b16 %v695
        %v1205 = vunpack.c.l.b16 %v696
        %v1206 = vunpack.c.h.b16 %v696
        %v1207 = vunpack.c.l.b16 %v697
        %v1208 = vunpack.c.h.b16 %v697
        %v1209 = vunpack.c.l.b16 %v698
        %v1210 = vunpack.c.h.b16 %v698
        %v1211 = vunpack.c.l.b16 %v699
        %v1212 = vunpack.c.h.b16 %v699
        %v1213 = vunpack.c.l.b16 %v700
        %v1214 = vunpack.c.h.b16 %v700
        %v1215 = vunpack.c.l.b16 %v701
        %v1216 = vunpack.c.h.b16 %v701
        %v1217 = vunpack.c.l.b16 %v702
        %v1218 = vunpack.c.h.b16 %v702
        %v1219 = vunpack.c.l.b16 %v703
        %v1220 = vunpack.c.h.b16 %v703
        %v1221 = vunpack.c.l.b16 %v704
        %v1222 = vunpack.c.h.b16 %v704
        %v1223 = vunpack.c.l.b16 %v705
        %v1224 = vunpack.c.h.b16 %v705
        %v1225 = vunpack.c.l.b16 %v706
        %v1226 = vunpack.c.h.b16 %v706
        %v1227 = vunpack.c.l.b16 %v707
        %v1228 = vunpack.c.h.b16 %v707
        %v1229 = vunpack.c.l.b16 %v708
        %v1230 = vunpack.c.h.b16 %v708
        %v1231 = vunpack.c.l.b16 %v709
        %v1232 = vunpack.c.h.b16 %v709
        %v1233 = vunpack.c.l.b16 %v710
        %v1234 = vunpack.c.h.b16 %v710
        %v1235 = vunpack.c.l.b16 %v711
        %v1236 = vunpack.c.h.b16 %v711
        %v1237 = vunpack.c.l.b16 %v712
        %v1238 = vunpack.c.h.b16 %v712
        %v1239 = vunpack.c.l.b16 %v713
        %v1240 = vunpack.c.h.b16 %v713
        %v1241 = vunpack.c.l.b16 %v714
        %v1242 = vunpack.c.h.b16 %v714
        %v1243 = vunpack.c.l.b16 %v715
        %v1244 = vunpack.c.h.b16 %v715
        %v1245 = vunpack.c.l.b16 %v716
        %v1246 = vunpack.c.h.b16 %v716
        %v1247 = vunpack.c.l.b16 %v717
        %v1248 = vunpack.c.h.b16 %v717
        %v1249 = vunpack.c.l.b16 %v718
        %v1250 = vunpack.c.h.b16 %v718
        %v1251 = vunpack.c.l.b16 %v719
        %v1252 = vunpack.c.h.b16 %v719
        %v1253 = vunpack.c.l.b16 %v720
        %v1254 = vunpack.c.h.b16 %v720
        %v1255 = vunpack.c.l.b16 %v721
        %v1256 = vunpack.c.h.b16 %v721
        %v1257 = vunpack.c.l.b16 %v722
        %v1258 = vunpack.c.h.b16 %v722
        %v1259 = vunpack.c.l.b16 %v723
        %v1260 = vunpack.c.h.b16 %v723
        %v1261 = vunpack.c.l.b16 %v724
        %v1262 = vunpack.c.h.b16 %v724
        %v1263 = vunpack.c.l.b16 %v725
        %v1264 = vunpack.c.h.b16 %v725
        %v1265 = vunpack.c.l.b16 %v726
        %v1266 = vunpack.c.h.b16 %v726
        %v1267 = vunpack.c.l.b16 %v727
        %v1268 = vunpack.c.h.b16 %v727
        %v1269 = vunpack.c.l.b16 %v728
        %v1270 = vunpack.c.h.b16 %v728
        %v1271 = vunpack.c.l.b16 %v729
        %v1272 = vunpack.c.h.b16 %v729
        %v1273 = vunpack.c.l.b16 %v730
        %v1274 = vunpack.c.h.b16 %v730
        %v1275 = vunpack.c.l.b16 %v731
        %v1276 = vunpack.c.h.b16 %v731
        %v1277 = vunpack.c.l.b16 %v732
        %v1278 = vunpack.c.h.b16 %v732
        %v1279 = vunpack.c.l.b16 %v733
        %v1280 = vunpack.c.h.b16 %v733
        %v1281 = vunpack.c.l.b16 %v734
        %v1282 = vunpack.c.h.b16 %v734
        %v1283 = vunpack.c.l.b16 %v735
        %v1284 = vunpack.c.h.b16 %v735
        %v1285 = vunpack.c.l.b16 %v736
        %v1286 = vunpack.c.h.b16 %v736
        %v1287 = vunpack.c.l.b16 %v737
        %v1288 = vunpack.c.h.b16 %v737
        %v1289 = vunpack.c.l.b16 %v738
        %v1290 = vunpack.c.h.b16 %v738
        %v1291 = vunpack.c.l.b16 %v739
        %v1292 = vunpack.c.h.b16 %v739
        %v1293 = vunpack.c.l.b16 %v740
        %v1294 = vunpack.c.h.b16 %v740
        %v1295 = vunpack.c.l.b16 %v741
        %v1296 = vunpack.c.h.b16 %v741
        %v1297 = vunpack.c.l.b16 %v742
        %v1298 = vunpack.c.h.b16 %v742
        %v1299 = vunpack.c.l.b16 %v743
        %v1300 = vunpack.c.h.b16 %v743
        %v1301 = vunpack.c.l.b16 %v744
        %v1302 = vunpack.c.h.b16 %v744
        %v1303 = vunpack.c.l.b16 %v745
        %v1304 = vunpack.c.h.b16 %v745
        %v1305 = vunpack.c.l.b16 %v746
        %v1306 = vunpack.c.h.b16 %v746
        %v1307 = vunpack.c.l.b16 %v747
        %v1308 = vunpack.c.h.b16 %v747
        %v1309 = vunpack.c.l.b16 %v748
        %v1310 = vunpack.c.h.b16 %v748
        %v1311 = vunpack.c.l.b16 %v749
        %v1312 = vunpack.c.h.b16 %v749
        %v1313 = vunpack.c.l.b16 %v750
        %v1314 = vunpack.c.h.b16 %v750
        %v1315 = vunpack.c.l.b16 %v751
        %v1316 = vunpack.c.h.b16 %v751
        %v1317 = vunpack.c.l.b16 %v752
        %v1318 = vunpack.c.h.b16 %v752
        %v1319 = vunpack.c.l.b16 %v753
        %v1320 = vunpack.c.h.b16 %v753
        %v1321 = vunpack.c.l.b16 %v754
        %v1322 = vunpack.c.h.b16 %v754
        %v1323 = vunpack.c.l.b16 %v755
        %v1324 = vunpack.c.h.b16 %v755
        %v1325 = vunpack.c.l.b16 %v756
        %v1326 = vunpack.c.h.b16 %v756
        %v1327 = vunpack.c.l.b16 %v757
        %v1328 = vunpack.c.h.b16 %v757
        %v1329 = vunpack.c.l.b16 %v758
        %v1330 = vunpack.c.h.b16 %v758
        %v1331 = vunpack.c.l.b16 %v759
        %v1332 = vunpack.c.h.b16 %v759
        %v1333 = vunpack.c.l.b16 %v760
        %v1334 = vunpack.c.h.b16 %v760
        %v1335 = vunpack.c.l.b16 %v761
        %v1336 = vunpack.c.h.b16 %v761
        %v1337 = vunpack.c.l.b16 %v762
        %v1338 = vunpack.c.h.b16 %v762
        %v1339 = vunpack.c.l.b16 %v763
        %v1340 = vunpack.c.h.b16 %v763
        %v1341 = vunpack.c.l.b16 %v764
        %v1342 = vunpack.c.h.b16 %v764
        %v1343 = vunpack.c.l.b16 %v765
        %v1344 = vunpack.c.h.b16 %v765
        %v1345 = vunpack.c.l.b16 %v766
        %v1346 = vunpack.c.h.b16 %v766
        %v1347 = vunpack.c.l.b16 %v767
        %v1348 = vunpack.c.h.b16 %v767
        %v1349 = vunpack.c.l.b16 %v768
        %v1350 = vunpack.c.h.b16 %v768
        %v1351 = vunpack.c.l.b16 %v769
        %v1352 = vunpack.c.h.b16 %v769
        %v1353 = vunpack.c.l.b16 %v770
        %v1354 = vunpack.c.h.b16 %v770
        %v1355 = vunpack.c.l.b16 %v771
        %v1356 = vunpack.c.h.b16 %v771
        %v1357 = vunpack.c.l.b16 %v772
        %v1358 = vunpack.c.h.b16 %v772
        %v1359 = vunpack.c.l.b16 %v773
        %v1360 = vunpack.c.h.b16 %v773
        %v1361 = vunpack.c.l.b16 %v774
        %v1362 = vunpack.c.h.b16 %v774
        %v1363 = vunpack.c.l.b16 %v775
        %v1364 = vunpack.c.h.b16 %v775
        %v1365 = vunpack.c.l.b16 %v776
        %v1366 = vunpack.c.h.b16 %v776
        %v1367 = vunpack.c.l.b16 %v777
        %v1368 = vunpack.c.h.b16 %v777
        %v1369 = vunpack.c.l.b16 %v778
        %v1370 = vunpack.c.h.b16 %v778
        %v1371 = vunpack.c.l.b16 %v779
        %v1372 = vunpack.c.h.b16 %v779
        %v1373 = vunpack.c.l.b16 %v780
        %v1374 = vunpack.c.h.b16 %v780
        %v1375 = vunpack.c.l.b16 %v781
        %v1376 = vunpack.c.h.b16 %v781
        %v1377 = vunpack.c.l.b16 %v782
        %v1378 = vunpack.c.h.b16 %v782
        %v1379 = vunpack.c.l.b16 %v783
        %v1380 = vunpack.c.h.b16 %v783
        %v1381 = vunpack.c.l.b16 %v784
        %v1382 = vunpack.c.h.b16 %v784
        %v1383 = vunpack.c.l.b16 %v785
        %v1384 = vunpack.c.h.b16 %v785
        %v1385 = vunpack.c.l.b16 %v786
        %v1386 = vunpack.c.h.b16 %v786
        %v1387 = vunpack.c.l.b16 %v787
        %v1388 = vunpack.c.h.b16 %v787
        %v1389 = vunpack.c.l.b16 %v788
        %v1390 = vunpack.c.h.b16 %v788
        %v1391 = vunpack.c.l.b16 %v789
        %v1392 = vunpack.c.h.b16 %v789
        %v1393 = vunpack.c.l.b16 %v790
        %v1394 = vunpack.c.h.b16 %v790
        %v1395 = vunpack.c.l.b16 %v791
        %v1396 = vunpack.c.h.b16 %v791
        %v1397 = vunpack.c.l.b16 %v792
        %v1398 = vunpack.c.h.b16 %v792
        %v1399 = vunpack.c.l.b16 %v793
        %v1400 = vunpack.c.h.b16 %v793
        %v1401 = vunpack.c.l.b16 %v794
        %v1402 = vunpack.c.h.b16 %v794
        %v1403 = vunpack.c.l.b16 %v795
        %v1404 = vunpack.c.h.b16 %v795
        %v1405 = vunpack.c.l.b16 %v796
        %v1406 = vunpack.c.h.b16 %v796
        %v1407 = vunpack.c.l.b16 %v797
        %v1408 = vunpack.c.h.b16 %v797
        %v1409 = vunpack.c.l.b16 %v798
        %v1410 = vunpack.c.h.b16 %v798
        %v1411 = vunpack.c.l.b16 %v799
        %v1412 = vunpack.c.h.b16 %v799
        %v1413 = vunpack.c.l.b16 %v800
        %v1414 = vunpack.c.h.b16 %v800
        %v1415 = vunpack.c.l.b16 %v801
        %v1416 = vunpack.c.h.b16 %v801
        %v1417 = vunpack.c.l.b16 %v802
        %v1418 = vunpack.c.h.b16 %v802
        %v1419 = vunpack.c.l.b16 %v803
        %v1420 = vunpack.c.h.b16 %v803
        %v1421 = vunpack.c.l.b16 %v804
        %v1422 = vunpack.c.h.b16 %v804
        %v1423 = vunpack.c.l.b16 %v805
        %v1424 = vunpack.c.h.b16 %v805
        %v1425 = vunpack.c.l.b16 %v806
        %v1426 = vunpack.c.h.b16 %v806
        %v1427 = vunpack.c.l.b16 %v807
        %v1428 = vunpack.c.h.b16 %v807
        %v1429 = vunpack.c.l.b16 %v808
        %v1430 = vunpack.c.h.b16 %v808
        %v1431 = vunpack.c.l.b16 %v809
        %v1432 = vunpack.c.h.b16 %v809
        %v1433 = vunpack.c.l.b16 %v810
        %v1434 = vunpack.c.h.b16 %v810
        %v1435 = vunpack.c.l.b16 %v811
        %v1436 = vunpack.c.h.b16 %v811
        %v1437 = vunpack.c.l.b16 %v812
        %v1438 = vunpack.c.h.b16 %v812
        %v1439 = vunpack.c.l.b16 %v813
        %v1440 = vunpack.c.h.b16 %v813
        %v1441 = vunpack.c.l.b16 %v814
        %v1442 = vunpack.c.h.b16 %v814
        %v1443 = vunpack.c.l.b16 %v815
        %v1444 = vunpack.c.h.b16 %v815
        %v1445 = vunpack.c.l.b16 %v816
        %v1446 = vunpack.c.h.b16 %v816
        %v1447 = vunpack.c.l.b16 %v817
        %v1448 = vunpack.c.h.b16 %v817
        %v1449 = vunpack.c.l.b16 %v818
        %v1450 = vunpack.c.h.b16 %v818
        %v1451 = vunpack.c.l.b16 %v819
        %v1452 = vunpack.c.h.b16 %v819
        %v1453 = vunpack.c.l.b16 %v820
        %v1454 = vunpack.c.h.b16 %v820
        %v1455 = vunpack.c.l.b16 %v821
        %v1456 = vunpack.c.h.b16 %v821
        %v1457 = vunpack.c.l.b16 %v822
        %v1458 = vunpack.c.h.b16 %v822
        %v1459 = vunpack.c.l.b16 %v823
        %v1460 = vunpack.c.h.b16 %v823
        %v1461 = vunpack.c.l.b16 %v824
        %v1462 = vunpack.c.h.b16 %v824
        %v1463 = vunpack.c.l.b16 %v825
        %v1464 = vunpack.c.h.b16 %v825
        %v1465 = vunpack.c.l.b16 %v826
        %v1466 = vunpack.c.h.b16 %v826
        %v1467 = vunpack.c.l.b16 %v827
        %v1468 = vunpack.c.h.b16 %v827
        %v1469 = vunpack.c.l.b16 %v828
        %v1470 = vunpack.c.h.b16 %v828
        %v1471 = vunpack.c.l.b16 %v829
        %v1472 = vunpack.c.h.b16 %v829
        %v1473 = vunpack.c.l.b16 %v830
        %v1474 = vunpack.c.h.b16 %v830
        %v1475 = vunpack.c.l.b16 %v831
        %v1476 = vunpack.c.h.b16 %v831
        %v1477 = vunpack.c.l.b16 %v832
        %v1478 = vunpack.c.h.b16 %v832
        %v1479 = vunpack.c.l.b16 %v833
        %v1480 = vunpack.c.h.b16 %v833
        %v1481 = vunpack.c.l.b16 %v834
        %v1482 = vunpack.c.h.b16 %v834
        %v1483 = vunpack.c.l.b16 %v835
        %v1484 = vunpack.c.h.b16 %v835
        %v1485 = vunpack.c.l.b16 %v836
        %v1486 = vunpack.c.h.b16 %v836
        %v1487 = vunpack.c.l.b16 %v837
        %v1488 = vunpack.c.h.b16 %v837
        %v1489 = vunpack.c.l.b16 %v838
        %v1490 = vunpack.c.h.b16 %v838
        %v1491 = vunpack.c.l.b16 %v839
        %v1492 = vunpack.c.h.b16 %v839
        %v1493 = vunpack.c.l.b16 %v840
        %v1494 = vunpack.c.h.b16 %v840
        %v1495 = vpack.c.b16 %v1171, %v1063
        %v1496 = vpack.c.b16 %v1172, %v1064
        %v1497 = vpack.c.b16 %v1173, %v1065
        %v1498 = vpack.c.b16 %v1174, %v1066
        %v1499 = vpack.c.b16 %v1175, %v1067
        %v1500 = vpack.c.b16 %v1176, %v1068
        %v1501 = vpack.c.b16 %v1177, %v1069
        %v1502 = vpack.c.b16 %v1178, %v1070
        %v1503 = vpack.c.b16 %v1179, %v1071
        %v1504 = vpack.c.b16 %v1180, %v1072
        %v1505 = vpack.c.b16 %v1181, %v1073
        %v1506 = vpack.c.b16 %v1182, %v1074
        %v1507 = vpack.c.b16 %v1183, %v1075
        %v1508 = vpack.c.b16 %v1184, %v1076
        %v1509 = vpack.c.b16 %v1185, %v1077
        %v1510 = vpack.c.b16 %v1186, %v1078
        %v1511 = vpack.c.b16 %v1187, %v1079
        %v1512 = vpack.c.b16 %v1188, %v1080
        %v1513 = vpack.c.b16 %v1189, %v1081
        %v1514 = vpack.c.b16 %v1190, %v1082
        %v1515 = vpack.c.b16 %v1191, %v1083
        %v1516 = vpack.c.b16 %v1192, %v1084
        %v1517 = vpack.c.b16 %v1193, %v1085
        %v1518 = vpack.c.b16 %v1194, %v1086
        %v1519 = vpack.c.b16 %v1195, %v1087
        %v1520 = vpack.c.b16 %v1196, %v1088
        %v1521 = vpack.c.b16 %v1197, %v1089
        %v1522 = vpack.c.b16 %v1198, %v1090
        %v1523 = vpack.c.b16 %v1199, %v1091
        %v1524 = vpack.c.b16 %v1200, %v1092
        %v1525 = vpack.c.b16 %v1201, %v1093
        %v1526 = vpack.c.b16 %v1202, %v1094
        %v1527 = vpack.c.b16 %v1203, %v1095
        %v1528 = vpack.c.b16 %v1204, %v1096
        %v1529 = vpack.c.b16 %v1205, %v1097
        %v1530 = vpack.c.b16 %v1206, %v1098
        %v1531 = vpack.c.b16 %v1207, %v1099
        %v1532 = vpack.c.b16 %v1208, %v1100
        %v1533 = vpack.c.b16 %v1209, %v1101
        %v1534 = vpack.c.b16 %v1210, %v1102
        %v1535 = vpack.c.b16 %v1211, %v1103
        %v1536 = vpack.c.b16 %v1212, %v1104
        %v1537 = vpack.c.b16 %v1213, %v1105
        %v1538 = vpack.c.b16 %v1214, %v1106
        %v1539 = vpack.c.b16 %v1215, %v1107
        %v1540 = vpack.c.b16 %v1216, %v1108
        %v1541 = vpack.c.b16 %v1217, %v1109
        %v1542 = vpack.c.b16 %v1218, %v1110
        %v1543 = vpack.c.b16 %v1219, %v1111
        %v1544 = vpack.c.b16 %v1220, %v1112
        %v1545 = vpack.c.b16 %v1221, %v1113
        %v1546 = vpack.c.b16 %v1222, %v1114
        %v1547 = vpack.c.b16 %v1223, %v1115
        %v1548 = vpack.c.b16 %v1224, %v1116
        %v1549 = vpack.c.b16 %v1225, %v1117
        %v1550 = vpack.c.b16 %v1226, %v1118
        %v1551 = vpack.c.b16 %v1227, %v1119
        %v1552 = vpack.c.b16 %v1228, %v1120
        %v1553 = vpack.c.b16 %v1229, %v1121
        %v1554 = vpack.c.b16 %v1230, %v1122
        %v1555 = vpack.c.b16 %v1231, %v1123
        %v1556 = vpack.c.b16 %v1232, %v1124
        %v1557 = vpack.c.b16 %v1233, %v1125
        %v1558 = vpack.c.b16 %v1234, %v1126
        %v1559 = vpack.c.b16 %v1235, %v1127
        %v1560 = vpack.c.b16 %v1236, %v1128
        %v1561 = vpack.c.b16 %v1237, %v1129
        %v1562 = vpack.c.b16 %v1238, %v1130
        %v1563 = vpack.c.b16 %v1239, %v1131
        %v1564 = vpack.c.b16 %v1240, %v1132
        %v1565 = vpack.c.b16 %v1241, %v1133
        %v1566 = vpack.c.b16 %v1242, %v1134
        %v1567 = vpack.c.b16 %v1243, %v1135
        %v1568 = vpack.c.b16 %v1244, %v1136
        %v1569 = vpack.c.b16 %v1245, %v1137
        %v1570 = vpack.c.b16 %v1246, %v1138
        %v1571 = vpack.c.b16 %v1247, %v1139
        %v1572 = vpack.c.b16 %v1248, %v1140
        %v1573 = vpack.c.b16 %v1249, %v1141
        %v1574 = vpack.c.b16 %v1250, %v1142
        %v1575 = vpack.c.b16 %v1251, %v1143
        %v1576 = vpack.c.b16 %v1252, %v1144
        %v1577 = vpack.c.b16 %v1253, %v1145
        %v1578 = vpack.c.b16 %v1254, %v1146
        %v1579 = vpack.c.b16 %v1255, %v1147
        %v1580 = vpack.c.b16 %v1256, %v1148
        %v1581 = vpack.c.b16 %v1257, %v1149
        %v1582 = vpack.c.b16 %v1258, %v1150
        %v1583 = vpack.c.b16 %v1259, %v1151
        %v1584 = vpack.c.b16 %v1260, %v1152
        %v1585 = vpack.c.b16 %v1261, %v1153
        %v1586 = vpack.c.b16 %v1262, %v1154
        %v1587 = vpack.c.b16 %v1263, %v1155
        %v1588 = vpack.c.b16 %v1264, %v1156
        %v1589 = vpack.c.b16 %v1265, %v1157
        %v1590 = vpack.c.b16 %v1266, %v1158
        %v1591 = vpack.c.b16 %v1267, %v1159
        %v1592 = vpack.c.b16 %v1268, %v1160
        %v1593 = vpack.c.b16 %v1269, %v1161
        %v1594 = vpack.c.b16 %v1270, %v1162
        %v1595 = vpack.c.b16 %v1271, %v1163
        %v1596 = vpack.c.b16 %v1272, %v1164
        %v1597 = vpack.c.b16 %v1273, %v1165
        %v1598 = vpack.c.b16 %v1274, %v1166
        %v1599 = vpack.c.b16 %v1275, %v1167
        %v1600 = vpack.c.b16 %v1276, %v1168
        %v1601 = vpack.c.b16 %v1277, %v1169
        %v1602 = vpack.c.b16 %v1278, %v1170
        %v1603 = vpack.c.b16 %v1387, %v1279
        %v1604 = vpack.c.b16 %v1388, %v1280
        %v1605 = vpack.c.b16 %v1389, %v1281
        %v1606 = vpack.c.b16 %v1390, %v1282
        %v1607 = vpack.c.b16 %v1391, %v1283
        %v1608 = vpack.c.b16 %v1392, %v1284
        %v1609 = vpack.c.b16 %v1393, %v1285
        %v1610 = vpack.c.b16 %v1394, %v1286
        %v1611 = vpack.c.b16 %v1395, %v1287
        %v1612 = vpack.c.b16 %v1396, %v1288
        %v1613 = vpack.c.b16 %v1397, %v1289
        %v1614 = vpack.c.b16 %v1398, %v1290
        %v1615 = vpack.c.b16 %v1399, %v1291
        %v1616 = vpack.c.b16 %v1400, %v1292
        %v1617 = vpack.c.b16 %v1401, %v1293
        %v1618 = vpack.c.b16 %v1402, %v1294
        %v1619 = vpack.c.b16 %v1403, %v1295
        %v1620 = vpack.c.b16 %v1404, %v1296
        %v1621 = vpack.c.b16 %v1405, %v1297
        %v1622 = vpack.c.b16 %v1406, %v1298
        %v1623 = vpack.c.b16 %v1407, %v1299
        %v1624 = vpack.c.b16 %v1408, %v1300
        %v1625 = vpack.c.b16 %v1409, %v1301
        %v1626 = vpack.c.b16 %v1410, %v1302
        %v1627 = vpack.c.b16 %v1411, %v1303
        %v1628 = vpack.c.b16 %v1412, %v1304
        %v1629 = vpack.c.b16 %v1413, %v1305
        %v1630 = vpack.c.b16 %v1414, %v1306
        %v1631 = vpack.c.b16 %v1415, %v1307
        %v1632 = vpack.c.b16 %v1416, %v1308
        %v1633 = vpack.c.b16 %v1417, %v1309
        %v1634 = vpack.c.b16 %v1418, %v1310
        %v1635 = vpack.c.b16 %v1419, %v1311
        %v1636 = vpack.c.b16 %v1420, %v1312
        %v1637 = vpack.c.b16 %v1421, %v1313
        %v1638 = vpack.c.b16 %v1422, %v1314
        %v1639 = vpack.c.b16 %v1423, %v1315
        %v1640 = vpack.c.b16 %v1424, %v1316
        %v1641 = vpack.c.b16 %v1425, %v1317
        %v1642 = vpack.c.b16 %v1426, %v1318
        %v1643 = vpack.c.b16 %v1427, %v1319
        %v1644 = vpack.c.b16 %v1428, %v1320
        %v1645 = vpack.c.b16 %v1429, %v1321
        %v1646 = vpack.c.b16 %v1430, %v1322
        %v1647 = vpack.c.b16 %v1431, %v1323
        %v1648 = vpack.c.b16 %v1432, %v1324
        %v1649 = vpack.c.b16 %v1433, %v1325
        %v1650 = vpack.c.b16 %v1434, %v1326
        %v1651 = vpack.c.b16 %v1435, %v1327
        %v1652 = vpack.c.b16 %v1436, %v1328
        %v1653 = vpack.c.b16 %v1437, %v1329
        %v1654 = vpack.c.b16 %v1438, %v1330
        %v1655 = vpack.c.b16 %v1439, %v1331
        %v1656 = vpack.c.b16 %v1440, %v1332
        %v1657 = vpack.c.b16 %v1441, %v1333
        %v1658 = vpack.c.b16 %v1442, %v1334
        %v1659 = vpack.c.b16 %v1443, %v1335
        %v1660 = vpack.c.b16 %v1444, %v1336
        %v1661 = vpack.c.b16 %v1445, %v1337
        %v1662 = vpack.c.b16 %v1446, %v1338
        %v1663 = vpack.c.b16 %v1447, %v1339
        %v1664 = vpack.c.b16 %v1448, %v1340
        %v1665 = vpack.c.b16 %v1449, %v1341
        %v1666 = vpack.c.b16 %v1450, %v1342
        %v1667 = vpack.c.b16 %v1451, %v1343
        %v1668 = vpack.c.b16 %v1452, %v1344
        %v1669 = vpack.c.b16 %v1453, %v1345
        %v1670 = vpack.c.b16 %v1454, %v1346
        %v1671 = vpack.c.b16 %v1455, %v1347
        %v1672 = vpack.c.b16 %v1456, %v1348
        %v1673 = vpack.c.b16 %v1457, %v1349
        %v1674 = vpack.c.b16 %v1458, %v1350
        %v1675 = vpack.c.b16 %v1459, %v1351
        %v1676 = vpack.c.b16 %v1460, %v1352
        %v1677 = vpack.c.b16 %v1461, %v1353
        %v1678 = vpack.c.b16 %v1462, %v1354
        %v1679 = vpack.c.b16 %v1463, %v1355
        %v1680 = vpack.c.b16 %v1464, %v1356
        %v1681 = vpack.c.b16 %v1465, %v1357
        %v1682 = vpack.c.b16 %v1466, %v1358
        %v1683 = vpack.c.b16 %v1467, %v1359
        %v1684 = vpack.c.b16 %v1468, %v1360
        %v1685 = vpack.c.b16 %v1469, %v1361
        %v1686 = vpack.c.b16 %v1470, %v1362
        %v1687 = vpack.c.b16 %v1471, %v1363
        %v1688 = vpack.c.b16 %v1472, %v1364
        %v1689 = vpack.c.b16 %v1473, %v1365
        %v1690 = vpack.c.b16 %v1474, %v1366
        %v1691 = vpack.c.b16 %v1475, %v1367
        %v1692 = vpack.c.b16 %v1476, %v1368
        %v1693 = vpack.c.b16 %v1477, %v1369
        %v1694 = vpack.c.b16 %v1478, %v1370
        %v1695 = vpack.c.b16 %v1479, %v1371
        %v1696 = vpack.c.b16 %v1480, %v1372
        %v1697 = vpack.c.b16 %v1481, %v1373
        %v1698 = vpack.c.b16 %v1482, %v1374
        %v1699 = vpack.c.b16 %v1483, %v1375
        %v1700 = vpack.c.b16 %v1484, %v1376
        %v1701 = vpack.c.b16 %v1485, %v1377
        %v1702 = vpack.c.b16 %v1486, %v1378
        %v1703 = vpack.c.b16 %v1487, %v1379
        %v1704 = vpack.c.b16 %v1488, %v1380
        %v1705 = vpack.c.b16 %v1489, %v1381
        %v1706 = vpack.c.b16 %v1490, %v1382
        %v1707 = vpack.c.b16 %v1491, %v1383
        %v1708 = vpack.c.b16 %v1492, %v1384
        %v1709 = vpack.c.b16 %v1493, %v1385
        %v1710 = vpack.c.b16 %v1494, %v1386
        %vm1819 = vcmask 220160
        %v1821 = vsel %vm1819, %v624, 0
        %vm1823 = vcmask 1044480
        %vm1824 = vcmask 1045504
        %v1825 = vsel %vm1823, 4294967295, 65535
        %v1826 = vsel %vm1824, %v1825, 0
        %v1828 = vand.u32 %v1603, %v1826
        %v1831 = vand.u32 %v1604, %v1826
        %v1834 = vand.u32 %v1605, %v1826
        %v1837 = vand.u32 %v1606, %v1826
        %v1840 = vand.u32 %v1607, %v1826
        %v1843 = vand.u32 %v1608, %v1826
        %v1846 = vand.u32 %v1609, %v1826
        %v1849 = vand.u32 %v1610, %v1826
        %v1852 = vand.u32 %v1611, %v1826
        %v1855 = vand.u32 %v1612, %v1826
        %v1858 = vand.u32 %v1613, %v1826
        %v1861 = vand.u32 %v1614, %v1826
        %v1864 = vand.u32 %v1615, %v1826
        %v1867 = vand.u32 %v1616, %v1826
        %v1870 = vand.u32 %v1617, %v1826
        %v1873 = vand.u32 %v1618, %v1826
        %v1876 = vand.u32 %v1619, %v1826
        %v1879 = vand.u32 %v1620, %v1826
        %v1882 = vand.u32 %v1621, %v1826
        %v1885 = vand.u32 %v1622, %v1826
        %v1888 = vand.u32 %v1623, %v1826
        %v1891 = vand.u32 %v1624, %v1826
        %v1894 = vand.u32 %v1625, %v1826
        %v1897 = vand.u32 %v1626, %v1826
        %v1900 = vand.u32 %v1627, %v1826
        %v1903 = vand.u32 %v1628, %v1826
        %v1906 = vand.u32 %v1629, %v1826
        %v1909 = vand.u32 %v1630, %v1826
        %v1912 = vand.u32 %v1631, %v1826
        %v1915 = vand.u32 %v1632, %v1826
        %v1918 = vand.u32 %v1633, %v1826
        %v1921 = vand.u32 %v1634, %v1826
        %v1924 = vand.u32 %v1635, %v1826
        %v1927 = vand.u32 %v1636, %v1826
        %v1930 = vand.u32 %v1637, %v1826
        %v1933 = vand.u32 %v1638, %v1826
        %v1936 = vand.u32 %v1639, %v1826
        %v1939 = vand.u32 %v1640, %v1826
        %v1942 = vand.u32 %v1641, %v1826
        %v1945 = vand.u32 %v1642, %v1826
        %v1948 = vand.u32 %v1643, %v1826
        %v1951 = vand.u32 %v1644, %v1826
        %v1954 = vand.u32 %v1645, %v1826
        %v1957 = vand.u32 %v1646, %v1826
        %v1960 = vand.u32 %v1647, %v1826
        %v1963 = vand.u32 %v1648, %v1826
        %v1966 = vand.u32 %v1649, %v1826
        %v1969 = vand.u32 %v1650, %v1826
        %v1972 = vand.u32 %v1651, %v1826
        %v1975 = vand.u32 %v1652, %v1826
        %v1978 = vand.u32 %v1653, %v1826
        %v1981 = vand.u32 %v1654, %v1826
        %v1984 = vand.u32 %v1655, %v1826
        %v1987 = vand.u32 %v1656, %v1826
        %v1990 = vand.u32 %v1657, %v1826
        %v1993 = vand.u32 %v1658, %v1826
        %v1996 = vand.u32 %v1659, %v1826
        %v1999 = vand.u32 %v1660, %v1826
        %v2002 = vand.u32 %v1661, %v1826
        %v2005 = vand.u32 %v1662, %v1826
        %v2008 = vand.u32 %v1663, %v1826
        %v2011 = vand.u32 %v1664, %v1826
        %v2014 = vand.u32 %v1665, %v1826
        %v2017 = vand.u32 %v1666, %v1826
        %v2020 = vand.u32 %v1667, %v1826
        %v2023 = vand.u32 %v1668, %v1826
        %v2026 = vand.u32 %v1669, %v1826
        %v2029 = vand.u32 %v1670, %v1826
        %v2032 = vand.u32 %v1671, %v1826
        %v2035 = vand.u32 %v1672, %v1826
        %v2038 = vand.u32 %v1673, %v1826
        %v2041 = vand.u32 %v1674, %v1826
        %v2044 = vand.u32 %v1675, %v1826
        %v2047 = vand.u32 %v1676, %v1826
        %v2050 = vand.u32 %v1677, %v1826
        %v2053 = vand.u32 %v1678, %v1826
        %v2056 = vand.u32 %v1679, %v1826
        %v2059 = vand.u32 %v1680, %v1826
        %v2062 = vand.u32 %v1681, %v1826
        %v2065 = vand.u32 %v1682, %v1826
        %v2068 = vand.u32 %v1683, %v1826
        %v2071 = vand.u32 %v1684, %v1826
        %v2074 = vand.u32 %v1685, %v1826
        %v2077 = vand.u32 %v1686, %v1826
        %v2080 = vand.u32 %v1687, %v1826
        %v2083 = vand.u32 %v1688, %v1826
        %v2086 = vand.u32 %v1689, %v1826
        %v2089 = vand.u32 %v1690, %v1826
        %v2092 = vand.u32 %v1691, %v1826
        %v2095 = vand.u32 %v1692, %v1826
        %v2098 = vand.u32 %v1693, %v1826
        %v2101 = vand.u32 %v1694, %v1826
        %v2104 = vand.u32 %v1695, %v1826
        %v2107 = vand.u32 %v1696, %v1826
        %v2110 = vand.u32 %v1697, %v1826
        %v2113 = vand.u32 %v1698, %v1826
        %v2116 = vand.u32 %v1699, %v1826
        %v2119 = vand.u32 %v1700, %v1826
        %v2122 = vand.u32 %v1701, %v1826
        %v2125 = vand.u32 %v1702, %v1826
        %v2128 = vand.u32 %v1703, %v1826
        %v2131 = vand.u32 %v1704, %v1826
        %v2134 = vand.u32 %v1705, %v1826
        %v2137 = vand.u32 %v1706, %v1826
        %v2140 = vand.u32 %v1707, %v1826
        %v2143 = vand.u32 %v1708, %v1826
        %v2146 = vand.u32 %v1709, %v1826
        %v2149 = vand.u32 %v1710, %v1826
        %2151 = vmatpush.bf16.msra.mxu0 0
        %2152 = vmatpush.bf16.msra.mxu0 0
        %2153 = vmatpush.bf16.msra.mxu0 0
        %2154 = vmatpush.bf16.msra.mxu0 0
        %2155 = vmatpush.bf16.msra.mxu0 0
        %2156 = vmatpush.bf16.msra.mxu0 0
        %2157 = vmatpush.bf16.msra.mxu0 %v1828
        %2158 = vmatpush.bf16.msra.mxu0 %v1495
        %2159 = vmatmul.bf16.gmra.mxu0 %v1821
        %v2160 = vpop.f32.mrf.mxu0
        %v2161 = vadd.f32 %v845, %v2160
        %v2162 = vpop.f32.mrf.mxu0
        %2163 = vdwg.mxu0
        %2164 = vmatpush.bf16.msra.mxu0 0
        %2165 = vmatpush.bf16.msra.mxu0 0
        %2166 = vmatpush.bf16.msra.mxu0 0
        %2167 = vmatpush.bf16.msra.mxu0 0
        %2168 = vmatpush.bf16.msra.mxu0 0
        %2169 = vmatpush.bf16.msra.mxu0 0
        %2170 = vmatpush.bf16.msra.mxu0 %v1831
        %2171 = vmatpush.bf16.msra.mxu0 %v1496
        %2172 = vmatmul.bf16.gmra.mxu0 %v1821
        %v2173 = vpop.f32.mrf.mxu0
        %v2174 = vadd.f32 %v845, %v2173
        %v2175 = vpop.f32.mrf.mxu0
        %2176 = vdwg.mxu0
        %2177 = vmatpush.bf16.msra.mxu0 0
        %2178 = vmatpush.bf16.msra.mxu0 0
        %2179 = vmatpush.bf16.msra.mxu0 0
        %2180 = vmatpush.bf16.msra.mxu0 0
        %2181 = vmatpush.bf16.msra.mxu0 0
        %2182 = vmatpush.bf16.msra.mxu0 0
        %2183 = vmatpush.bf16.msra.mxu0 %v1834
        %2184 = vmatpush.bf16.msra.mxu0 %v1497
        %2185 = vmatmul.bf16.gmra.mxu0 %v1821
        %v2186 = vpop.f32.mrf.mxu0
        %v2187 = vadd.f32 %v845, %v2186
        %v2188 = vpop.f32.mrf.mxu0
        %2189 = vdwg.mxu0
        %2190 = vmatpush.bf16.msra.mxu0 0
        %2191 = vmatpush.bf16.msra.mxu0 0
        %2192 = vmatpush.bf16.msra.mxu0 0
        %2193 = vmatpush.bf16.msra.mxu0 0
        %2194 = vmatpush.bf16.msra.mxu0 0
        %2195 = vmatpush.bf16.msra.mxu0 0
        %2196 = vmatpush.bf16.msra.mxu0 %v1837
        %2197 = vmatpush.bf16.msra.mxu0 %v1498
        %2198 = vmatmul.bf16.gmra.mxu0 %v1821
        %v2199 = vpop.f32.mrf.mxu0
        %v2200 = vadd.f32 %v845, %v2199
        %v2201 = vpop.f32.mrf.mxu0
        %2202 = vdwg.mxu0
        %2203 = vmatpush.bf16.msra.mxu0 0
        %2204 = vmatpush.bf16.msra.mxu0 0
        %2205 = vmatpush.bf16.msra.mxu0 0
        %2206 = vmatpush.bf16.msra.mxu0 0
        %2207 = vmatpush.bf16.msra.mxu0 0
        %2208 = vmatpush.bf16.msra.mxu0 0
        %2209 = vmatpush.bf16.msra.mxu0 %v1840
        %2210 = vmatpush.bf16.msra.mxu0 %v1499
        %2211 = vmatmul.bf16.gmra.mxu0 %v1821
        %v2212 = vpop.f32.mrf.mxu0
        %v2213 = vadd.f32 %v845, %v2212
        %v2214 = vpop.f32.mrf.mxu0
        %2215 = vdwg.mxu0
        %2216 = vmatpush.bf16.msra.mxu0 0
        %2217 = vmatpush.bf16.msra.mxu0 0
        %2218 = vmatpush.bf16.msra.mxu0 0
        %2219 = vmatpush.bf16.msra.mxu0 0
        %2220 = vmatpush.bf16.msra.mxu0 0
        %2221 = vmatpush.bf16.msra.mxu0 0
        %2222 = vmatpush.bf16.msra.mxu0 %v1843
        %2223 = vmatpush.bf16.msra.mxu0 %v1500
        %2224 = vmatmul.bf16.gmra.mxu0 %v1821
        %v2225 = vpop.f32.mrf.mxu0
        %v2226 = vadd.f32 %v845, %v2225
        %v2227 = vpop.f32.mrf.mxu0
        %2228 = vdwg.mxu0
        %2229 = vmatpush.bf16.msra.mxu0 0
        %2230 = vmatpush.bf16.msra.mxu0 0
        %2231 = vmatpush.bf16.msra.mxu0 0
        %2232 = vmatpush.bf16.msra.mxu0 0
        %2233 = vmatpush.bf16.msra.mxu0 0
        %2234 = vmatpush.bf16.msra.mxu0 0
        %2235 = vmatpush.bf16.msra.mxu0 %v1846
        %2236 = vmatpush.bf16.msra.mxu0 %v1501
        %2237 = vmatmul.bf16.gmra.mxu0 %v1821
        %v2238 = vpop.f32.mrf.mxu0
        %v2239 = vadd.f32 %v845, %v2238
        %v2240 = vpop.f32.mrf.mxu0
        %2241 = vdwg.mxu0
        %2242 = vmatpush.bf16.msra.mxu0 0
        %2243 = vmatpush.bf16.msra.mxu0 0
        %2244 = vmatpush.bf16.msra.mxu0 0
        %2245 = vmatpush.bf16.msra.mxu0 0
        %2246 = vmatpush.bf16.msra.mxu0 0
        %2247 = vmatpush.bf16.msra.mxu0 0
        %2248 = vmatpush.bf16.msra.mxu0 %v1849
        %2249 = vmatpush.bf16.msra.mxu0 %v1502
        %2250 = vmatmul.bf16.gmra.mxu0 %v1821
        %v2251 = vpop.f32.mrf.mxu0
        %v2252 = vadd.f32 %v845, %v2251
        %v2253 = vpop.f32.mrf.mxu0
        %2254 = vdwg.mxu0
        %2255 = vmatpush.bf16.msra.mxu0 0
        %2256 = vmatpush.bf16.msra.mxu0 0
        %2257 = vmatpush.bf16.msra.mxu0 0
        %2258 = vmatpush.bf16.msra.mxu0 0
        %2259 = vmatpush.bf16.msra.mxu0 0
        %2260 = vmatpush.bf16.msra.mxu0 0
        %2261 = vmatpush.bf16.msra.mxu0 %v1852
        %2262 = vmatpush.bf16.msra.mxu0 %v1503
        %2263 = vmatmul.bf16.gmra.mxu0 %v1821
        %v2264 = vpop.f32.mrf.mxu0
        %v2265 = vadd.f32 %v845, %v2264
        %v2266 = vpop.f32.mrf.mxu0
        %2267 = vdwg.mxu0
        %2268 = vmatpush.bf16.msra.mxu0 0
        %2269 = vmatpush.bf16.msra.mxu0 0
        %2270 = vmatpush.bf16.msra.mxu0 0
        %2271 = vmatpush.bf16.msra.mxu0 0
        %2272 = vmatpush.bf16.msra.mxu0 0
        %2273 = vmatpush.bf16.msra.mxu0 0
        %2274 = vmatpush.bf16.msra.mxu0 %v1855
        %2275 = vmatpush.bf16.msra.mxu0 %v1504
        %2276 = vmatmul.bf16.gmra.mxu0 %v1821
        %v2277 = vpop.f32.mrf.mxu0
        %v2278 = vadd.f32 %v845, %v2277
        %v2279 = vpop.f32.mrf.mxu0
        %2280 = vdwg.mxu0
        %2281 = vmatpush.bf16.msra.mxu0 0
        %2282 = vmatpush.bf16.msra.mxu0 0
        %2283 = vmatpush.bf16.msra.mxu0 0
        %2284 = vmatpush.bf16.msra.mxu0 0
        %2285 = vmatpush.bf16.msra.mxu0 0
        %2286 = vmatpush.bf16.msra.mxu0 0
        %2287 = vmatpush.bf16.msra.mxu0 %v1858
        %2288 = vmatpush.bf16.msra.mxu0 %v1505
        %2289 = vmatmul.bf16.gmra.mxu0 %v1821
        %v2290 = vpop.f32.mrf.mxu0
        %v2291 = vadd.f32 %v845, %v2290
        %v2292 = vpop.f32.mrf.mxu0
        %2293 = vdwg.mxu0
        %2294 = vmatpush.bf16.msra.mxu0 0
        %2295 = vmatpush.bf16.msra.mxu0 0
        %2296 = vmatpush.bf16.msra.mxu0 0
        %2297 = vmatpush.bf16.msra.mxu0 0
        %2298 = vmatpush.bf16.msra.mxu0 0
        %2299 = vmatpush.bf16.msra.mxu0 0
        %2300 = vmatpush.bf16.msra.mxu0 %v1861
        %2301 = vmatpush.bf16.msra.mxu0 %v1506
        %2302 = vmatmul.bf16.gmra.mxu0 %v1821
        %v2303 = vpop.f32.mrf.mxu0
        %v2304 = vadd.f32 %v845, %v2303
        %v2305 = vpop.f32.mrf.mxu0
        %2306 = vdwg.mxu0
        %2307 = vmatpush.bf16.msra.mxu0 0
        %2308 = vmatpush.bf16.msra.mxu0 0
        %2309 = vmatpush.bf16.msra.mxu0 0
        %2310 = vmatpush.bf16.msra.mxu0 0
        %2311 = vmatpush.bf16.msra.mxu0 0
        %2312 = vmatpush.bf16.msra.mxu0 0
        %2313 = vmatpush.bf16.msra.mxu0 %v1864
        %2314 = vmatpush.bf16.msra.mxu0 %v1507
        %2315 = vmatmul.bf16.gmra.mxu0 %v1821
        %v2316 = vpop.f32.mrf.mxu0
        %v2317 = vadd.f32 %v845, %v2316
        %v2318 = vpop.f32.mrf.mxu0
        %2319 = vdwg.mxu0
        %2320 = vmatpush.bf16.msra.mxu0 0
        %2321 = vmatpush.bf16.msra.mxu0 0
        %2322 = vmatpush.bf16.msra.mxu0 0
        %2323 = vmatpush.bf16.msra.mxu0 0
        %2324 = vmatpush.bf16.msra.mxu0 0
        %2325 = vmatpush.bf16.msra.mxu0 0
        %2326 = vmatpush.bf16.msra.mxu0 %v1867
        %2327 = vmatpush.bf16.msra.mxu0 %v1508
        %2328 = vmatmul.bf16.gmra.mxu0 %v1821
        %v2329 = vpop.f32.mrf.mxu0
        %v2330 = vadd.f32 %v845, %v2329
        %v2331 = vpop.f32.mrf.mxu0
        %2332 = vdwg.mxu0
        %2333 = vmatpush.bf16.msra.mxu0 0
        %2334 = vmatpush.bf16.msra.mxu0 0
        %2335 = vmatpush.bf16.msra.mxu0 0
        %2336 = vmatpush.bf16.msra.mxu0 0
        %2337 = vmatpush.bf16.msra.mxu0 0
        %2338 = vmatpush.bf16.msra.mxu0 0
        %2339 = vmatpush.bf16.msra.mxu0 %v1870
        %2340 = vmatpush.bf16.msra.mxu0 %v1509
        %2341 = vmatmul.bf16.gmra.mxu0 %v1821
        %v2342 = vpop.f32.mrf.mxu0
        %v2343 = vadd.f32 %v845, %v2342
        %v2344 = vpop.f32.mrf.mxu0
        %2345 = vdwg.mxu0
        %2346 = vmatpush.bf16.msra.mxu0 0
        %2347 = vmatpush.bf16.msra.mxu0 0
        %2348 = vmatpush.bf16.msra.mxu0 0
        %2349 = vmatpush.bf16.msra.mxu0 0
        %2350 = vmatpush.bf16.msra.mxu0 0
        %2351 = vmatpush.bf16.msra.mxu0 0
        %2352 = vmatpush.bf16.msra.mxu0 %v1873
        %2353 = vmatpush.bf16.msra.mxu0 %v1510
        %2354 = vmatmul.bf16.gmra.mxu0 %v1821
        %v2355 = vpop.f32.mrf.mxu0
        %v2356 = vadd.f32 %v845, %v2355
        %v2357 = vpop.f32.mrf.mxu0
        %2358 = vdwg.mxu0
        %2359 = vmatpush.bf16.msra.mxu0 0
        %2360 = vmatpush.bf16.msra.mxu0 0
        %2361 = vmatpush.bf16.msra.mxu0 0
        %2362 = vmatpush.bf16.msra.mxu0 0
        %2363 = vmatpush.bf16.msra.mxu0 0
        %2364 = vmatpush.bf16.msra.mxu0 0
        %2365 = vmatpush.bf16.msra.mxu0 %v1876
        %2366 = vmatpush.bf16.msra.mxu0 %v1511
        %2367 = vmatmul.bf16.gmra.mxu0 %v1821
        %v2368 = vpop.f32.mrf.mxu0
        %v2369 = vadd.f32 %v845, %v2368
        %v2370 = vpop.f32.mrf.mxu0
        %2371 = vdwg.mxu0
        %2372 = vmatpush.bf16.msra.mxu0 0
        %2373 = vmatpush.bf16.msra.mxu0 0
        %2374 = vmatpush.bf16.msra.mxu0 0
        %2375 = vmatpush.bf16.msra.mxu0 0
        %2376 = vmatpush.bf16.msra.mxu0 0
        %2377 = vmatpush.bf16.msra.mxu0 0
        %2378 = vmatpush.bf16.msra.mxu0 %v1879
        %2379 = vmatpush.bf16.msra.mxu0 %v1512
        %2380 = vmatmul.bf16.gmra.mxu0 %v1821
        %v2381 = vpop.f32.mrf.mxu0
        %v2382 = vadd.f32 %v845, %v2381
        %v2383 = vpop.f32.mrf.mxu0
        %2384 = vdwg.mxu0
        %2385 = vmatpush.bf16.msra.mxu0 0
        %2386 = vmatpush.bf16.msra.mxu0 0
        %2387 = vmatpush.bf16.msra.mxu0 0
        %2388 = vmatpush.bf16.msra.mxu0 0
        %2389 = vmatpush.bf16.msra.mxu0 0
        %2390 = vmatpush.bf16.msra.mxu0 0
        %2391 = vmatpush.bf16.msra.mxu0 %v1882
        %2392 = vmatpush.bf16.msra.mxu0 %v1513
        %2393 = vmatmul.bf16.gmra.mxu0 %v1821
        %v2394 = vpop.f32.mrf.mxu0
        %v2395 = vadd.f32 %v845, %v2394
        %v2396 = vpop.f32.mrf.mxu0
        %2397 = vdwg.mxu0
        %2398 = vmatpush.bf16.msra.mxu0 0
        %2399 = vmatpush.bf16.msra.mxu0 0
        %2400 = vmatpush.bf16.msra.mxu0 0
        %2401 = vmatpush.bf16.msra.mxu0 0
        %2402 = vmatpush.bf16.msra.mxu0 0
        %2403 = vmatpush.bf16.msra.mxu0 0
        %2404 = vmatpush.bf16.msra.mxu0 %v1885
        %2405 = vmatpush.bf16.msra.mxu0 %v1514
        %2406 = vmatmul.bf16.gmra.mxu0 %v1821
        %v2407 = vpop.f32.mrf.mxu0
        %v2408 = vadd.f32 %v845, %v2407
        %v2409 = vpop.f32.mrf.mxu0
        %2410 = vdwg.mxu0
        %2411 = vmatpush.bf16.msra.mxu0 0
        %2412 = vmatpush.bf16.msra.mxu0 0
        %2413 = vmatpush.bf16.msra.mxu0 0
        %2414 = vmatpush.bf16.msra.mxu0 0
        %2415 = vmatpush.bf16.msra.mxu0 0
        %2416 = vmatpush.bf16.msra.mxu0 0
        %2417 = vmatpush.bf16.msra.mxu0 %v1888
        %2418 = vmatpush.bf16.msra.mxu0 %v1515
        %2419 = vmatmul.bf16.gmra.mxu0 %v1821
        %v2420 = vpop.f32.mrf.mxu0
        %v2421 = vadd.f32 %v845, %v2420
        %v2422 = vpop.f32.mrf.mxu0
        %2423 = vdwg.mxu0
        %2424 = vmatpush.bf16.msra.mxu0 0
        %2425 = vmatpush.bf16.msra.mxu0 0
        %2426 = vmatpush.bf16.msra.mxu0 0
        %2427 = vmatpush.bf16.msra.mxu0 0
        %2428 = vmatpush.bf16.msra.mxu0 0
        %2429 = vmatpush.bf16.msra.mxu0 0
        %2430 = vmatpush.bf16.msra.mxu0 %v1891
        %2431 = vmatpush.bf16.msra.mxu0 %v1516
        %2432 = vmatmul.bf16.gmra.mxu0 %v1821
        %v2433 = vpop.f32.mrf.mxu0
        %v2434 = vadd.f32 %v845, %v2433
        %v2435 = vpop.f32.mrf.mxu0
        %2436 = vdwg.mxu0
        %2437 = vmatpush.bf16.msra.mxu0 0
        %2438 = vmatpush.bf16.msra.mxu0 0
        %2439 = vmatpush.bf16.msra.mxu0 0
        %2440 = vmatpush.bf16.msra.mxu0 0
        %2441 = vmatpush.bf16.msra.mxu0 0
        %2442 = vmatpush.bf16.msra.mxu0 0
        %2443 = vmatpush.bf16.msra.mxu0 %v1894
        %2444 = vmatpush.bf16.msra.mxu0 %v1517
        %2445 = vmatmul.bf16.gmra.mxu0 %v1821
        %v2446 = vpop.f32.mrf.mxu0
        %v2447 = vadd.f32 %v845, %v2446
        %v2448 = vpop.f32.mrf.mxu0
        %2449 = vdwg.mxu0
        %2450 = vmatpush.bf16.msra.mxu0 0
        %2451 = vmatpush.bf16.msra.mxu0 0
        %2452 = vmatpush.bf16.msra.mxu0 0
        %2453 = vmatpush.bf16.msra.mxu0 0
        %2454 = vmatpush.bf16.msra.mxu0 0
        %2455 = vmatpush.bf16.msra.mxu0 0
        %2456 = vmatpush.bf16.msra.mxu0 %v1897
        %2457 = vmatpush.bf16.msra.mxu0 %v1518
        %2458 = vmatmul.bf16.gmra.mxu0 %v1821
        %v2459 = vpop.f32.mrf.mxu0
        %v2460 = vadd.f32 %v845, %v2459
        %v2461 = vpop.f32.mrf.mxu0
        %2462 = vdwg.mxu0
        %2463 = vmatpush.bf16.msra.mxu0 0
        %2464 = vmatpush.bf16.msra.mxu0 0
        %2465 = vmatpush.bf16.msra.mxu0 0
        %2466 = vmatpush.bf16.msra.mxu0 0
        %2467 = vmatpush.bf16.msra.mxu0 0
        %2468 = vmatpush.bf16.msra.mxu0 0
        %2469 = vmatpush.bf16.msra.mxu0 %v1900
        %2470 = vmatpush.bf16.msra.mxu0 %v1519
        %2471 = vmatmul.bf16.gmra.mxu0 %v1821
        %v2472 = vpop.f32.mrf.mxu0
        %v2473 = vadd.f32 %v845, %v2472
        %v2474 = vpop.f32.mrf.mxu0
        %2475 = vdwg.mxu0
        %2476 = vmatpush.bf16.msra.mxu0 0
        %2477 = vmatpush.bf16.msra.mxu0 0
        %2478 = vmatpush.bf16.msra.mxu0 0
        %2479 = vmatpush.bf16.msra.mxu0 0
        %2480 = vmatpush.bf16.msra.mxu0 0
        %2481 = vmatpush.bf16.msra.mxu0 0
        %2482 = vmatpush.bf16.msra.mxu0 %v1903
        %2483 = vmatpush.bf16.msra.mxu0 %v1520
        %2484 = vmatmul.bf16.gmra.mxu0 %v1821
        %v2485 = vpop.f32.mrf.mxu0
        %v2486 = vadd.f32 %v845, %v2485
        %v2487 = vpop.f32.mrf.mxu0
        %2488 = vdwg.mxu0
        %2489 = vmatpush.bf16.msra.mxu0 0
        %2490 = vmatpush.bf16.msra.mxu0 0
        %2491 = vmatpush.bf16.msra.mxu0 0
        %2492 = vmatpush.bf16.msra.mxu0 0
        %2493 = vmatpush.bf16.msra.mxu0 0
        %2494 = vmatpush.bf16.msra.mxu0 0
        %2495 = vmatpush.bf16.msra.mxu0 %v1906
        %2496 = vmatpush.bf16.msra.mxu0 %v1521
        %2497 = vmatmul.bf16.gmra.mxu0 %v1821
        %v2498 = vpop.f32.mrf.mxu0
        %v2499 = vadd.f32 %v845, %v2498
        %v2500 = vpop.f32.mrf.mxu0
        %2501 = vdwg.mxu0
        %2502 = vmatpush.bf16.msra.mxu0 0
        %2503 = vmatpush.bf16.msra.mxu0 0
        %2504 = vmatpush.bf16.msra.mxu0 0
        %2505 = vmatpush.bf16.msra.mxu0 0
        %2506 = vmatpush.bf16.msra.mxu0 0
        %2507 = vmatpush.bf16.msra.mxu0 0
        %2508 = vmatpush.bf16.msra.mxu0 %v1909
        %2509 = vmatpush.bf16.msra.mxu0 %v1522
        %2510 = vmatmul.bf16.gmra.mxu0 %v1821
        %v2511 = vpop.f32.mrf.mxu0
        %v2512 = vadd.f32 %v845, %v2511
        %v2513 = vpop.f32.mrf.mxu0
        %2514 = vdwg.mxu0
        %2515 = vmatpush.bf16.msra.mxu0 0
        %2516 = vmatpush.bf16.msra.mxu0 0
        %2517 = vmatpush.bf16.msra.mxu0 0
        %2518 = vmatpush.bf16.msra.mxu0 0
        %2519 = vmatpush.bf16.msra.mxu0 0
        %2520 = vmatpush.bf16.msra.mxu0 0
        %2521 = vmatpush.bf16.msra.mxu0 %v1912
        %2522 = vmatpush.bf16.msra.mxu0 %v1523
        %2523 = vmatmul.bf16.gmra.mxu0 %v1821
        %v2524 = vpop.f32.mrf.mxu0
        %v2525 = vadd.f32 %v845, %v2524
        %v2526 = vpop.f32.mrf.mxu0
        %2527 = vdwg.mxu0
        %2528 = vmatpush.bf16.msra.mxu0 0
        %2529 = vmatpush.bf16.msra.mxu0 0
        %2530 = vmatpush.bf16.msra.mxu0 0
        %2531 = vmatpush.bf16.msra.mxu0 0
        %2532 = vmatpush.bf16.msra.mxu0 0
        %2533 = vmatpush.bf16.msra.mxu0 0
        %2534 = vmatpush.bf16.msra.mxu0 %v1915
        %2535 = vmatpush.bf16.msra.mxu0 %v1524
        %2536 = vmatmul.bf16.gmra.mxu0 %v1821
        %v2537 = vpop.f32.mrf.mxu0
        %v2538 = vadd.f32 %v845, %v2537
        %v2539 = vpop.f32.mrf.mxu0
        %2540 = vdwg.mxu0
        %2541 = vmatpush.bf16.msra.mxu0 0
        %2542 = vmatpush.bf16.msra.mxu0 0
        %2543 = vmatpush.bf16.msra.mxu0 0
        %2544 = vmatpush.bf16.msra.mxu0 0
        %2545 = vmatpush.bf16.msra.mxu0 0
        %2546 = vmatpush.bf16.msra.mxu0 0
        %2547 = vmatpush.bf16.msra.mxu0 %v1918
        %2548 = vmatpush.bf16.msra.mxu0 %v1525
        %2549 = vmatmul.bf16.gmra.mxu0 %v1821
        %v2550 = vpop.f32.mrf.mxu0
        %v2551 = vadd.f32 %v845, %v2550
        %v2552 = vpop.f32.mrf.mxu0
        %2553 = vdwg.mxu0
        %2554 = vmatpush.bf16.msra.mxu0 0
        %2555 = vmatpush.bf16.msra.mxu0 0
        %2556 = vmatpush.bf16.msra.mxu0 0
        %2557 = vmatpush.bf16.msra.mxu0 0
        %2558 = vmatpush.bf16.msra.mxu0 0
        %2559 = vmatpush.bf16.msra.mxu0 0
        %2560 = vmatpush.bf16.msra.mxu0 %v1921
        %2561 = vmatpush.bf16.msra.mxu0 %v1526
        %2562 = vmatmul.bf16.gmra.mxu0 %v1821
        %v2563 = vpop.f32.mrf.mxu0
        %v2564 = vadd.f32 %v845, %v2563
        %v2565 = vpop.f32.mrf.mxu0
        %2566 = vdwg.mxu0
        %2567 = vmatpush.bf16.msra.mxu0 0
        %2568 = vmatpush.bf16.msra.mxu0 0
        %2569 = vmatpush.bf16.msra.mxu0 0
        %2570 = vmatpush.bf16.msra.mxu0 0
        %2571 = vmatpush.bf16.msra.mxu0 0
        %2572 = vmatpush.bf16.msra.mxu0 0
        %2573 = vmatpush.bf16.msra.mxu0 %v1924
        %2574 = vmatpush.bf16.msra.mxu0 %v1527
        %2575 = vmatmul.bf16.gmra.mxu0 %v1821
        %v2576 = vpop.f32.mrf.mxu0
        %v2577 = vadd.f32 %v845, %v2576
        %v2578 = vpop.f32.mrf.mxu0
        %2579 = vdwg.mxu0
        %2580 = vmatpush.bf16.msra.mxu0 0
        %2581 = vmatpush.bf16.msra.mxu0 0
        %2582 = vmatpush.bf16.msra.mxu0 0
        %2583 = vmatpush.bf16.msra.mxu0 0
        %2584 = vmatpush.bf16.msra.mxu0 0
        %2585 = vmatpush.bf16.msra.mxu0 0
        %2586 = vmatpush.bf16.msra.mxu0 %v1927
        %2587 = vmatpush.bf16.msra.mxu0 %v1528
        %2588 = vmatmul.bf16.gmra.mxu0 %v1821
        %v2589 = vpop.f32.mrf.mxu0
        %v2590 = vadd.f32 %v845, %v2589
        %v2591 = vpop.f32.mrf.mxu0
        %2592 = vdwg.mxu0
        %2593 = vmatpush.bf16.msra.mxu0 0
        %2594 = vmatpush.bf16.msra.mxu0 0
        %2595 = vmatpush.bf16.msra.mxu0 0
        %2596 = vmatpush.bf16.msra.mxu0 0
        %2597 = vmatpush.bf16.msra.mxu0 0
        %2598 = vmatpush.bf16.msra.mxu0 0
        %2599 = vmatpush.bf16.msra.mxu0 %v1930
        %2600 = vmatpush.bf16.msra.mxu0 %v1529
        %2601 = vmatmul.bf16.gmra.mxu0 %v1821
        %v2602 = vpop.f32.mrf.mxu0
        %v2603 = vadd.f32 %v845, %v2602
        %v2604 = vpop.f32.mrf.mxu0
        %2605 = vdwg.mxu0
        %2606 = vmatpush.bf16.msra.mxu0 0
        %2607 = vmatpush.bf16.msra.mxu0 0
        %2608 = vmatpush.bf16.msra.mxu0 0
        %2609 = vmatpush.bf16.msra.mxu0 0
        %2610 = vmatpush.bf16.msra.mxu0 0
        %2611 = vmatpush.bf16.msra.mxu0 0
        %2612 = vmatpush.bf16.msra.mxu0 %v1933
        %2613 = vmatpush.bf16.msra.mxu0 %v1530
        %2614 = vmatmul.bf16.gmra.mxu0 %v1821
        %v2615 = vpop.f32.mrf.mxu0
        %v2616 = vadd.f32 %v845, %v2615
        %v2617 = vpop.f32.mrf.mxu0
        %2618 = vdwg.mxu0
        %2619 = vmatpush.bf16.msra.mxu0 0
        %2620 = vmatpush.bf16.msra.mxu0 0
        %2621 = vmatpush.bf16.msra.mxu0 0
        %2622 = vmatpush.bf16.msra.mxu0 0
        %2623 = vmatpush.bf16.msra.mxu0 0
        %2624 = vmatpush.bf16.msra.mxu0 0
        %2625 = vmatpush.bf16.msra.mxu0 %v1936
        %2626 = vmatpush.bf16.msra.mxu0 %v1531
        %2627 = vmatmul.bf16.gmra.mxu0 %v1821
        %v2628 = vpop.f32.mrf.mxu0
        %v2629 = vadd.f32 %v845, %v2628
        %v2630 = vpop.f32.mrf.mxu0
        %2631 = vdwg.mxu0
        %2632 = vmatpush.bf16.msra.mxu0 0
        %2633 = vmatpush.bf16.msra.mxu0 0
        %2634 = vmatpush.bf16.msra.mxu0 0
        %2635 = vmatpush.bf16.msra.mxu0 0
        %2636 = vmatpush.bf16.msra.mxu0 0
        %2637 = vmatpush.bf16.msra.mxu0 0
        %2638 = vmatpush.bf16.msra.mxu0 %v1939
        %2639 = vmatpush.bf16.msra.mxu0 %v1532
        %2640 = vmatmul.bf16.gmra.mxu0 %v1821
        %v2641 = vpop.f32.mrf.mxu0
        %v2642 = vadd.f32 %v845, %v2641
        %v2643 = vpop.f32.mrf.mxu0
        %2644 = vdwg.mxu0
        %2645 = vmatpush.bf16.msra.mxu0 0
        %2646 = vmatpush.bf16.msra.mxu0 0
        %2647 = vmatpush.bf16.msra.mxu0 0
        %2648 = vmatpush.bf16.msra.mxu0 0
        %2649 = vmatpush.bf16.msra.mxu0 0
        %2650 = vmatpush.bf16.msra.mxu0 0
        %2651 = vmatpush.bf16.msra.mxu0 %v1942
        %2652 = vmatpush.bf16.msra.mxu0 %v1533
        %2653 = vmatmul.bf16.gmra.mxu0 %v1821
        %v2654 = vpop.f32.mrf.mxu0
        %v2655 = vadd.f32 %v845, %v2654
        %v2656 = vpop.f32.mrf.mxu0
        %2657 = vdwg.mxu0
        %2658 = vmatpush.bf16.msra.mxu0 0
        %2659 = vmatpush.bf16.msra.mxu0 0
        %2660 = vmatpush.bf16.msra.mxu0 0
        %2661 = vmatpush.bf16.msra.mxu0 0
        %2662 = vmatpush.bf16.msra.mxu0 0
        %2663 = vmatpush.bf16.msra.mxu0 0
        %2664 = vmatpush.bf16.msra.mxu0 %v1945
        %2665 = vmatpush.bf16.msra.mxu0 %v1534
        %2666 = vmatmul.bf16.gmra.mxu0 %v1821
        %v2667 = vpop.f32.mrf.mxu0
        %v2668 = vadd.f32 %v845, %v2667
        %v2669 = vpop.f32.mrf.mxu0
        %2670 = vdwg.mxu0
        %2671 = vmatpush.bf16.msra.mxu0 0
        %2672 = vmatpush.bf16.msra.mxu0 0
        %2673 = vmatpush.bf16.msra.mxu0 0
        %2674 = vmatpush.bf16.msra.mxu0 0
        %2675 = vmatpush.bf16.msra.mxu0 0
        %2676 = vmatpush.bf16.msra.mxu0 0
        %2677 = vmatpush.bf16.msra.mxu0 %v1948
        %2678 = vmatpush.bf16.msra.mxu0 %v1535
        %2679 = vmatmul.bf16.gmra.mxu0 %v1821
        %v2680 = vpop.f32.mrf.mxu0
        %v2681 = vadd.f32 %v845, %v2680
        %v2682 = vpop.f32.mrf.mxu0
        %2683 = vdwg.mxu0
        %2684 = vmatpush.bf16.msra.mxu0 0
        %2685 = vmatpush.bf16.msra.mxu0 0
        %2686 = vmatpush.bf16.msra.mxu0 0
        %2687 = vmatpush.bf16.msra.mxu0 0
        %2688 = vmatpush.bf16.msra.mxu0 0
        %2689 = vmatpush.bf16.msra.mxu0 0
        %2690 = vmatpush.bf16.msra.mxu0 %v1951
        %2691 = vmatpush.bf16.msra.mxu0 %v1536
        %2692 = vmatmul.bf16.gmra.mxu0 %v1821
        %v2693 = vpop.f32.mrf.mxu0
        %v2694 = vadd.f32 %v845, %v2693
        %v2695 = vpop.f32.mrf.mxu0
        %2696 = vdwg.mxu0
        %2697 = vmatpush.bf16.msra.mxu0 0
        %2698 = vmatpush.bf16.msra.mxu0 0
        %2699 = vmatpush.bf16.msra.mxu0 0
        %2700 = vmatpush.bf16.msra.mxu0 0
        %2701 = vmatpush.bf16.msra.mxu0 0
        %2702 = vmatpush.bf16.msra.mxu0 0
        %2703 = vmatpush.bf16.msra.mxu0 %v1954
        %2704 = vmatpush.bf16.msra.mxu0 %v1537
        %2705 = vmatmul.bf16.gmra.mxu0 %v1821
        %v2706 = vpop.f32.mrf.mxu0
        %v2707 = vadd.f32 %v845, %v2706
        %v2708 = vpop.f32.mrf.mxu0
        %2709 = vdwg.mxu0
        %2710 = vmatpush.bf16.msra.mxu0 0
        %2711 = vmatpush.bf16.msra.mxu0 0
        %2712 = vmatpush.bf16.msra.mxu0 0
        %2713 = vmatpush.bf16.msra.mxu0 0
        %2714 = vmatpush.bf16.msra.mxu0 0
        %2715 = vmatpush.bf16.msra.mxu0 0
        %2716 = vmatpush.bf16.msra.mxu0 %v1957
        %2717 = vmatpush.bf16.msra.mxu0 %v1538
        %2718 = vmatmul.bf16.gmra.mxu0 %v1821
        %v2719 = vpop.f32.mrf.mxu0
        %v2720 = vadd.f32 %v845, %v2719
        %v2721 = vpop.f32.mrf.mxu0
        %2722 = vdwg.mxu0
        %2723 = vmatpush.bf16.msra.mxu0 0
        %2724 = vmatpush.bf16.msra.mxu0 0
        %2725 = vmatpush.bf16.msra.mxu0 0
        %2726 = vmatpush.bf16.msra.mxu0 0
        %2727 = vmatpush.bf16.msra.mxu0 0
        %2728 = vmatpush.bf16.msra.mxu0 0
        %2729 = vmatpush.bf16.msra.mxu0 %v1960
        %2730 = vmatpush.bf16.msra.mxu0 %v1539
        %2731 = vmatmul.bf16.gmra.mxu0 %v1821
        %v2732 = vpop.f32.mrf.mxu0
        %v2733 = vadd.f32 %v845, %v2732
        %v2734 = vpop.f32.mrf.mxu0
        %2735 = vdwg.mxu0
        %2736 = vmatpush.bf16.msra.mxu0 0
        %2737 = vmatpush.bf16.msra.mxu0 0
        %2738 = vmatpush.bf16.msra.mxu0 0
        %2739 = vmatpush.bf16.msra.mxu0 0
        %2740 = vmatpush.bf16.msra.mxu0 0
        %2741 = vmatpush.bf16.msra.mxu0 0
        %2742 = vmatpush.bf16.msra.mxu0 %v1963
        %2743 = vmatpush.bf16.msra.mxu0 %v1540
        %2744 = vmatmul.bf16.gmra.mxu0 %v1821
        %v2745 = vpop.f32.mrf.mxu0
        %v2746 = vadd.f32 %v845, %v2745
        %v2747 = vpop.f32.mrf.mxu0
        %2748 = vdwg.mxu0
        %2749 = vmatpush.bf16.msra.mxu0 0
        %2750 = vmatpush.bf16.msra.mxu0 0
        %2751 = vmatpush.bf16.msra.mxu0 0
        %2752 = vmatpush.bf16.msra.mxu0 0
        %2753 = vmatpush.bf16.msra.mxu0 0
        %2754 = vmatpush.bf16.msra.mxu0 0
        %2755 = vmatpush.bf16.msra.mxu0 %v1966
        %2756 = vmatpush.bf16.msra.mxu0 %v1541
        %2757 = vmatmul.bf16.gmra.mxu0 %v1821
        %v2758 = vpop.f32.mrf.mxu0
        %v2759 = vadd.f32 %v845, %v2758
        %v2760 = vpop.f32.mrf.mxu0
        %2761 = vdwg.mxu0
        %2762 = vmatpush.bf16.msra.mxu0 0
        %2763 = vmatpush.bf16.msra.mxu0 0
        %2764 = vmatpush.bf16.msra.mxu0 0
        %2765 = vmatpush.bf16.msra.mxu0 0
        %2766 = vmatpush.bf16.msra.mxu0 0
        %2767 = vmatpush.bf16.msra.mxu0 0
        %2768 = vmatpush.bf16.msra.mxu0 %v1969
        %2769 = vmatpush.bf16.msra.mxu0 %v1542
        %2770 = vmatmul.bf16.gmra.mxu0 %v1821
        %v2771 = vpop.f32.mrf.mxu0
        %v2772 = vadd.f32 %v845, %v2771
        %v2773 = vpop.f32.mrf.mxu0
        %2774 = vdwg.mxu0
        %2775 = vmatpush.bf16.msra.mxu0 0
        %2776 = vmatpush.bf16.msra.mxu0 0
        %2777 = vmatpush.bf16.msra.mxu0 0
        %2778 = vmatpush.bf16.msra.mxu0 0
        %2779 = vmatpush.bf16.msra.mxu0 0
        %2780 = vmatpush.bf16.msra.mxu0 0
        %2781 = vmatpush.bf16.msra.mxu0 %v1972
        %2782 = vmatpush.bf16.msra.mxu0 %v1543
        %2783 = vmatmul.bf16.gmra.mxu0 %v1821
        %v2784 = vpop.f32.mrf.mxu0
        %v2785 = vadd.f32 %v845, %v2784
        %v2786 = vpop.f32.mrf.mxu0
        %2787 = vdwg.mxu0
        %2788 = vmatpush.bf16.msra.mxu0 0
        %2789 = vmatpush.bf16.msra.mxu0 0
        %2790 = vmatpush.bf16.msra.mxu0 0
        %2791 = vmatpush.bf16.msra.mxu0 0
        %2792 = vmatpush.bf16.msra.mxu0 0
        %2793 = vmatpush.bf16.msra.mxu0 0
        %2794 = vmatpush.bf16.msra.mxu0 %v1975
        %2795 = vmatpush.bf16.msra.mxu0 %v1544
        %2796 = vmatmul.bf16.gmra.mxu0 %v1821
        %v2797 = vpop.f32.mrf.mxu0
        %v2798 = vadd.f32 %v845, %v2797
        %v2799 = vpop.f32.mrf.mxu0
        %2800 = vdwg.mxu0
        %2801 = vmatpush.bf16.msra.mxu0 0
        %2802 = vmatpush.bf16.msra.mxu0 0
        %2803 = vmatpush.bf16.msra.mxu0 0
        %2804 = vmatpush.bf16.msra.mxu0 0
        %2805 = vmatpush.bf16.msra.mxu0 0
        %2806 = vmatpush.bf16.msra.mxu0 0
        %2807 = vmatpush.bf16.msra.mxu0 %v1978
        %2808 = vmatpush.bf16.msra.mxu0 %v1545
        %2809 = vmatmul.bf16.gmra.mxu0 %v1821
        %v2810 = vpop.f32.mrf.mxu0
        %v2811 = vadd.f32 %v845, %v2810
        %v2812 = vpop.f32.mrf.mxu0
        %2813 = vdwg.mxu0
        %2814 = vmatpush.bf16.msra.mxu0 0
        %2815 = vmatpush.bf16.msra.mxu0 0
        %2816 = vmatpush.bf16.msra.mxu0 0
        %2817 = vmatpush.bf16.msra.mxu0 0
        %2818 = vmatpush.bf16.msra.mxu0 0
        %2819 = vmatpush.bf16.msra.mxu0 0
        %2820 = vmatpush.bf16.msra.mxu0 %v1981
        %2821 = vmatpush.bf16.msra.mxu0 %v1546
        %2822 = vmatmul.bf16.gmra.mxu0 %v1821
        %v2823 = vpop.f32.mrf.mxu0
        %v2824 = vadd.f32 %v845, %v2823
        %v2825 = vpop.f32.mrf.mxu0
        %2826 = vdwg.mxu0
        %2827 = vmatpush.bf16.msra.mxu0 0
        %2828 = vmatpush.bf16.msra.mxu0 0
        %2829 = vmatpush.bf16.msra.mxu0 0
        %2830 = vmatpush.bf16.msra.mxu0 0
        %2831 = vmatpush.bf16.msra.mxu0 0
        %2832 = vmatpush.bf16.msra.mxu0 0
        %2833 = vmatpush.bf16.msra.mxu0 %v1984
        %2834 = vmatpush.bf16.msra.mxu0 %v1547
        %2835 = vmatmul.bf16.gmra.mxu0 %v1821
        %v2836 = vpop.f32.mrf.mxu0
        %v2837 = vadd.f32 %v845, %v2836
        %v2838 = vpop.f32.mrf.mxu0
        %2839 = vdwg.mxu0
        %2840 = vmatpush.bf16.msra.mxu0 0
        %2841 = vmatpush.bf16.msra.mxu0 0
        %2842 = vmatpush.bf16.msra.mxu0 0
        %2843 = vmatpush.bf16.msra.mxu0 0
        %2844 = vmatpush.bf16.msra.mxu0 0
        %2845 = vmatpush.bf16.msra.mxu0 0
        %2846 = vmatpush.bf16.msra.mxu0 %v1987
        %2847 = vmatpush.bf16.msra.mxu0 %v1548
        %2848 = vmatmul.bf16.gmra.mxu0 %v1821
        %v2849 = vpop.f32.mrf.mxu0
        %v2850 = vadd.f32 %v845, %v2849
        %v2851 = vpop.f32.mrf.mxu0
        %2852 = vdwg.mxu0
        %2853 = vmatpush.bf16.msra.mxu0 0
        %2854 = vmatpush.bf16.msra.mxu0 0
        %2855 = vmatpush.bf16.msra.mxu0 0
        %2856 = vmatpush.bf16.msra.mxu0 0
        %2857 = vmatpush.bf16.msra.mxu0 0
        %2858 = vmatpush.bf16.msra.mxu0 0
        %2859 = vmatpush.bf16.msra.mxu0 %v1990
        %2860 = vmatpush.bf16.msra.mxu0 %v1549
        %2861 = vmatmul.bf16.gmra.mxu0 %v1821
        %v2862 = vpop.f32.mrf.mxu0
        %v2863 = vadd.f32 %v845, %v2862
        %v2864 = vpop.f32.mrf.mxu0
        %2865 = vdwg.mxu0
        %2866 = vmatpush.bf16.msra.mxu0 0
        %2867 = vmatpush.bf16.msra.mxu0 0
        %2868 = vmatpush.bf16.msra.mxu0 0
        %2869 = vmatpush.bf16.msra.mxu0 0
        %2870 = vmatpush.bf16.msra.mxu0 0
        %2871 = vmatpush.bf16.msra.mxu0 0
        %2872 = vmatpush.bf16.msra.mxu0 %v1993
        %2873 = vmatpush.bf16.msra.mxu0 %v1550
        %2874 = vmatmul.bf16.gmra.mxu0 %v1821
        %v2875 = vpop.f32.mrf.mxu0
        %v2876 = vadd.f32 %v845, %v2875
        %v2877 = vpop.f32.mrf.mxu0
        %2878 = vdwg.mxu0
        %2879 = vmatpush.bf16.msra.mxu0 0
        %2880 = vmatpush.bf16.msra.mxu0 0
        %2881 = vmatpush.bf16.msra.mxu0 0
        %2882 = vmatpush.bf16.msra.mxu0 0
        %2883 = vmatpush.bf16.msra.mxu0 0
        %2884 = vmatpush.bf16.msra.mxu0 0
        %2885 = vmatpush.bf16.msra.mxu0 %v1996
        %2886 = vmatpush.bf16.msra.mxu0 %v1551
        %2887 = vmatmul.bf16.gmra.mxu0 %v1821
        %v2888 = vpop.f32.mrf.mxu0
        %v2889 = vadd.f32 %v845, %v2888
        %v2890 = vpop.f32.mrf.mxu0
        %2891 = vdwg.mxu0
        %2892 = vmatpush.bf16.msra.mxu0 0
        %2893 = vmatpush.bf16.msra.mxu0 0
        %2894 = vmatpush.bf16.msra.mxu0 0
        %2895 = vmatpush.bf16.msra.mxu0 0
        %2896 = vmatpush.bf16.msra.mxu0 0
        %2897 = vmatpush.bf16.msra.mxu0 0
        %2898 = vmatpush.bf16.msra.mxu0 %v1999
        %2899 = vmatpush.bf16.msra.mxu0 %v1552
        %2900 = vmatmul.bf16.gmra.mxu0 %v1821
        %v2901 = vpop.f32.mrf.mxu0
        %v2902 = vadd.f32 %v845, %v2901
        %v2903 = vpop.f32.mrf.mxu0
        %2904 = vdwg.mxu0
        %2905 = vmatpush.bf16.msra.mxu0 0
        %2906 = vmatpush.bf16.msra.mxu0 0
        %2907 = vmatpush.bf16.msra.mxu0 0
        %2908 = vmatpush.bf16.msra.mxu0 0
        %2909 = vmatpush.bf16.msra.mxu0 0
        %2910 = vmatpush.bf16.msra.mxu0 0
        %2911 = vmatpush.bf16.msra.mxu0 %v2002
        %2912 = vmatpush.bf16.msra.mxu0 %v1553
        %2913 = vmatmul.bf16.gmra.mxu0 %v1821
        %v2914 = vpop.f32.mrf.mxu0
        %v2915 = vadd.f32 %v845, %v2914
        %v2916 = vpop.f32.mrf.mxu0
        %2917 = vdwg.mxu0
        %2918 = vmatpush.bf16.msra.mxu0 0
        %2919 = vmatpush.bf16.msra.mxu0 0
        %2920 = vmatpush.bf16.msra.mxu0 0
        %2921 = vmatpush.bf16.msra.mxu0 0
        %2922 = vmatpush.bf16.msra.mxu0 0
        %2923 = vmatpush.bf16.msra.mxu0 0
        %2924 = vmatpush.bf16.msra.mxu0 %v2005
        %2925 = vmatpush.bf16.msra.mxu0 %v1554
        %2926 = vmatmul.bf16.gmra.mxu0 %v1821
        %v2927 = vpop.f32.mrf.mxu0
        %v2928 = vadd.f32 %v845, %v2927
        %v2929 = vpop.f32.mrf.mxu0
        %2930 = vdwg.mxu0
        %2931 = vmatpush.bf16.msra.mxu0 0
        %2932 = vmatpush.bf16.msra.mxu0 0
        %2933 = vmatpush.bf16.msra.mxu0 0
        %2934 = vmatpush.bf16.msra.mxu0 0
        %2935 = vmatpush.bf16.msra.mxu0 0
        %2936 = vmatpush.bf16.msra.mxu0 0
        %2937 = vmatpush.bf16.msra.mxu0 %v2008
        %2938 = vmatpush.bf16.msra.mxu0 %v1555
        %2939 = vmatmul.bf16.gmra.mxu0 %v1821
        %v2940 = vpop.f32.mrf.mxu0
        %v2941 = vadd.f32 %v845, %v2940
        %v2942 = vpop.f32.mrf.mxu0
        %2943 = vdwg.mxu0
        %2944 = vmatpush.bf16.msra.mxu0 0
        %2945 = vmatpush.bf16.msra.mxu0 0
        %2946 = vmatpush.bf16.msra.mxu0 0
        %2947 = vmatpush.bf16.msra.mxu0 0
        %2948 = vmatpush.bf16.msra.mxu0 0
        %2949 = vmatpush.bf16.msra.mxu0 0
        %2950 = vmatpush.bf16.msra.mxu0 %v2011
        %2951 = vmatpush.bf16.msra.mxu0 %v1556
        %2952 = vmatmul.bf16.gmra.mxu0 %v1821
        %v2953 = vpop.f32.mrf.mxu0
        %v2954 = vadd.f32 %v845, %v2953
        %v2955 = vpop.f32.mrf.mxu0
        %2956 = vdwg.mxu0
        %2957 = vmatpush.bf16.msra.mxu0 0
        %2958 = vmatpush.bf16.msra.mxu0 0
        %2959 = vmatpush.bf16.msra.mxu0 0
        %2960 = vmatpush.bf16.msra.mxu0 0
        %2961 = vmatpush.bf16.msra.mxu0 0
        %2962 = vmatpush.bf16.msra.mxu0 0
        %2963 = vmatpush.bf16.msra.mxu0 %v2014
        %2964 = vmatpush.bf16.msra.mxu0 %v1557
        %2965 = vmatmul.bf16.gmra.mxu0 %v1821
        %v2966 = vpop.f32.mrf.mxu0
        %v2967 = vadd.f32 %v845, %v2966
        %v2968 = vpop.f32.mrf.mxu0
        %2969 = vdwg.mxu0
        %2970 = vmatpush.bf16.msra.mxu0 0
        %2971 = vmatpush.bf16.msra.mxu0 0
        %2972 = vmatpush.bf16.msra.mxu0 0
        %2973 = vmatpush.bf16.msra.mxu0 0
        %2974 = vmatpush.bf16.msra.mxu0 0
        %2975 = vmatpush.bf16.msra.mxu0 0
        %2976 = vmatpush.bf16.msra.mxu0 %v2017
        %2977 = vmatpush.bf16.msra.mxu0 %v1558
        %2978 = vmatmul.bf16.gmra.mxu0 %v1821
        %v2979 = vpop.f32.mrf.mxu0
        %v2980 = vadd.f32 %v845, %v2979
        %v2981 = vpop.f32.mrf.mxu0
        %2982 = vdwg.mxu0
        %2983 = vmatpush.bf16.msra.mxu0 0
        %2984 = vmatpush.bf16.msra.mxu0 0
        %2985 = vmatpush.bf16.msra.mxu0 0
        %2986 = vmatpush.bf16.msra.mxu0 0
        %2987 = vmatpush.bf16.msra.mxu0 0
        %2988 = vmatpush.bf16.msra.mxu0 0
        %2989 = vmatpush.bf16.msra.mxu0 %v2020
        %2990 = vmatpush.bf16.msra.mxu0 %v1559
        %2991 = vmatmul.bf16.gmra.mxu0 %v1821
        %v2992 = vpop.f32.mrf.mxu0
        %v2993 = vadd.f32 %v845, %v2992
        %v2994 = vpop.f32.mrf.mxu0
        %2995 = vdwg.mxu0
        %2996 = vmatpush.bf16.msra.mxu0 0
        %2997 = vmatpush.bf16.msra.mxu0 0
        %2998 = vmatpush.bf16.msra.mxu0 0
        %2999 = vmatpush.bf16.msra.mxu0 0
        %3000 = vmatpush.bf16.msra.mxu0 0
        %3001 = vmatpush.bf16.msra.mxu0 0
        %3002 = vmatpush.bf16.msra.mxu0 %v2023
        %3003 = vmatpush.bf16.msra.mxu0 %v1560
        %3004 = vmatmul.bf16.gmra.mxu0 %v1821
        %v3005 = vpop.f32.mrf.mxu0
        %v3006 = vadd.f32 %v845, %v3005
        %v3007 = vpop.f32.mrf.mxu0
        %3008 = vdwg.mxu0
        %3009 = vmatpush.bf16.msra.mxu0 0
        %3010 = vmatpush.bf16.msra.mxu0 0
        %3011 = vmatpush.bf16.msra.mxu0 0
        %3012 = vmatpush.bf16.msra.mxu0 0
        %3013 = vmatpush.bf16.msra.mxu0 0
        %3014 = vmatpush.bf16.msra.mxu0 0
        %3015 = vmatpush.bf16.msra.mxu0 %v2026
        %3016 = vmatpush.bf16.msra.mxu0 %v1561
        %3017 = vmatmul.bf16.gmra.mxu0 %v1821
        %v3018 = vpop.f32.mrf.mxu0
        %v3019 = vadd.f32 %v845, %v3018
        %v3020 = vpop.f32.mrf.mxu0
        %3021 = vdwg.mxu0
        %3022 = vmatpush.bf16.msra.mxu0 0
        %3023 = vmatpush.bf16.msra.mxu0 0
        %3024 = vmatpush.bf16.msra.mxu0 0
        %3025 = vmatpush.bf16.msra.mxu0 0
        %3026 = vmatpush.bf16.msra.mxu0 0
        %3027 = vmatpush.bf16.msra.mxu0 0
        %3028 = vmatpush.bf16.msra.mxu0 %v2029
        %3029 = vmatpush.bf16.msra.mxu0 %v1562
        %3030 = vmatmul.bf16.gmra.mxu0 %v1821
        %v3031 = vpop.f32.mrf.mxu0
        %v3032 = vadd.f32 %v845, %v3031
        %v3033 = vpop.f32.mrf.mxu0
        %3034 = vdwg.mxu0
        %3035 = vmatpush.bf16.msra.mxu0 0
        %3036 = vmatpush.bf16.msra.mxu0 0
        %3037 = vmatpush.bf16.msra.mxu0 0
        %3038 = vmatpush.bf16.msra.mxu0 0
        %3039 = vmatpush.bf16.msra.mxu0 0
        %3040 = vmatpush.bf16.msra.mxu0 0
        %3041 = vmatpush.bf16.msra.mxu0 %v2032
        %3042 = vmatpush.bf16.msra.mxu0 %v1563
        %3043 = vmatmul.bf16.gmra.mxu0 %v1821
        %v3044 = vpop.f32.mrf.mxu0
        %v3045 = vadd.f32 %v845, %v3044
        %v3046 = vpop.f32.mrf.mxu0
        %3047 = vdwg.mxu0
        %3048 = vmatpush.bf16.msra.mxu0 0
        %3049 = vmatpush.bf16.msra.mxu0 0
        %3050 = vmatpush.bf16.msra.mxu0 0
        %3051 = vmatpush.bf16.msra.mxu0 0
        %3052 = vmatpush.bf16.msra.mxu0 0
        %3053 = vmatpush.bf16.msra.mxu0 0
        %3054 = vmatpush.bf16.msra.mxu0 %v2035
        %3055 = vmatpush.bf16.msra.mxu0 %v1564
        %3056 = vmatmul.bf16.gmra.mxu0 %v1821
        %v3057 = vpop.f32.mrf.mxu0
        %v3058 = vadd.f32 %v845, %v3057
        %v3059 = vpop.f32.mrf.mxu0
        %3060 = vdwg.mxu0
        %3061 = vmatpush.bf16.msra.mxu0 0
        %3062 = vmatpush.bf16.msra.mxu0 0
        %3063 = vmatpush.bf16.msra.mxu0 0
        %3064 = vmatpush.bf16.msra.mxu0 0
        %3065 = vmatpush.bf16.msra.mxu0 0
        %3066 = vmatpush.bf16.msra.mxu0 0
        %3067 = vmatpush.bf16.msra.mxu0 %v2038
        %3068 = vmatpush.bf16.msra.mxu0 %v1565
        %3069 = vmatmul.bf16.gmra.mxu0 %v1821
        %v3070 = vpop.f32.mrf.mxu0
        %v3071 = vadd.f32 %v845, %v3070
        %v3072 = vpop.f32.mrf.mxu0
        %3073 = vdwg.mxu0
        %3074 = vmatpush.bf16.msra.mxu0 0
        %3075 = vmatpush.bf16.msra.mxu0 0
        %3076 = vmatpush.bf16.msra.mxu0 0
        %3077 = vmatpush.bf16.msra.mxu0 0
        %3078 = vmatpush.bf16.msra.mxu0 0
        %3079 = vmatpush.bf16.msra.mxu0 0
        %3080 = vmatpush.bf16.msra.mxu0 %v2041
        %3081 = vmatpush.bf16.msra.mxu0 %v1566
        %3082 = vmatmul.bf16.gmra.mxu0 %v1821
        %v3083 = vpop.f32.mrf.mxu0
        %v3084 = vadd.f32 %v845, %v3083
        %v3085 = vpop.f32.mrf.mxu0
        %3086 = vdwg.mxu0
        %3087 = vmatpush.bf16.msra.mxu0 0
        %3088 = vmatpush.bf16.msra.mxu0 0
        %3089 = vmatpush.bf16.msra.mxu0 0
        %3090 = vmatpush.bf16.msra.mxu0 0
        %3091 = vmatpush.bf16.msra.mxu0 0
        %3092 = vmatpush.bf16.msra.mxu0 0
        %3093 = vmatpush.bf16.msra.mxu0 %v2044
        %3094 = vmatpush.bf16.msra.mxu0 %v1567
        %3095 = vmatmul.bf16.gmra.mxu0 %v1821
        %v3096 = vpop.f32.mrf.mxu0
        %v3097 = vadd.f32 %v845, %v3096
        %v3098 = vpop.f32.mrf.mxu0
        %3099 = vdwg.mxu0
        %3100 = vmatpush.bf16.msra.mxu0 0
        %3101 = vmatpush.bf16.msra.mxu0 0
        %3102 = vmatpush.bf16.msra.mxu0 0
        %3103 = vmatpush.bf16.msra.mxu0 0
        %3104 = vmatpush.bf16.msra.mxu0 0
        %3105 = vmatpush.bf16.msra.mxu0 0
        %3106 = vmatpush.bf16.msra.mxu0 %v2047
        %3107 = vmatpush.bf16.msra.mxu0 %v1568
        %3108 = vmatmul.bf16.gmra.mxu0 %v1821
        %v3109 = vpop.f32.mrf.mxu0
        %v3110 = vadd.f32 %v845, %v3109
        %v3111 = vpop.f32.mrf.mxu0
        %3112 = vdwg.mxu0
        %3113 = vmatpush.bf16.msra.mxu0 0
        %3114 = vmatpush.bf16.msra.mxu0 0
        %3115 = vmatpush.bf16.msra.mxu0 0
        %3116 = vmatpush.bf16.msra.mxu0 0
        %3117 = vmatpush.bf16.msra.mxu0 0
        %3118 = vmatpush.bf16.msra.mxu0 0
        %3119 = vmatpush.bf16.msra.mxu0 %v2050
        %3120 = vmatpush.bf16.msra.mxu0 %v1569
        %3121 = vmatmul.bf16.gmra.mxu0 %v1821
        %v3122 = vpop.f32.mrf.mxu0
        %v3123 = vadd.f32 %v845, %v3122
        %v3124 = vpop.f32.mrf.mxu0
        %3125 = vdwg.mxu0
        %3126 = vmatpush.bf16.msra.mxu0 0
        %3127 = vmatpush.bf16.msra.mxu0 0
        %3128 = vmatpush.bf16.msra.mxu0 0
        %3129 = vmatpush.bf16.msra.mxu0 0
        %3130 = vmatpush.bf16.msra.mxu0 0
        %3131 = vmatpush.bf16.msra.mxu0 0
        %3132 = vmatpush.bf16.msra.mxu0 %v2053
        %3133 = vmatpush.bf16.msra.mxu0 %v1570
        %3134 = vmatmul.bf16.gmra.mxu0 %v1821
        %v3135 = vpop.f32.mrf.mxu0
        %v3136 = vadd.f32 %v845, %v3135
        %v3137 = vpop.f32.mrf.mxu0
        %3138 = vdwg.mxu0
        %3139 = vmatpush.bf16.msra.mxu0 0
        %3140 = vmatpush.bf16.msra.mxu0 0
        %3141 = vmatpush.bf16.msra.mxu0 0
        %3142 = vmatpush.bf16.msra.mxu0 0
        %3143 = vmatpush.bf16.msra.mxu0 0
        %3144 = vmatpush.bf16.msra.mxu0 0
        %3145 = vmatpush.bf16.msra.mxu0 %v2056
        %3146 = vmatpush.bf16.msra.mxu0 %v1571
        %3147 = vmatmul.bf16.gmra.mxu0 %v1821
        %v3148 = vpop.f32.mrf.mxu0
        %v3149 = vadd.f32 %v845, %v3148
        %v3150 = vpop.f32.mrf.mxu0
        %3151 = vdwg.mxu0
        %3152 = vmatpush.bf16.msra.mxu0 0
        %3153 = vmatpush.bf16.msra.mxu0 0
        %3154 = vmatpush.bf16.msra.mxu0 0
        %3155 = vmatpush.bf16.msra.mxu0 0
        %3156 = vmatpush.bf16.msra.mxu0 0
        %3157 = vmatpush.bf16.msra.mxu0 0
        %3158 = vmatpush.bf16.msra.mxu0 %v2059
        %3159 = vmatpush.bf16.msra.mxu0 %v1572
        %3160 = vmatmul.bf16.gmra.mxu0 %v1821
        %v3161 = vpop.f32.mrf.mxu0
        %v3162 = vadd.f32 %v845, %v3161
        %v3163 = vpop.f32.mrf.mxu0
        %3164 = vdwg.mxu0
        %3165 = vmatpush.bf16.msra.mxu0 0
        %3166 = vmatpush.bf16.msra.mxu0 0
        %3167 = vmatpush.bf16.msra.mxu0 0
        %3168 = vmatpush.bf16.msra.mxu0 0
        %3169 = vmatpush.bf16.msra.mxu0 0
        %3170 = vmatpush.bf16.msra.mxu0 0
        %3171 = vmatpush.bf16.msra.mxu0 %v2062
        %3172 = vmatpush.bf16.msra.mxu0 %v1573
        %3173 = vmatmul.bf16.gmra.mxu0 %v1821
        %v3174 = vpop.f32.mrf.mxu0
        %v3175 = vadd.f32 %v845, %v3174
        %v3176 = vpop.f32.mrf.mxu0
        %3177 = vdwg.mxu0
        %3178 = vmatpush.bf16.msra.mxu0 0
        %3179 = vmatpush.bf16.msra.mxu0 0
        %3180 = vmatpush.bf16.msra.mxu0 0
        %3181 = vmatpush.bf16.msra.mxu0 0
        %3182 = vmatpush.bf16.msra.mxu0 0
        %3183 = vmatpush.bf16.msra.mxu0 0
        %3184 = vmatpush.bf16.msra.mxu0 %v2065
        %3185 = vmatpush.bf16.msra.mxu0 %v1574
        %3186 = vmatmul.bf16.gmra.mxu0 %v1821
        %v3187 = vpop.f32.mrf.mxu0
        %v3188 = vadd.f32 %v845, %v3187
        %v3189 = vpop.f32.mrf.mxu0
        %3190 = vdwg.mxu0
        %3191 = vmatpush.bf16.msra.mxu0 0
        %3192 = vmatpush.bf16.msra.mxu0 0
        %3193 = vmatpush.bf16.msra.mxu0 0
        %3194 = vmatpush.bf16.msra.mxu0 0
        %3195 = vmatpush.bf16.msra.mxu0 0
        %3196 = vmatpush.bf16.msra.mxu0 0
        %3197 = vmatpush.bf16.msra.mxu0 %v2068
        %3198 = vmatpush.bf16.msra.mxu0 %v1575
        %3199 = vmatmul.bf16.gmra.mxu0 %v1821
        %v3200 = vpop.f32.mrf.mxu0
        %v3201 = vadd.f32 %v845, %v3200
        %v3202 = vpop.f32.mrf.mxu0
        %3203 = vdwg.mxu0
        %3204 = vmatpush.bf16.msra.mxu0 0
        %3205 = vmatpush.bf16.msra.mxu0 0
        %3206 = vmatpush.bf16.msra.mxu0 0
        %3207 = vmatpush.bf16.msra.mxu0 0
        %3208 = vmatpush.bf16.msra.mxu0 0
        %3209 = vmatpush.bf16.msra.mxu0 0
        %3210 = vmatpush.bf16.msra.mxu0 %v2071
        %3211 = vmatpush.bf16.msra.mxu0 %v1576
        %3212 = vmatmul.bf16.gmra.mxu0 %v1821
        %v3213 = vpop.f32.mrf.mxu0
        %v3214 = vadd.f32 %v845, %v3213
        %v3215 = vpop.f32.mrf.mxu0
        %3216 = vdwg.mxu0
        %3217 = vmatpush.bf16.msra.mxu0 0
        %3218 = vmatpush.bf16.msra.mxu0 0
        %3219 = vmatpush.bf16.msra.mxu0 0
        %3220 = vmatpush.bf16.msra.mxu0 0
        %3221 = vmatpush.bf16.msra.mxu0 0
        %3222 = vmatpush.bf16.msra.mxu0 0
        %3223 = vmatpush.bf16.msra.mxu0 %v2074
        %3224 = vmatpush.bf16.msra.mxu0 %v1577
        %3225 = vmatmul.bf16.gmra.mxu0 %v1821
        %v3226 = vpop.f32.mrf.mxu0
        %v3227 = vadd.f32 %v845, %v3226
        %v3228 = vpop.f32.mrf.mxu0
        %3229 = vdwg.mxu0
        %3230 = vmatpush.bf16.msra.mxu0 0
        %3231 = vmatpush.bf16.msra.mxu0 0
        %3232 = vmatpush.bf16.msra.mxu0 0
        %3233 = vmatpush.bf16.msra.mxu0 0
        %3234 = vmatpush.bf16.msra.mxu0 0
        %3235 = vmatpush.bf16.msra.mxu0 0
        %3236 = vmatpush.bf16.msra.mxu0 %v2077
        %3237 = vmatpush.bf16.msra.mxu0 %v1578
        %3238 = vmatmul.bf16.gmra.mxu0 %v1821
        %v3239 = vpop.f32.mrf.mxu0
        %v3240 = vadd.f32 %v845, %v3239
        %v3241 = vpop.f32.mrf.mxu0
        %3242 = vdwg.mxu0
        %3243 = vmatpush.bf16.msra.mxu0 0
        %3244 = vmatpush.bf16.msra.mxu0 0
        %3245 = vmatpush.bf16.msra.mxu0 0
        %3246 = vmatpush.bf16.msra.mxu0 0
        %3247 = vmatpush.bf16.msra.mxu0 0
        %3248 = vmatpush.bf16.msra.mxu0 0
        %3249 = vmatpush.bf16.msra.mxu0 %v2080
        %3250 = vmatpush.bf16.msra.mxu0 %v1579
        %3251 = vmatmul.bf16.gmra.mxu0 %v1821
        %v3252 = vpop.f32.mrf.mxu0
        %v3253 = vadd.f32 %v845, %v3252
        %v3254 = vpop.f32.mrf.mxu0
        %3255 = vdwg.mxu0
        %3256 = vmatpush.bf16.msra.mxu0 0
        %3257 = vmatpush.bf16.msra.mxu0 0
        %3258 = vmatpush.bf16.msra.mxu0 0
        %3259 = vmatpush.bf16.msra.mxu0 0
        %3260 = vmatpush.bf16.msra.mxu0 0
        %3261 = vmatpush.bf16.msra.mxu0 0
        %3262 = vmatpush.bf16.msra.mxu0 %v2083
        %3263 = vmatpush.bf16.msra.mxu0 %v1580
        %3264 = vmatmul.bf16.gmra.mxu0 %v1821
        %v3265 = vpop.f32.mrf.mxu0
        %v3266 = vadd.f32 %v845, %v3265
        %v3267 = vpop.f32.mrf.mxu0
        %3268 = vdwg.mxu0
        %3269 = vmatpush.bf16.msra.mxu0 0
        %3270 = vmatpush.bf16.msra.mxu0 0
        %3271 = vmatpush.bf16.msra.mxu0 0
        %3272 = vmatpush.bf16.msra.mxu0 0
        %3273 = vmatpush.bf16.msra.mxu0 0
        %3274 = vmatpush.bf16.msra.mxu0 0
        %3275 = vmatpush.bf16.msra.mxu0 %v2086
        %3276 = vmatpush.bf16.msra.mxu0 %v1581
        %3277 = vmatmul.bf16.gmra.mxu0 %v1821
        %v3278 = vpop.f32.mrf.mxu0
        %v3279 = vadd.f32 %v845, %v3278
        %v3280 = vpop.f32.mrf.mxu0
        %3281 = vdwg.mxu0
        %3282 = vmatpush.bf16.msra.mxu0 0
        %3283 = vmatpush.bf16.msra.mxu0 0
        %3284 = vmatpush.bf16.msra.mxu0 0
        %3285 = vmatpush.bf16.msra.mxu0 0
        %3286 = vmatpush.bf16.msra.mxu0 0
        %3287 = vmatpush.bf16.msra.mxu0 0
        %3288 = vmatpush.bf16.msra.mxu0 %v2089
        %3289 = vmatpush.bf16.msra.mxu0 %v1582
        %3290 = vmatmul.bf16.gmra.mxu0 %v1821
        %v3291 = vpop.f32.mrf.mxu0
        %v3292 = vadd.f32 %v845, %v3291
        %v3293 = vpop.f32.mrf.mxu0
        %3294 = vdwg.mxu0
        %3295 = vmatpush.bf16.msra.mxu0 0
        %3296 = vmatpush.bf16.msra.mxu0 0
        %3297 = vmatpush.bf16.msra.mxu0 0
        %3298 = vmatpush.bf16.msra.mxu0 0
        %3299 = vmatpush.bf16.msra.mxu0 0
        %3300 = vmatpush.bf16.msra.mxu0 0
        %3301 = vmatpush.bf16.msra.mxu0 %v2092
        %3302 = vmatpush.bf16.msra.mxu0 %v1583
        %3303 = vmatmul.bf16.gmra.mxu0 %v1821
        %v3304 = vpop.f32.mrf.mxu0
        %v3305 = vadd.f32 %v845, %v3304
        %v3306 = vpop.f32.mrf.mxu0
        %3307 = vdwg.mxu0
        %3308 = vmatpush.bf16.msra.mxu0 0
        %3309 = vmatpush.bf16.msra.mxu0 0
        %3310 = vmatpush.bf16.msra.mxu0 0
        %3311 = vmatpush.bf16.msra.mxu0 0
        %3312 = vmatpush.bf16.msra.mxu0 0
        %3313 = vmatpush.bf16.msra.mxu0 0
        %3314 = vmatpush.bf16.msra.mxu0 %v2095
        %3315 = vmatpush.bf16.msra.mxu0 %v1584
        %3316 = vmatmul.bf16.gmra.mxu0 %v1821
        %v3317 = vpop.f32.mrf.mxu0
        %v3318 = vadd.f32 %v845, %v3317
        %v3319 = vpop.f32.mrf.mxu0
        %3320 = vdwg.mxu0
        %3321 = vmatpush.bf16.msra.mxu0 0
        %3322 = vmatpush.bf16.msra.mxu0 0
        %3323 = vmatpush.bf16.msra.mxu0 0
        %3324 = vmatpush.bf16.msra.mxu0 0
        %3325 = vmatpush.bf16.msra.mxu0 0
        %3326 = vmatpush.bf16.msra.mxu0 0
        %3327 = vmatpush.bf16.msra.mxu0 %v2098
        %3328 = vmatpush.bf16.msra.mxu0 %v1585
        %3329 = vmatmul.bf16.gmra.mxu0 %v1821
        %v3330 = vpop.f32.mrf.mxu0
        %v3331 = vadd.f32 %v845, %v3330
        %v3332 = vpop.f32.mrf.mxu0
        %3333 = vdwg.mxu0
        %3334 = vmatpush.bf16.msra.mxu0 0
        %3335 = vmatpush.bf16.msra.mxu0 0
        %3336 = vmatpush.bf16.msra.mxu0 0
        %3337 = vmatpush.bf16.msra.mxu0 0
        %3338 = vmatpush.bf16.msra.mxu0 0
        %3339 = vmatpush.bf16.msra.mxu0 0
        %3340 = vmatpush.bf16.msra.mxu0 %v2101
        %3341 = vmatpush.bf16.msra.mxu0 %v1586
        %3342 = vmatmul.bf16.gmra.mxu0 %v1821
        %v3343 = vpop.f32.mrf.mxu0
        %v3344 = vadd.f32 %v845, %v3343
        %v3345 = vpop.f32.mrf.mxu0
        %3346 = vdwg.mxu0
        %3347 = vmatpush.bf16.msra.mxu0 0
        %3348 = vmatpush.bf16.msra.mxu0 0
        %3349 = vmatpush.bf16.msra.mxu0 0
        %3350 = vmatpush.bf16.msra.mxu0 0
        %3351 = vmatpush.bf16.msra.mxu0 0
        %3352 = vmatpush.bf16.msra.mxu0 0
        %3353 = vmatpush.bf16.msra.mxu0 %v2104
        %3354 = vmatpush.bf16.msra.mxu0 %v1587
        %3355 = vmatmul.bf16.gmra.mxu0 %v1821
        %v3356 = vpop.f32.mrf.mxu0
        %v3357 = vadd.f32 %v845, %v3356
        %v3358 = vpop.f32.mrf.mxu0
        %3359 = vdwg.mxu0
        %3360 = vmatpush.bf16.msra.mxu0 0
        %3361 = vmatpush.bf16.msra.mxu0 0
        %3362 = vmatpush.bf16.msra.mxu0 0
        %3363 = vmatpush.bf16.msra.mxu0 0
        %3364 = vmatpush.bf16.msra.mxu0 0
        %3365 = vmatpush.bf16.msra.mxu0 0
        %3366 = vmatpush.bf16.msra.mxu0 %v2107
        %3367 = vmatpush.bf16.msra.mxu0 %v1588
        %3368 = vmatmul.bf16.gmra.mxu0 %v1821
        %v3369 = vpop.f32.mrf.mxu0
        %v3370 = vadd.f32 %v845, %v3369
        %v3371 = vpop.f32.mrf.mxu0
        %3372 = vdwg.mxu0
        %3373 = vmatpush.bf16.msra.mxu0 0
        %3374 = vmatpush.bf16.msra.mxu0 0
        %3375 = vmatpush.bf16.msra.mxu0 0
        %3376 = vmatpush.bf16.msra.mxu0 0
        %3377 = vmatpush.bf16.msra.mxu0 0
        %3378 = vmatpush.bf16.msra.mxu0 0
        %3379 = vmatpush.bf16.msra.mxu0 %v2110
        %3380 = vmatpush.bf16.msra.mxu0 %v1589
        %3381 = vmatmul.bf16.gmra.mxu0 %v1821
        %v3382 = vpop.f32.mrf.mxu0
        %v3383 = vadd.f32 %v845, %v3382
        %v3384 = vpop.f32.mrf.mxu0
        %3385 = vdwg.mxu0
        %3386 = vmatpush.bf16.msra.mxu0 0
        %3387 = vmatpush.bf16.msra.mxu0 0
        %3388 = vmatpush.bf16.msra.mxu0 0
        %3389 = vmatpush.bf16.msra.mxu0 0
        %3390 = vmatpush.bf16.msra.mxu0 0
        %3391 = vmatpush.bf16.msra.mxu0 0
        %3392 = vmatpush.bf16.msra.mxu0 %v2113
        %3393 = vmatpush.bf16.msra.mxu0 %v1590
        %3394 = vmatmul.bf16.gmra.mxu0 %v1821
        %v3395 = vpop.f32.mrf.mxu0
        %v3396 = vadd.f32 %v845, %v3395
        %v3397 = vpop.f32.mrf.mxu0
        %3398 = vdwg.mxu0
        %3399 = vmatpush.bf16.msra.mxu0 0
        %3400 = vmatpush.bf16.msra.mxu0 0
        %3401 = vmatpush.bf16.msra.mxu0 0
        %3402 = vmatpush.bf16.msra.mxu0 0
        %3403 = vmatpush.bf16.msra.mxu0 0
        %3404 = vmatpush.bf16.msra.mxu0 0
        %3405 = vmatpush.bf16.msra.mxu0 %v2116
        %3406 = vmatpush.bf16.msra.mxu0 %v1591
        %3407 = vmatmul.bf16.gmra.mxu0 %v1821
        %v3408 = vpop.f32.mrf.mxu0
        %v3409 = vadd.f32 %v845, %v3408
        %v3410 = vpop.f32.mrf.mxu0
        %3411 = vdwg.mxu0
        %3412 = vmatpush.bf16.msra.mxu0 0
        %3413 = vmatpush.bf16.msra.mxu0 0
        %3414 = vmatpush.bf16.msra.mxu0 0
        %3415 = vmatpush.bf16.msra.mxu0 0
        %3416 = vmatpush.bf16.msra.mxu0 0
        %3417 = vmatpush.bf16.msra.mxu0 0
        %3418 = vmatpush.bf16.msra.mxu0 %v2119
        %3419 = vmatpush.bf16.msra.mxu0 %v1592
        %3420 = vmatmul.bf16.gmra.mxu0 %v1821
        %v3421 = vpop.f32.mrf.mxu0
        %v3422 = vadd.f32 %v845, %v3421
        %v3423 = vpop.f32.mrf.mxu0
        %3424 = vdwg.mxu0
        %3425 = vmatpush.bf16.msra.mxu0 0
        %3426 = vmatpush.bf16.msra.mxu0 0
        %3427 = vmatpush.bf16.msra.mxu0 0
        %3428 = vmatpush.bf16.msra.mxu0 0
        %3429 = vmatpush.bf16.msra.mxu0 0
        %3430 = vmatpush.bf16.msra.mxu0 0
        %3431 = vmatpush.bf16.msra.mxu0 %v2122
        %3432 = vmatpush.bf16.msra.mxu0 %v1593
        %3433 = vmatmul.bf16.gmra.mxu0 %v1821
        %v3434 = vpop.f32.mrf.mxu0
        %v3435 = vadd.f32 %v845, %v3434
        %v3436 = vpop.f32.mrf.mxu0
        %3437 = vdwg.mxu0
        %3438 = vmatpush.bf16.msra.mxu0 0
        %3439 = vmatpush.bf16.msra.mxu0 0
        %3440 = vmatpush.bf16.msra.mxu0 0
        %3441 = vmatpush.bf16.msra.mxu0 0
        %3442 = vmatpush.bf16.msra.mxu0 0
        %3443 = vmatpush.bf16.msra.mxu0 0
        %3444 = vmatpush.bf16.msra.mxu0 %v2125
        %3445 = vmatpush.bf16.msra.mxu0 %v1594
        %3446 = vmatmul.bf16.gmra.mxu0 %v1821
        %v3447 = vpop.f32.mrf.mxu0
        %v3448 = vadd.f32 %v845, %v3447
        %v3449 = vpop.f32.mrf.mxu0
        %3450 = vdwg.mxu0
        %3451 = vmatpush.bf16.msra.mxu0 0
        %3452 = vmatpush.bf16.msra.mxu0 0
        %3453 = vmatpush.bf16.msra.mxu0 0
        %3454 = vmatpush.bf16.msra.mxu0 0
        %3455 = vmatpush.bf16.msra.mxu0 0
        %3456 = vmatpush.bf16.msra.mxu0 0
        %3457 = vmatpush.bf16.msra.mxu0 %v2128
        %3458 = vmatpush.bf16.msra.mxu0 %v1595
        %3459 = vmatmul.bf16.gmra.mxu0 %v1821
        %v3460 = vpop.f32.mrf.mxu0
        %v3461 = vadd.f32 %v845, %v3460
        %v3462 = vpop.f32.mrf.mxu0
        %3463 = vdwg.mxu0
        %3464 = vmatpush.bf16.msra.mxu0 0
        %3465 = vmatpush.bf16.msra.mxu0 0
        %3466 = vmatpush.bf16.msra.mxu0 0
        %3467 = vmatpush.bf16.msra.mxu0 0
        %3468 = vmatpush.bf16.msra.mxu0 0
        %3469 = vmatpush.bf16.msra.mxu0 0
        %3470 = vmatpush.bf16.msra.mxu0 %v2131
        %3471 = vmatpush.bf16.msra.mxu0 %v1596
        %3472 = vmatmul.bf16.gmra.mxu0 %v1821
        %v3473 = vpop.f32.mrf.mxu0
        %v3474 = vadd.f32 %v845, %v3473
        %v3475 = vpop.f32.mrf.mxu0
        %3476 = vdwg.mxu0
        %3477 = vmatpush.bf16.msra.mxu0 0
        %3478 = vmatpush.bf16.msra.mxu0 0
        %3479 = vmatpush.bf16.msra.mxu0 0
        %3480 = vmatpush.bf16.msra.mxu0 0
        %3481 = vmatpush.bf16.msra.mxu0 0
        %3482 = vmatpush.bf16.msra.mxu0 0
        %3483 = vmatpush.bf16.msra.mxu0 %v2134
        %3484 = vmatpush.bf16.msra.mxu0 %v1597
        %3485 = vmatmul.bf16.gmra.mxu0 %v1821
        %v3486 = vpop.f32.mrf.mxu0
        %v3487 = vadd.f32 %v845, %v3486
        %v3488 = vpop.f32.mrf.mxu0
        %3489 = vdwg.mxu0
        %3490 = vmatpush.bf16.msra.mxu0 0
        %3491 = vmatpush.bf16.msra.mxu0 0
        %3492 = vmatpush.bf16.msra.mxu0 0
        %3493 = vmatpush.bf16.msra.mxu0 0
        %3494 = vmatpush.bf16.msra.mxu0 0
        %3495 = vmatpush.bf16.msra.mxu0 0
        %3496 = vmatpush.bf16.msra.mxu0 %v2137
        %3497 = vmatpush.bf16.msra.mxu0 %v1598
        %3498 = vmatmul.bf16.gmra.mxu0 %v1821
        %v3499 = vpop.f32.mrf.mxu0
        %v3500 = vadd.f32 %v845, %v3499
        %v3501 = vpop.f32.mrf.mxu0
        %3502 = vdwg.mxu0
        %3503 = vmatpush.bf16.msra.mxu0 0
        %3504 = vmatpush.bf16.msra.mxu0 0
        %3505 = vmatpush.bf16.msra.mxu0 0
        %3506 = vmatpush.bf16.msra.mxu0 0
        %3507 = vmatpush.bf16.msra.mxu0 0
        %3508 = vmatpush.bf16.msra.mxu0 0
        %3509 = vmatpush.bf16.msra.mxu0 %v2140
        %3510 = vmatpush.bf16.msra.mxu0 %v1599
        %3511 = vmatmul.bf16.gmra.mxu0 %v1821
        %v3512 = vpop.f32.mrf.mxu0
        %v3513 = vadd.f32 %v845, %v3512
        %v3514 = vpop.f32.mrf.mxu0
        %3515 = vdwg.mxu0
        %3516 = vmatpush.bf16.msra.mxu0 0
        %3517 = vmatpush.bf16.msra.mxu0 0
        %3518 = vmatpush.bf16.msra.mxu0 0
        %3519 = vmatpush.bf16.msra.mxu0 0
        %3520 = vmatpush.bf16.msra.mxu0 0
        %3521 = vmatpush.bf16.msra.mxu0 0
        %3522 = vmatpush.bf16.msra.mxu0 %v2143
        %3523 = vmatpush.bf16.msra.mxu0 %v1600
        %3524 = vmatmul.bf16.gmra.mxu0 %v1821
        %v3525 = vpop.f32.mrf.mxu0
        %v3526 = vadd.f32 %v845, %v3525
        %v3527 = vpop.f32.mrf.mxu0
        %3528 = vdwg.mxu0
        %3529 = vmatpush.bf16.msra.mxu0 0
        %3530 = vmatpush.bf16.msra.mxu0 0
        %3531 = vmatpush.bf16.msra.mxu0 0
        %3532 = vmatpush.bf16.msra.mxu0 0
        %3533 = vmatpush.bf16.msra.mxu0 0
        %3534 = vmatpush.bf16.msra.mxu0 0
        %3535 = vmatpush.bf16.msra.mxu0 %v2146
        %3536 = vmatpush.bf16.msra.mxu0 %v1601
        %3537 = vmatmul.bf16.gmra.mxu0 %v1821
        %v3538 = vpop.f32.mrf.mxu0
        %v3539 = vadd.f32 %v845, %v3538
        %v3540 = vpop.f32.mrf.mxu0
        %3541 = vdwg.mxu0
        %3542 = vmatpush.bf16.msra.mxu0 0
        %3543 = vmatpush.bf16.msra.mxu0 0
        %3544 = vmatpush.bf16.msra.mxu0 0
        %3545 = vmatpush.bf16.msra.mxu0 0
        %3546 = vmatpush.bf16.msra.mxu0 0
        %3547 = vmatpush.bf16.msra.mxu0 0
        %3548 = vmatpush.bf16.msra.mxu0 %v2149
        %3549 = vmatpush.bf16.msra.mxu0 %v1602
        %3550 = vmatmul.bf16.gmra.mxu0 %v1821
        %v3551 = vpop.f32.mrf.mxu0
        %v3552 = vadd.f32 %v845, %v3551
        %v3553 = vpop.f32.mrf.mxu0
        %3554 = vdwg.mxu0
        %vm3555 = vcmp.gt.f32.partialorder %v2161, 0.0
        %vm3556 = vcmp.gt.f32.partialorder %v2174, 0.0
        %vm3557 = vcmp.gt.f32.partialorder %v2187, 0.0
        %vm3558 = vcmp.gt.f32.partialorder %v2200, 0.0
        %vm3559 = vcmp.gt.f32.partialorder %v2213, 0.0
        %vm3560 = vcmp.gt.f32.partialorder %v2226, 0.0
        %vm3561 = vcmp.gt.f32.partialorder %v2239, 0.0
        %vm3562 = vcmp.gt.f32.partialorder %v2252, 0.0
        %vm3563 = vcmp.gt.f32.partialorder %v2265, 0.0
        %vm3564 = vcmp.gt.f32.partialorder %v2278, 0.0
        %vm3565 = vcmp.gt.f32.partialorder %v2291, 0.0
        %vm3566 = vcmp.gt.f32.partialorder %v2304, 0.0
        %vm3567 = vcmp.gt.f32.partialorder %v2317, 0.0
        %vm3568 = vcmp.gt.f32.partialorder %v2330, 0.0
        %vm3569 = vcmp.gt.f32.partialorder %v2343, 0.0
        %vm3570 = vcmp.gt.f32.partialorder %v2356, 0.0
        %vm3571 = vcmp.gt.f32.partialorder %v2369, 0.0
        %vm3572 = vcmp.gt.f32.partialorder %v2382, 0.0
        %vm3573 = vcmp.gt.f32.partialorder %v2395, 0.0
        %vm3574 = vcmp.gt.f32.partialorder %v2408, 0.0
        %vm3575 = vcmp.gt.f32.partialorder %v2421, 0.0
        %vm3576 = vcmp.gt.f32.partialorder %v2434, 0.0
        %vm3577 = vcmp.gt.f32.partialorder %v2447, 0.0
        %vm3578 = vcmp.gt.f32.partialorder %v2460, 0.0
        %vm3579 = vcmp.gt.f32.partialorder %v2473, 0.0
        %vm3580 = vcmp.gt.f32.partialorder %v2486, 0.0
        %vm3581 = vcmp.gt.f32.partialorder %v2499, 0.0
        %vm3582 = vcmp.gt.f32.partialorder %v2512, 0.0
        %vm3583 = vcmp.gt.f32.partialorder %v2525, 0.0
        %vm3584 = vcmp.gt.f32.partialorder %v2538, 0.0
        %vm3585 = vcmp.gt.f32.partialorder %v2551, 0.0
        %vm3586 = vcmp.gt.f32.partialorder %v2564, 0.0
        %vm3587 = vcmp.gt.f32.partialorder %v2577, 0.0
        %vm3588 = vcmp.gt.f32.partialorder %v2590, 0.0
        %vm3589 = vcmp.gt.f32.partialorder %v2603, 0.0
        %vm3590 = vcmp.gt.f32.partialorder %v2616, 0.0
        %vm3591 = vcmp.gt.f32.partialorder %v2629, 0.0
        %vm3592 = vcmp.gt.f32.partialorder %v2642, 0.0
        %vm3593 = vcmp.gt.f32.partialorder %v2655, 0.0
        %vm3594 = vcmp.gt.f32.partialorder %v2668, 0.0
        %vm3595 = vcmp.gt.f32.partialorder %v2681, 0.0
        %vm3596 = vcmp.gt.f32.partialorder %v2694, 0.0
        %vm3597 = vcmp.gt.f32.partialorder %v2707, 0.0
        %vm3598 = vcmp.gt.f32.partialorder %v2720, 0.0
        %vm3599 = vcmp.gt.f32.partialorder %v2733, 0.0
        %vm3600 = vcmp.gt.f32.partialorder %v2746, 0.0
        %vm3601 = vcmp.gt.f32.partialorder %v2759, 0.0
        %vm3602 = vcmp.gt.f32.partialorder %v2772, 0.0
        %vm3603 = vcmp.gt.f32.partialorder %v2785, 0.0
        %vm3604 = vcmp.gt.f32.partialorder %v2798, 0.0
        %vm3605 = vcmp.gt.f32.partialorder %v2811, 0.0
        %vm3606 = vcmp.gt.f32.partialorder %v2824, 0.0
        %vm3607 = vcmp.gt.f32.partialorder %v2837, 0.0
        %vm3608 = vcmp.gt.f32.partialorder %v2850, 0.0
        %vm3609 = vcmp.gt.f32.partialorder %v2863, 0.0
        %vm3610 = vcmp.gt.f32.partialorder %v2876, 0.0
        %vm3611 = vcmp.gt.f32.partialorder %v2889, 0.0
        %vm3612 = vcmp.gt.f32.partialorder %v2902, 0.0
        %vm3613 = vcmp.gt.f32.partialorder %v2915, 0.0
        %vm3614 = vcmp.gt.f32.partialorder %v2928, 0.0
        %vm3615 = vcmp.gt.f32.partialorder %v2941, 0.0
        %vm3616 = vcmp.gt.f32.partialorder %v2954, 0.0
        %vm3617 = vcmp.gt.f32.partialorder %v2967, 0.0
        %vm3618 = vcmp.gt.f32.partialorder %v2980, 0.0
        %vm3619 = vcmp.gt.f32.partialorder %v2993, 0.0
        %vm3620 = vcmp.gt.f32.partialorder %v3006, 0.0
        %vm3621 = vcmp.gt.f32.partialorder %v3019, 0.0
        %vm3622 = vcmp.gt.f32.partialorder %v3032, 0.0
        %vm3623 = vcmp.gt.f32.partialorder %v3045, 0.0
        %vm3624 = vcmp.gt.f32.partialorder %v3058, 0.0
        %vm3625 = vcmp.gt.f32.partialorder %v3071, 0.0
        %vm3626 = vcmp.gt.f32.partialorder %v3084, 0.0
        %vm3627 = vcmp.gt.f32.partialorder %v3097, 0.0
        %vm3628 = vcmp.gt.f32.partialorder %v3110, 0.0
        %vm3629 = vcmp.gt.f32.partialorder %v3123, 0.0
        %vm3630 = vcmp.gt.f32.partialorder %v3136, 0.0
        %vm3631 = vcmp.gt.f32.partialorder %v3149, 0.0
        %vm3632 = vcmp.gt.f32.partialorder %v3162, 0.0
        %vm3633 = vcmp.gt.f32.partialorder %v3175, 0.0
        %vm3634 = vcmp.gt.f32.partialorder %v3188, 0.0
        %vm3635 = vcmp.gt.f32.partialorder %v3201, 0.0
        %vm3636 = vcmp.gt.f32.partialorder %v3214, 0.0
        %vm3637 = vcmp.gt.f32.partialorder %v3227, 0.0
        %vm3638 = vcmp.gt.f32.partialorder %v3240, 0.0
        %vm3639 = vcmp.gt.f32.partialorder %v3253, 0.0
        %vm3640 = vcmp.gt.f32.partialorder %v3266, 0.0
        %vm3641 = vcmp.gt.f32.partialorder %v3279, 0.0
        %vm3642 = vcmp.gt.f32.partialorder %v3292, 0.0
        %vm3643 = vcmp.gt.f32.partialorder %v3305, 0.0
        %vm3644 = vcmp.gt.f32.partialorder %v3318, 0.0
        %vm3645 = vcmp.gt.f32.partialorder %v3331, 0.0
        %vm3646 = vcmp.gt.f32.partialorder %v3344, 0.0
        %vm3647 = vcmp.gt.f32.partialorder %v3357, 0.0
        %vm3648 = vcmp.gt.f32.partialorder %v3370, 0.0
        %vm3649 = vcmp.gt.f32.partialorder %v3383, 0.0
        %vm3650 = vcmp.gt.f32.partialorder %v3396, 0.0
        %vm3651 = vcmp.gt.f32.partialorder %v3409, 0.0
        %vm3652 = vcmp.gt.f32.partialorder %v3422, 0.0
        %vm3653 = vcmp.gt.f32.partialorder %v3435, 0.0
        %vm3654 = vcmp.gt.f32.partialorder %v3448, 0.0
        %vm3655 = vcmp.gt.f32.partialorder %v3461, 0.0
        %vm3656 = vcmp.gt.f32.partialorder %v3474, 0.0
        %vm3657 = vcmp.gt.f32.partialorder %v3487, 0.0
        %vm3658 = vcmp.gt.f32.partialorder %v3500, 0.0
        %vm3659 = vcmp.gt.f32.partialorder %v3513, 0.0
        %vm3660 = vcmp.gt.f32.partialorder %v3526, 0.0
        %vm3661 = vcmp.gt.f32.partialorder %v3539, 0.0
        %vm3662 = vcmp.gt.f32.partialorder %v3552, 0.0
        %v3663 = vmin.f32 %v2161, 0.0
        %v3664 = vmin.f32 %v2174, 0.0
        %v3665 = vmin.f32 %v2187, 0.0
        %v3666 = vmin.f32 %v2200, 0.0
        %v3667 = vmin.f32 %v2213, 0.0
        %v3668 = vmin.f32 %v2226, 0.0
        %v3669 = vmin.f32 %v2239, 0.0
        %v3670 = vmin.f32 %v2252, 0.0
        %v3671 = vmin.f32 %v2265, 0.0
        %v3672 = vmin.f32 %v2278, 0.0
        %v3673 = vmin.f32 %v2291, 0.0
        %v3674 = vmin.f32 %v2304, 0.0
        %v3675 = vmin.f32 %v2317, 0.0
        %v3676 = vmin.f32 %v2330, 0.0
        %v3677 = vmin.f32 %v2343, 0.0
        %v3678 = vmin.f32 %v2356, 0.0
        %v3679 = vmin.f32 %v2369, 0.0
        %v3680 = vmin.f32 %v2382, 0.0
        %v3681 = vmin.f32 %v2395, 0.0
        %v3682 = vmin.f32 %v2408, 0.0
        %v3683 = vmin.f32 %v2421, 0.0
        %v3684 = vmin.f32 %v2434, 0.0
        %v3685 = vmin.f32 %v2447, 0.0
        %v3686 = vmin.f32 %v2460, 0.0
        %v3687 = vmin.f32 %v2473, 0.0
        %v3688 = vmin.f32 %v2486, 0.0
        %v3689 = vmin.f32 %v2499, 0.0
        %v3690 = vmin.f32 %v2512, 0.0
        %v3691 = vmin.f32 %v2525, 0.0
        %v3692 = vmin.f32 %v2538, 0.0
        %v3693 = vmin.f32 %v2551, 0.0
        %v3694 = vmin.f32 %v2564, 0.0
        %v3695 = vmin.f32 %v2577, 0.0
        %v3696 = vmin.f32 %v2590, 0.0
        %v3697 = vmin.f32 %v2603, 0.0
        %v3698 = vmin.f32 %v2616, 0.0
        %v3699 = vmin.f32 %v2629, 0.0
        %v3700 = vmin.f32 %v2642, 0.0
        %v3701 = vmin.f32 %v2655, 0.0
        %v3702 = vmin.f32 %v2668, 0.0
        %v3703 = vmin.f32 %v2681, 0.0
        %v3704 = vmin.f32 %v2694, 0.0
        %v3705 = vmin.f32 %v2707, 0.0
        %v3706 = vmin.f32 %v2720, 0.0
        %v3707 = vmin.f32 %v2733, 0.0
        %v3708 = vmin.f32 %v2746, 0.0
        %v3709 = vmin.f32 %v2759, 0.0
        %v3710 = vmin.f32 %v2772, 0.0
        %v3711 = vmin.f32 %v2785, 0.0
        %v3712 = vmin.f32 %v2798, 0.0
        %v3713 = vmin.f32 %v2811, 0.0
        %v3714 = vmin.f32 %v2824, 0.0
        %v3715 = vmin.f32 %v2837, 0.0
        %v3716 = vmin.f32 %v2850, 0.0
        %v3717 = vmin.f32 %v2863, 0.0
        %v3718 = vmin.f32 %v2876, 0.0
        %v3719 = vmin.f32 %v2889, 0.0
        %v3720 = vmin.f32 %v2902, 0.0
        %v3721 = vmin.f32 %v2915, 0.0
        %v3722 = vmin.f32 %v2928, 0.0
        %v3723 = vmin.f32 %v2941, 0.0
        %v3724 = vmin.f32 %v2954, 0.0
        %v3725 = vmin.f32 %v2967, 0.0
        %v3726 = vmin.f32 %v2980, 0.0
        %v3727 = vmin.f32 %v2993, 0.0
        %v3728 = vmin.f32 %v3006, 0.0
        %v3729 = vmin.f32 %v3019, 0.0
        %v3730 = vmin.f32 %v3032, 0.0
        %v3731 = vmin.f32 %v3045, 0.0
        %v3732 = vmin.f32 %v3058, 0.0
        %v3733 = vmin.f32 %v3071, 0.0
        %v3734 = vmin.f32 %v3084, 0.0
        %v3735 = vmin.f32 %v3097, 0.0
        %v3736 = vmin.f32 %v3110, 0.0
        %v3737 = vmin.f32 %v3123, 0.0
        %v3738 = vmin.f32 %v3136, 0.0
        %v3739 = vmin.f32 %v3149, 0.0
        %v3740 = vmin.f32 %v3162, 0.0
        %v3741 = vmin.f32 %v3175, 0.0
        %v3742 = vmin.f32 %v3188, 0.0
        %v3743 = vmin.f32 %v3201, 0.0
        %v3744 = vmin.f32 %v3214, 0.0
        %v3745 = vmin.f32 %v3227, 0.0
        %v3746 = vmin.f32 %v3240, 0.0
        %v3747 = vmin.f32 %v3253, 0.0
        %v3748 = vmin.f32 %v3266, 0.0
        %v3749 = vmin.f32 %v3279, 0.0
        %v3750 = vmin.f32 %v3292, 0.0
        %v3751 = vmin.f32 %v3305, 0.0
        %v3752 = vmin.f32 %v3318, 0.0
        %v3753 = vmin.f32 %v3331, 0.0
        %v3754 = vmin.f32 %v3344, 0.0
        %v3755 = vmin.f32 %v3357, 0.0
        %v3756 = vmin.f32 %v3370, 0.0
        %v3757 = vmin.f32 %v3383, 0.0
        %v3758 = vmin.f32 %v3396, 0.0
        %v3759 = vmin.f32 %v3409, 0.0
        %v3760 = vmin.f32 %v3422, 0.0
        %v3761 = vmin.f32 %v3435, 0.0
        %v3762 = vmin.f32 %v3448, 0.0
        %v3763 = vmin.f32 %v3461, 0.0
        %v3764 = vmin.f32 %v3474, 0.0
        %v3765 = vmin.f32 %v3487, 0.0
        %v3766 = vmin.f32 %v3500, 0.0
        %v3767 = vmin.f32 %v3513, 0.0
        %v3768 = vmin.f32 %v3526, 0.0
        %v3769 = vmin.f32 %v3539, 0.0
        %v3770 = vmin.f32 %v3552, 0.0
        %v3771 = vmul.f32 %v3663, 1.442695
        %v3772 = vpow.pop %v3771
        %v3773 = vmul.f32 %v3664, 1.442695
        %v3774 = vpow.pop %v3773
        %v3775 = vmul.f32 %v3665, 1.442695
        %v3776 = vpow.pop %v3775
        %v3777 = vmul.f32 %v3666, 1.442695
        %v3778 = vpow.pop %v3777
        %v3779 = vmul.f32 %v3667, 1.442695
        %v3780 = vpow.pop %v3779
        %v3781 = vmul.f32 %v3668, 1.442695
        %v3782 = vpow.pop %v3781
        %v3783 = vmul.f32 %v3669, 1.442695
        %v3784 = vpow.pop %v3783
        %v3785 = vmul.f32 %v3670, 1.442695
        %v3786 = vpow.pop %v3785
        %v3787 = vmul.f32 %v3671, 1.442695
        %v3788 = vpow.pop %v3787
        %v3789 = vmul.f32 %v3672, 1.442695
        %v3790 = vpow.pop %v3789
        %v3791 = vmul.f32 %v3673, 1.442695
        %v3792 = vpow.pop %v3791
        %v3793 = vmul.f32 %v3674, 1.442695
        %v3794 = vpow.pop %v3793
        %v3795 = vmul.f32 %v3675, 1.442695
        %v3796 = vpow.pop %v3795
        %v3797 = vmul.f32 %v3676, 1.442695
        %v3798 = vpow.pop %v3797
        %v3799 = vmul.f32 %v3677, 1.442695
        %v3800 = vpow.pop %v3799
        %v3801 = vmul.f32 %v3678, 1.442695
        %v3802 = vpow.pop %v3801
        %v3803 = vmul.f32 %v3679, 1.442695
        %v3804 = vpow.pop %v3803
        %v3805 = vmul.f32 %v3680, 1.442695
        %v3806 = vpow.pop %v3805
        %v3807 = vmul.f32 %v3681, 1.442695
        %v3808 = vpow.pop %v3807
        %v3809 = vmul.f32 %v3682, 1.442695
        %v3810 = vpow.pop %v3809
        %v3811 = vmul.f32 %v3683, 1.442695
        %v3812 = vpow.pop %v3811
        %v3813 = vmul.f32 %v3684, 1.442695
        %v3814 = vpow.pop %v3813
        %v3815 = vmul.f32 %v3685, 1.442695
        %v3816 = vpow.pop %v3815
        %v3817 = vmul.f32 %v3686, 1.442695
        %v3818 = vpow.pop %v3817
        %v3819 = vmul.f32 %v3687, 1.442695
        %v3820 = vpow.pop %v3819
        %v3821 = vmul.f32 %v3688, 1.442695
        %v3822 = vpow.pop %v3821
        %v3823 = vmul.f32 %v3689, 1.442695
        %v3824 = vpow.pop %v3823
        %v3825 = vmul.f32 %v3690, 1.442695
        %v3826 = vpow.pop %v3825
        %v3827 = vmul.f32 %v3691, 1.442695
        %v3828 = vpow.pop %v3827
        %v3829 = vmul.f32 %v3692, 1.442695
        %v3830 = vpow.pop %v3829
        %v3831 = vmul.f32 %v3693, 1.442695
        %v3832 = vpow.pop %v3831
        %v3833 = vmul.f32 %v3694, 1.442695
        %v3834 = vpow.pop %v3833
        %v3835 = vmul.f32 %v3695, 1.442695
        %v3836 = vpow.pop %v3835
        %v3837 = vmul.f32 %v3696, 1.442695
        %v3838 = vpow.pop %v3837
        %v3839 = vmul.f32 %v3697, 1.442695
        %v3840 = vpow.pop %v3839
        %v3841 = vmul.f32 %v3698, 1.442695
        %v3842 = vpow.pop %v3841
        %v3843 = vmul.f32 %v3699, 1.442695
        %v3844 = vpow.pop %v3843
        %v3845 = vmul.f32 %v3700, 1.442695
        %v3846 = vpow.pop %v3845
        %v3847 = vmul.f32 %v3701, 1.442695
        %v3848 = vpow.pop %v3847
        %v3849 = vmul.f32 %v3702, 1.442695
        %v3850 = vpow.pop %v3849
        %v3851 = vmul.f32 %v3703, 1.442695
        %v3852 = vpow.pop %v3851
        %v3853 = vmul.f32 %v3704, 1.442695
        %v3854 = vpow.pop %v3853
        %v3855 = vmul.f32 %v3705, 1.442695
        %v3856 = vpow.pop %v3855
        %v3857 = vmul.f32 %v3706, 1.442695
        %v3858 = vpow.pop %v3857
        %v3859 = vmul.f32 %v3707, 1.442695
        %v3860 = vpow.pop %v3859
        %v3861 = vmul.f32 %v3708, 1.442695
        %v3862 = vpow.pop %v3861
        %v3863 = vmul.f32 %v3709, 1.442695
        %v3864 = vpow.pop %v3863
        %v3865 = vmul.f32 %v3710, 1.442695
        %v3866 = vpow.pop %v3865
        %v3867 = vmul.f32 %v3711, 1.442695
        %v3868 = vpow.pop %v3867
        %v3869 = vmul.f32 %v3712, 1.442695
        %v3870 = vpow.pop %v3869
        %v3871 = vmul.f32 %v3713, 1.442695
        %v3872 = vpow.pop %v3871
        %v3873 = vmul.f32 %v3714, 1.442695
        %v3874 = vpow.pop %v3873
        %v3875 = vmul.f32 %v3715, 1.442695
        %v3876 = vpow.pop %v3875
        %v3877 = vmul.f32 %v3716, 1.442695
        %v3878 = vpow.pop %v3877
        %v3879 = vmul.f32 %v3717, 1.442695
        %v3880 = vpow.pop %v3879
        %v3881 = vmul.f32 %v3718, 1.442695
        %v3882 = vpow.pop %v3881
        %v3883 = vmul.f32 %v3719, 1.442695
        %v3884 = vpow.pop %v3883
        %v3885 = vmul.f32 %v3720, 1.442695
        %v3886 = vpow.pop %v3885
        %v3887 = vmul.f32 %v3721, 1.442695
        %v3888 = vpow.pop %v3887
        %v3889 = vmul.f32 %v3722, 1.442695
        %v3890 = vpow.pop %v3889
        %v3891 = vmul.f32 %v3723, 1.442695
        %v3892 = vpow.pop %v3891
        %v3893 = vmul.f32 %v3724, 1.442695
        %v3894 = vpow.pop %v3893
        %v3895 = vmul.f32 %v3725, 1.442695
        %v3896 = vpow.pop %v3895
        %v3897 = vmul.f32 %v3726, 1.442695
        %v3898 = vpow.pop %v3897
        %v3899 = vmul.f32 %v3727, 1.442695
        %v3900 = vpow.pop %v3899
        %v3901 = vmul.f32 %v3728, 1.442695
        %v3902 = vpow.pop %v3901
        %v3903 = vmul.f32 %v3729, 1.442695
        %v3904 = vpow.pop %v3903
        %v3905 = vmul.f32 %v3730, 1.442695
        %v3906 = vpow.pop %v3905
        %v3907 = vmul.f32 %v3731, 1.442695
        %v3908 = vpow.pop %v3907
        %v3909 = vmul.f32 %v3732, 1.442695
        %v3910 = vpow.pop %v3909
        %v3911 = vmul.f32 %v3733, 1.442695
        %v3912 = vpow.pop %v3911
        %v3913 = vmul.f32 %v3734, 1.442695
        %v3914 = vpow.pop %v3913
        %v3915 = vmul.f32 %v3735, 1.442695
        %v3916 = vpow.pop %v3915
        %v3917 = vmul.f32 %v3736, 1.442695
        %v3918 = vpow.pop %v3917
        %v3919 = vmul.f32 %v3737, 1.442695
        %v3920 = vpow.pop %v3919
        %v3921 = vmul.f32 %v3738, 1.442695
        %v3922 = vpow.pop %v3921
        %v3923 = vmul.f32 %v3739, 1.442695
        %v3924 = vpow.pop %v3923
        %v3925 = vmul.f32 %v3740, 1.442695
        %v3926 = vpow.pop %v3925
        %v3927 = vmul.f32 %v3741, 1.442695
        %v3928 = vpow.pop %v3927
        %v3929 = vmul.f32 %v3742, 1.442695
        %v3930 = vpow.pop %v3929
        %v3931 = vmul.f32 %v3743, 1.442695
        %v3932 = vpow.pop %v3931
        %v3933 = vmul.f32 %v3744, 1.442695
        %v3934 = vpow.pop %v3933
        %v3935 = vmul.f32 %v3745, 1.442695
        %v3936 = vpow.pop %v3935
        %v3937 = vmul.f32 %v3746, 1.442695
        %v3938 = vpow.pop %v3937
        %v3939 = vmul.f32 %v3747, 1.442695
        %v3940 = vpow.pop %v3939
        %v3941 = vmul.f32 %v3748, 1.442695
        %v3942 = vpow.pop %v3941
        %v3943 = vmul.f32 %v3749, 1.442695
        %v3944 = vpow.pop %v3943
        %v3945 = vmul.f32 %v3750, 1.442695
        %v3946 = vpow.pop %v3945
        %v3947 = vmul.f32 %v3751, 1.442695
        %v3948 = vpow.pop %v3947
        %v3949 = vmul.f32 %v3752, 1.442695
        %v3950 = vpow.pop %v3949
        %v3951 = vmul.f32 %v3753, 1.442695
        %v3952 = vpow.pop %v3951
        %v3953 = vmul.f32 %v3754, 1.442695
        %v3954 = vpow.pop %v3953
        %v3955 = vmul.f32 %v3755, 1.442695
        %v3956 = vpow.pop %v3955
        %v3957 = vmul.f32 %v3756, 1.442695
        %v3958 = vpow.pop %v3957
        %v3959 = vmul.f32 %v3757, 1.442695
        %v3960 = vpow.pop %v3959
        %v3961 = vmul.f32 %v3758, 1.442695
        %v3962 = vpow.pop %v3961
        %v3963 = vmul.f32 %v3759, 1.442695
        %v3964 = vpow.pop %v3963
        %v3965 = vmul.f32 %v3760, 1.442695
        %v3966 = vpow.pop %v3965
        %v3967 = vmul.f32 %v3761, 1.442695
        %v3968 = vpow.pop %v3967
        %v3969 = vmul.f32 %v3762, 1.442695
        %v3970 = vpow.pop %v3969
        %v3971 = vmul.f32 %v3763, 1.442695
        %v3972 = vpow.pop %v3971
        %v3973 = vmul.f32 %v3764, 1.442695
        %v3974 = vpow.pop %v3973
        %v3975 = vmul.f32 %v3765, 1.442695
        %v3976 = vpow.pop %v3975
        %v3977 = vmul.f32 %v3766, 1.442695
        %v3978 = vpow.pop %v3977
        %v3979 = vmul.f32 %v3767, 1.442695
        %v3980 = vpow.pop %v3979
        %v3981 = vmul.f32 %v3768, 1.442695
        %v3982 = vpow.pop %v3981
        %v3983 = vmul.f32 %v3769, 1.442695
        %v3984 = vpow.pop %v3983
        %v3985 = vmul.f32 %v3770, 1.442695
        %v3986 = vpow.pop %v3985
        %v3987 = vsub.f32 %v3772, 1.0
        %v3988 = vsub.f32 %v3774, 1.0
        %v3989 = vsub.f32 %v3776, 1.0
        %v3990 = vsub.f32 %v3778, 1.0
        %v3991 = vsub.f32 %v3780, 1.0
        %v3992 = vsub.f32 %v3782, 1.0
        %v3993 = vsub.f32 %v3784, 1.0
        %v3994 = vsub.f32 %v3786, 1.0
        %v3995 = vsub.f32 %v3788, 1.0
        %v3996 = vsub.f32 %v3790, 1.0
        %v3997 = vsub.f32 %v3792, 1.0
        %v3998 = vsub.f32 %v3794, 1.0
        %v3999 = vsub.f32 %v3796, 1.0
        %v4000 = vsub.f32 %v3798, 1.0
        %v4001 = vsub.f32 %v3800, 1.0
        %v4002 = vsub.f32 %v3802, 1.0
        %v4003 = vsub.f32 %v3804, 1.0
        %v4004 = vsub.f32 %v3806, 1.0
        %v4005 = vsub.f32 %v3808, 1.0
        %v4006 = vsub.f32 %v3810, 1.0
        %v4007 = vsub.f32 %v3812, 1.0
        %v4008 = vsub.f32 %v3814, 1.0
        %v4009 = vsub.f32 %v3816, 1.0
        %v4010 = vsub.f32 %v3818, 1.0
        %v4011 = vsub.f32 %v3820, 1.0
        %v4012 = vsub.f32 %v3822, 1.0
        %v4013 = vsub.f32 %v3824, 1.0
        %v4014 = vsub.f32 %v3826, 1.0
        %v4015 = vsub.f32 %v3828, 1.0
        %v4016 = vsub.f32 %v3830, 1.0
        %v4017 = vsub.f32 %v3832, 1.0
        %v4018 = vsub.f32 %v3834, 1.0
        %v4019 = vsub.f32 %v3836, 1.0
        %v4020 = vsub.f32 %v3838, 1.0
        %v4021 = vsub.f32 %v3840, 1.0
        %v4022 = vsub.f32 %v3842, 1.0
        %v4023 = vsub.f32 %v3844, 1.0
        %v4024 = vsub.f32 %v3846, 1.0
        %v4025 = vsub.f32 %v3848, 1.0
        %v4026 = vsub.f32 %v3850, 1.0
        %v4027 = vsub.f32 %v3852, 1.0
        %v4028 = vsub.f32 %v3854, 1.0
        %v4029 = vsub.f32 %v3856, 1.0
        %v4030 = vsub.f32 %v3858, 1.0
        %v4031 = vsub.f32 %v3860, 1.0
        %v4032 = vsub.f32 %v3862, 1.0
        %v4033 = vsub.f32 %v3864, 1.0
        %v4034 = vsub.f32 %v3866, 1.0
        %v4035 = vsub.f32 %v3868, 1.0
        %v4036 = vsub.f32 %v3870, 1.0
        %v4037 = vsub.f32 %v3872, 1.0
        %v4038 = vsub.f32 %v3874, 1.0
        %v4039 = vsub.f32 %v3876, 1.0
        %v4040 = vsub.f32 %v3878, 1.0
        %v4041 = vsub.f32 %v3880, 1.0
        %v4042 = vsub.f32 %v3882, 1.0
        %v4043 = vsub.f32 %v3884, 1.0
        %v4044 = vsub.f32 %v3886, 1.0
        %v4045 = vsub.f32 %v3888, 1.0
        %v4046 = vsub.f32 %v3890, 1.0
        %v4047 = vsub.f32 %v3892, 1.0
        %v4048 = vsub.f32 %v3894, 1.0
        %v4049 = vsub.f32 %v3896, 1.0
        %v4050 = vsub.f32 %v3898, 1.0
        %v4051 = vsub.f32 %v3900, 1.0
        %v4052 = vsub.f32 %v3902, 1.0
        %v4053 = vsub.f32 %v3904, 1.0
        %v4054 = vsub.f32 %v3906, 1.0
        %v4055 = vsub.f32 %v3908, 1.0
        %v4056 = vsub.f32 %v3910, 1.0
        %v4057 = vsub.f32 %v3912, 1.0
        %v4058 = vsub.f32 %v3914, 1.0
        %v4059 = vsub.f32 %v3916, 1.0
        %v4060 = vsub.f32 %v3918, 1.0
        %v4061 = vsub.f32 %v3920, 1.0
        %v4062 = vsub.f32 %v3922, 1.0
        %v4063 = vsub.f32 %v3924, 1.0
        %v4064 = vsub.f32 %v3926, 1.0
        %v4065 = vsub.f32 %v3928, 1.0
        %v4066 = vsub.f32 %v3930, 1.0
        %v4067 = vsub.f32 %v3932, 1.0
        %v4068 = vsub.f32 %v3934, 1.0
        %v4069 = vsub.f32 %v3936, 1.0
        %v4070 = vsub.f32 %v3938, 1.0
        %v4071 = vsub.f32 %v3940, 1.0
        %v4072 = vsub.f32 %v3942, 1.0
        %v4073 = vsub.f32 %v3944, 1.0
        %v4074 = vsub.f32 %v3946, 1.0
        %v4075 = vsub.f32 %v3948, 1.0
        %v4076 = vsub.f32 %v3950, 1.0
        %v4077 = vsub.f32 %v3952, 1.0
        %v4078 = vsub.f32 %v3954, 1.0
        %v4079 = vsub.f32 %v3956, 1.0
        %v4080 = vsub.f32 %v3958, 1.0
        %v4081 = vsub.f32 %v3960, 1.0
        %v4082 = vsub.f32 %v3962, 1.0
        %v4083 = vsub.f32 %v3964, 1.0
        %v4084 = vsub.f32 %v3966, 1.0
        %v4085 = vsub.f32 %v3968, 1.0
        %v4086 = vsub.f32 %v3970, 1.0
        %v4087 = vsub.f32 %v3972, 1.0
        %v4088 = vsub.f32 %v3974, 1.0
        %v4089 = vsub.f32 %v3976, 1.0
        %v4090 = vsub.f32 %v3978, 1.0
        %v4091 = vsub.f32 %v3980, 1.0
        %v4092 = vsub.f32 %v3982, 1.0
        %v4093 = vsub.f32 %v3984, 1.0
        %v4094 = vsub.f32 %v3986, 1.0
        %v4095 = vsel %vm3555, %v2161, %v3987
        %v4096 = vsel %vm3556, %v2174, %v3988
        %v4097 = vsel %vm3557, %v2187, %v3989
        %v4098 = vsel %vm3558, %v2200, %v3990
        %v4099 = vsel %vm3559, %v2213, %v3991
        %v4100 = vsel %vm3560, %v2226, %v3992
        %v4101 = vsel %vm3561, %v2239, %v3993
        %v4102 = vsel %vm3562, %v2252, %v3994
        %v4103 = vsel %vm3563, %v2265, %v3995
        %v4104 = vsel %vm3564, %v2278, %v3996
        %v4105 = vsel %vm3565, %v2291, %v3997
        %v4106 = vsel %vm3566, %v2304, %v3998
        %v4107 = vsel %vm3567, %v2317, %v3999
        %v4108 = vsel %vm3568, %v2330, %v4000
        %v4109 = vsel %vm3569, %v2343, %v4001
        %v4110 = vsel %vm3570, %v2356, %v4002
        %v4111 = vsel %vm3571, %v2369, %v4003
        %v4112 = vsel %vm3572, %v2382, %v4004
        %v4113 = vsel %vm3573, %v2395, %v4005
        %v4114 = vsel %vm3574, %v2408, %v4006
        %v4115 = vsel %vm3575, %v2421, %v4007
        %v4116 = vsel %vm3576, %v2434, %v4008
        %v4117 = vsel %vm3577, %v2447, %v4009
        %v4118 = vsel %vm3578, %v2460, %v4010
        %v4119 = vsel %vm3579, %v2473, %v4011
        %v4120 = vsel %vm3580, %v2486, %v4012
        %v4121 = vsel %vm3581, %v2499, %v4013
        %v4122 = vsel %vm3582, %v2512, %v4014
        %v4123 = vsel %vm3583, %v2525, %v4015
        %v4124 = vsel %vm3584, %v2538, %v4016
        %v4125 = vsel %vm3585, %v2551, %v4017
        %v4126 = vsel %vm3586, %v2564, %v4018
        %v4127 = vsel %vm3587, %v2577, %v4019
        %v4128 = vsel %vm3588, %v2590, %v4020
        %v4129 = vsel %vm3589, %v2603, %v4021
        %v4130 = vsel %vm3590, %v2616, %v4022
        %v4131 = vsel %vm3591, %v2629, %v4023
        %v4132 = vsel %vm3592, %v2642, %v4024
        %v4133 = vsel %vm3593, %v2655, %v4025
        %v4134 = vsel %vm3594, %v2668, %v4026
        %v4135 = vsel %vm3595, %v2681, %v4027
        %v4136 = vsel %vm3596, %v2694, %v4028
        %v4137 = vsel %vm3597, %v2707, %v4029
        %v4138 = vsel %vm3598, %v2720, %v4030
        %v4139 = vsel %vm3599, %v2733, %v4031
        %v4140 = vsel %vm3600, %v2746, %v4032
        %v4141 = vsel %vm3601, %v2759, %v4033
        %v4142 = vsel %vm3602, %v2772, %v4034
        %v4143 = vsel %vm3603, %v2785, %v4035
        %v4144 = vsel %vm3604, %v2798, %v4036
        %v4145 = vsel %vm3605, %v2811, %v4037
        %v4146 = vsel %vm3606, %v2824, %v4038
        %v4147 = vsel %vm3607, %v2837, %v4039
        %v4148 = vsel %vm3608, %v2850, %v4040
        %v4149 = vsel %vm3609, %v2863, %v4041
        %v4150 = vsel %vm3610, %v2876, %v4042
        %v4151 = vsel %vm3611, %v2889, %v4043
        %v4152 = vsel %vm3612, %v2902, %v4044
        %v4153 = vsel %vm3613, %v2915, %v4045
        %v4154 = vsel %vm3614, %v2928, %v4046
        %v4155 = vsel %vm3615, %v2941, %v4047
        %v4156 = vsel %vm3616, %v2954, %v4048
        %v4157 = vsel %vm3617, %v2967, %v4049
        %v4158 = vsel %vm3618, %v2980, %v4050
        %v4159 = vsel %vm3619, %v2993, %v4051
        %v4160 = vsel %vm3620, %v3006, %v4052
        %v4161 = vsel %vm3621, %v3019, %v4053
        %v4162 = vsel %vm3622, %v3032, %v4054
        %v4163 = vsel %vm3623, %v3045, %v4055
        %v4164 = vsel %vm3624, %v3058, %v4056
        %v4165 = vsel %vm3625, %v3071, %v4057
        %v4166 = vsel %vm3626, %v3084, %v4058
        %v4167 = vsel %vm3627, %v3097, %v4059
        %v4168 = vsel %vm3628, %v3110, %v4060
        %v4169 = vsel %vm3629, %v3123, %v4061
        %v4170 = vsel %vm3630, %v3136, %v4062
        %v4171 = vsel %vm3631, %v3149, %v4063
        %v4172 = vsel %vm3632, %v3162, %v4064
        %v4173 = vsel %vm3633, %v3175, %v4065
        %v4174 = vsel %vm3634, %v3188, %v4066
        %v4175 = vsel %vm3635, %v3201, %v4067
        %v4176 = vsel %vm3636, %v3214, %v4068
        %v4177 = vsel %vm3637, %v3227, %v4069
        %v4178 = vsel %vm3638, %v3240, %v4070
        %v4179 = vsel %vm3639, %v3253, %v4071
        %v4180 = vsel %vm3640, %v3266, %v4072
        %v4181 = vsel %vm3641, %v3279, %v4073
        %v4182 = vsel %vm3642, %v3292, %v4074
        %v4183 = vsel %vm3643, %v3305, %v4075
        %v4184 = vsel %vm3644, %v3318, %v4076
        %v4185 = vsel %vm3645, %v3331, %v4077
        %v4186 = vsel %vm3646, %v3344, %v4078
        %v4187 = vsel %vm3647, %v3357, %v4079
        %v4188 = vsel %vm3648, %v3370, %v4080
        %v4189 = vsel %vm3649, %v3383, %v4081
        %v4190 = vsel %vm3650, %v3396, %v4082
        %v4191 = vsel %vm3651, %v3409, %v4083
        %v4192 = vsel %vm3652, %v3422, %v4084
        %v4193 = vsel %vm3653, %v3435, %v4085
        %v4194 = vsel %vm3654, %v3448, %v4086
        %v4195 = vsel %vm3655, %v3461, %v4087
        %v4196 = vsel %vm3656, %v3474, %v4088
        %v4197 = vsel %vm3657, %v3487, %v4089
        %v4198 = vsel %vm3658, %v3500, %v4090
        %v4199 = vsel %vm3659, %v3513, %v4091
        %v4200 = vsel %vm3660, %v3526, %v4092
        %v4201 = vsel %vm3661, %v3539, %v4093
        %v4202 = vsel %vm3662, %v3552, %v4094
        %v4203 = vpack.c.bf16 %v4096, %v4095
        %v4204 = vpack.c.bf16 %v4098, %v4097
        %v4205 = vpack.c.bf16 %v4100, %v4099
        %v4206 = vpack.c.bf16 %v4102, %v4101
        %v4207 = vpack.c.bf16 %v4104, %v4103
        %v4208 = vpack.c.bf16 %v4106, %v4105
        %v4209 = vpack.c.bf16 %v4108, %v4107
        %v4210 = vpack.c.bf16 %v4110, %v4109
        %v4211 = vpack.c.bf16 %v4112, %v4111
        %v4212 = vpack.c.bf16 %v4114, %v4113
        %v4213 = vpack.c.bf16 %v4116, %v4115
        %v4214 = vpack.c.bf16 %v4118, %v4117
        %v4215 = vpack.c.bf16 %v4120, %v4119
        %v4216 = vpack.c.bf16 %v4122, %v4121
        %v4217 = vpack.c.bf16 %v4124, %v4123
        %v4218 = vpack.c.bf16 %v4126, %v4125
        %v4219 = vpack.c.bf16 %v4128, %v4127
        %v4220 = vpack.c.bf16 %v4130, %v4129
        %v4221 = vpack.c.bf16 %v4132, %v4131
        %v4222 = vpack.c.bf16 %v4134, %v4133
        %v4223 = vpack.c.bf16 %v4136, %v4135
        %v4224 = vpack.c.bf16 %v4138, %v4137
        %v4225 = vpack.c.bf16 %v4140, %v4139
        %v4226 = vpack.c.bf16 %v4142, %v4141
        %v4227 = vpack.c.bf16 %v4144, %v4143
        %v4228 = vpack.c.bf16 %v4146, %v4145
        %v4229 = vpack.c.bf16 %v4148, %v4147
        %v4230 = vpack.c.bf16 %v4150, %v4149
        %v4231 = vpack.c.bf16 %v4152, %v4151
        %v4232 = vpack.c.bf16 %v4154, %v4153
        %v4233 = vpack.c.bf16 %v4156, %v4155
        %v4234 = vpack.c.bf16 %v4158, %v4157
        %v4235 = vpack.c.bf16 %v4160, %v4159
        %v4236 = vpack.c.bf16 %v4162, %v4161
        %v4237 = vpack.c.bf16 %v4164, %v4163
        %v4238 = vpack.c.bf16 %v4166, %v4165
        %v4239 = vpack.c.bf16 %v4168, %v4167
        %v4240 = vpack.c.bf16 %v4170, %v4169
        %v4241 = vpack.c.bf16 %v4172, %v4171
        %v4242 = vpack.c.bf16 %v4174, %v4173
        %v4243 = vpack.c.bf16 %v4176, %v4175
        %v4244 = vpack.c.bf16 %v4178, %v4177
        %v4245 = vpack.c.bf16 %v4180, %v4179
        %v4246 = vpack.c.bf16 %v4182, %v4181
        %v4247 = vpack.c.bf16 %v4184, %v4183
        %v4248 = vpack.c.bf16 %v4186, %v4185
        %v4249 = vpack.c.bf16 %v4188, %v4187
        %v4250 = vpack.c.bf16 %v4190, %v4189
        %v4251 = vpack.c.bf16 %v4192, %v4191
        %v4252 = vpack.c.bf16 %v4194, %v4193
        %v4253 = vpack.c.bf16 %v4196, %v4195
        %v4254 = vpack.c.bf16 %v4198, %v4197
        %v4255 = vpack.c.bf16 %v4200, %v4199
        %v4256 = vpack.c.bf16 %v4202, %v4201
        %4257 = vst [vmem:[%s621] sm:$0xff] %v4203
        %4258 = vst [vmem:[%s621 + $0x8] sm:$0xff] %v4204
        %4259 = vst [vmem:[%s621 + $0x10] sm:$0xff] %v4205
        %4260 = vst [vmem:[%s621 + $0x18] sm:$0xff] %v4206
        %4261 = vst [vmem:[%s621 + $0x20] sm:$0xff] %v4207
        %4262 = vst [vmem:[%s621 + $0x28] sm:$0xff] %v4208
        %4263 = vst [vmem:[%s621 + $0x30] sm:$0xff] %v4209
        %4264 = vst [vmem:[%s621 + $0x38] sm:$0xff] %v4210
        %4265 = vst [vmem:[%s621 + $0x40] sm:$0xff] %v4211
        %4266 = vst [vmem:[%s621 + $0x48] sm:$0xff] %v4212
        %4267 = vst [vmem:[%s621 + $0x50] sm:$0xff] %v4213
        %4268 = vst [vmem:[%s621 + $0x58] sm:$0xff] %v4214
        %4269 = vst [vmem:[%s621 + $0x60] sm:$0xff] %v4215
        %4270 = vst [vmem:[%s621 + $0x68] sm:$0xff] %v4216
        %4271 = vst [vmem:[%s621 + $0x70] sm:$0xff] %v4217
        %4272 = vst [vmem:[%s621 + $0x78] sm:$0xff] %v4218
        %4273 = vst [vmem:[%s621 + $0x80] sm:$0xff] %v4219
        %4274 = vst [vmem:[%s621 + $0x88] sm:$0xff] %v4220
        %4275 = vst [vmem:[%s621 + $0x90] sm:$0xff] %v4221
        %4276 = vst [vmem:[%s621 + $0x98] sm:$0xff] %v4222
        %4277 = vst [vmem:[%s621 + $0xa0] sm:$0xff] %v4223
        %4278 = vst [vmem:[%s621 + $0xa8] sm:$0xff] %v4224
        %4279 = vst [vmem:[%s621 + $0xb0] sm:$0xff] %v4225
        %4280 = vst [vmem:[%s621 + $0xb8] sm:$0xff] %v4226
        %4281 = vst [vmem:[%s621 + $0xc0] sm:$0xff] %v4227
        %4282 = vst [vmem:[%s621 + $0xc8] sm:$0xff] %v4228
        %4283 = vst [vmem:[%s621 + $0xd0] sm:$0xff] %v4229
        %4284 = vst [vmem:[%s621 + $0xd8] sm:$0xff] %v4230
        %4285 = vst [vmem:[%s621 + $0xe0] sm:$0xff] %v4231
        %4286 = vst [vmem:[%s621 + $0xe8] sm:$0xff] %v4232
        %4287 = vst [vmem:[%s621 + $0xf0] sm:$0xff] %v4233
        %4288 = vst [vmem:[%s621 + $0xf8] sm:$0xff] %v4234
        %4289 = vst [vmem:[%s621 + $0x100] sm:$0xff] %v4235
        %4290 = vst [vmem:[%s621 + $0x108] sm:$0xff] %v4236
        %4291 = vst [vmem:[%s621 + $0x110] sm:$0xff] %v4237
        %4292 = vst [vmem:[%s621 + $0x118] sm:$0xff] %v4238
        %4293 = vst [vmem:[%s621 + $0x120] sm:$0xff] %v4239
        %4294 = vst [vmem:[%s621 + $0x128] sm:$0xff] %v4240
        %4295 = vst [vmem:[%s621 + $0x130] sm:$0xff] %v4241
        %4296 = vst [vmem:[%s621 + $0x138] sm:$0xff] %v4242
        %4297 = vst [vmem:[%s621 + $0x140] sm:$0xff] %v4243
        %4298 = vst [vmem:[%s621 + $0x148] sm:$0xff] %v4244
        %4299 = vst [vmem:[%s621 + $0x150] sm:$0xff] %v4245
        %4300 = vst [vmem:[%s621 + $0x158] sm:$0xff] %v4246
        %4301 = vst [vmem:[%s621 + $0x160] sm:$0xff] %v4247
        %4302 = vst [vmem:[%s621 + $0x168] sm:$0xff] %v4248
        %4303 = vst [vmem:[%s621 + $0x170] sm:$0xff] %v4249
        %4304 = vst [vmem:[%s621 + $0x178] sm:$0xff] %v4250
        %4305 = vst [vmem:[%s621 + $0x180] sm:$0xff] %v4251
        %4306 = vst [vmem:[%s621 + $0x188] sm:$0xff] %v4252
        %4307 = vst [vmem:[%s621 + $0x190] sm:$0xff] %v4253
        %4308 = vst [vmem:[%s621 + $0x198] sm:$0xff] %v4254
        %4309 = vst [vmem:[%s621 + $0x1a0] sm:$0xff] %v4255
        %4310 = vst [vmem:[%s621 + $0x1a8] sm:$0xff] %v4256
        %s4311 = smul.u32 108, %s14
        %p4312 = scmp.lt.s32.totalorder %s4311, 215
        %s4313 = scalar_select %p4312, %s4311, 215
        %s4314 = smul.addr %s4313, 4
        %s4315 = scalar_lea.vmem %s3, %s4314
        // Predicated region
        $region56: #{encoder_classifier_forward.4} parent=50 // pred_check
          %p4316 = pneg %p100
        $region57: #{encoder_classifier_forward.4} parent=50 // pred_check_branch
          %4318 = sbr.rel (%p4316) target = $region59
        $region58: #{encoder_classifier_forward.4} parent=50 // pred_region
          %s4319 = smul.u32 108, %s14
        $region59: #{encoder_classifier_forward.4} parent=50 // pred_fallthru
          _
      $region51: #{encoder_classifier_forward.4} parent=5 // pred_fallthru
        _
      %p4320 = scmp.le.s32.totalorder 2, %s9
      // Predicated region
      $region60: #{encoder_classifier_forward.4} parent=5 // pred_check
        %p4321 = pneg %p4320
      $region61: #{encoder_classifier_forward.4} parent=5 // pred_check_branch
        %4323 = sbr.rel (%p4321) target = $region63
      $region62: #{encoder_classifier_forward.4} parent=5 // pred_region
        %s4324 = ssub.s32 %s9, 2
        // Predicated region
        $region64: #{encoder_classifier_forward.4} parent=62 // pred_check
          %p4325 = pneg %p106
        $region65: #{encoder_classifier_forward.4} parent=62 // pred_check_branch
          %4327 = sbr.rel (%p4325) target = $region67
        $region66: #{encoder_classifier_forward.4} parent=62 // pred_region
          %s4328 = smul.u32 108, %s15
          %p4329 = scmp.lt.s32.totalorder %s4328, 215
          %s4330 = scalar_select %p4329, %s4328, 215
          %s4331 = smul.addr %s4330, 4
          %s4332 = scalar_lea.vmem %s3, %s4331
        $region67: #{encoder_classifier_forward.4} parent=62 // pred_fallthru
          _
      $region63: #{encoder_classifier_forward.4} parent=5 // pred_fallthru
        _
    $region6: #{encoder_classifier_forward.4} parent=1 // loop_footer
      %s13 = sadd.s32 1, %s9
    $region7: #{encoder_classifier_forward.4} parent=1 // loop_footer_branch
      %8 = sbr.rel target = $region3
    $region8: #{encoder_classifier_forward.4} parent=1 // loop_exit
      _

// kernel: encoder_classifier_forward.5
$region0: #{encoder_classifier_forward.5}
  #allocation0 [shape = 'u32[]', space=smem, size = 0x4, offset = 0x4, fixed_abs, tag = 'smem constant byte address 0x4 - core index']
  #allocation1 [shape = 'u32[72,128]{1,0:T(1,128)}', space=vmem, size = 0x9000, scoped, tag = 'internal scratch']
  %s0 = inlined_call_operand.vmem [shape: bf16[16,216], index: 0, kind: input, shape index: {}]
  %s1 = inlined_call_operand.vmem [shape: f32[16,1], index: 1, kind: input, shape index: {}]
  %s2 = inlined_call_operand.vmem [shape: bf16[216,3456], index: 2, kind: input, shape index: {}]
  %s3 = inlined_call_operand.vmem [shape: bf16[16,3456], index: 3, kind: output, shape index: {}]
  %s4 = sld [smem:[#allocation0]]
  $region93: #{encoder_classifier_forward.5} parent=0
    _
  %s6 = ssub.s32 1, %s4
  %s7 = scalar_select 0, %s6, %s4
  $region1: #{encoder_classifier_forward.5} parent=0
    #allocation2 [shape = 'u8[995328]{0}', space=vmem, size = 0xf3000, scoped, tag = 'input window, operand 2']
    #allocation3 [shape = 'u8[73728]{0}', space=vmem, size = 0x12000, scoped, tag = 'output window, operand 0']
    loop: start=0, step=1, limit=5
    $region2: #{encoder_classifier_forward.5} parent=1 // loop_pre_header
      _
    $region3: #{encoder_classifier_forward.5} parent=1 // loop_header
      %s9 = sphi 0, %s13
      %p10 = scmp.ge.s32.totalorder %s9, 5
      %s17 = sphi 0, %s17
      %s19 = sphi 0, %s17
      %s20 = sphi 0, %s19
      %s34 = sphi 0, %s20
      %s38 = sphi 0, %s38
      %s40 = sphi 0, %s38
      %s41 = sphi 0, %s40
      %s55 = sphi 0, %s41
      %s61 = sphi 0, %s63
      %s64 = sphi 0, %s61
      %s65 = sphi 0, %s64
      %s81 = sphi 0, %s65
      %s87 = sphi 0, %s89
      %s90 = sphi 0, %s87
      %s91 = sphi 0, %s90
      %s107 = sphi 0, %s91
    $region4: #{encoder_classifier_forward.5} parent=1 // loop_header_branch
      %12 = sbr.rel (%p10) target = $region8
    $region5: #{encoder_classifier_forward.5} parent=1 // loop_body
      %s14 = ssub.s32 %s9, 1
      %s15 = ssub.s32 %s9, 2
      %s16 = sadd.s32 %s9, 1
      %s18 = sadd.s32 %s17, 1
      %p21 = scmp.eq.s32.totalorder %s9, 2
      %p22 = scmp.ne.s32.totalorder %s17, %s19
      %p23 = scmp.eq.s32.totalorder %s9, 0
      %p24 = por %p22, %p23
      %p25 = scmp.ne.s32.totalorder %s17, %s19
      %p26 = scmp.eq.s32.totalorder %s14, 2
      %p27 = por %p25, %p26
      %p28 = scmp.ne.s32.totalorder %s19, %s20
      %p29 = scmp.eq.s32.totalorder %s14, 0
      %p30 = por %p28, %p29
      %p31 = scmp.ne.s32.totalorder %s19, %s20
      %p32 = scmp.eq.s32.totalorder %s15, 2
      %p33 = por %p31, %p32
      %p35 = scmp.ne.s32.totalorder %s20, %s34
      %p36 = scmp.eq.s32.totalorder %s15, 0
      %p37 = por %p35, %p36
      %s39 = sadd.s32 %s38, 1
      %p42 = scmp.eq.s32.totalorder %s9, 2
      %p43 = scmp.ne.s32.totalorder %s38, %s40
      %p44 = scmp.eq.s32.totalorder %s9, 0
      %p45 = por %p43, %p44
      %p46 = scmp.ne.s32.totalorder %s38, %s40
      %p47 = scmp.eq.s32.totalorder %s14, 2
      %p48 = por %p46, %p47
      %p49 = scmp.ne.s32.totalorder %s40, %s41
      %p50 = scmp.eq.s32.totalorder %s14, 0
      %p51 = por %p49, %p50
      %p52 = scmp.ne.s32.totalorder %s40, %s41
      %p53 = scmp.eq.s32.totalorder %s15, 2
      %p54 = por %p52, %p53
      %p56 = scmp.ne.s32.totalorder %s41, %s55
      %p57 = scmp.eq.s32.totalorder %s15, 0
      %p58 = por %p56, %p57
      %s59 = ssub.s32 %s9, %s16
      %p60 = scmp.eq.s32.totalorder %s59, 0
      %s62 = sadd.s32 %s61, 1
      %s63 = scalar_select %p60, %s61, %s62
      %p66 = pneg %p60
      %p67 = scmp.eq.s32.totalorder %s9, 2
      %p68 = por %p66, %p67
      %p69 = scmp.ne.s32.totalorder %s61, %s64
      %p70 = scmp.eq.s32.totalorder %s9, 0
      %p71 = por %p69, %p70
      %p72 = scmp.ne.s32.totalorder %s61, %s64
      %p73 = scmp.eq.s32.totalorder %s14, 2
      %p74 = por %p72, %p73
      %p75 = scmp.ne.s32.totalorder %s64, %s65
      %p76 = scmp.eq.s32.totalorder %s14, 0
      %p77 = por %p75, %p76
      %p78 = scmp.ne.s32.totalorder %s64, %s65
      %p79 = scmp.eq.s32.totalorder %s15, 2
      %p80 = por %p78, %p79
      %p82 = scmp.ne.s32.totalorder %s65, %s81
      %p83 = scmp.eq.s32.totalorder %s15, 0
      %p84 = por %p82, %p83
      %s85 = ssub.s32 %s9, %s16
      %p86 = scmp.eq.s32.totalorder %s85, 0
      %s88 = sadd.s32 %s87, 1
      %s89 = scalar_select %p86, %s87, %s88
      %p92 = pneg %p86
      %p93 = scmp.eq.s32.totalorder %s9, 2
      %p94 = por %p92, %p93
      %p95 = scmp.ne.s32.totalorder %s87, %s90
      %p96 = scmp.eq.s32.totalorder %s9, 0
      %p97 = por %p95, %p96
      %p98 = scmp.ne.s32.totalorder %s87, %s90
      %p99 = scmp.eq.s32.totalorder %s14, 2
      %p100 = por %p98, %p99
      %p101 = scmp.ne.s32.totalorder %s90, %s91
      %p102 = scmp.eq.s32.totalorder %s14, 0
      %p103 = por %p101, %p102
      %p104 = scmp.ne.s32.totalorder %s90, %s91
      %p105 = scmp.eq.s32.totalorder %s15, 2
      %p106 = por %p104, %p105
      %p108 = scmp.ne.s32.totalorder %s91, %s107
      %p109 = scmp.eq.s32.totalorder %s15, 0
      %p110 = por %p108, %p109
      %p111 = scmp.le.s32.totalorder 1, %s9
      %p112 = scmp.lt.s32.totalorder %s9, 4
      %p113 = pnand %p111, %p112
      %p114 = pneg %p113
      // Predicated region
      $region9: #{encoder_classifier_forward.5} parent=5 // pred_check
        _
      $region10: #{encoder_classifier_forward.5} parent=5 // pred_check_branch
        %116 = sbr.rel (%p113) target = $region12
      $region11: #{encoder_classifier_forward.5} parent=5 // pred_region
        %s117 = ssub.s32 %s9, 1
        // Predicated region
        $region13: #{encoder_classifier_forward.5} parent=11 // pred_check
          %p118 = pneg %p30
        $region14: #{encoder_classifier_forward.5} parent=11 // pred_check_branch
          %120 = sbr.rel (%p118) target = $region16
        $region15: #{encoder_classifier_forward.5} parent=11 // pred_region
          _
        $region16: #{encoder_classifier_forward.5} parent=11 // pred_fallthru
          _
        // Predicated region
        $region17: #{encoder_classifier_forward.5} parent=11 // pred_check
          %p121 = pneg %p51
        $region18: #{encoder_classifier_forward.5} parent=11 // pred_check_branch
          %123 = sbr.rel (%p121) target = $region20
        $region19: #{encoder_classifier_forward.5} parent=11 // pred_region
          _
        $region20: #{encoder_classifier_forward.5} parent=11 // pred_fallthru
          _
      $region12: #{encoder_classifier_forward.5} parent=5 // pred_fallthru
        _
      %p124 = scmp.lt.s32.totalorder %s9, 3
      // Predicated region
      $region21: #{encoder_classifier_forward.5} parent=5 // pred_check
        %p125 = pneg %p124
      $region22: #{encoder_classifier_forward.5} parent=5 // pred_check_branch
        %127 = sbr.rel (%p125) target = $region24
      $region23: #{encoder_classifier_forward.5} parent=5 // pred_region
        // Predicated region
        $region25: #{encoder_classifier_forward.5} parent=23 // pred_check
          %p128 = pneg %p71
        $region26: #{encoder_classifier_forward.5} parent=23 // pred_check_branch
          %130 = sbr.rel (%p128) target = $region28
        $region27: #{encoder_classifier_forward.5} parent=23 // pred_region
          %s131 = sand.u32 %s61, 1
          %s132 = sand.u32 %s61, 1
          %s133 = smul.addr %s132, 972
          %s134 = scalar_lea.vmem [#allocation2], %s133
          %s135 = smul.u32 9, %s9
          %s136 = smul.addr %s135, 4
          %s137 = scalar_lea.vmem %s2, %s136
          // Predicated region
          $region29: #{encoder_classifier_forward.5} parent=27 // pred_check
            _
          $region30: #{encoder_classifier_forward.5} parent=27 // pred_check_branch
            %139 = sbr.rel (0) target = $region32
          $region31: #{encoder_classifier_forward.5} parent=27 // pred_region
            // Predicated region
            $region33: #{encoder_classifier_forward.5} parent=31 // pred_check
              _
            $region34: #{encoder_classifier_forward.5} parent=31 // pred_check_branch
              %141 = sbr.rel (0) target = $region36
            $region35: #{encoder_classifier_forward.5} parent=31 // pred_region
              %s142 = scalar_lea.vmem %s137, 32
              %s143 = scalar_lea.vmem %s134, 32 [#allocation2]
              loop: start=0, step=1, limit=1
              $region37: #{encoder_classifier_forward.5} parent=35 // loop_pre_header
                _
              $region38: #{encoder_classifier_forward.5} parent=35 // loop_header
                %s145 = sphi 0, %s149
                %p146 = scmp.ge.s32.totalorder %s145, 1
                %s150 = sphi %s137, %s137
                %s151 = sphi %s134, %s134
              $region39: #{encoder_classifier_forward.5} parent=35 // loop_header_branch
                %148 = sbr.rel (%p146) target = $region43
              $region40: #{encoder_classifier_forward.5} parent=35 // loop_body
                %v152 = vld [vmem:[%s150] sm:$0xff]
                %153 = vst [vmem:[%s151] sm:$0xff] %v152
                %v154 = vld [vmem:[%s150 + $0x8] sm:$0xff]
                %155 = vst [vmem:[%s151 + $0x8] sm:$0xff] %v154
                %v156 = vld [vmem:[%s150 + $0x10] sm:$0xff]
                %157 = vst [vmem:[%s151 + $0x10] sm:$0xff] %v156
                %v158 = vld [vmem:[%s150 + $0x18] sm:$0xff]
                %159 = vst [vmem:[%s151 + $0x18] sm:$0xff] %v158
                %v160 = vld [vmem:[%s150 + $0x6c] sm:$0xff]
                %161 = vst [vmem:[%s151 + $0x24] sm:$0xff] %v160
                %v162 = vld [vmem:[%s150 + $0x74] sm:$0xff]
                %163 = vst [vmem:[%s151 + $0x2c] sm:$0xff] %v162
                %v164 = vld [vmem:[%s150 + $0x7c] sm:$0xff]
                %165 = vst [vmem:[%s151 + $0x34] sm:$0xff] %v164
                %v166 = vld [vmem:[%s150 + $0x84] sm:$0xff]
                %167 = vst [vmem:[%s151 + $0x3c] sm:$0xff] %v166
                %v168 = vld [vmem:[%s150 + $0xd8] sm:$0xff]
                %169 = vst [vmem:[%s151 + $0x48] sm:$0xff] %v168
                %v170 = vld [vmem:[%s150 + $0xe0] sm:$0xff]
                %171 = vst [vmem:[%s151 + $0x50] sm:$0xff] %v170
                %v172 = vld [vmem:[%s150 + $0xe8] sm:$0xff]
                %173 = vst [vmem:[%s151 + $0x58] sm:$0xff] %v172
                %v174 = vld [vmem:[%s150 + $0xf0] sm:$0xff]
                %175 = vst [vmem:[%s151 + $0x60] sm:$0xff] %v174
                %v176 = vld [vmem:[%s150 + $0x144] sm:$0xff]
                %177 = vst [vmem:[%s151 + $0x6c] sm:$0xff] %v176
                %v178 = vld [vmem:[%s150 + $0x14c] sm:$0xff]
                %179 = vst [vmem:[%s151 + $0x74] sm:$0xff] %v178
                %v180 = vld [vmem:[%s150 + $0x154] sm:$0xff]
                %181 = vst [vmem:[%s151 + $0x7c] sm:$0xff] %v180
                %v182 = vld [vmem:[%s150 + $0x15c] sm:$0xff]
                %183 = vst [vmem:[%s151 + $0x84] sm:$0xff] %v182
                %v184 = vld [vmem:[%s150 + $0x1b0] sm:$0xff]
                %185 = vst [vmem:[%s151 + $0x90] sm:$0xff] %v184
                %v186 = vld [vmem:[%s150 + $0x1b8] sm:$0xff]
                %187 = vst [vmem:[%s151 + $0x98] sm:$0xff] %v186
                %v188 = vld [vmem:[%s150 + $0x1c0] sm:$0xff]
                %189 = vst [vmem:[%s151 + $0xa0] sm:$0xff] %v188
                %v190 = vld [vmem:[%s150 + $0x1c8] sm:$0xff]
                %191 = vst [vmem:[%s151 + $0xa8] sm:$0xff] %v190
                %v192 = vld [vmem:[%s150 + $0x21c] sm:$0xff]
                %193 = vst [vmem:[%s151 + $0xb4] sm:$0xff] %v192
                %v194 = vld [vmem:[%s150 + $0x224] sm:$0xff]
                %195 = vst [vmem:[%s151 + $0xbc] sm:$0xff] %v194
                %v196 = vld [vmem:[%s150 + $0x22c] sm:$0xff]
                %197 = vst [vmem:[%s151 + $0xc4] sm:$0xff] %v196
                %v198 = vld [vmem:[%s150 + $0x234] sm:$0xff]
                %199 = vst [vmem:[%s151 + $0xcc] sm:$0xff] %v198
                %v200 = vld [vmem:[%s150 + $0x288] sm:$0xff]
                %201 = vst [vmem:[%s151 + $0xd8] sm:$0xff] %v200
                %v202 = vld [vmem:[%s150 + $0x290] sm:$0xff]
                %203 = vst [vmem:[%s151 + $0xe0] sm:$0xff] %v202
                %v204 = vld [vmem:[%s150 + $0x298] sm:$0xff]
                %205 = vst [vmem:[%s151 + $0xe8] sm:$0xff] %v204
                %v206 = vld [vmem:[%s150 + $0x2a0] sm:$0xff]
                %207 = vst [vmem:[%s151 + $0xf0] sm:$0xff] %v206
                %v208 = vld [vmem:[%s150 + $0x2f4] sm:$0xff]
                %209 = vst [vmem:[%s151 + $0xfc] sm:$0xff] %v208
                %v210 = vld [vmem:[%s150 + $0x2fc] sm:$0xff]
                %211 = vst [vmem:[%s151 + $0x104] sm:$0xff] %v210
                %v212 = vld [vmem:[%s150 + $0x304] sm:$0xff]
                %213 = vst [vmem:[%s151 + $0x10c] sm:$0xff] %v212
                %v214 = vld [vmem:[%s150 + $0x30c] sm:$0xff]
                %215 = vst [vmem:[%s151 + $0x114] sm:$0xff] %v214
                %v216 = vld [vmem:[%s150 + $0x360] sm:$0xff]
                %217 = vst [vmem:[%s151 + $0x120] sm:$0xff] %v216
                %v218 = vld [vmem:[%s150 + $0x368] sm:$0xff]
                %219 = vst [vmem:[%s151 + $0x128] sm:$0xff] %v218
                %v220 = vld [vmem:[%s150 + $0x370] sm:$0xff]
                %221 = vst [vmem:[%s151 + $0x130] sm:$0xff] %v220
                %v222 = vld [vmem:[%s150 + $0x378] sm:$0xff]
                %223 = vst [vmem:[%s151 + $0x138] sm:$0xff] %v222
                %v224 = vld [vmem:[%s150 + $0x3cc] sm:$0xff]
                %225 = vst [vmem:[%s151 + $0x144] sm:$0xff] %v224
                %v226 = vld [vmem:[%s150 + $0x3d4] sm:$0xff]
                %227 = vst [vmem:[%s151 + $0x14c] sm:$0xff] %v226
                %v228 = vld [vmem:[%s150 + $0x3dc] sm:$0xff]
                %229 = vst [vmem:[%s151 + $0x154] sm:$0xff] %v228
                %v230 = vld [vmem:[%s150 + $0x3e4] sm:$0xff]
                %231 = vst [vmem:[%s151 + $0x15c] sm:$0xff] %v230
                %v232 = vld [vmem:[%s150 + $0x438] sm:$0xff]
                %233 = vst [vmem:[%s151 + $0x168] sm:$0xff] %v232
                %v234 = vld [vmem:[%s150 + $0x440] sm:$0xff]
                %235 = vst [vmem:[%s151 + $0x170] sm:$0xff] %v234
                %v236 = vld [vmem:[%s150 + $0x448] sm:$0xff]
                %237 = vst [vmem:[%s151 + $0x178] sm:$0xff] %v236
                %v238 = vld [vmem:[%s150 + $0x450] sm:$0xff]
                %239 = vst [vmem:[%s151 + $0x180] sm:$0xff] %v238
                %v240 = vld [vmem:[%s150 + $0x4a4] sm:$0xff]
                %241 = vst [vmem:[%s151 + $0x18c] sm:$0xff] %v240
                %v242 = vld [vmem:[%s150 + $0x4ac] sm:$0xff]
                %243 = vst [vmem:[%s151 + $0x194] sm:$0xff] %v242
                %v244 = vld [vmem:[%s150 + $0x4b4] sm:$0xff]
                %245 = vst [vmem:[%s151 + $0x19c] sm:$0xff] %v244
                %v246 = vld [vmem:[%s150 + $0x4bc] sm:$0xff]
                %247 = vst [vmem:[%s151 + $0x1a4] sm:$0xff] %v246
                %v248 = vld [vmem:[%s150 + $0x510] sm:$0xff]
                %249 = vst [vmem:[%s151 + $0x1b0] sm:$0xff] %v248
                %v250 = vld [vmem:[%s150 + $0x518] sm:$0xff]
                %251 = vst [vmem:[%s151 + $0x1b8] sm:$0xff] %v250
                %v252 = vld [vmem:[%s150 + $0x520] sm:$0xff]
                %253 = vst [vmem:[%s151 + $0x1c0] sm:$0xff] %v252
                %v254 = vld [vmem:[%s150 + $0x528] sm:$0xff]
                %255 = vst [vmem:[%s151 + $0x1c8] sm:$0xff] %v254
                %v256 = vld [vmem:[%s150 + $0x57c] sm:$0xff]
                %257 = vst [vmem:[%s151 + $0x1d4] sm:$0xff] %v256
                %v258 = vld [vmem:[%s150 + $0x584] sm:$0xff]
                %259 = vst [vmem:[%s151 + $0x1dc] sm:$0xff] %v258
                %v260 = vld [vmem:[%s150 + $0x58c] sm:$0xff]
                %261 = vst [vmem:[%s151 + $0x1e4] sm:$0xff] %v260
                %v262 = vld [vmem:[%s150 + $0x594] sm:$0xff]
                %263 = vst [vmem:[%s151 + $0x1ec] sm:$0xff] %v262
                %v264 = vld [vmem:[%s150 + $0x5e8] sm:$0xff]
                %265 = vst [vmem:[%s151 + $0x1f8] sm:$0xff] %v264
                %v266 = vld [vmem:[%s150 + $0x5f0] sm:$0xff]
                %267 = vst [vmem:[%s151 + $0x200] sm:$0xff] %v266
                %v268 = vld [vmem:[%s150 + $0x5f8] sm:$0xff]
                %269 = vst [vmem:[%s151 + $0x208] sm:$0xff] %v268
                %v270 = vld [vmem:[%s150 + $0x600] sm:$0xff]
                %271 = vst [vmem:[%s151 + $0x210] sm:$0xff] %v270
                %v272 = vld [vmem:[%s150 + $0x654] sm:$0xff]
                %273 = vst [vmem:[%s151 + $0x21c] sm:$0xff] %v272
                %v274 = vld [vmem:[%s150 + $0x65c] sm:$0xff]
                %275 = vst [vmem:[%s151 + $0x224] sm:$0xff] %v274
                %v276 = vld [vmem:[%s150 + $0x664] sm:$0xff]
                %277 = vst [vmem:[%s151 + $0x22c] sm:$0xff] %v276
                %v278 = vld [vmem:[%s150 + $0x66c] sm:$0xff]
                %279 = vst [vmem:[%s151 + $0x234] sm:$0xff] %v278
                %v280 = vld [vmem:[%s150 + $0x6c0] sm:$0xff]
                %281 = vst [vmem:[%s151 + $0x240] sm:$0xff] %v280
                %v282 = vld [vmem:[%s150 + $0x6c8] sm:$0xff]
                %283 = vst [vmem:[%s151 + $0x248] sm:$0xff] %v282
                %v284 = vld [vmem:[%s150 + $0x6d0] sm:$0xff]
                %285 = vst [vmem:[%s151 + $0x250] sm:$0xff] %v284
                %v286 = vld [vmem:[%s150 + $0x6d8] sm:$0xff]
                %287 = vst [vmem:[%s151 + $0x258] sm:$0xff] %v286
                %v288 = vld [vmem:[%s150 + $0x72c] sm:$0xff]
                %289 = vst [vmem:[%s151 + $0x264] sm:$0xff] %v288
                %v290 = vld [vmem:[%s150 + $0x734] sm:$0xff]
                %291 = vst [vmem:[%s151 + $0x26c] sm:$0xff] %v290
                %v292 = vld [vmem:[%s150 + $0x73c] sm:$0xff]
                %293 = vst [vmem:[%s151 + $0x274] sm:$0xff] %v292
                %v294 = vld [vmem:[%s150 + $0x744] sm:$0xff]
                %295 = vst [vmem:[%s151 + $0x27c] sm:$0xff] %v294
                %v296 = vld [vmem:[%s150 + $0x798] sm:$0xff]
                %297 = vst [vmem:[%s151 + $0x288] sm:$0xff] %v296
                %v298 = vld [vmem:[%s150 + $0x7a0] sm:$0xff]
                %299 = vst [vmem:[%s151 + $0x290] sm:$0xff] %v298
                %v300 = vld [vmem:[%s150 + $0x7a8] sm:$0xff]
                %301 = vst [vmem:[%s151 + $0x298] sm:$0xff] %v300
                %v302 = vld [vmem:[%s150 + $0x7b0] sm:$0xff]
                %303 = vst [vmem:[%s151 + $0x2a0] sm:$0xff] %v302
                %v304 = vld [vmem:[%s150 + $0x804] sm:$0xff]
                %305 = vst [vmem:[%s151 + $0x2ac] sm:$0xff] %v304
                %v306 = vld [vmem:[%s150 + $0x80c] sm:$0xff]
                %307 = vst [vmem:[%s151 + $0x2b4] sm:$0xff] %v306
                %v308 = vld [vmem:[%s150 + $0x814] sm:$0xff]
                %309 = vst [vmem:[%s151 + $0x2bc] sm:$0xff] %v308
                %v310 = vld [vmem:[%s150 + $0x81c] sm:$0xff]
                %311 = vst [vmem:[%s151 + $0x2c4] sm:$0xff] %v310
                %v312 = vld [vmem:[%s150 + $0x870] sm:$0xff]
                %313 = vst [vmem:[%s151 + $0x2d0] sm:$0xff] %v312
                %v314 = vld [vmem:[%s150 + $0x878] sm:$0xff]
                %315 = vst [vmem:[%s151 + $0x2d8] sm:$0xff] %v314
                %v316 = vld [vmem:[%s150 + $0x880] sm:$0xff]
                %317 = vst [vmem:[%s151 + $0x2e0] sm:$0xff] %v316
                %v318 = vld [vmem:[%s150 + $0x888] sm:$0xff]
                %319 = vst [vmem:[%s151 + $0x2e8] sm:$0xff] %v318
                %v320 = vld [vmem:[%s150 + $0x8dc] sm:$0xff]
                %321 = vst [vmem:[%s151 + $0x2f4] sm:$0xff] %v320
                %v322 = vld [vmem:[%s150 + $0x8e4] sm:$0xff]
                %323 = vst [vmem:[%s151 + $0x2fc] sm:$0xff] %v322
                %v324 = vld [vmem:[%s150 + $0x8ec] sm:$0xff]
                %325 = vst [vmem:[%s151 + $0x304] sm:$0xff] %v324
                %v326 = vld [vmem:[%s150 + $0x8f4] sm:$0xff]
                %327 = vst [vmem:[%s151 + $0x30c] sm:$0xff] %v326
                %v328 = vld [vmem:[%s150 + $0x948] sm:$0xff]
                %329 = vst [vmem:[%s151 + $0x318] sm:$0xff] %v328
                %v330 = vld [vmem:[%s150 + $0x950] sm:$0xff]
                %331 = vst [vmem:[%s151 + $0x320] sm:$0xff] %v330
                %v332 = vld [vmem:[%s150 + $0x958] sm:$0xff]
                %333 = vst [vmem:[%s151 + $0x328] sm:$0xff] %v332
                %v334 = vld [vmem:[%s150 + $0x960] sm:$0xff]
                %335 = vst [vmem:[%s151 + $0x330] sm:$0xff] %v334
                %v336 = vld [vmem:[%s150 + $0x9b4] sm:$0xff]
                %337 = vst [vmem:[%s151 + $0x33c] sm:$0xff] %v336
                %v338 = vld [vmem:[%s150 + $0x9bc] sm:$0xff]
                %339 = vst [vmem:[%s151 + $0x344] sm:$0xff] %v338
                %v340 = vld [vmem:[%s150 + $0x9c4] sm:$0xff]
                %341 = vst [vmem:[%s151 + $0x34c] sm:$0xff] %v340
                %v342 = vld [vmem:[%s150 + $0x9cc] sm:$0xff]
                %343 = vst [vmem:[%s151 + $0x354] sm:$0xff] %v342
                %v344 = vld [vmem:[%s150 + $0xa20] sm:$0xff]
                %345 = vst [vmem:[%s151 + $0x360] sm:$0xff] %v344
                %v346 = vld [vmem:[%s150 + $0xa28] sm:$0xff]
                %347 = vst [vmem:[%s151 + $0x368] sm:$0xff] %v346
                %v348 = vld [vmem:[%s150 + $0xa30] sm:$0xff]
                %349 = vst [vmem:[%s151 + $0x370] sm:$0xff] %v348
                %v350 = vld [vmem:[%s150 + $0xa38] sm:$0xff]
                %351 = vst [vmem:[%s151 + $0x378] sm:$0xff] %v350
                %v352 = vld [vmem:[%s150 + $0xa8c] sm:$0xff]
                %353 = vst [vmem:[%s151 + $0x384] sm:$0xff] %v352
                %v354 = vld [vmem:[%s150 + $0xa94] sm:$0xff]
                %355 = vst [vmem:[%s151 + $0x38c] sm:$0xff] %v354
                %v356 = vld [vmem:[%s150 + $0xa9c] sm:$0xff]
                %357 = vst [vmem:[%s151 + $0x394] sm:$0xff] %v356
                %v358 = vld [vmem:[%s150 + $0xaa4] sm:$0xff]
                %359 = vst [vmem:[%s151 + $0x39c] sm:$0xff] %v358
                %v360 = vld [vmem:[%s150 + $0xaf8] sm:$0xff]
                %361 = vst [vmem:[%s151 + $0x3a8] sm:$0xff] %v360
                %v362 = vld [vmem:[%s150 + $0xb00] sm:$0xff]
                %363 = vst [vmem:[%s151 + $0x3b0] sm:$0xff] %v362
                %v364 = vld [vmem:[%s150 + $0xb08] sm:$0xff]
                %365 = vst [vmem:[%s151 + $0x3b8] sm:$0xff] %v364
                %v366 = vld [vmem:[%s150 + $0xb10] sm:$0xff]
                %367 = vst [vmem:[%s151 + $0x3c0] sm:$0xff] %v366
              $region41: #{encoder_classifier_forward.5} parent=35 // loop_footer
                %s149 = sadd.s32 1, %s145
              $region42: #{encoder_classifier_forward.5} parent=35 // loop_footer_branch
                %144 = sbr.rel target = $region38
              $region43: #{encoder_classifier_forward.5} parent=35 // loop_exit
                _
              %s369 = ssub.s32 16, 1
              loop: start=0, step=1, limit=1
              $region44: #{encoder_classifier_forward.5} parent=35 // loop_pre_header
                _
              $region45: #{encoder_classifier_forward.5} parent=35 // loop_header
                %s371 = sphi 0, %s375
                %p372 = scmp.ge.s32.totalorder %s371, 1
                %s376 = sphi %s142, %s142
                %s377 = sphi %s143, %s143
              $region46: #{encoder_classifier_forward.5} parent=35 // loop_header_branch
                %374 = sbr.rel (%p372) target = $region50
              $region47: #{encoder_classifier_forward.5} parent=35 // loop_body
                %v378 = vld [vmem:[%s376] sm:%s369]
                %379 = vst [vmem:[%s377] sm:%s369] %v378
                %v380 = vld [vmem:[%s376 + $0x6c] sm:%s369]
                %381 = vst [vmem:[%s377 + $0x24] sm:%s369] %v380
                %v382 = vld [vmem:[%s376 + $0xd8] sm:%s369]
                %383 = vst [vmem:[%s377 + $0x48] sm:%s369] %v382
                %v384 = vld [vmem:[%s376 + $0x144] sm:%s369]
                %385 = vst [vmem:[%s377 + $0x6c] sm:%s369] %v384
                %v386 = vld [vmem:[%s376 + $0x1b0] sm:%s369]
                %387 = vst [vmem:[%s377 + $0x90] sm:%s369] %v386
                %v388 = vld [vmem:[%s376 + $0x21c] sm:%s369]
                %389 = vst [vmem:[%s377 + $0xb4] sm:%s369] %v388
                %v390 = vld [vmem:[%s376 + $0x288] sm:%s369]
                %391 = vst [vmem:[%s377 + $0xd8] sm:%s369] %v390
                %v392 = vld [vmem:[%s376 + $0x2f4] sm:%s369]
                %393 = vst [vmem:[%s377 + $0xfc] sm:%s369] %v392
                %v394 = vld [vmem:[%s376 + $0x360] sm:%s369]
                %395 = vst [vmem:[%s377 + $0x120] sm:%s369] %v394
                %v396 = vld [vmem:[%s376 + $0x3cc] sm:%s369]
                %397 = vst [vmem:[%s377 + $0x144] sm:%s369] %v396
                %v398 = vld [vmem:[%s376 + $0x438] sm:%s369]
                %399 = vst [vmem:[%s377 + $0x168] sm:%s369] %v398
                %v400 = vld [vmem:[%s376 + $0x4a4] sm:%s369]
                %401 = vst [vmem:[%s377 + $0x18c] sm:%s369] %v400
                %v402 = vld [vmem:[%s376 + $0x510] sm:%s369]
                %403 = vst [vmem:[%s377 + $0x1b0] sm:%s369] %v402
                %v404 = vld [vmem:[%s376 + $0x57c] sm:%s369]
                %405 = vst [vmem:[%s377 + $0x1d4] sm:%s369] %v404
                %v406 = vld [vmem:[%s376 + $0x5e8] sm:%s369]
                %407 = vst [vmem:[%s377 + $0x1f8] sm:%s369] %v406
                %v408 = vld [vmem:[%s376 + $0x654] sm:%s369]
                %409 = vst [vmem:[%s377 + $0x21c] sm:%s369] %v408
                %v410 = vld [vmem:[%s376 + $0x6c0] sm:%s369]
                %411 = vst [vmem:[%s377 + $0x240] sm:%s369] %v410
                %v412 = vld [vmem:[%s376 + $0x72c] sm:%s369]
                %413 = vst [vmem:[%s377 + $0x264] sm:%s369] %v412
                %v414 = vld [vmem:[%s376 + $0x798] sm:%s369]
                %415 = vst [vmem:[%s377 + $0x288] sm:%s369] %v414
                %v416 = vld [vmem:[%s376 + $0x804] sm:%s369]
                %417 = vst [vmem:[%s377 + $0x2ac] sm:%s369] %v416
                %v418 = vld [vmem:[%s376 + $0x870] sm:%s369]
                %419 = vst [vmem:[%s377 + $0x2d0] sm:%s369] %v418
                %v420 = vld [vmem:[%s376 + $0x8dc] sm:%s369]
                %421 = vst [vmem:[%s377 + $0x2f4] sm:%s369] %v420
                %v422 = vld [vmem:[%s376 + $0x948] sm:%s369]
                %423 = vst [vmem:[%s377 + $0x318] sm:%s369] %v422
                %v424 = vld [vmem:[%s376 + $0x9b4] sm:%s369]
                %425 = vst [vmem:[%s377 + $0x33c] sm:%s369] %v424
                %v426 = vld [vmem:[%s376 + $0xa20] sm:%s369]
                %427 = vst [vmem:[%s377 + $0x360] sm:%s369] %v426
                %v428 = vld [vmem:[%s376 + $0xa8c] sm:%s369]
                %429 = vst [vmem:[%s377 + $0x384] sm:%s369] %v428
                %v430 = vld [vmem:[%s376 + $0xaf8] sm:%s369]
                %431 = vst [vmem:[%s377 + $0x3a8] sm:%s369] %v430
              $region48: #{encoder_classifier_forward.5} parent=35 // loop_footer
                %s375 = sadd.s32 1, %s371
              $region49: #{encoder_classifier_forward.5} parent=35 // loop_footer_branch
                %370 = sbr.rel target = $region45
              $region50: #{encoder_classifier_forward.5} parent=35 // loop_exit
                _
            $region36: #{encoder_classifier_forward.5} parent=31 // pred_fallthru
              _
          $region32: #{encoder_classifier_forward.5} parent=27 // pred_fallthru
            _
          %432 = vnop
        $region28: #{encoder_classifier_forward.5} parent=23 // pred_fallthru
          _
      $region24: #{encoder_classifier_forward.5} parent=5 // pred_fallthru
        _
      %p433 = scmp.le.s32.totalorder 1, %s9
      %p434 = scmp.lt.s32.totalorder %s9, 4
      %p435 = pnand %p433, %p434
      %p436 = pneg %p435
      // Predicated region
      $region51: #{encoder_classifier_forward.5} parent=5 // pred_check
        _
      $region52: #{encoder_classifier_forward.5} parent=5 // pred_check_branch
        %438 = sbr.rel (%p435) target = $region54
      $region53: #{encoder_classifier_forward.5} parent=5 // pred_region
        %s439 = ssub.s32 %s9, 1
        %s440 = sand.u32 %s64, 1
        %s441 = sand.u32 %s64, 1
        %s442 = smul.addr %s441, 972
        %s443 = scalar_lea.vmem [#allocation2], %s442
        // Predicated region
        $region55: #{encoder_classifier_forward.5} parent=53 // pred_check
          %p444 = pneg %p77
        $region56: #{encoder_classifier_forward.5} parent=53 // pred_check_branch
          %446 = sbr.rel (%p444) target = $region58
        $region57: #{encoder_classifier_forward.5} parent=53 // pred_region
          _
        $region58: #{encoder_classifier_forward.5} parent=53 // pred_fallthru
          _
        %p447 = pneg %p30
        %p448 = pneg %p27
        %p449 = pneg %p51
        %p450 = pneg %p48
        %s451 = sand.u32 %s64, 1
        %s452 = sand.u32 %s64, 1
        %s453 = smul.addr %s452, 972
        %s454 = scalar_lea.vmem [#allocation2], %s453
        %p455 = pneg %p77
        %p456 = pneg %p74
        %p457 = pneg %p103
        %p458 = pneg %p100
        %s459 = sand.u32 %s90, 1
        %s460 = sand.u32 %s90, 1
        %s461 = smul.addr %s460, 72
        %s462 = scalar_lea.vmem [#allocation3], %s461
        %s463 = smul.u32 9, %s14
        %s464 = smul.u32 9, %s14
        %v466 = vld [vmem:[%s0] sm:$0xff]
        %v467 = vld [vmem:[%s0 + $0x8] sm:$0xff]
        %v468 = vld [vmem:[%s443] sm:$0xff]
        %v469 = vld [vmem:[%s443 + $0x8] sm:$0xff]
        %v470 = vld [vmem:[%s443 + $0x10] sm:$0xff]
        %v471 = vld [vmem:[%s443 + $0x18] sm:$0xff]
        %v472 = vld [vmem:[%s443 + $0x20] sm:$0xf]
        %v473 = vld [vmem:[%s443 + $0x24] sm:$0xff]
        %v474 = vld [vmem:[%s443 + $0x2c] sm:$0xff]
        %v475 = vld [vmem:[%s443 + $0x34] sm:$0xff]
        %v476 = vld [vmem:[%s443 + $0x3c] sm:$0xff]
        %v477 = vld [vmem:[%s443 + $0x44] sm:$0xf]
        %v478 = vld [vmem:[%s443 + $0x48] sm:$0xff]
        %v479 = vld [vmem:[%s443 + $0x50] sm:$0xff]
        %v480 = vld [vmem:[%s443 + $0x58] sm:$0xff]
        %v481 = vld [vmem:[%s443 + $0x60] sm:$0xff]
        %v482 = vld [vmem:[%s443 + $0x68] sm:$0xf]
        %v483 = vld [vmem:[%s443 + $0x6c] sm:$0xff]
        %v484 = vld [vmem:[%s443 + $0x74] sm:$0xff]
        %v485 = vld [vmem:[%s443 + $0x7c] sm:$0xff]
        %v486 = vld [vmem:[%s443 + $0x84] sm:$0xff]
        %v487 = vld [vmem:[%s443 + $0x8c] sm:$0xf]
        %v488 = vld [vmem:[%s443 + $0x90] sm:$0xff]
        %v489 = vld [vmem:[%s443 + $0x98] sm:$0xff]
        %v490 = vld [vmem:[%s443 + $0xa0] sm:$0xff]
        %v491 = vld [vmem:[%s443 + $0xa8] sm:$0xff]
        %v492 = vld [vmem:[%s443 + $0xb0] sm:$0xf]
        %v493 = vld [vmem:[%s443 + $0xb4] sm:$0xff]
        %v494 = vld [vmem:[%s443 + $0xbc] sm:$0xff]
        %v495 = vld [vmem:[%s443 + $0xc4] sm:$0xff]
        %v496 = vld [vmem:[%s443 + $0xcc] sm:$0xff]
        %v497 = vld [vmem:[%s443 + $0xd4] sm:$0xf]
        %v498 = vld [vmem:[%s443 + $0xd8] sm:$0xff]
        %v499 = vld [vmem:[%s443 + $0xe0] sm:$0xff]
        %v500 = vld [vmem:[%s443 + $0xe8] sm:$0xff]
        %v501 = vld [vmem:[%s443 + $0xf0] sm:$0xff]
        %v502 = vld [vmem:[%s443 + $0xf8] sm:$0xf]
        %v503 = vld [vmem:[%s443 + $0xfc] sm:$0xff]
        %v504 = vld [vmem:[%s443 + $0x104] sm:$0xff]
        %v505 = vld [vmem:[%s443 + $0x10c] sm:$0xff]
        %v506 = vld [vmem:[%s443 + $0x114] sm:$0xff]
        %v507 = vld [vmem:[%s443 + $0x11c] sm:$0xf]
        %v508 = vld [vmem:[%s443 + $0x120] sm:$0xff]
        %v509 = vld [vmem:[%s443 + $0x128] sm:$0xff]
        %v510 = vld [vmem:[%s443 + $0x130] sm:$0xff]
        %v511 = vld [vmem:[%s443 + $0x138] sm:$0xff]
        %v512 = vld [vmem:[%s443 + $0x140] sm:$0xf]
        %v513 = vld [vmem:[%s443 + $0x144] sm:$0xff]
        %v514 = vld [vmem:[%s443 + $0x14c] sm:$0xff]
        %v515 = vld [vmem:[%s443 + $0x154] sm:$0xff]
        %v516 = vld [vmem:[%s443 + $0x15c] sm:$0xff]
        %v517 = vld [vmem:[%s443 + $0x164] sm:$0xf]
        %v518 = vld [vmem:[%s443 + $0x168] sm:$0xff]
        %v519 = vld [vmem:[%s443 + $0x170] sm:$0xff]
        %v520 = vld [vmem:[%s443 + $0x178] sm:$0xff]
        %v521 = vld [vmem:[%s443 + $0x180] sm:$0xff]
        %v522 = vld [vmem:[%s443 + $0x188] sm:$0xf]
        %v523 = vld [vmem:[%s443 + $0x18c] sm:$0xff]
        %v524 = vld [vmem:[%s443 + $0x194] sm:$0xff]
        %v525 = vld [vmem:[%s443 + $0x19c] sm:$0xff]
        %v526 = vld [vmem:[%s443 + $0x1a4] sm:$0xff]
        %v527 = vld [vmem:[%s443 + $0x1ac] sm:$0xf]
        %v528 = vld [vmem:[%s443 + $0x1b0] sm:$0xff]
        %v529 = vld [vmem:[%s443 + $0x1b8] sm:$0xff]
        %v530 = vld [vmem:[%s443 + $0x1c0] sm:$0xff]
        %v531 = vld [vmem:[%s443 + $0x1c8] sm:$0xff]
        %v532 = vld [vmem:[%s443 + $0x1d0] sm:$0xf]
        %v533 = vld [vmem:[%s443 + $0x1d4] sm:$0xff]
        %v534 = vld [vmem:[%s443 + $0x1dc] sm:$0xff]
        %v535 = vld [vmem:[%s443 + $0x1e4] sm:$0xff]
        %v536 = vld [vmem:[%s443 + $0x1ec] sm:$0xff]
        %v537 = vld [vmem:[%s443 + $0x1f4] sm:$0xf]
        %v538 = vld [vmem:[%s443 + $0x1f8] sm:$0xff]
        %v539 = vld [vmem:[%s443 + $0x200] sm:$0xff]
        %v540 = vld [vmem:[%s443 + $0x208] sm:$0xff]
        %v541 = vld [vmem:[%s443 + $0x210] sm:$0xff]
        %v542 = vld [vmem:[%s443 + $0x218] sm:$0xf]
        %v543 = vld [vmem:[%s443 + $0x21c] sm:$0xff]
        %v544 = vld [vmem:[%s443 + $0x224] sm:$0xff]
        %v545 = vld [vmem:[%s443 + $0x22c] sm:$0xff]
        %v546 = vld [vmem:[%s443 + $0x234] sm:$0xff]
        %v547 = vld [vmem:[%s443 + $0x23c] sm:$0xf]
        %v548 = vld [vmem:[%s443 + $0x240] sm:$0xff]
        %v549 = vld [vmem:[%s443 + $0x248] sm:$0xff]
        %v550 = vld [vmem:[%s443 + $0x250] sm:$0xff]
        %v551 = vld [vmem:[%s443 + $0x258] sm:$0xff]
        %v552 = vld [vmem:[%s443 + $0x260] sm:$0xf]
        %v553 = vld [vmem:[%s443 + $0x264] sm:$0xff]
        %v554 = vld [vmem:[%s443 + $0x26c] sm:$0xff]
        %v555 = vld [vmem:[%s443 + $0x274] sm:$0xff]
        %v556 = vld [vmem:[%s443 + $0x27c] sm:$0xff]
        %v557 = vld [vmem:[%s443 + $0x284] sm:$0xf]
        %v558 = vld [vmem:[%s443 + $0x288] sm:$0xff]
        %v559 = vld [vmem:[%s443 + $0x290] sm:$0xff]
        %v560 = vld [vmem:[%s443 + $0x298] sm:$0xff]
        %v561 = vld [vmem:[%s443 + $0x2a0] sm:$0xff]
        %v562 = vld [vmem:[%s443 + $0x2a8] sm:$0xf]
        %v563 = vld [vmem:[%s443 + $0x2ac] sm:$0xff]
        %v564 = vld [vmem:[%s443 + $0x2b4] sm:$0xff]
        %v565 = vld [vmem:[%s443 + $0x2bc] sm:$0xff]
        %v566 = vld [vmem:[%s443 + $0x2c4] sm:$0xff]
        %v567 = vld [vmem:[%s443 + $0x2cc] sm:$0xf]
        %v568 = vld [vmem:[%s443 + $0x2d0] sm:$0xff]
        %v569 = vld [vmem:[%s443 + $0x2d8] sm:$0xff]
        %v570 = vld [vmem:[%s443 + $0x2e0] sm:$0xff]
        %v571 = vld [vmem:[%s443 + $0x2e8] sm:$0xff]
        %v572 = vld [vmem:[%s443 + $0x2f0] sm:$0xf]
        %v573 = vld [vmem:[%s443 + $0x2f4] sm:$0xff]
        %v574 = vld [vmem:[%s443 + $0x2fc] sm:$0xff]
        %v575 = vld [vmem:[%s443 + $0x304] sm:$0xff]
        %v576 = vld [vmem:[%s443 + $0x30c] sm:$0xff]
        %v577 = vld [vmem:[%s443 + $0x314] sm:$0xf]
        %v578 = vld [vmem:[%s443 + $0x318] sm:$0xff]
        %v579 = vld [vmem:[%s443 + $0x320] sm:$0xff]
        %v580 = vld [vmem:[%s443 + $0x328] sm:$0xff]
        %v581 = vld [vmem:[%s443 + $0x330] sm:$0xff]
        %v582 = vld [vmem:[%s443 + $0x338] sm:$0xf]
        %v583 = vld [vmem:[%s443 + $0x33c] sm:$0xff]
        %v584 = vld [vmem:[%s443 + $0x344] sm:$0xff]
        %v585 = vld [vmem:[%s443 + $0x34c] sm:$0xff]
        %v586 = vld [vmem:[%s443 + $0x354] sm:$0xff]
        %v587 = vld [vmem:[%s443 + $0x35c] sm:$0xf]
        %v588 = vld [vmem:[%s443 + $0x360] sm:$0xff]
        %v589 = vld [vmem:[%s443 + $0x368] sm:$0xff]
        %v590 = vld [vmem:[%s443 + $0x370] sm:$0xff]
        %v591 = vld [vmem:[%s443 + $0x378] sm:$0xff]
        %v592 = vld [vmem:[%s443 + $0x380] sm:$0xf]
        %v593 = vld [vmem:[%s443 + $0x384] sm:$0xff]
        %v594 = vld [vmem:[%s443 + $0x38c] sm:$0xff]
        %v595 = vld [vmem:[%s443 + $0x394] sm:$0xff]
        %v596 = vld [vmem:[%s443 + $0x39c] sm:$0xff]
        %v597 = vld [vmem:[%s443 + $0x3a4] sm:$0xf]
        %v598 = vld [vmem:[%s443 + $0x3a8] sm:$0xff]
        %v599 = vld [vmem:[%s443 + $0x3b0] sm:$0xff]
        %v600 = vld [vmem:[%s443 + $0x3b8] sm:$0xff]
        %v601 = vld [vmem:[%s443 + $0x3c0] sm:$0xff]
        %v602 = vld [vmem:[%s443 + $0x3c8] sm:$0xf]
        %v603 = vld [vmem:[%s1] sm:$0xff]
        %v604 = vld [vmem:[%s1 + $0x8] sm:$0xff]
        %606 = vset.pattern.permute.xlu0 0
        %607 = vperm.xlu0 %606, %v603
        %v608 = vpop.permute.xlu0 %607
        %611 = vset.pattern.permute.xlu0 0
        %612 = vperm.xlu0 %611, %v604
        %v613 = vpop.permute.xlu0 %612
        %v617 = vunpack.c.l.b16 %v466
        %v618 = vunpack.c.h.b16 %v466
        %v619 = vunpack.c.l.b16 %v467
        %v620 = vunpack.c.h.b16 %v467
        %v621 = vpack.c.b16 %v619, %v617
        %v622 = vpack.c.b16 %v620, %v618
        %v759 = vunpack.c.l.b16 %v468
        %v760 = vunpack.c.h.b16 %v468
        %v761 = vunpack.c.l.b16 %v469
        %v762 = vunpack.c.h.b16 %v469
        %v763 = vunpack.c.l.b16 %v470
        %v764 = vunpack.c.h.b16 %v470
        %v765 = vunpack.c.l.b16 %v471
        %v766 = vunpack.c.h.b16 %v471
        %v767 = vunpack.c.l.b16 %v472
        %v768 = vunpack.c.l.b16 %v473
        %v769 = vunpack.c.h.b16 %v473
        %v770 = vunpack.c.l.b16 %v474
        %v771 = vunpack.c.h.b16 %v474
        %v772 = vunpack.c.l.b16 %v475
        %v773 = vunpack.c.h.b16 %v475
        %v774 = vunpack.c.l.b16 %v476
        %v775 = vunpack.c.h.b16 %v476
        %v776 = vunpack.c.l.b16 %v477
        %v777 = vunpack.c.l.b16 %v478
        %v778 = vunpack.c.h.b16 %v478
        %v779 = vunpack.c.l.b16 %v479
        %v780 = vunpack.c.h.b16 %v479
        %v781 = vunpack.c.l.b16 %v480
        %v782 = vunpack.c.h.b16 %v480
        %v783 = vunpack.c.l.b16 %v481
        %v784 = vunpack.c.h.b16 %v481
        %v785 = vunpack.c.l.b16 %v482
        %v786 = vunpack.c.l.b16 %v483
        %v787 = vunpack.c.h.b16 %v483
        %v788 = vunpack.c.l.b16 %v484
        %v789 = vunpack.c.h.b16 %v484
        %v790 = vunpack.c.l.b16 %v485
        %v791 = vunpack.c.h.b16 %v485
        %v792 = vunpack.c.l.b16 %v486
        %v793 = vunpack.c.h.b16 %v486
        %v794 = vunpack.c.l.b16 %v487
        %v795 = vunpack.c.l.b16 %v488
        %v796 = vunpack.c.h.b16 %v488
        %v797 = vunpack.c.l.b16 %v489
        %v798 = vunpack.c.h.b16 %v489
        %v799 = vunpack.c.l.b16 %v490
        %v800 = vunpack.c.h.b16 %v490
        %v801 = vunpack.c.l.b16 %v491
        %v802 = vunpack.c.h.b16 %v491
        %v803 = vunpack.c.l.b16 %v492
        %v804 = vunpack.c.l.b16 %v493
        %v805 = vunpack.c.h.b16 %v493
        %v806 = vunpack.c.l.b16 %v494
        %v807 = vunpack.c.h.b16 %v494
        %v808 = vunpack.c.l.b16 %v495
        %v809 = vunpack.c.h.b16 %v495
        %v810 = vunpack.c.l.b16 %v496
        %v811 = vunpack.c.h.b16 %v496
        %v812 = vunpack.c.l.b16 %v497
        %v813 = vunpack.c.l.b16 %v498
        %v814 = vunpack.c.h.b16 %v498
        %v815 = vunpack.c.l.b16 %v499
        %v816 = vunpack.c.h.b16 %v499
        %v817 = vunpack.c.l.b16 %v500
        %v818 = vunpack.c.h.b16 %v500
        %v819 = vunpack.c.l.b16 %v501
        %v820 = vunpack.c.h.b16 %v501
        %v821 = vunpack.c.l.b16 %v502
        %v822 = vunpack.c.l.b16 %v503
        %v823 = vunpack.c.h.b16 %v503
        %v824 = vunpack.c.l.b16 %v504
        %v825 = vunpack.c.h.b16 %v504
        %v826 = vunpack.c.l.b16 %v505
        %v827 = vunpack.c.h.b16 %v505
        %v828 = vunpack.c.l.b16 %v506
        %v829 = vunpack.c.h.b16 %v506
        %v830 = vunpack.c.l.b16 %v507
        %v831 = vunpack.c.l.b16 %v508
        %v832 = vunpack.c.h.b16 %v508
        %v833 = vunpack.c.l.b16 %v509
        %v834 = vunpack.c.h.b16 %v509
        %v835 = vunpack.c.l.b16 %v510
        %v836 = vunpack.c.h.b16 %v510
        %v837 = vunpack.c.l.b16 %v511
        %v838 = vunpack.c.h.b16 %v511
        %v839 = vunpack.c.l.b16 %v512
        %v840 = vunpack.c.l.b16 %v513
        %v841 = vunpack.c.h.b16 %v513
        %v842 = vunpack.c.l.b16 %v514
        %v843 = vunpack.c.h.b16 %v514
        %v844 = vunpack.c.l.b16 %v515
        %v845 = vunpack.c.h.b16 %v515
        %v846 = vunpack.c.l.b16 %v516
        %v847 = vunpack.c.h.b16 %v516
        %v848 = vunpack.c.l.b16 %v517
        %v849 = vunpack.c.l.b16 %v518
        %v850 = vunpack.c.h.b16 %v518
        %v851 = vunpack.c.l.b16 %v519
        %v852 = vunpack.c.h.b16 %v519
        %v853 = vunpack.c.l.b16 %v520
        %v854 = vunpack.c.h.b16 %v520
        %v855 = vunpack.c.l.b16 %v521
        %v856 = vunpack.c.h.b16 %v521
        %v857 = vunpack.c.l.b16 %v522
        %v858 = vunpack.c.l.b16 %v523
        %v859 = vunpack.c.h.b16 %v523
        %v860 = vunpack.c.l.b16 %v524
        %v861 = vunpack.c.h.b16 %v524
        %v862 = vunpack.c.l.b16 %v525
        %v863 = vunpack.c.h.b16 %v525
        %v864 = vunpack.c.l.b16 %v526
        %v865 = vunpack.c.h.b16 %v526
        %v866 = vunpack.c.l.b16 %v527
        %v867 = vunpack.c.l.b16 %v528
        %v868 = vunpack.c.h.b16 %v528
        %v869 = vunpack.c.l.b16 %v529
        %v870 = vunpack.c.h.b16 %v529
        %v871 = vunpack.c.l.b16 %v530
        %v872 = vunpack.c.h.b16 %v530
        %v873 = vunpack.c.l.b16 %v531
        %v874 = vunpack.c.h.b16 %v531
        %v875 = vunpack.c.l.b16 %v532
        %v876 = vunpack.c.l.b16 %v533
        %v877 = vunpack.c.h.b16 %v533
        %v878 = vunpack.c.l.b16 %v534
        %v879 = vunpack.c.h.b16 %v534
        %v880 = vunpack.c.l.b16 %v535
        %v881 = vunpack.c.h.b16 %v535
        %v882 = vunpack.c.l.b16 %v536
        %v883 = vunpack.c.h.b16 %v536
        %v884 = vunpack.c.l.b16 %v537
        %v885 = vunpack.c.l.b16 %v538
        %v886 = vunpack.c.h.b16 %v538
        %v887 = vunpack.c.l.b16 %v539
        %v888 = vunpack.c.h.b16 %v539
        %v889 = vunpack.c.l.b16 %v540
        %v890 = vunpack.c.h.b16 %v540
        %v891 = vunpack.c.l.b16 %v541
        %v892 = vunpack.c.h.b16 %v541
        %v893 = vunpack.c.l.b16 %v542
        %v894 = vunpack.c.l.b16 %v543
        %v895 = vunpack.c.h.b16 %v543
        %v896 = vunpack.c.l.b16 %v544
        %v897 = vunpack.c.h.b16 %v544
        %v898 = vunpack.c.l.b16 %v545
        %v899 = vunpack.c.h.b16 %v545
        %v900 = vunpack.c.l.b16 %v546
        %v901 = vunpack.c.h.b16 %v546
        %v902 = vunpack.c.l.b16 %v547
        %v903 = vunpack.c.l.b16 %v548
        %v904 = vunpack.c.h.b16 %v548
        %v905 = vunpack.c.l.b16 %v549
        %v906 = vunpack.c.h.b16 %v549
        %v907 = vunpack.c.l.b16 %v550
        %v908 = vunpack.c.h.b16 %v550
        %v909 = vunpack.c.l.b16 %v551
        %v910 = vunpack.c.h.b16 %v551
        %v911 = vunpack.c.l.b16 %v552
        %v912 = vunpack.c.l.b16 %v553
        %v913 = vunpack.c.h.b16 %v553
        %v914 = vunpack.c.l.b16 %v554
        %v915 = vunpack.c.h.b16 %v554
        %v916 = vunpack.c.l.b16 %v555
        %v917 = vunpack.c.h.b16 %v555
        %v918 = vunpack.c.l.b16 %v556
        %v919 = vunpack.c.h.b16 %v556
        %v920 = vunpack.c.l.b16 %v557
        %v921 = vunpack.c.l.b16 %v558
        %v922 = vunpack.c.h.b16 %v558
        %v923 = vunpack.c.l.b16 %v559
        %v924 = vunpack.c.h.b16 %v559
        %v925 = vunpack.c.l.b16 %v560
        %v926 = vunpack.c.h.b16 %v560
        %v927 = vunpack.c.l.b16 %v561
        %v928 = vunpack.c.h.b16 %v561
        %v929 = vunpack.c.l.b16 %v562
        %v930 = vunpack.c.l.b16 %v563
        %v931 = vunpack.c.h.b16 %v563
        %v932 = vunpack.c.l.b16 %v564
        %v933 = vunpack.c.h.b16 %v564
        %v934 = vunpack.c.l.b16 %v565
        %v935 = vunpack.c.h.b16 %v565
        %v936 = vunpack.c.l.b16 %v566
        %v937 = vunpack.c.h.b16 %v566
        %v938 = vunpack.c.l.b16 %v567
        %v939 = vunpack.c.l.b16 %v568
        %v940 = vunpack.c.h.b16 %v568
        %v941 = vunpack.c.l.b16 %v569
        %v942 = vunpack.c.h.b16 %v569
        %v943 = vunpack.c.l.b16 %v570
        %v944 = vunpack.c.h.b16 %v570
        %v945 = vunpack.c.l.b16 %v571
        %v946 = vunpack.c.h.b16 %v571
        %v947 = vunpack.c.l.b16 %v572
        %v948 = vunpack.c.l.b16 %v573
        %v949 = vunpack.c.h.b16 %v573
        %v950 = vunpack.c.l.b16 %v574
        %v951 = vunpack.c.h.b16 %v574
        %v952 = vunpack.c.l.b16 %v575
        %v953 = vunpack.c.h.b16 %v575
        %v954 = vunpack.c.l.b16 %v576
        %v955 = vunpack.c.h.b16 %v576
        %v956 = vunpack.c.l.b16 %v577
        %v957 = vunpack.c.l.b16 %v578
        %v958 = vunpack.c.h.b16 %v578
        %v959 = vunpack.c.l.b16 %v579
        %v960 = vunpack.c.h.b16 %v579
        %v961 = vunpack.c.l.b16 %v580
        %v962 = vunpack.c.h.b16 %v580
        %v963 = vunpack.c.l.b16 %v581
        %v964 = vunpack.c.h.b16 %v581
        %v965 = vunpack.c.l.b16 %v582
        %v966 = vunpack.c.l.b16 %v583
        %v967 = vunpack.c.h.b16 %v583
        %v968 = vunpack.c.l.b16 %v584
        %v969 = vunpack.c.h.b16 %v584
        %v970 = vunpack.c.l.b16 %v585
        %v971 = vunpack.c.h.b16 %v585
        %v972 = vunpack.c.l.b16 %v586
        %v973 = vunpack.c.h.b16 %v586
        %v974 = vunpack.c.l.b16 %v587
        %v975 = vunpack.c.l.b16 %v588
        %v976 = vunpack.c.h.b16 %v588
        %v977 = vunpack.c.l.b16 %v589
        %v978 = vunpack.c.h.b16 %v589
        %v979 = vunpack.c.l.b16 %v590
        %v980 = vunpack.c.h.b16 %v590
        %v981 = vunpack.c.l.b16 %v591
        %v982 = vunpack.c.h.b16 %v591
        %v983 = vunpack.c.l.b16 %v592
        %v984 = vunpack.c.l.b16 %v593
        %v985 = vunpack.c.h.b16 %v593
        %v986 = vunpack.c.l.b16 %v594
        %v987 = vunpack.c.h.b16 %v594
        %v988 = vunpack.c.l.b16 %v595
        %v989 = vunpack.c.h.b16 %v595
        %v990 = vunpack.c.l.b16 %v596
        %v991 = vunpack.c.h.b16 %v596
        %v992 = vunpack.c.l.b16 %v597
        %v993 = vunpack.c.l.b16 %v598
        %v994 = vunpack.c.h.b16 %v598
        %v995 = vunpack.c.l.b16 %v599
        %v996 = vunpack.c.h.b16 %v599
        %v997 = vunpack.c.l.b16 %v600
        %v998 = vunpack.c.h.b16 %v600
        %v999 = vunpack.c.l.b16 %v601
        %v1000 = vunpack.c.h.b16 %v601
        %v1001 = vunpack.c.l.b16 %v602
        %v1002 = vpack.c.b16 %v768, %v759
        %v1003 = vpack.c.b16 %v769, %v760
        %v1004 = vpack.c.b16 %v770, %v761
        %v1005 = vpack.c.b16 %v771, %v762
        %v1006 = vpack.c.b16 %v772, %v763
        %v1007 = vpack.c.b16 %v773, %v764
        %v1008 = vpack.c.b16 %v774, %v765
        %v1009 = vpack.c.b16 %v775, %v766
        %v1010 = vpack.c.b16 %v776, %v767
        %v1011 = vpack.c.b16 %v786, %v777
        %v1012 = vpack.c.b16 %v787, %v778
        %v1013 = vpack.c.b16 %v788, %v779
        %v1014 = vpack.c.b16 %v789, %v780
        %v1015 = vpack.c.b16 %v790, %v781
        %v1016 = vpack.c.b16 %v791, %v782
        %v1017 = vpack.c.b16 %v792, %v783
        %v1018 = vpack.c.b16 %v793, %v784
        %v1019 = vpack.c.b16 %v794, %v785
        %v1020 = vpack.c.b16 %v804, %v795
        %v1021 = vpack.c.b16 %v805, %v796
        %v1022 = vpack.c.b16 %v806, %v797
        %v1023 = vpack.c.b16 %v807, %v798
        %v1024 = vpack.c.b16 %v808, %v799
        %v1025 = vpack.c.b16 %v809, %v800
        %v1026 = vpack.c.b16 %v810, %v801
        %v1027 = vpack.c.b16 %v811, %v802
        %v1028 = vpack.c.b16 %v812, %v803
        %v1029 = vpack.c.b16 %v822, %v813
        %v1030 = vpack.c.b16 %v823, %v814
        %v1031 = vpack.c.b16 %v824, %v815
        %v1032 = vpack.c.b16 %v825, %v816
        %v1033 = vpack.c.b16 %v826, %v817
        %v1034 = vpack.c.b16 %v827, %v818
        %v1035 = vpack.c.b16 %v828, %v819
        %v1036 = vpack.c.b16 %v829, %v820
        %v1037 = vpack.c.b16 %v830, %v821
        %v1038 = vpack.c.b16 %v840, %v831
        %v1039 = vpack.c.b16 %v841, %v832
        %v1040 = vpack.c.b16 %v842, %v833
        %v1041 = vpack.c.b16 %v843, %v834
        %v1042 = vpack.c.b16 %v844, %v835
        %v1043 = vpack.c.b16 %v845, %v836
        %v1044 = vpack.c.b16 %v846, %v837
        %v1045 = vpack.c.b16 %v847, %v838
        %v1046 = vpack.c.b16 %v848, %v839
        %v1047 = vpack.c.b16 %v858, %v849
        %v1048 = vpack.c.b16 %v859, %v850
        %v1049 = vpack.c.b16 %v860, %v851
        %v1050 = vpack.c.b16 %v861, %v852
        %v1051 = vpack.c.b16 %v862, %v853
        %v1052 = vpack.c.b16 %v863, %v854
        %v1053 = vpack.c.b16 %v864, %v855
        %v1054 = vpack.c.b16 %v865, %v856
        %v1055 = vpack.c.b16 %v866, %v857
        %v1056 = vpack.c.b16 %v876, %v867
        %v1057 = vpack.c.b16 %v877, %v868
        %v1058 = vpack.c.b16 %v878, %v869
        %v1059 = vpack.c.b16 %v879, %v870
        %v1060 = vpack.c.b16 %v880, %v871
        %v1061 = vpack.c.b16 %v881, %v872
        %v1062 = vpack.c.b16 %v882, %v873
        %v1063 = vpack.c.b16 %v883, %v874
        %v1064 = vpack.c.b16 %v884, %v875
        %v1065 = vpack.c.b16 %v894, %v885
        %v1066 = vpack.c.b16 %v895, %v886
        %v1067 = vpack.c.b16 %v896, %v887
        %v1068 = vpack.c.b16 %v897, %v888
        %v1069 = vpack.c.b16 %v898, %v889
        %v1070 = vpack.c.b16 %v899, %v890
        %v1071 = vpack.c.b16 %v900, %v891
        %v1072 = vpack.c.b16 %v901, %v892
        %v1073 = vpack.c.b16 %v902, %v893
        %v1074 = vpack.c.b16 %v912, %v903
        %v1075 = vpack.c.b16 %v913, %v904
        %v1076 = vpack.c.b16 %v914, %v905
        %v1077 = vpack.c.b16 %v915, %v906
        %v1078 = vpack.c.b16 %v916, %v907
        %v1079 = vpack.c.b16 %v917, %v908
        %v1080 = vpack.c.b16 %v918, %v909
        %v1081 = vpack.c.b16 %v919, %v910
        %v1082 = vpack.c.b16 %v920, %v911
        %v1083 = vpack.c.b16 %v930, %v921
        %v1084 = vpack.c.b16 %v931, %v922
        %v1085 = vpack.c.b16 %v932, %v923
        %v1086 = vpack.c.b16 %v933, %v924
        %v1087 = vpack.c.b16 %v934, %v925
        %v1088 = vpack.c.b16 %v935, %v926
        %v1089 = vpack.c.b16 %v936, %v927
        %v1090 = vpack.c.b16 %v937, %v928
        %v1091 = vpack.c.b16 %v938, %v929
        %v1092 = vpack.c.b16 %v948, %v939
        %v1093 = vpack.c.b16 %v949, %v940
        %v1094 = vpack.c.b16 %v950, %v941
        %v1095 = vpack.c.b16 %v951, %v942
        %v1096 = vpack.c.b16 %v952, %v943
        %v1097 = vpack.c.b16 %v953, %v944
        %v1098 = vpack.c.b16 %v954, %v945
        %v1099 = vpack.c.b16 %v955, %v946
        %v1100 = vpack.c.b16 %v956, %v947
        %v1101 = vpack.c.b16 %v966, %v957
        %v1102 = vpack.c.b16 %v967, %v958
        %v1103 = vpack.c.b16 %v968, %v959
        %v1104 = vpack.c.b16 %v969, %v960
        %v1105 = vpack.c.b16 %v970, %v961
        %v1106 = vpack.c.b16 %v971, %v962
        %v1107 = vpack.c.b16 %v972, %v963
        %v1108 = vpack.c.b16 %v973, %v964
        %v1109 = vpack.c.b16 %v974, %v965
        %v1110 = vpack.c.b16 %v984, %v975
        %v1111 = vpack.c.b16 %v985, %v976
        %v1112 = vpack.c.b16 %v986, %v977
        %v1113 = vpack.c.b16 %v987, %v978
        %v1114 = vpack.c.b16 %v988, %v979
        %v1115 = vpack.c.b16 %v989, %v980
        %v1116 = vpack.c.b16 %v990, %v981
        %v1117 = vpack.c.b16 %v991, %v982
        %v1118 = vpack.c.b16 %v992, %v983
        %v1119 = vpack.c.b16 %v993, %v993
        %v1120 = vpack.c.b16 %v994, %v994
        %v1121 = vpack.c.b16 %v995, %v995
        %v1122 = vpack.c.b16 %v996, %v996
        %v1123 = vpack.c.b16 %v997, %v997
        %v1124 = vpack.c.b16 %v998, %v998
        %v1125 = vpack.c.b16 %v999, %v999
        %v1126 = vpack.c.b16 %v1000, %v1000
        %v1127 = vpack.c.b16 %v1001, %v1001
        %vm1245 = vcmask 719872
        %v1247 = vsel %vm1245, %v622, 0
        %vm1249 = vcmask 1043456
        %v1251 = vsel %vm1249, %v1119, 0
        %v1254 = vsel %vm1249, %v1120, 0
        %v1257 = vsel %vm1249, %v1121, 0
        %v1260 = vsel %vm1249, %v1122, 0
        %v1263 = vsel %vm1249, %v1123, 0
        %v1266 = vsel %vm1249, %v1124, 0
        %v1269 = vsel %vm1249, %v1125, 0
        %v1272 = vsel %vm1249, %v1126, 0
        %v1275 = vsel %vm1249, %v1127, 0
        %1277 = vmatpush.bf16.msra.mxu0 %v1065
        %1278 = vmatpush.bf16.msra.mxu0 %v1056
        %1279 = vmatpush.bf16.msra.mxu0 %v1047
        %1280 = vmatpush.bf16.msra.mxu0 %v1038
        %1281 = vmatpush.bf16.msra.mxu0 %v1029
        %1282 = vmatpush.bf16.msra.mxu0 %v1020
        %1283 = vmatpush.bf16.msra.mxu0 %v1011
        %1284 = vmatpush.bf16.msra.mxu0 %v1002
        %1285 = vmatmul.bf16.gmra.mxu0 %v621
        %v1286 = vpop.f32.mrf.mxu0
        %v1287 = vadd.f32 %v608, %v1286
        %v1288 = vpop.f32.mrf.mxu0
        %v1289 = vadd.f32 %v613, %v1288
        %1290 = vdwg.mxu0
        %1291 = vmatpush.bf16.msra.mxu0 0
        %1292 = vmatpush.bf16.msra.mxu0 0
        %1293 = vmatpush.bf16.msra.mxu0 %v1251
        %1294 = vmatpush.bf16.msra.mxu0 %v1110
        %1295 = vmatpush.bf16.msra.mxu0 %v1101
        %1296 = vmatpush.bf16.msra.mxu0 %v1092
        %1297 = vmatpush.bf16.msra.mxu0 %v1083
        %1298 = vmatpush.bf16.msra.mxu0 %v1074
        %1299 = vmatmul.bf16.gmra.mxu0 %v1247
        %v1300 = vpop.f32.mrf.mxu0
        %v1301 = vadd.f32 %v1287, %v1300
        %v1302 = vpop.f32.mrf.mxu0
        %v1303 = vadd.f32 %v1289, %v1302
        %1304 = vdwg.mxu0
        %1305 = vmatpush.bf16.msra.mxu0 %v1066
        %1306 = vmatpush.bf16.msra.mxu0 %v1057
        %1307 = vmatpush.bf16.msra.mxu0 %v1048
        %1308 = vmatpush.bf16.msra.mxu0 %v1039
        %1309 = vmatpush.bf16.msra.mxu0 %v1030
        %1310 = vmatpush.bf16.msra.mxu0 %v1021
        %1311 = vmatpush.bf16.msra.mxu0 %v1012
        %1312 = vmatpush.bf16.msra.mxu0 %v1003
        %1313 = vmatmul.bf16.gmra.mxu0 %v621
        %v1314 = vpop.f32.mrf.mxu0
        %v1315 = vadd.f32 %v608, %v1314
        %v1316 = vpop.f32.mrf.mxu0
        %v1317 = vadd.f32 %v613, %v1316
        %1318 = vdwg.mxu0
        %1319 = vmatpush.bf16.msra.mxu0 0
        %1320 = vmatpush.bf16.msra.mxu0 0
        %1321 = vmatpush.bf16.msra.mxu0 %v1254
        %1322 = vmatpush.bf16.msra.mxu0 %v1111
        %1323 = vmatpush.bf16.msra.mxu0 %v1102
        %1324 = vmatpush.bf16.msra.mxu0 %v1093
        %1325 = vmatpush.bf16.msra.mxu0 %v1084
        %1326 = vmatpush.bf16.msra.mxu0 %v1075
        %1327 = vmatmul.bf16.gmra.mxu0 %v1247
        %v1328 = vpop.f32.mrf.mxu0
        %v1329 = vadd.f32 %v1315, %v1328
        %v1330 = vpop.f32.mrf.mxu0
        %v1331 = vadd.f32 %v1317, %v1330
        %1332 = vdwg.mxu0
        %1333 = vmatpush.bf16.msra.mxu0 %v1067
        %1334 = vmatpush.bf16.msra.mxu0 %v1058
        %1335 = vmatpush.bf16.msra.mxu0 %v1049
        %1336 = vmatpush.bf16.msra.mxu0 %v1040
        %1337 = vmatpush.bf16.msra.mxu0 %v1031
        %1338 = vmatpush.bf16.msra.mxu0 %v1022
        %1339 = vmatpush.bf16.msra.mxu0 %v1013
        %1340 = vmatpush.bf16.msra.mxu0 %v1004
        %1341 = vmatmul.bf16.gmra.mxu0 %v621
        %v1342 = vpop.f32.mrf.mxu0
        %v1343 = vadd.f32 %v608, %v1342
        %v1344 = vpop.f32.mrf.mxu0
        %v1345 = vadd.f32 %v613, %v1344
        %1346 = vdwg.mxu0
        %1347 = vmatpush.bf16.msra.mxu0 0
        %1348 = vmatpush.bf16.msra.mxu0 0
        %1349 = vmatpush.bf16.msra.mxu0 %v1257
        %1350 = vmatpush.bf16.msra.mxu0 %v1112
        %1351 = vmatpush.bf16.msra.mxu0 %v1103
        %1352 = vmatpush.bf16.msra.mxu0 %v1094
        %1353 = vmatpush.bf16.msra.mxu0 %v1085
        %1354 = vmatpush.bf16.msra.mxu0 %v1076
        %1355 = vmatmul.bf16.gmra.mxu0 %v1247
        %v1356 = vpop.f32.mrf.mxu0
        %v1357 = vadd.f32 %v1343, %v1356
        %v1358 = vpop.f32.mrf.mxu0
        %v1359 = vadd.f32 %v1345, %v1358
        %1360 = vdwg.mxu0
        %1361 = vmatpush.bf16.msra.mxu0 %v1068
        %1362 = vmatpush.bf16.msra.mxu0 %v1059
        %1363 = vmatpush.bf16.msra.mxu0 %v1050
        %1364 = vmatpush.bf16.msra.mxu0 %v1041
        %1365 = vmatpush.bf16.msra.mxu0 %v1032
        %1366 = vmatpush.bf16.msra.mxu0 %v1023
        %1367 = vmatpush.bf16.msra.mxu0 %v1014
        %1368 = vmatpush.bf16.msra.mxu0 %v1005
        %1369 = vmatmul.bf16.gmra.mxu0 %v621
        %v1370 = vpop.f32.mrf.mxu0
        %v1371 = vadd.f32 %v608, %v1370
        %v1372 = vpop.f32.mrf.mxu0
        %v1373 = vadd.f32 %v613, %v1372
        %1374 = vdwg.mxu0
        %1375 = vmatpush.bf16.msra.mxu0 0
        %1376 = vmatpush.bf16.msra.mxu0 0
        %1377 = vmatpush.bf16.msra.mxu0 %v1260
        %1378 = vmatpush.bf16.msra.mxu0 %v1113
        %1379 = vmatpush.bf16.msra.mxu0 %v1104
        %1380 = vmatpush.bf16.msra.mxu0 %v1095
        %1381 = vmatpush.bf16.msra.mxu0 %v1086
        %1382 = vmatpush.bf16.msra.mxu0 %v1077
        %1383 = vmatmul.bf16.gmra.mxu0 %v1247
        %v1384 = vpop.f32.mrf.mxu0
        %v1385 = vadd.f32 %v1371, %v1384
        %v1386 = vpop.f32.mrf.mxu0
        %v1387 = vadd.f32 %v1373, %v1386
        %1388 = vdwg.mxu0
        %1389 = vmatpush.bf16.msra.mxu0 %v1069
        %1390 = vmatpush.bf16.msra.mxu0 %v1060
        %1391 = vmatpush.bf16.msra.mxu0 %v1051
        %1392 = vmatpush.bf16.msra.mxu0 %v1042
        %1393 = vmatpush.bf16.msra.mxu0 %v1033
        %1394 = vmatpush.bf16.msra.mxu0 %v1024
        %1395 = vmatpush.bf16.msra.mxu0 %v1015
        %1396 = vmatpush.bf16.msra.mxu0 %v1006
        %1397 = vmatmul.bf16.gmra.mxu0 %v621
        %v1398 = vpop.f32.mrf.mxu0
        %v1399 = vadd.f32 %v608, %v1398
        %v1400 = vpop.f32.mrf.mxu0
        %v1401 = vadd.f32 %v613, %v1400
        %1402 = vdwg.mxu0
        %1403 = vmatpush.bf16.msra.mxu0 0
        %1404 = vmatpush.bf16.msra.mxu0 0
        %1405 = vmatpush.bf16.msra.mxu0 %v1263
        %1406 = vmatpush.bf16.msra.mxu0 %v1114
        %1407 = vmatpush.bf16.msra.mxu0 %v1105
        %1408 = vmatpush.bf16.msra.mxu0 %v1096
        %1409 = vmatpush.bf16.msra.mxu0 %v1087
        %1410 = vmatpush.bf16.msra.mxu0 %v1078
        %1411 = vmatmul.bf16.gmra.mxu0 %v1247
        %v1412 = vpop.f32.mrf.mxu0
        %v1413 = vadd.f32 %v1399, %v1412
        %v1414 = vpop.f32.mrf.mxu0
        %v1415 = vadd.f32 %v1401, %v1414
        %1416 = vdwg.mxu0
        %1417 = vmatpush.bf16.msra.mxu0 %v1070
        %1418 = vmatpush.bf16.msra.mxu0 %v1061
        %1419 = vmatpush.bf16.msra.mxu0 %v1052
        %1420 = vmatpush.bf16.msra.mxu0 %v1043
        %1421 = vmatpush.bf16.msra.mxu0 %v1034
        %1422 = vmatpush.bf16.msra.mxu0 %v1025
        %1423 = vmatpush.bf16.msra.mxu0 %v1016
        %1424 = vmatpush.bf16.msra.mxu0 %v1007
        %1425 = vmatmul.bf16.gmra.mxu0 %v621
        %v1426 = vpop.f32.mrf.mxu0
        %v1427 = vadd.f32 %v608, %v1426
        %v1428 = vpop.f32.mrf.mxu0
        %v1429 = vadd.f32 %v613, %v1428
        %1430 = vdwg.mxu0
        %1431 = vmatpush.bf16.msra.mxu0 0
        %1432 = vmatpush.bf16.msra.mxu0 0
        %1433 = vmatpush.bf16.msra.mxu0 %v1266
        %1434 = vmatpush.bf16.msra.mxu0 %v1115
        %1435 = vmatpush.bf16.msra.mxu0 %v1106
        %1436 = vmatpush.bf16.msra.mxu0 %v1097
        %1437 = vmatpush.bf16.msra.mxu0 %v1088
        %1438 = vmatpush.bf16.msra.mxu0 %v1079
        %1439 = vmatmul.bf16.gmra.mxu0 %v1247
        %v1440 = vpop.f32.mrf.mxu0
        %v1441 = vadd.f32 %v1427, %v1440
        %v1442 = vpop.f32.mrf.mxu0
        %v1443 = vadd.f32 %v1429, %v1442
        %1444 = vdwg.mxu0
        %1445 = vmatpush.bf16.msra.mxu0 %v1071
        %1446 = vmatpush.bf16.msra.mxu0 %v1062
        %1447 = vmatpush.bf16.msra.mxu0 %v1053
        %1448 = vmatpush.bf16.msra.mxu0 %v1044
        %1449 = vmatpush.bf16.msra.mxu0 %v1035
        %1450 = vmatpush.bf16.msra.mxu0 %v1026
        %1451 = vmatpush.bf16.msra.mxu0 %v1017
        %1452 = vmatpush.bf16.msra.mxu0 %v1008
        %1453 = vmatmul.bf16.gmra.mxu0 %v621
        %v1454 = vpop.f32.mrf.mxu0
        %v1455 = vadd.f32 %v608, %v1454
        %v1456 = vpop.f32.mrf.mxu0
        %v1457 = vadd.f32 %v613, %v1456
        %1458 = vdwg.mxu0
        %1459 = vmatpush.bf16.msra.mxu0 0
        %1460 = vmatpush.bf16.msra.mxu0 0
        %1461 = vmatpush.bf16.msra.mxu0 %v1269
        %1462 = vmatpush.bf16.msra.mxu0 %v1116
        %1463 = vmatpush.bf16.msra.mxu0 %v1107
        %1464 = vmatpush.bf16.msra.mxu0 %v1098
        %1465 = vmatpush.bf16.msra.mxu0 %v1089
        %1466 = vmatpush.bf16.msra.mxu0 %v1080
        %1467 = vmatmul.bf16.gmra.mxu0 %v1247
        %v1468 = vpop.f32.mrf.mxu0
        %v1469 = vadd.f32 %v1455, %v1468
        %v1470 = vpop.f32.mrf.mxu0
        %v1471 = vadd.f32 %v1457, %v1470
        %1472 = vdwg.mxu0
        %1473 = vmatpush.bf16.msra.mxu0 %v1072
        %1474 = vmatpush.bf16.msra.mxu0 %v1063
        %1475 = vmatpush.bf16.msra.mxu0 %v1054
        %1476 = vmatpush.bf16.msra.mxu0 %v1045
        %1477 = vmatpush.bf16.msra.mxu0 %v1036
        %1478 = vmatpush.bf16.msra.mxu0 %v1027
        %1479 = vmatpush.bf16.msra.mxu0 %v1018
        %1480 = vmatpush.bf16.msra.mxu0 %v1009
        %1481 = vmatmul.bf16.gmra.mxu0 %v621
        %v1482 = vpop.f32.mrf.mxu0
        %v1483 = vadd.f32 %v608, %v1482
        %v1484 = vpop.f32.mrf.mxu0
        %v1485 = vadd.f32 %v613, %v1484
        %1486 = vdwg.mxu0
        %1487 = vmatpush.bf16.msra.mxu0 0
        %1488 = vmatpush.bf16.msra.mxu0 0
        %1489 = vmatpush.bf16.msra.mxu0 %v1272
        %1490 = vmatpush.bf16.msra.mxu0 %v1117
        %1491 = vmatpush.bf16.msra.mxu0 %v1108
        %1492 = vmatpush.bf16.msra.mxu0 %v1099
        %1493 = vmatpush.bf16.msra.mxu0 %v1090
        %1494 = vmatpush.bf16.msra.mxu0 %v1081
        %1495 = vmatmul.bf16.gmra.mxu0 %v1247
        %v1496 = vpop.f32.mrf.mxu0
        %v1497 = vadd.f32 %v1483, %v1496
        %v1498 = vpop.f32.mrf.mxu0
        %v1499 = vadd.f32 %v1485, %v1498
        %1500 = vdwg.mxu0
        %1501 = vmatpush.bf16.msra.mxu0 %v1073
        %1502 = vmatpush.bf16.msra.mxu0 %v1064
        %1503 = vmatpush.bf16.msra.mxu0 %v1055
        %1504 = vmatpush.bf16.msra.mxu0 %v1046
        %1505 = vmatpush.bf16.msra.mxu0 %v1037
        %1506 = vmatpush.bf16.msra.mxu0 %v1028
        %1507 = vmatpush.bf16.msra.mxu0 %v1019
        %1508 = vmatpush.bf16.msra.mxu0 %v1010
        %1509 = vmatmul.bf16.gmra.mxu0 %v621
        %v1510 = vpop.f32.mrf.mxu0
        %v1511 = vadd.f32 %v608, %v1510
        %v1512 = vpop.f32.mrf.mxu0
        %v1513 = vadd.f32 %v613, %v1512
        %1514 = vdwg.mxu0
        %1515 = vmatpush.bf16.msra.mxu0 0
        %1516 = vmatpush.bf16.msra.mxu0 0
        %1517 = vmatpush.bf16.msra.mxu0 %v1275
        %1518 = vmatpush.bf16.msra.mxu0 %v1118
        %1519 = vmatpush.bf16.msra.mxu0 %v1109
        %1520 = vmatpush.bf16.msra.mxu0 %v1100
        %1521 = vmatpush.bf16.msra.mxu0 %v1091
        %1522 = vmatpush.bf16.msra.mxu0 %v1082
        %1523 = vmatmul.bf16.gmra.mxu0 %v1247
        %v1524 = vpop.f32.mrf.mxu0
        %v1525 = vadd.f32 %v1511, %v1524
        %v1526 = vpop.f32.mrf.mxu0
        %v1527 = vadd.f32 %v1513, %v1526
        %1528 = vdwg.mxu0
        %vm1529 = vcmp.gt.f32.partialorder %v1301, 0.0
        %vm1530 = vcmp.gt.f32.partialorder %v1329, 0.0
        %vm1531 = vcmp.gt.f32.partialorder %v1357, 0.0
        %vm1532 = vcmp.gt.f32.partialorder %v1385, 0.0
        %vm1533 = vcmp.gt.f32.partialorder %v1413, 0.0
        %vm1534 = vcmp.gt.f32.partialorder %v1441, 0.0
        %vm1535 = vcmp.gt.f32.partialorder %v1469, 0.0
        %vm1536 = vcmp.gt.f32.partialorder %v1497, 0.0
        %vm1537 = vcmp.gt.f32.partialorder %v1525, 0.0
        %vm1538 = vcmp.gt.f32.partialorder %v1303, 0.0
        %vm1539 = vcmp.gt.f32.partialorder %v1331, 0.0
        %vm1540 = vcmp.gt.f32.partialorder %v1359, 0.0
        %vm1541 = vcmp.gt.f32.partialorder %v1387, 0.0
        %vm1542 = vcmp.gt.f32.partialorder %v1415, 0.0
        %vm1543 = vcmp.gt.f32.partialorder %v1443, 0.0
        %vm1544 = vcmp.gt.f32.partialorder %v1471, 0.0
        %vm1545 = vcmp.gt.f32.partialorder %v1499, 0.0
        %vm1546 = vcmp.gt.f32.partialorder %v1527, 0.0
        %v1547 = vmin.f32 %v1301, 0.0
        %v1548 = vmin.f32 %v1329, 0.0
        %v1549 = vmin.f32 %v1357, 0.0
        %v1550 = vmin.f32 %v1385, 0.0
        %v1551 = vmin.f32 %v1413, 0.0
        %v1552 = vmin.f32 %v1441, 0.0
        %v1553 = vmin.f32 %v1469, 0.0
        %v1554 = vmin.f32 %v1497, 0.0
        %v1555 = vmin.f32 %v1525, 0.0
        %v1556 = vmin.f32 %v1303, 0.0
        %v1557 = vmin.f32 %v1331, 0.0
        %v1558 = vmin.f32 %v1359, 0.0
        %v1559 = vmin.f32 %v1387, 0.0
        %v1560 = vmin.f32 %v1415, 0.0
        %v1561 = vmin.f32 %v1443, 0.0
        %v1562 = vmin.f32 %v1471, 0.0
        %v1563 = vmin.f32 %v1499, 0.0
        %v1564 = vmin.f32 %v1527, 0.0
        %v1565 = vmul.f32 %v1547, 1.442695
        %v1566 = vpow.pop %v1565
        %v1567 = vmul.f32 %v1548, 1.442695
        %v1568 = vpow.pop %v1567
        %v1569 = vmul.f32 %v1549, 1.442695
        %v1570 = vpow.pop %v1569
        %v1571 = vmul.f32 %v1550, 1.442695
        %v1572 = vpow.pop %v1571
        %v1573 = vmul.f32 %v1551, 1.442695
        %v1574 = vpow.pop %v1573
        %v1575 = vmul.f32 %v1552, 1.442695
        %v1576 = vpow.pop %v1575
        %v1577 = vmul.f32 %v1553, 1.442695
        %v1578 = vpow.pop %v1577
        %v1579 = vmul.f32 %v1554, 1.442695
        %v1580 = vpow.pop %v1579
        %v1581 = vmul.f32 %v1555, 1.442695
        %v1582 = vpow.pop %v1581
        %v1583 = vmul.f32 %v1556, 1.442695
        %v1584 = vpow.pop %v1583
        %v1585 = vmul.f32 %v1557, 1.442695
        %v1586 = vpow.pop %v1585
        %v1587 = vmul.f32 %v1558, 1.442695
        %v1588 = vpow.pop %v1587
        %v1589 = vmul.f32 %v1559, 1.442695
        %v1590 = vpow.pop %v1589
        %v1591 = vmul.f32 %v1560, 1.442695
        %v1592 = vpow.pop %v1591
        %v1593 = vmul.f32 %v1561, 1.442695
        %v1594 = vpow.pop %v1593
        %v1595 = vmul.f32 %v1562, 1.442695
        %v1596 = vpow.pop %v1595
        %v1597 = vmul.f32 %v1563, 1.442695
        %v1598 = vpow.pop %v1597
        %v1599 = vmul.f32 %v1564, 1.442695
        %v1600 = vpow.pop %v1599
        %v1601 = vsub.f32 %v1566, 1.0
        %v1602 = vsub.f32 %v1568, 1.0
        %v1603 = vsub.f32 %v1570, 1.0
        %v1604 = vsub.f32 %v1572, 1.0
        %v1605 = vsub.f32 %v1574, 1.0
        %v1606 = vsub.f32 %v1576, 1.0
        %v1607 = vsub.f32 %v1578, 1.0
        %v1608 = vsub.f32 %v1580, 1.0
        %v1609 = vsub.f32 %v1582, 1.0
        %v1610 = vsub.f32 %v1584, 1.0
        %v1611 = vsub.f32 %v1586, 1.0
        %v1612 = vsub.f32 %v1588, 1.0
        %v1613 = vsub.f32 %v1590, 1.0
        %v1614 = vsub.f32 %v1592, 1.0
        %v1615 = vsub.f32 %v1594, 1.0
        %v1616 = vsub.f32 %v1596, 1.0
        %v1617 = vsub.f32 %v1598, 1.0
        %v1618 = vsub.f32 %v1600, 1.0
        %v1619 = vsel %vm1529, %v1301, %v1601
        %v1620 = vsel %vm1530, %v1329, %v1602
        %v1621 = vsel %vm1531, %v1357, %v1603
        %v1622 = vsel %vm1532, %v1385, %v1604
        %v1623 = vsel %vm1533, %v1413, %v1605
        %v1624 = vsel %vm1534, %v1441, %v1606
        %v1625 = vsel %vm1535, %v1469, %v1607
        %v1626 = vsel %vm1536, %v1497, %v1608
        %v1627 = vsel %vm1537, %v1525, %v1609
        %v1628 = vsel %vm1538, %v1303, %v1610
        %v1629 = vsel %vm1539, %v1331, %v1611
        %v1630 = vsel %vm1540, %v1359, %v1612
        %v1631 = vsel %vm1541, %v1387, %v1613
        %v1632 = vsel %vm1542, %v1415, %v1614
        %v1633 = vsel %vm1543, %v1443, %v1615
        %v1634 = vsel %vm1544, %v1471, %v1616
        %v1635 = vsel %vm1545, %v1499, %v1617
        %v1636 = vsel %vm1546, %v1527, %v1618
        %v1637 = vpack.c.bf16 %v1620, %v1619
        %v1638 = vpack.c.bf16 %v1622, %v1621
        %v1639 = vpack.c.bf16 %v1624, %v1623
        %v1640 = vpack.c.bf16 %v1626, %v1625
        %v1641 = vpack.c.bf16 %v1627, %v1627
        %v1642 = vpack.c.bf16 %v1629, %v1628
        %v1643 = vpack.c.bf16 %v1631, %v1630
        %v1644 = vpack.c.bf16 %v1633, %v1632
        %v1645 = vpack.c.bf16 %v1635, %v1634
        %v1646 = vpack.c.bf16 %v1636, %v1636
        %1647 = vst [vmem:[%s462] sm:$0xff] %v1637
        %1648 = vst [vmem:[%s462 + $0x8] sm:$0xff] %v1638
        %1649 = vst [vmem:[%s462 + $0x10] sm:$0xff] %v1639
        %1650 = vst [vmem:[%s462 + $0x18] sm:$0xff] %v1640
        %1651 = vst [vmem:[%s462 + $0x20] sm:$0xf] %v1641
        %1652 = vst [vmem:[%s462 + $0x24] sm:$0xff] %v1642
        %1653 = vst [vmem:[%s462 + $0x2c] sm:$0xff] %v1643
        %1654 = vst [vmem:[%s462 + $0x34] sm:$0xff] %v1644
        %1655 = vst [vmem:[%s462 + $0x3c] sm:$0xff] %v1645
        %1656 = vst [vmem:[%s462 + $0x44] sm:$0xf] %v1646
        %s1657 = sand.u32 %s90, 1
        %s1658 = sand.u32 %s90, 1
        %s1659 = smul.addr %s1658, 72
        %s1660 = scalar_lea.vmem [#allocation3], %s1659
        // Predicated region
        $region59: #{encoder_classifier_forward.5} parent=53 // pred_check
          %p1661 = pneg %p100
        $region60: #{encoder_classifier_forward.5} parent=53 // pred_check_branch
          %1663 = sbr.rel (%p1661) target = $region62
        $region61: #{encoder_classifier_forward.5} parent=53 // pred_region
          %s1664 = smul.u32 9, %s14
          %s1665 = smul.addr %s1664, 4
          %s1666 = scalar_lea.vmem %s3, %s1665
          // Predicated region
          $region63: #{encoder_classifier_forward.5} parent=61 // pred_check
            _
          $region64: #{encoder_classifier_forward.5} parent=61 // pred_check_branch
            %1668 = sbr.rel (0) target = $region66
          $region65: #{encoder_classifier_forward.5} parent=61 // pred_region
            // Predicated region
            $region67: #{encoder_classifier_forward.5} parent=65 // pred_check
              _
            $region68: #{encoder_classifier_forward.5} parent=65 // pred_check_branch
              %1670 = sbr.rel (0) target = $region70
            $region69: #{encoder_classifier_forward.5} parent=65 // pred_region
              %s1671 = scalar_lea.vmem %s1660, 32 [#allocation3]
              %s1672 = scalar_lea.vmem %s1666, 32
              loop: start=0, step=1, limit=1
              $region71: #{encoder_classifier_forward.5} parent=69 // loop_pre_header
                _
              $region72: #{encoder_classifier_forward.5} parent=69 // loop_header
                %s1674 = sphi 0, %s1678
                %p1675 = scmp.ge.s32.totalorder %s1674, 1
                %s1679 = sphi %s1660, %s1660
                %s1680 = sphi %s1666, %s1666
              $region73: #{encoder_classifier_forward.5} parent=69 // loop_header_branch
                %1677 = sbr.rel (%p1675) target = $region77
              $region74: #{encoder_classifier_forward.5} parent=69 // loop_body
                %v1681 = vld [vmem:[%s1679] sm:$0xff]
                %1682 = vst [vmem:[%s1680] sm:$0xff] %v1681
                %v1683 = vld [vmem:[%s1679 + $0x8] sm:$0xff]
                %1684 = vst [vmem:[%s1680 + $0x8] sm:$0xff] %v1683
                %v1685 = vld [vmem:[%s1679 + $0x10] sm:$0xff]
                %1686 = vst [vmem:[%s1680 + $0x10] sm:$0xff] %v1685
                %v1687 = vld [vmem:[%s1679 + $0x18] sm:$0xff]
                %1688 = vst [vmem:[%s1680 + $0x18] sm:$0xff] %v1687
                %v1689 = vld [vmem:[%s1679 + $0x24] sm:$0xff]
                %1690 = vst [vmem:[%s1680 + $0x6c] sm:$0xff] %v1689
                %v1691 = vld [vmem:[%s1679 + $0x2c] sm:$0xff]
                %1692 = vst [vmem:[%s1680 + $0x74] sm:$0xff] %v1691
                %v1693 = vld [vmem:[%s1679 + $0x34] sm:$0xff]
                %1694 = vst [vmem:[%s1680 + $0x7c] sm:$0xff] %v1693
                %v1695 = vld [vmem:[%s1679 + $0x3c] sm:$0xff]
                %1696 = vst [vmem:[%s1680 + $0x84] sm:$0xff] %v1695
              $region75: #{encoder_classifier_forward.5} parent=69 // loop_footer
                %s1678 = sadd.s32 1, %s1674
              $region76: #{encoder_classifier_forward.5} parent=69 // loop_footer_branch
                %1673 = sbr.rel target = $region72
              $region77: #{encoder_classifier_forward.5} parent=69 // loop_exit
                _
              %s1698 = ssub.s32 16, 1
              loop: start=0, step=1, limit=1
              $region78: #{encoder_classifier_forward.5} parent=69 // loop_pre_header
                _
              $region79: #{encoder_classifier_forward.5} parent=69 // loop_header
                %s1700 = sphi 0, %s1704
                %p1701 = scmp.ge.s32.totalorder %s1700, 1
                %s1705 = sphi %s1671, %s1671
                %s1706 = sphi %s1672, %s1672
              $region80: #{encoder_classifier_forward.5} parent=69 // loop_header_branch
                %1703 = sbr.rel (%p1701) target = $region84
              $region81: #{encoder_classifier_forward.5} parent=69 // loop_body
                %v1707 = vld [vmem:[%s1705] sm:%s1698]
                %1708 = vst [vmem:[%s1706] sm:%s1698] %v1707
                %v1709 = vld [vmem:[%s1705 + $0x24] sm:%s1698]
                %1710 = vst [vmem:[%s1706 + $0x6c] sm:%s1698] %v1709
              $region82: #{encoder_classifier_forward.5} parent=69 // loop_footer
                %s1704 = sadd.s32 1, %s1700
              $region83: #{encoder_classifier_forward.5} parent=69 // loop_footer_branch
                %1699 = sbr.rel target = $region79
              $region84: #{encoder_classifier_forward.5} parent=69 // loop_exit
                _
            $region70: #{encoder_classifier_forward.5} parent=65 // pred_fallthru
              _
          $region66: #{encoder_classifier_forward.5} parent=61 // pred_fallthru
            _
          %1711 = vnop
        $region62: #{encoder_classifier_forward.5} parent=53 // pred_fallthru
          _
      $region54: #{encoder_classifier_forward.5} parent=5 // pred_fallthru
        _
      %p1712 = scmp.le.s32.totalorder 2, %s9
      // Predicated region
      $region85: #{encoder_classifier_forward.5} parent=5 // pred_check
        %p1713 = pneg %p1712
      $region86: #{encoder_classifier_forward.5} parent=5 // pred_check_branch
        %1715 = sbr.rel (%p1713) target = $region88
      $region87: #{encoder_classifier_forward.5} parent=5 // pred_region
        %s1716 = ssub.s32 %s9, 2
        // Predicated region
        $region89: #{encoder_classifier_forward.5} parent=87 // pred_check
          %p1717 = pneg %p106
        $region90: #{encoder_classifier_forward.5} parent=87 // pred_check_branch
          %1719 = sbr.rel (%p1717) target = $region92
        $region91: #{encoder_classifier_forward.5} parent=87 // pred_region
          %s1720 = sand.u32 %s91, 1
          %s1721 = sand.u32 %s91, 1
          %s1722 = smul.addr %s1721, 72
          %s1723 = scalar_lea.vmem [#allocation3], %s1722
        $region92: #{encoder_classifier_forward.5} parent=87 // pred_fallthru
          _
      $region88: #{encoder_classifier_forward.5} parent=5 // pred_fallthru
        _
    $region6: #{encoder_classifier_forward.5} parent=1 // loop_footer
      %s13 = sadd.s32 1, %s9
    $region7: #{encoder_classifier_forward.5} parent=1 // loop_footer_branch
      %8 = sbr.rel target = $region3
    $region8: #{encoder_classifier_forward.5} parent=1 // loop_exit
      _

// kernel: encoder_classifier_forward.6
$region0: #{encoder_classifier_forward.6}
  #allocation0 [shape = 'u32[]', space=smem, size = 0x4, offset = 0x4, fixed_abs, tag = 'smem constant byte address 0x4 - core index']
  #allocation1 [shape = 'u32[72,128]{1,0:T(1,128)}', space=vmem, size = 0x9000, scoped, tag = 'internal scratch']
  %s0 = inlined_call_operand.vmem [shape: bf16[32,432], index: 0, kind: input, shape index: {}]
  %s1 = inlined_call_operand.vmem [shape: f32[32,1], index: 1, kind: input, shape index: {}]
  %s2 = inlined_call_operand.vmem [shape: bf16[432,432], index: 2, kind: input, shape index: {}]
  %s3 = inlined_call_operand.vmem [shape: bf16[32,432], index: 3, kind: output, shape index: {}]
  %s4 = sld [smem:[#allocation0]]
  $region22: #{encoder_classifier_forward.6} parent=0
    _
  %s6 = ssub.s32 1, %s4
  %s7 = scalar_select 0, %s6, %s4
  // Predicated region
  $region2: #{encoder_classifier_forward.6} parent=0 // pred_check
    _
  $region3: #{encoder_classifier_forward.6} parent=0 // pred_check_branch
    %9 = sbr.rel (0) target = $region5
  $region4: #{encoder_classifier_forward.6} parent=0 // pred_region
    _
  $region5: #{encoder_classifier_forward.6} parent=0 // pred_fallthru
    _
  // Predicated region
  $region6: #{encoder_classifier_forward.6} parent=0 // pred_check
    _
  $region7: #{encoder_classifier_forward.6} parent=0 // pred_check_branch
    %11 = sbr.rel (0) target = $region9
  $region8: #{encoder_classifier_forward.6} parent=0 // pred_region
    _
  $region9: #{encoder_classifier_forward.6} parent=0 // pred_fallthru
    _
  // Predicated region
  $region10: #{encoder_classifier_forward.6} parent=0 // pred_check
    _
  $region11: #{encoder_classifier_forward.6} parent=0 // pred_check_branch
    %13 = sbr.rel (0) target = $region13
  $region12: #{encoder_classifier_forward.6} parent=0 // pred_region
    _
  $region13: #{encoder_classifier_forward.6} parent=0 // pred_fallthru
    _
  %v15 = vld [vmem:[%s0] sm:$0xff]
  %v16 = vld [vmem:[%s0 + $0x8] sm:$0xff]
  %v17 = vld [vmem:[%s0 + $0x10] sm:$0xff]
  %v18 = vld [vmem:[%s0 + $0x18] sm:$0xff]
  %v19 = vld [vmem:[%s0 + $0x20] sm:$0xff]
  %v20 = vld [vmem:[%s0 + $0x28] sm:$0xff]
  %v21 = vld [vmem:[%s0 + $0x30] sm:$0xff]
  %v22 = vld [vmem:[%s0 + $0x38] sm:$0xff]
  %v23 = vld [vmem:[%s2] sm:$0xff]
  %v24 = vld [vmem:[%s2 + $0x8] sm:$0xff]
  %v25 = vld [vmem:[%s2 + $0x10] sm:$0xff]
  %v26 = vld [vmem:[%s2 + $0x18] sm:$0xff]
  %v27 = vld [vmem:[%s2 + $0x20] sm:$0xff]
  %v28 = vld [vmem:[%s2 + $0x28] sm:$0xff]
  %v29 = vld [vmem:[%s2 + $0x30] sm:$0xff]
  %v30 = vld [vmem:[%s2 + $0x38] sm:$0xff]
  %v31 = vld [vmem:[%s2 + $0x40] sm:$0xff]
  %v32 = vld [vmem:[%s2 + $0x48] sm:$0xff]
  %v33 = vld [vmem:[%s2 + $0x50] sm:$0xff]
  %v34 = vld [vmem:[%s2 + $0x58] sm:$0xff]
  %v35 = vld [vmem:[%s2 + $0x60] sm:$0xff]
  %v36 = vld [vmem:[%s2 + $0x68] sm:$0xff]
  %v37 = vld [vmem:[%s2 + $0x70] sm:$0xff]
  %v38 = vld [vmem:[%s2 + $0x78] sm:$0xff]
  %v39 = vld [vmem:[%s2 + $0x80] sm:$0xff]
  %v40 = vld [vmem:[%s2 + $0x88] sm:$0xff]
  %v41 = vld [vmem:[%s2 + $0x90] sm:$0xff]
  %v42 = vld [vmem:[%s2 + $0x98] sm:$0xff]
  %v43 = vld [vmem:[%s2 + $0xa0] sm:$0xff]
  %v44 = vld [vmem:[%s2 + $0xa8] sm:$0xff]
  %v45 = vld [vmem:[%s2 + $0xb0] sm:$0xff]
  %v46 = vld [vmem:[%s2 + $0xb8] sm:$0xff]
  %v47 = vld [vmem:[%s2 + $0xc0] sm:$0xff]
  %v48 = vld [vmem:[%s2 + $0xc8] sm:$0xff]
  %v49 = vld [vmem:[%s2 + $0xd0] sm:$0xff]
  %v50 = vld [vmem:[%s2 + $0xd8] sm:$0xff]
  %v51 = vld [vmem:[%s2 + $0xe0] sm:$0xff]
  %v52 = vld [vmem:[%s2 + $0xe8] sm:$0xff]
  %v53 = vld [vmem:[%s2 + $0xf0] sm:$0xff]
  %v54 = vld [vmem:[%s2 + $0xf8] sm:$0xff]
  %v55 = vld [vmem:[%s2 + $0x100] sm:$0xff]
  %v56 = vld [vmem:[%s2 + $0x108] sm:$0xff]
  %v57 = vld [vmem:[%s2 + $0x110] sm:$0xff]
  %v58 = vld [vmem:[%s2 + $0x118] sm:$0xff]
  %v59 = vld [vmem:[%s2 + $0x120] sm:$0xff]
  %v60 = vld [vmem:[%s2 + $0x128] sm:$0xff]
  %v61 = vld [vmem:[%s2 + $0x130] sm:$0xff]
  %v62 = vld [vmem:[%s2 + $0x138] sm:$0xff]
  %v63 = vld [vmem:[%s2 + $0x140] sm:$0xff]
  %v64 = vld [vmem:[%s2 + $0x148] sm:$0xff]
  %v65 = vld [vmem:[%s2 + $0x150] sm:$0xff]
  %v66 = vld [vmem:[%s2 + $0x158] sm:$0xff]
  %v67 = vld [vmem:[%s2 + $0x160] sm:$0xff]
  %v68 = vld [vmem:[%s2 + $0x168] sm:$0xff]
  %v69 = vld [vmem:[%s2 + $0x170] sm:$0xff]
  %v70 = vld [vmem:[%s2 + $0x178] sm:$0xff]
  %v71 = vld [vmem:[%s2 + $0x180] sm:$0xff]
  %v72 = vld [vmem:[%s2 + $0x188] sm:$0xff]
  %v73 = vld [vmem:[%s2 + $0x190] sm:$0xff]
  %v74 = vld [vmem:[%s2 + $0x198] sm:$0xff]
  %v75 = vld [vmem:[%s2 + $0x1a0] sm:$0xff]
  %v76 = vld [vmem:[%s2 + $0x1a8] sm:$0xff]
  %v77 = vld [vmem:[%s2 + $0x1b0] sm:$0xff]
  %v78 = vld [vmem:[%s2 + $0x1b8] sm:$0xff]
  %v79 = vld [vmem:[%s2 + $0x1c0] sm:$0xff]
  %v80 = vld [vmem:[%s2 + $0x1c8] sm:$0xff]
  %v81 = vld [vmem:[%s2 + $0x1d0] sm:$0xff]
  %v82 = vld [vmem:[%s2 + $0x1d8] sm:$0xff]
  %v83 = vld [vmem:[%s2 + $0x1e0] sm:$0xff]
  %v84 = vld [vmem:[%s2 + $0x1e8] sm:$0xff]
  %v85 = vld [vmem:[%s2 + $0x1f0] sm:$0xff]
  %v86 = vld [vmem:[%s2 + $0x1f8] sm:$0xff]
  %v87 = vld [vmem:[%s2 + $0x200] sm:$0xff]
  %v88 = vld [vmem:[%s2 + $0x208] sm:$0xff]
  %v89 = vld [vmem:[%s2 + $0x210] sm:$0xff]
  %v90 = vld [vmem:[%s2 + $0x218] sm:$0xff]
  %v91 = vld [vmem:[%s2 + $0x220] sm:$0xff]
  %v92 = vld [vmem:[%s2 + $0x228] sm:$0xff]
  %v93 = vld [vmem:[%s2 + $0x230] sm:$0xff]
  %v94 = vld [vmem:[%s2 + $0x238] sm:$0xff]
  %v95 = vld [vmem:[%s2 + $0x240] sm:$0xff]
  %v96 = vld [vmem:[%s2 + $0x248] sm:$0xff]
  %v97 = vld [vmem:[%s2 + $0x250] sm:$0xff]
  %v98 = vld [vmem:[%s2 + $0x258] sm:$0xff]
  %v99 = vld [vmem:[%s2 + $0x260] sm:$0xff]
  %v100 = vld [vmem:[%s2 + $0x268] sm:$0xff]
  %v101 = vld [vmem:[%s2 + $0x270] sm:$0xff]
  %v102 = vld [vmem:[%s2 + $0x278] sm:$0xff]
  %v103 = vld [vmem:[%s2 + $0x280] sm:$0xff]
  %v104 = vld [vmem:[%s2 + $0x288] sm:$0xff]
  %v105 = vld [vmem:[%s2 + $0x290] sm:$0xff]
  %v106 = vld [vmem:[%s2 + $0x298] sm:$0xff]
  %v107 = vld [vmem:[%s2 + $0x2a0] sm:$0xff]
  %v108 = vld [vmem:[%s2 + $0x2a8] sm:$0xff]
  %v109 = vld [vmem:[%s2 + $0x2b0] sm:$0xff]
  %v110 = vld [vmem:[%s2 + $0x2b8] sm:$0xff]
  %v111 = vld [vmem:[%s2 + $0x2c0] sm:$0xff]
  %v112 = vld [vmem:[%s2 + $0x2c8] sm:$0xff]
  %v113 = vld [vmem:[%s2 + $0x2d0] sm:$0xff]
  %v114 = vld [vmem:[%s2 + $0x2d8] sm:$0xff]
  %v115 = vld [vmem:[%s2 + $0x2e0] sm:$0xff]
  %v116 = vld [vmem:[%s2 + $0x2e8] sm:$0xff]
  %v117 = vld [vmem:[%s2 + $0x2f0] sm:$0xff]
  %v118 = vld [vmem:[%s2 + $0x2f8] sm:$0xff]
  %v119 = vld [vmem:[%s2 + $0x300] sm:$0xff]
  %v120 = vld [vmem:[%s2 + $0x308] sm:$0xff]
  %v121 = vld [vmem:[%s2 + $0x310] sm:$0xff]
  %v122 = vld [vmem:[%s2 + $0x318] sm:$0xff]
  %v123 = vld [vmem:[%s2 + $0x320] sm:$0xff]
  %v124 = vld [vmem:[%s2 + $0x328] sm:$0xff]
  %v125 = vld [vmem:[%s2 + $0x330] sm:$0xff]
  %v126 = vld [vmem:[%s2 + $0x338] sm:$0xff]
  %v127 = vld [vmem:[%s2 + $0x340] sm:$0xff]
  %v128 = vld [vmem:[%s2 + $0x348] sm:$0xff]
  %v129 = vld [vmem:[%s2 + $0x350] sm:$0xff]
  %v130 = vld [vmem:[%s2 + $0x358] sm:$0xff]
  %v131 = vld [vmem:[%s1] sm:$0xff]
  %v132 = vld [vmem:[%s1 + $0x8] sm:$0xff]
  %v133 = vld [vmem:[%s1 + $0x10] sm:$0xff]
  %v134 = vld [vmem:[%s1 + $0x18] sm:$0xff]
  %136 = vset.pattern.permute.xlu0 0
  %137 = vperm.xlu0 %136, %v131
  %v138 = vpop.permute.xlu0 %137
  %141 = vset.pattern.permute.xlu0 0
  %142 = vperm.xlu0 %141, %v132
  %v143 = vpop.permute.xlu0 %142
  %146 = vset.pattern.permute.xlu0 0
  %147 = vperm.xlu0 %146, %v133
  %v148 = vpop.permute.xlu0 %147
  %151 = vset.pattern.permute.xlu0 0
  %152 = vperm.xlu0 %151, %v134
  %v153 = vpop.permute.xlu0 %152
  %v163 = vunpack.c.l.b16 %v15
  %v164 = vunpack.c.h.b16 %v15
  %v165 = vunpack.c.l.b16 %v16
  %v166 = vunpack.c.h.b16 %v16
  %v167 = vunpack.c.l.b16 %v17
  %v168 = vunpack.c.h.b16 %v17
  %v169 = vunpack.c.l.b16 %v18
  %v170 = vunpack.c.h.b16 %v18
  %v171 = vunpack.c.l.b16 %v19
  %v172 = vunpack.c.h.b16 %v19
  %v173 = vunpack.c.l.b16 %v20
  %v174 = vunpack.c.h.b16 %v20
  %v175 = vunpack.c.l.b16 %v21
  %v176 = vunpack.c.h.b16 %v21
  %v177 = vunpack.c.l.b16 %v22
  %v178 = vunpack.c.h.b16 %v22
  %v179 = vpack.c.b16 %v167, %v163
  %v180 = vpack.c.b16 %v168, %v164
  %v181 = vpack.c.b16 %v169, %v165
  %v182 = vpack.c.b16 %v170, %v166
  %v183 = vpack.c.b16 %v175, %v171
  %v184 = vpack.c.b16 %v176, %v172
  %v185 = vpack.c.b16 %v177, %v173
  %v186 = vpack.c.b16 %v178, %v174
  %v301 = vunpack.c.l.b16 %v23
  %v302 = vunpack.c.h.b16 %v23
  %v303 = vunpack.c.l.b16 %v24
  %v304 = vunpack.c.h.b16 %v24
  %v305 = vunpack.c.l.b16 %v25
  %v306 = vunpack.c.h.b16 %v25
  %v307 = vunpack.c.l.b16 %v26
  %v308 = vunpack.c.h.b16 %v26
  %v309 = vunpack.c.l.b16 %v27
  %v310 = vunpack.c.h.b16 %v27
  %v311 = vunpack.c.l.b16 %v28
  %v312 = vunpack.c.h.b16 %v28
  %v313 = vunpack.c.l.b16 %v29
  %v314 = vunpack.c.h.b16 %v29
  %v315 = vunpack.c.l.b16 %v30
  %v316 = vunpack.c.h.b16 %v30
  %v317 = vunpack.c.l.b16 %v31
  %v318 = vunpack.c.h.b16 %v31
  %v319 = vunpack.c.l.b16 %v32
  %v320 = vunpack.c.h.b16 %v32
  %v321 = vunpack.c.l.b16 %v33
  %v322 = vunpack.c.h.b16 %v33
  %v323 = vunpack.c.l.b16 %v34
  %v324 = vunpack.c.h.b16 %v34
  %v325 = vunpack.c.l.b16 %v35
  %v326 = vunpack.c.h.b16 %v35
  %v327 = vunpack.c.l.b16 %v36
  %v328 = vunpack.c.h.b16 %v36
  %v329 = vunpack.c.l.b16 %v37
  %v330 = vunpack.c.h.b16 %v37
  %v331 = vunpack.c.l.b16 %v38
  %v332 = vunpack.c.h.b16 %v38
  %v333 = vunpack.c.l.b16 %v39
  %v334 = vunpack.c.h.b16 %v39
  %v335 = vunpack.c.l.b16 %v40
  %v336 = vunpack.c.h.b16 %v40
  %v337 = vunpack.c.l.b16 %v41
  %v338 = vunpack.c.h.b16 %v41
  %v339 = vunpack.c.l.b16 %v42
  %v340 = vunpack.c.h.b16 %v42
  %v341 = vunpack.c.l.b16 %v43
  %v342 = vunpack.c.h.b16 %v43
  %v343 = vunpack.c.l.b16 %v44
  %v344 = vunpack.c.h.b16 %v44
  %v345 = vunpack.c.l.b16 %v45
  %v346 = vunpack.c.h.b16 %v45
  %v347 = vunpack.c.l.b16 %v46
  %v348 = vunpack.c.h.b16 %v46
  %v349 = vunpack.c.l.b16 %v47
  %v350 = vunpack.c.h.b16 %v47
  %v351 = vunpack.c.l.b16 %v48
  %v352 = vunpack.c.h.b16 %v48
  %v353 = vunpack.c.l.b16 %v49
  %v354 = vunpack.c.h.b16 %v49
  %v355 = vunpack.c.l.b16 %v50
  %v356 = vunpack.c.h.b16 %v50
  %v357 = vunpack.c.l.b16 %v51
  %v358 = vunpack.c.h.b16 %v51
  %v359 = vunpack.c.l.b16 %v52
  %v360 = vunpack.c.h.b16 %v52
  %v361 = vunpack.c.l.b16 %v53
  %v362 = vunpack.c.h.b16 %v53
  %v363 = vunpack.c.l.b16 %v54
  %v364 = vunpack.c.h.b16 %v54
  %v365 = vunpack.c.l.b16 %v55
  %v366 = vunpack.c.h.b16 %v55
  %v367 = vunpack.c.l.b16 %v56
  %v368 = vunpack.c.h.b16 %v56
  %v369 = vunpack.c.l.b16 %v57
  %v370 = vunpack.c.h.b16 %v57
  %v371 = vunpack.c.l.b16 %v58
  %v372 = vunpack.c.h.b16 %v58
  %v373 = vunpack.c.l.b16 %v59
  %v374 = vunpack.c.h.b16 %v59
  %v375 = vunpack.c.l.b16 %v60
  %v376 = vunpack.c.h.b16 %v60
  %v377 = vunpack.c.l.b16 %v61
  %v378 = vunpack.c.h.b16 %v61
  %v379 = vunpack.c.l.b16 %v62
  %v380 = vunpack.c.h.b16 %v62
  %v381 = vunpack.c.l.b16 %v63
  %v382 = vunpack.c.h.b16 %v63
  %v383 = vunpack.c.l.b16 %v64
  %v384 = vunpack.c.h.b16 %v64
  %v385 = vunpack.c.l.b16 %v65
  %v386 = vunpack.c.h.b16 %v65
  %v387 = vunpack.c.l.b16 %v66
  %v388 = vunpack.c.h.b16 %v66
  %v389 = vunpack.c.l.b16 %v67
  %v390 = vunpack.c.h.b16 %v67
  %v391 = vunpack.c.l.b16 %v68
  %v392 = vunpack.c.h.b16 %v68
  %v393 = vunpack.c.l.b16 %v69
  %v394 = vunpack.c.h.b16 %v69
  %v395 = vunpack.c.l.b16 %v70
  %v396 = vunpack.c.h.b16 %v70
  %v397 = vunpack.c.l.b16 %v71
  %v398 = vunpack.c.h.b16 %v71
  %v399 = vunpack.c.l.b16 %v72
  %v400 = vunpack.c.h.b16 %v72
  %v401 = vunpack.c.l.b16 %v73
  %v402 = vunpack.c.h.b16 %v73
  %v403 = vunpack.c.l.b16 %v74
  %v404 = vunpack.c.h.b16 %v74
  %v405 = vunpack.c.l.b16 %v75
  %v406 = vunpack.c.h.b16 %v75
  %v407 = vunpack.c.l.b16 %v76
  %v408 = vunpack.c.h.b16 %v76
  %v409 = vunpack.c.l.b16 %v77
  %v410 = vunpack.c.h.b16 %v77
  %v411 = vunpack.c.l.b16 %v78
  %v412 = vunpack.c.h.b16 %v78
  %v413 = vunpack.c.l.b16 %v79
  %v414 = vunpack.c.h.b16 %v79
  %v415 = vunpack.c.l.b16 %v80
  %v416 = vunpack.c.h.b16 %v80
  %v417 = vunpack.c.l.b16 %v81
  %v418 = vunpack.c.h.b16 %v81
  %v419 = vunpack.c.l.b16 %v82
  %v420 = vunpack.c.h.b16 %v82
  %v421 = vunpack.c.l.b16 %v83
  %v422 = vunpack.c.h.b16 %v83
  %v423 = vunpack.c.l.b16 %v84
  %v424 = vunpack.c.h.b16 %v84
  %v425 = vunpack.c.l.b16 %v85
  %v426 = vunpack.c.h.b16 %v85
  %v427 = vunpack.c.l.b16 %v86
  %v428 = vunpack.c.h.b16 %v86
  %v429 = vunpack.c.l.b16 %v87
  %v430 = vunpack.c.h.b16 %v87
  %v431 = vunpack.c.l.b16 %v88
  %v432 = vunpack.c.h.b16 %v88
  %v433 = vunpack.c.l.b16 %v89
  %v434 = vunpack.c.h.b16 %v89
  %v435 = vunpack.c.l.b16 %v90
  %v436 = vunpack.c.h.b16 %v90
  %v437 = vunpack.c.l.b16 %v91
  %v438 = vunpack.c.h.b16 %v91
  %v439 = vunpack.c.l.b16 %v92
  %v440 = vunpack.c.h.b16 %v92
  %v441 = vunpack.c.l.b16 %v93
  %v442 = vunpack.c.h.b16 %v93
  %v443 = vunpack.c.l.b16 %v94
  %v444 = vunpack.c.h.b16 %v94
  %v445 = vunpack.c.l.b16 %v95
  %v446 = vunpack.c.h.b16 %v95
  %v447 = vunpack.c.l.b16 %v96
  %v448 = vunpack.c.h.b16 %v96
  %v449 = vunpack.c.l.b16 %v97
  %v450 = vunpack.c.h.b16 %v97
  %v451 = vunpack.c.l.b16 %v98
  %v452 = vunpack.c.h.b16 %v98
  %v453 = vunpack.c.l.b16 %v99
  %v454 = vunpack.c.h.b16 %v99
  %v455 = vunpack.c.l.b16 %v100
  %v456 = vunpack.c.h.b16 %v100
  %v457 = vunpack.c.l.b16 %v101
  %v458 = vunpack.c.h.b16 %v101
  %v459 = vunpack.c.l.b16 %v102
  %v460 = vunpack.c.h.b16 %v102
  %v461 = vunpack.c.l.b16 %v103
  %v462 = vunpack.c.h.b16 %v103
  %v463 = vunpack.c.l.b16 %v104
  %v464 = vunpack.c.h.b16 %v104
  %v465 = vunpack.c.l.b16 %v105
  %v466 = vunpack.c.h.b16 %v105
  %v467 = vunpack.c.l.b16 %v106
  %v468 = vunpack.c.h.b16 %v106
  %v469 = vunpack.c.l.b16 %v107
  %v470 = vunpack.c.h.b16 %v107
  %v471 = vunpack.c.l.b16 %v108
  %v472 = vunpack.c.h.b16 %v108
  %v473 = vunpack.c.l.b16 %v109
  %v474 = vunpack.c.h.b16 %v109
  %v475 = vunpack.c.l.b16 %v110
  %v476 = vunpack.c.h.b16 %v110
  %v477 = vunpack.c.l.b16 %v111
  %v478 = vunpack.c.h.b16 %v111
  %v479 = vunpack.c.l.b16 %v112
  %v480 = vunpack.c.h.b16 %v112
  %v481 = vunpack.c.l.b16 %v113
  %v482 = vunpack.c.h.b16 %v113
  %v483 = vunpack.c.l.b16 %v114
  %v484 = vunpack.c.h.b16 %v114
  %v485 = vunpack.c.l.b16 %v115
  %v486 = vunpack.c.h.b16 %v115
  %v487 = vunpack.c.l.b16 %v116
  %v488 = vunpack.c.h.b16 %v116
  %v489 = vunpack.c.l.b16 %v117
  %v490 = vunpack.c.h.b16 %v117
  %v491 = vunpack.c.l.b16 %v118
  %v492 = vunpack.c.h.b16 %v118
  %v493 = vunpack.c.l.b16 %v119
  %v494 = vunpack.c.h.b16 %v119
  %v495 = vunpack.c.l.b16 %v120
  %v496 = vunpack.c.h.b16 %v120
  %v497 = vunpack.c.l.b16 %v121
  %v498 = vunpack.c.h.b16 %v121
  %v499 = vunpack.c.l.b16 %v122
  %v500 = vunpack.c.h.b16 %v122
  %v501 = vunpack.c.l.b16 %v123
  %v502 = vunpack.c.h.b16 %v123
  %v503 = vunpack.c.l.b16 %v124
  %v504 = vunpack.c.h.b16 %v124
  %v505 = vunpack.c.l.b16 %v125
  %v506 = vunpack.c.h.b16 %v125
  %v507 = vunpack.c.l.b16 %v126
  %v508 = vunpack.c.h.b16 %v126
  %v509 = vunpack.c.l.b16 %v127
  %v510 = vunpack.c.h.b16 %v127
  %v511 = vunpack.c.l.b16 %v128
  %v512 = vunpack.c.h.b16 %v128
  %v513 = vunpack.c.l.b16 %v129
  %v514 = vunpack.c.h.b16 %v129
  %v515 = vunpack.c.l.b16 %v130
  %v516 = vunpack.c.h.b16 %v130
  %v517 = vpack.c.b16 %v305, %v301
  %v518 = vpack.c.b16 %v306, %v302
  %v519 = vpack.c.b16 %v307, %v303
  %v520 = vpack.c.b16 %v308, %v304
  %v521 = vpack.c.b16 %v313, %v309
  %v522 = vpack.c.b16 %v314, %v310
  %v523 = vpack.c.b16 %v315, %v311
  %v524 = vpack.c.b16 %v316, %v312
  %v525 = vpack.c.b16 %v321, %v317
  %v526 = vpack.c.b16 %v322, %v318
  %v527 = vpack.c.b16 %v323, %v319
  %v528 = vpack.c.b16 %v324, %v320
  %v529 = vpack.c.b16 %v329, %v325
  %v530 = vpack.c.b16 %v330, %v326
  %v531 = vpack.c.b16 %v331, %v327
  %v532 = vpack.c.b16 %v332, %v328
  %v533 = vpack.c.b16 %v337, %v333
  %v534 = vpack.c.b16 %v338, %v334
  %v535 = vpack.c.b16 %v339, %v335
  %v536 = vpack.c.b16 %v340, %v336
  %v537 = vpack.c.b16 %v345, %v341
  %v538 = vpack.c.b16 %v346, %v342
  %v539 = vpack.c.b16 %v347, %v343
  %v540 = vpack.c.b16 %v348, %v344
  %v541 = vpack.c.b16 %v353, %v349
  %v542 = vpack.c.b16 %v354, %v350
  %v543 = vpack.c.b16 %v355, %v351
  %v544 = vpack.c.b16 %v356, %v352
  %v545 = vpack.c.b16 %v361, %v357
  %v546 = vpack.c.b16 %v362, %v358
  %v547 = vpack.c.b16 %v363, %v359
  %v548 = vpack.c.b16 %v364, %v360
  %v549 = vpack.c.b16 %v369, %v365
  %v550 = vpack.c.b16 %v370, %v366
  %v551 = vpack.c.b16 %v371, %v367
  %v552 = vpack.c.b16 %v372, %v368
  %v553 = vpack.c.b16 %v377, %v373
  %v554 = vpack.c.b16 %v378, %v374
  %v555 = vpack.c.b16 %v379, %v375
  %v556 = vpack.c.b16 %v380, %v376
  %v557 = vpack.c.b16 %v385, %v381
  %v558 = vpack.c.b16 %v386, %v382
  %v559 = vpack.c.b16 %v387, %v383
  %v560 = vpack.c.b16 %v388, %v384
  %v561 = vpack.c.b16 %v393, %v389
  %v562 = vpack.c.b16 %v394, %v390
  %v563 = vpack.c.b16 %v395, %v391
  %v564 = vpack.c.b16 %v396, %v392
  %v565 = vpack.c.b16 %v401, %v397
  %v566 = vpack.c.b16 %v402, %v398
  %v567 = vpack.c.b16 %v403, %v399
  %v568 = vpack.c.b16 %v404, %v400
  %v569 = vpack.c.b16 %v409, %v405
  %v570 = vpack.c.b16 %v410, %v406
  %v571 = vpack.c.b16 %v411, %v407
  %v572 = vpack.c.b16 %v412, %v408
  %v573 = vpack.c.b16 %v417, %v413
  %v574 = vpack.c.b16 %v418, %v414
  %v575 = vpack.c.b16 %v419, %v415
  %v576 = vpack.c.b16 %v420, %v416
  %v577 = vpack.c.b16 %v425, %v421
  %v578 = vpack.c.b16 %v426, %v422
  %v579 = vpack.c.b16 %v427, %v423
  %v580 = vpack.c.b16 %v428, %v424
  %v581 = vpack.c.b16 %v433, %v429
  %v582 = vpack.c.b16 %v434, %v430
  %v583 = vpack.c.b16 %v435, %v431
  %v584 = vpack.c.b16 %v436, %v432
  %v585 = vpack.c.b16 %v441, %v437
  %v586 = vpack.c.b16 %v442, %v438
  %v587 = vpack.c.b16 %v443, %v439
  %v588 = vpack.c.b16 %v444, %v440
  %v589 = vpack.c.b16 %v449, %v445
  %v590 = vpack.c.b16 %v450, %v446
  %v591 = vpack.c.b16 %v451, %v447
  %v592 = vpack.c.b16 %v452, %v448
  %v593 = vpack.c.b16 %v457, %v453
  %v594 = vpack.c.b16 %v458, %v454
  %v595 = vpack.c.b16 %v459, %v455
  %v596 = vpack.c.b16 %v460, %v456
  %v597 = vpack.c.b16 %v465, %v461
  %v598 = vpack.c.b16 %v466, %v462
  %v599 = vpack.c.b16 %v467, %v463
  %v600 = vpack.c.b16 %v468, %v464
  %v601 = vpack.c.b16 %v473, %v469
  %v602 = vpack.c.b16 %v474, %v470
  %v603 = vpack.c.b16 %v475, %v471
  %v604 = vpack.c.b16 %v476, %v472
  %v605 = vpack.c.b16 %v481, %v477
  %v606 = vpack.c.b16 %v482, %v478
  %v607 = vpack.c.b16 %v483, %v479
  %v608 = vpack.c.b16 %v484, %v480
  %v609 = vpack.c.b16 %v489, %v485
  %v610 = vpack.c.b16 %v490, %v486
  %v611 = vpack.c.b16 %v491, %v487
  %v612 = vpack.c.b16 %v492, %v488
  %v613 = vpack.c.b16 %v497, %v493
  %v614 = vpack.c.b16 %v498, %v494
  %v615 = vpack.c.b16 %v499, %v495
  %v616 = vpack.c.b16 %v500, %v496
  %v617 = vpack.c.b16 %v505, %v501
  %v618 = vpack.c.b16 %v506, %v502
  %v619 = vpack.c.b16 %v507, %v503
  %v620 = vpack.c.b16 %v508, %v504
  %v621 = vpack.c.b16 %v513, %v509
  %v622 = vpack.c.b16 %v514, %v510
  %v623 = vpack.c.b16 %v515, %v511
  %v624 = vpack.c.b16 %v516, %v512
  %vm733 = vcmask 392192
  %v735 = vsel %vm733, %v182, 0
  %v738 = vsel %vm733, %v186, 0
  %740 = vmatpush.bf16.msra.mxu0 %v545
  %741 = vmatpush.bf16.msra.mxu0 %v541
  %742 = vmatpush.bf16.msra.mxu0 %v537
  %743 = vmatpush.bf16.msra.mxu0 %v533
  %744 = vmatpush.bf16.msra.mxu0 %v529
  %745 = vmatpush.bf16.msra.mxu0 %v525
  %746 = vmatpush.bf16.msra.mxu0 %v521
  %747 = vmatpush.bf16.msra.mxu0 %v517
  %748 = vmatmul.bf16.gmra.mxu0 %v179
  %v749 = vpop.f32.mrf.mxu0
  %v750 = vadd.f32 %v138, %v749
  %v751 = vpop.f32.mrf.mxu0
  %v752 = vadd.f32 %v143, %v751
  %753 = vmatmul.bf16.gmra.mxu0 %v183
  %v754 = vpop.f32.mrf.mxu0
  %v755 = vadd.f32 %v148, %v754
  %v756 = vpop.f32.mrf.mxu0
  %v757 = vadd.f32 %v153, %v756
  %758 = vdwg.mxu0
  %759 = vmatpush.bf16.msra.mxu0 %v577
  %760 = vmatpush.bf16.msra.mxu0 %v573
  %761 = vmatpush.bf16.msra.mxu0 %v569
  %762 = vmatpush.bf16.msra.mxu0 %v565
  %763 = vmatpush.bf16.msra.mxu0 %v561
  %764 = vmatpush.bf16.msra.mxu0 %v557
  %765 = vmatpush.bf16.msra.mxu0 %v553
  %766 = vmatpush.bf16.msra.mxu0 %v549
  %767 = vmatmul.bf16.gmra.mxu0 %v180
  %v768 = vpop.f32.mrf.mxu0
  %v769 = vadd.f32 %v750, %v768
  %v770 = vpop.f32.mrf.mxu0
  %v771 = vadd.f32 %v752, %v770
  %772 = vmatmul.bf16.gmra.mxu0 %v184
  %v773 = vpop.f32.mrf.mxu0
  %v774 = vadd.f32 %v755, %v773
  %v775 = vpop.f32.mrf.mxu0
  %v776 = vadd.f32 %v757, %v775
  %777 = vdwg.mxu0
  %778 = vmatpush.bf16.msra.mxu0 %v609
  %779 = vmatpush.bf16.msra.mxu0 %v605
  %780 = vmatpush.bf16.msra.mxu0 %v601
  %781 = vmatpush.bf16.msra.mxu0 %v597
  %782 = vmatpush.bf16.msra.mxu0 %v593
  %783 = vmatpush.bf16.msra.mxu0 %v589
  %784 = vmatpush.bf16.msra.mxu0 %v585
  %785 = vmatpush.bf16.msra.mxu0 %v581
  %786 = vmatmul.bf16.gmra.mxu0 %v181
  %v787 = vpop.f32.mrf.mxu0
  %v788 = vadd.f32 %v769, %v787
  %v789 = vpop.f32.mrf.mxu0
  %v790 = vadd.f32 %v771, %v789
  %791 = vmatmul.bf16.gmra.mxu0 %v185
  %v792 = vpop.f32.mrf.mxu0
  %v793 = vadd.f32 %v774, %v792
  %v794 = vpop.f32.mrf.mxu0
  %v795 = vadd.f32 %v776, %v794
  %796 = vdwg.mxu0
  %797 = vmatpush.bf16.msra.mxu0 0
  %798 = vmatpush.bf16.msra.mxu0 0
  %799 = vmatpush.bf16.msra.mxu0 0
  %800 = vmatpush.bf16.msra.mxu0 0
  %801 = vmatpush.bf16.msra.mxu0 0
  %802 = vmatpush.bf16.msra.mxu0 %v621
  %803 = vmatpush.bf16.msra.mxu0 %v617
  %804 = vmatpush.bf16.msra.mxu0 %v613
  %805 = vmatmul.bf16.gmra.mxu0 %v735
  %v806 = vpop.f32.mrf.mxu0
  %v807 = vadd.f32 %v788, %v806
  %v808 = vpop.f32.mrf.mxu0
  %v809 = vadd.f32 %v790, %v808
  %810 = vmatmul.bf16.gmra.mxu0 %v738
  %v811 = vpop.f32.mrf.mxu0
  %v812 = vadd.f32 %v793, %v811
  %v813 = vpop.f32.mrf.mxu0
  %v814 = vadd.f32 %v795, %v813
  %815 = vdwg.mxu0
  %816 = vmatpush.bf16.msra.mxu0 %v546
  %817 = vmatpush.bf16.msra.mxu0 %v542
  %818 = vmatpush.bf16.msra.mxu0 %v538
  %819 = vmatpush.bf16.msra.mxu0 %v534
  %820 = vmatpush.bf16.msra.mxu0 %v530
  %821 = vmatpush.bf16.msra.mxu0 %v526
  %822 = vmatpush.bf16.msra.mxu0 %v522
  %823 = vmatpush.bf16.msra.mxu0 %v518
  %824 = vmatmul.bf16.gmra.mxu0 %v179
  %v825 = vpop.f32.mrf.mxu0
  %v826 = vadd.f32 %v138, %v825
  %v827 = vpop.f32.mrf.mxu0
  %v828 = vadd.f32 %v143, %v827
  %829 = vmatmul.bf16.gmra.mxu0 %v183
  %v830 = vpop.f32.mrf.mxu0
  %v831 = vadd.f32 %v148, %v830
  %v832 = vpop.f32.mrf.mxu0
  %v833 = vadd.f32 %v153, %v832
  %834 = vdwg.mxu0
  %835 = vmatpush.bf16.msra.mxu0 %v578
  %836 = vmatpush.bf16.msra.mxu0 %v574
  %837 = vmatpush.bf16.msra.mxu0 %v570
  %838 = vmatpush.bf16.msra.mxu0 %v566
  %839 = vmatpush.bf16.msra.mxu0 %v562
  %840 = vmatpush.bf16.msra.mxu0 %v558
  %841 = vmatpush.bf16.msra.mxu0 %v554
  %842 = vmatpush.bf16.msra.mxu0 %v550
  %843 = vmatmul.bf16.gmra.mxu0 %v180
  %v844 = vpop.f32.mrf.mxu0
  %v845 = vadd.f32 %v826, %v844
  %v846 = vpop.f32.mrf.mxu0
  %v847 = vadd.f32 %v828, %v846
  %848 = vmatmul.bf16.gmra.mxu0 %v184
  %v849 = vpop.f32.mrf.mxu0
  %v850 = vadd.f32 %v831, %v849
  %v851 = vpop.f32.mrf.mxu0
  %v852 = vadd.f32 %v833, %v851
  %853 = vdwg.mxu0
  %854 = vmatpush.bf16.msra.mxu0 %v610
  %855 = vmatpush.bf16.msra.mxu0 %v606
  %856 = vmatpush.bf16.msra.mxu0 %v602
  %857 = vmatpush.bf16.msra.mxu0 %v598
  %858 = vmatpush.bf16.msra.mxu0 %v594
  %859 = vmatpush.bf16.msra.mxu0 %v590
  %860 = vmatpush.bf16.msra.mxu0 %v586
  %861 = vmatpush.bf16.msra.mxu0 %v582
  %862 = vmatmul.bf16.gmra.mxu0 %v181
  %v863 = vpop.f32.mrf.mxu0
  %v864 = vadd.f32 %v845, %v863
  %v865 = vpop.f32.mrf.mxu0
  %v866 = vadd.f32 %v847, %v865
  %867 = vmatmul.bf16.gmra.mxu0 %v185
  %v868 = vpop.f32.mrf.mxu0
  %v869 = vadd.f32 %v850, %v868
  %v870 = vpop.f32.mrf.mxu0
  %v871 = vadd.f32 %v852, %v870
  %872 = vdwg.mxu0
  %873 = vmatpush.bf16.msra.mxu0 0
  %874 = vmatpush.bf16.msra.mxu0 0
  %875 = vmatpush.bf16.msra.mxu0 0
  %876 = vmatpush.bf16.msra.mxu0 0
  %877 = vmatpush.bf16.msra.mxu0 0
  %878 = vmatpush.bf16.msra.mxu0 %v622
  %879 = vmatpush.bf16.msra.mxu0 %v618
  %880 = vmatpush.bf16.msra.mxu0 %v614
  %881 = vmatmul.bf16.gmra.mxu0 %v735
  %v882 = vpop.f32.mrf.mxu0
  %v883 = vadd.f32 %v864, %v882
  %v884 = vpop.f32.mrf.mxu0
  %v885 = vadd.f32 %v866, %v884
  %886 = vmatmul.bf16.gmra.mxu0 %v738
  %v887 = vpop.f32.mrf.mxu0
  %v888 = vadd.f32 %v869, %v887
  %v889 = vpop.f32.mrf.mxu0
  %v890 = vadd.f32 %v871, %v889
  %891 = vdwg.mxu0
  %892 = vmatpush.bf16.msra.mxu0 %v547
  %893 = vmatpush.bf16.msra.mxu0 %v543
  %894 = vmatpush.bf16.msra.mxu0 %v539
  %895 = vmatpush.bf16.msra.mxu0 %v535
  %896 = vmatpush.bf16.msra.mxu0 %v531
  %897 = vmatpush.bf16.msra.mxu0 %v527
  %898 = vmatpush.bf16.msra.mxu0 %v523
  %899 = vmatpush.bf16.msra.mxu0 %v519
  %900 = vmatmul.bf16.gmra.mxu0 %v179
  %v901 = vpop.f32.mrf.mxu0
  %v902 = vadd.f32 %v138, %v901
  %v903 = vpop.f32.mrf.mxu0
  %v904 = vadd.f32 %v143, %v903
  %905 = vmatmul.bf16.gmra.mxu0 %v183
  %v906 = vpop.f32.mrf.mxu0
  %v907 = vadd.f32 %v148, %v906
  %v908 = vpop.f32.mrf.mxu0
  %v909 = vadd.f32 %v153, %v908
  %910 = vdwg.mxu0
  %911 = vmatpush.bf16.msra.mxu0 %v579
  %912 = vmatpush.bf16.msra.mxu0 %v575
  %913 = vmatpush.bf16.msra.mxu0 %v571
  %914 = vmatpush.bf16.msra.mxu0 %v567
  %915 = vmatpush.bf16.msra.mxu0 %v563
  %916 = vmatpush.bf16.msra.mxu0 %v559
  %917 = vmatpush.bf16.msra.mxu0 %v555
  %918 = vmatpush.bf16.msra.mxu0 %v551
  %919 = vmatmul.bf16.gmra.mxu0 %v180
  %v920 = vpop.f32.mrf.mxu0
  %v921 = vadd.f32 %v902, %v920
  %v922 = vpop.f32.mrf.mxu0
  %v923 = vadd.f32 %v904, %v922
  %924 = vmatmul.bf16.gmra.mxu0 %v184
  %v925 = vpop.f32.mrf.mxu0
  %v926 = vadd.f32 %v907, %v925
  %v927 = vpop.f32.mrf.mxu0
  %v928 = vadd.f32 %v909, %v927
  %929 = vdwg.mxu0
  %930 = vmatpush.bf16.msra.mxu0 %v611
  %931 = vmatpush.bf16.msra.mxu0 %v607
  %932 = vmatpush.bf16.msra.mxu0 %v603
  %933 = vmatpush.bf16.msra.mxu0 %v599
  %934 = vmatpush.bf16.msra.mxu0 %v595
  %935 = vmatpush.bf16.msra.mxu0 %v591
  %936 = vmatpush.bf16.msra.mxu0 %v587
  %937 = vmatpush.bf16.msra.mxu0 %v583
  %938 = vmatmul.bf16.gmra.mxu0 %v181
  %v939 = vpop.f32.mrf.mxu0
  %v940 = vadd.f32 %v921, %v939
  %v941 = vpop.f32.mrf.mxu0
  %v942 = vadd.f32 %v923, %v941
  %943 = vmatmul.bf16.gmra.mxu0 %v185
  %v944 = vpop.f32.mrf.mxu0
  %v945 = vadd.f32 %v926, %v944
  %v946 = vpop.f32.mrf.mxu0
  %v947 = vadd.f32 %v928, %v946
  %948 = vdwg.mxu0
  %949 = vmatpush.bf16.msra.mxu0 0
  %950 = vmatpush.bf16.msra.mxu0 0
  %951 = vmatpush.bf16.msra.mxu0 0
  %952 = vmatpush.bf16.msra.mxu0 0
  %953 = vmatpush.bf16.msra.mxu0 0
  %954 = vmatpush.bf16.msra.mxu0 %v623
  %955 = vmatpush.bf16.msra.mxu0 %v619
  %956 = vmatpush.bf16.msra.mxu0 %v615
  %957 = vmatmul.bf16.gmra.mxu0 %v735
  %v958 = vpop.f32.mrf.mxu0
  %v959 = vadd.f32 %v940, %v958
  %v960 = vpop.f32.mrf.mxu0
  %v961 = vadd.f32 %v942, %v960
  %962 = vmatmul.bf16.gmra.mxu0 %v738
  %v963 = vpop.f32.mrf.mxu0
  %v964 = vadd.f32 %v945, %v963
  %v965 = vpop.f32.mrf.mxu0
  %v966 = vadd.f32 %v947, %v965
  %967 = vdwg.mxu0
  %968 = vmatpush.bf16.msra.mxu0 %v548
  %969 = vmatpush.bf16.msra.mxu0 %v544
  %970 = vmatpush.bf16.msra.mxu0 %v540
  %971 = vmatpush.bf16.msra.mxu0 %v536
  %972 = vmatpush.bf16.msra.mxu0 %v532
  %973 = vmatpush.bf16.msra.mxu0 %v528
  %974 = vmatpush.bf16.msra.mxu0 %v524
  %975 = vmatpush.bf16.msra.mxu0 %v520
  %976 = vmatmul.bf16.gmra.mxu0 %v179
  %v977 = vpop.f32.mrf.mxu0
  %v978 = vadd.f32 %v138, %v977
  %v979 = vpop.f32.mrf.mxu0
  %v980 = vadd.f32 %v143, %v979
  %981 = vmatmul.bf16.gmra.mxu0 %v183
  %v982 = vpop.f32.mrf.mxu0
  %v983 = vadd.f32 %v148, %v982
  %v984 = vpop.f32.mrf.mxu0
  %v985 = vadd.f32 %v153, %v984
  %986 = vdwg.mxu0
  %987 = vmatpush.bf16.msra.mxu0 %v580
  %988 = vmatpush.bf16.msra.mxu0 %v576
  %989 = vmatpush.bf16.msra.mxu0 %v572
  %990 = vmatpush.bf16.msra.mxu0 %v568
  %991 = vmatpush.bf16.msra.mxu0 %v564
  %992 = vmatpush.bf16.msra.mxu0 %v560
  %993 = vmatpush.bf16.msra.mxu0 %v556
  %994 = vmatpush.bf16.msra.mxu0 %v552
  %995 = vmatmul.bf16.gmra.mxu0 %v180
  %v996 = vpop.f32.mrf.mxu0
  %v997 = vadd.f32 %v978, %v996
  %v998 = vpop.f32.mrf.mxu0
  %v999 = vadd.f32 %v980, %v998
  %1000 = vmatmul.bf16.gmra.mxu0 %v184
  %v1001 = vpop.f32.mrf.mxu0
  %v1002 = vadd.f32 %v983, %v1001
  %v1003 = vpop.f32.mrf.mxu0
  %v1004 = vadd.f32 %v985, %v1003
  %1005 = vdwg.mxu0
  %1006 = vmatpush.bf16.msra.mxu0 %v612
  %1007 = vmatpush.bf16.msra.mxu0 %v608
  %1008 = vmatpush.bf16.msra.mxu0 %v604
  %1009 = vmatpush.bf16.msra.mxu0 %v600
  %1010 = vmatpush.bf16.msra.mxu0 %v596
  %1011 = vmatpush.bf16.msra.mxu0 %v592
  %1012 = vmatpush.bf16.msra.mxu0 %v588
  %1013 = vmatpush.bf16.msra.mxu0 %v584
  %1014 = vmatmul.bf16.gmra.mxu0 %v181
  %v1015 = vpop.f32.mrf.mxu0
  %v1016 = vadd.f32 %v997, %v1015
  %v1017 = vpop.f32.mrf.mxu0
  %v1018 = vadd.f32 %v999, %v1017
  %1019 = vmatmul.bf16.gmra.mxu0 %v185
  %v1020 = vpop.f32.mrf.mxu0
  %v1021 = vadd.f32 %v1002, %v1020
  %v1022 = vpop.f32.mrf.mxu0
  %v1023 = vadd.f32 %v1004, %v1022
  %1024 = vdwg.mxu0
  %1025 = vmatpush.bf16.msra.mxu0 0
  %1026 = vmatpush.bf16.msra.mxu0 0
  %1027 = vmatpush.bf16.msra.mxu0 0
  %1028 = vmatpush.bf16.msra.mxu0 0
  %1029 = vmatpush.bf16.msra.mxu0 0
  %1030 = vmatpush.bf16.msra.mxu0 %v624
  %1031 = vmatpush.bf16.msra.mxu0 %v620
  %1032 = vmatpush.bf16.msra.mxu0 %v616
  %1033 = vmatmul.bf16.gmra.mxu0 %v735
  %v1034 = vpop.f32.mrf.mxu0
  %v1035 = vadd.f32 %v1016, %v1034
  %v1036 = vpop.f32.mrf.mxu0
  %v1037 = vadd.f32 %v1018, %v1036
  %1038 = vmatmul.bf16.gmra.mxu0 %v738
  %v1039 = vpop.f32.mrf.mxu0
  %v1040 = vadd.f32 %v1021, %v1039
  %v1041 = vpop.f32.mrf.mxu0
  %v1042 = vadd.f32 %v1023, %v1041
  %1043 = vdwg.mxu0
  %vm1044 = vcmp.gt.f32.partialorder %v807, 0.0
  %vm1045 = vcmp.gt.f32.partialorder %v883, 0.0
  %vm1046 = vcmp.gt.f32.partialorder %v959, 0.0
  %vm1047 = vcmp.gt.f32.partialorder %v1035, 0.0
  %vm1048 = vcmp.gt.f32.partialorder %v809, 0.0
  %vm1049 = vcmp.gt.f32.partialorder %v885, 0.0
  %vm1050 = vcmp.gt.f32.partialorder %v961, 0.0
  %vm1051 = vcmp.gt.f32.partialorder %v1037, 0.0
  %vm1052 = vcmp.gt.f32.partialorder %v812, 0.0
  %vm1053 = vcmp.gt.f32.partialorder %v888, 0.0
  %vm1054 = vcmp.gt.f32.partialorder %v964, 0.0
  %vm1055 = vcmp.gt.f32.partialorder %v1040, 0.0
  %vm1056 = vcmp.gt.f32.partialorder %v814, 0.0
  %vm1057 = vcmp.gt.f32.partialorder %v890, 0.0
  %vm1058 = vcmp.gt.f32.partialorder %v966, 0.0
  %vm1059 = vcmp.gt.f32.partialorder %v1042, 0.0
  %v1060 = vmin.f32 %v807, 0.0
  %v1061 = vmin.f32 %v883, 0.0
  %v1062 = vmin.f32 %v959, 0.0
  %v1063 = vmin.f32 %v1035, 0.0
  %v1064 = vmin.f32 %v809, 0.0
  %v1065 = vmin.f32 %v885, 0.0
  %v1066 = vmin.f32 %v961, 0.0
  %v1067 = vmin.f32 %v1037, 0.0
  %v1068 = vmin.f32 %v812, 0.0
  %v1069 = vmin.f32 %v888, 0.0
  %v1070 = vmin.f32 %v964, 0.0
  %v1071 = vmin.f32 %v1040, 0.0
  %v1072 = vmin.f32 %v814, 0.0
  %v1073 = vmin.f32 %v890, 0.0
  %v1074 = vmin.f32 %v966, 0.0
  %v1075 = vmin.f32 %v1042, 0.0
  %v1076 = vmul.f32 %v1060, 1.442695
  %v1077 = vpow.pop %v1076
  %v1078 = vmul.f32 %v1061, 1.442695
  %v1079 = vpow.pop %v1078
  %v1080 = vmul.f32 %v1062, 1.442695
  %v1081 = vpow.pop %v1080
  %v1082 = vmul.f32 %v1063, 1.442695
  %v1083 = vpow.pop %v1082
  %v1084 = vmul.f32 %v1064, 1.442695
  %v1085 = vpow.pop %v1084
  %v1086 = vmul.f32 %v1065, 1.442695
  %v1087 = vpow.pop %v1086
  %v1088 = vmul.f32 %v1066, 1.442695
  %v1089 = vpow.pop %v1088
  %v1090 = vmul.f32 %v1067, 1.442695
  %v1091 = vpow.pop %v1090
  %v1092 = vmul.f32 %v1068, 1.442695
  %v1093 = vpow.pop %v1092
  %v1094 = vmul.f32 %v1069, 1.442695
  %v1095 = vpow.pop %v1094
  %v1096 = vmul.f32 %v1070, 1.442695
  %v1097 = vpow.pop %v1096
  %v1098 = vmul.f32 %v1071, 1.442695
  %v1099 = vpow.pop %v1098
  %v1100 = vmul.f32 %v1072, 1.442695
  %v1101 = vpow.pop %v1100
  %v1102 = vmul.f32 %v1073, 1.442695
  %v1103 = vpow.pop %v1102
  %v1104 = vmul.f32 %v1074, 1.442695
  %v1105 = vpow.pop %v1104
  %v1106 = vmul.f32 %v1075, 1.442695
  %v1107 = vpow.pop %v1106
  %v1108 = vsub.f32 %v1077, 1.0
  %v1109 = vsub.f32 %v1079, 1.0
  %v1110 = vsub.f32 %v1081, 1.0
  %v1111 = vsub.f32 %v1083, 1.0
  %v1112 = vsub.f32 %v1085, 1.0
  %v1113 = vsub.f32 %v1087, 1.0
  %v1114 = vsub.f32 %v1089, 1.0
  %v1115 = vsub.f32 %v1091, 1.0
  %v1116 = vsub.f32 %v1093, 1.0
  %v1117 = vsub.f32 %v1095, 1.0
  %v1118 = vsub.f32 %v1097, 1.0
  %v1119 = vsub.f32 %v1099, 1.0
  %v1120 = vsub.f32 %v1101, 1.0
  %v1121 = vsub.f32 %v1103, 1.0
  %v1122 = vsub.f32 %v1105, 1.0
  %v1123 = vsub.f32 %v1107, 1.0
  %v1124 = vsel %vm1044, %v807, %v1108
  %v1125 = vsel %vm1045, %v883, %v1109
  %v1126 = vsel %vm1046, %v959, %v1110
  %v1127 = vsel %vm1047, %v1035, %v1111
  %v1128 = vsel %vm1048, %v809, %v1112
  %v1129 = vsel %vm1049, %v885, %v1113
  %v1130 = vsel %vm1050, %v961, %v1114
  %v1131 = vsel %vm1051, %v1037, %v1115
  %v1132 = vsel %vm1052, %v812, %v1116
  %v1133 = vsel %vm1053, %v888, %v1117
  %v1134 = vsel %vm1054, %v964, %v1118
  %v1135 = vsel %vm1055, %v1040, %v1119
  %v1136 = vsel %vm1056, %v814, %v1120
  %v1137 = vsel %vm1057, %v890, %v1121
  %v1138 = vsel %vm1058, %v966, %v1122
  %v1139 = vsel %vm1059, %v1042, %v1123
  %v1140 = vpack.c.bf16 %v1125, %v1124
  %v1141 = vpack.c.bf16 %v1127, %v1126
  %v1142 = vpack.c.bf16 %v1129, %v1128
  %v1143 = vpack.c.bf16 %v1131, %v1130
  %v1144 = vpack.c.bf16 %v1133, %v1132
  %v1145 = vpack.c.bf16 %v1135, %v1134
  %v1146 = vpack.c.bf16 %v1137, %v1136
  %v1147 = vpack.c.bf16 %v1139, %v1138
  %1148 = vst [vmem:[%s3] sm:$0xff] %v1140
  %vm1149 = vcmask 1043456
  %vm1150 = vcmask 392196
  %vm1151 = vmor %vm1150, %vm1149
  %1152 = vst.msk [vmem:[%s3 + $0x8] sm:$0xff] %vm1151, %v1141
  %1153 = vst [vmem:[%s3 + $0x10] sm:$0xff] %v1142
  %1154 = vst.msk [vmem:[%s3 + $0x18] sm:$0xff] %vm1151, %v1143
  %1155 = vst [vmem:[%s3 + $0x20] sm:$0xff] %v1144
  %1156 = vst.msk [vmem:[%s3 + $0x28] sm:$0xff] %vm1151, %v1145
  %1157 = vst [vmem:[%s3 + $0x30] sm:$0xff] %v1146
  %1158 = vst.msk [vmem:[%s3 + $0x38] sm:$0xff] %vm1151, %v1147
  // Predicated region
  $region14: #{encoder_classifier_forward.6} parent=0 // pred_check
    _
  $region15: #{encoder_classifier_forward.6} parent=0 // pred_check_branch
    %1160 = sbr.rel (0) target = $region17
  $region16: #{encoder_classifier_forward.6} parent=0 // pred_region
    _
  $region17: #{encoder_classifier_forward.6} parent=0 // pred_fallthru
    _
  // Predicated region
  $region18: #{encoder_classifier_forward.6} parent=0 // pred_check
    _
  $region19: #{encoder_classifier_forward.6} parent=0 // pred_check_branch
    %1162 = sbr.rel (0) target = $region21
  $region20: #{encoder_classifier_forward.6} parent=0 // pred_region
    _
  $region21: #{encoder_classifier_forward.6} parent=0 // pred_fallthru
    _

// kernel: encoder_classifier_forward.7
$region0: #{encoder_classifier_forward.7}
  #allocation0 [shape = 'u32[]', space=smem, size = 0x4, offset = 0x4, fixed_abs, tag = 'smem constant byte address 0x4 - core index']
  #allocation1 [shape = 'u32[72,128]{1,0:T(1,128)}', space=vmem, size = 0x9000, scoped, tag = 'internal scratch']
  %s0 = inlined_call_operand.vmem [shape: f32[2,864], index: 0, kind: input, shape index: {}]
  %s1 = inlined_call_operand.vmem [shape: f32[864,16], index: 1, kind: input, shape index: {}]
  %s2 = inlined_call_operand.vmem [shape: f32[1,16], index: 2, kind: input, shape index: {}]
  %s3 = inlined_call_operand.vmem [shape: f32[16,32], index: 3, kind: input, shape index: {}]
  %s4 = inlined_call_operand.vmem [shape: f32[1,32], index: 4, kind: input, shape index: {}]
  %s5 = inlined_call_operand.vmem [shape: f32[32,2], index: 5, kind: input, shape index: {}]
  %s6 = inlined_call_operand.vmem [shape: f32[1,2], index: 6, kind: input, shape index: {}]
  %s7 = inlined_call_operand.hbm [shape: f32[2,2], index: 7, kind: output, shape index: {}]
  %s8 = sld [smem:[#allocation0]]
  $region38: #{encoder_classifier_forward.7} parent=0
    _
  %s10 = ssub.s32 1, %s8
  %s11 = scalar_select 0, %s10, %s8
  $region1: #{encoder_classifier_forward.7} parent=0
    #allocation2 [shape = 'u8[1024]{0}', space=vmem, size = 0x400, scoped, tag = 'output window, operand 0, single buffered']
    #allocation3 [shape = 's32[1]{0}', space=sflag, size = 0x4, scoped, tag = 'scoped memory for encoder_classifier_forward.7']
    %12 = vsyncpa [#allocation3], 0
    // Predicated region
    $region2: #{encoder_classifier_forward.7} parent=1 // pred_check
      _
    $region3: #{encoder_classifier_forward.7} parent=1 // pred_check_branch
      %14 = sbr.rel (0) target = $region5
    $region4: #{encoder_classifier_forward.7} parent=1 // pred_region
      _
    $region5: #{encoder_classifier_forward.7} parent=1 // pred_fallthru
      _
    // Predicated region
    $region6: #{encoder_classifier_forward.7} parent=1 // pred_check
      _
    $region7: #{encoder_classifier_forward.7} parent=1 // pred_check_branch
      %16 = sbr.rel (0) target = $region9
    $region8: #{encoder_classifier_forward.7} parent=1 // pred_region
      _
    $region9: #{encoder_classifier_forward.7} parent=1 // pred_fallthru
      _
    // Predicated region
    $region10: #{encoder_classifier_forward.7} parent=1 // pred_check
      _
    $region11: #{encoder_classifier_forward.7} parent=1 // pred_check_branch
      %18 = sbr.rel (0) target = $region13
    $region12: #{encoder_classifier_forward.7} parent=1 // pred_region
      _
    $region13: #{encoder_classifier_forward.7} parent=1 // pred_fallthru
      _
    // Predicated region
    $region14: #{encoder_classifier_forward.7} parent=1 // pred_check
      _
    $region15: #{encoder_classifier_forward.7} parent=1 // pred_check_branch
      %20 = sbr.rel (0) target = $region17
    $region16: #{encoder_classifier_forward.7} parent=1 // pred_region
      _
    $region17: #{encoder_classifier_forward.7} parent=1 // pred_fallthru
      _
    // Predicated region
    $region18: #{encoder_classifier_forward.7} parent=1 // pred_check
      _
    $region19: #{encoder_classifier_forward.7} parent=1 // pred_check_branch
      %22 = sbr.rel (0) target = $region21
    $region20: #{encoder_classifier_forward.7} parent=1 // pred_region
      _
    $region21: #{encoder_classifier_forward.7} parent=1 // pred_fallthru
      _
    // Predicated region
    $region22: #{encoder_classifier_forward.7} parent=1 // pred_check
      _
    $region23: #{encoder_classifier_forward.7} parent=1 // pred_check_branch
      %24 = sbr.rel (0) target = $region25
    $region24: #{encoder_classifier_forward.7} parent=1 // pred_region
      _
    $region25: #{encoder_classifier_forward.7} parent=1 // pred_fallthru
      _
    // Predicated region
    $region26: #{encoder_classifier_forward.7} parent=1 // pred_check
      _
    $region27: #{encoder_classifier_forward.7} parent=1 // pred_check_branch
      %26 = sbr.rel (0) target = $region29
    $region28: #{encoder_classifier_forward.7} parent=1 // pred_region
      _
    $region29: #{encoder_classifier_forward.7} parent=1 // pred_fallthru
      _
    %v27 = vld [vmem:[%s0] sm:$0xff]
    %v28 = vld [vmem:[%s0 + $0x8] sm:$0x3f]
    %v29 = vld [vmem:[%s1] sm:$0xff]
    %v30 = vld [vmem:[%s1 + $0x8] sm:$0xff]
    %v31 = vld [vmem:[%s1 + $0x10] sm:$0xff]
    %v32 = vld [vmem:[%s1 + $0x18] sm:$0xff]
    %v33 = vld [vmem:[%s1 + $0x20] sm:$0xff]
    %v34 = vld [vmem:[%s1 + $0x28] sm:$0xff]
    %v35 = vld [vmem:[%s1 + $0x30] sm:$0xff]
    %v36 = vld [vmem:[%s1 + $0x38] sm:$0xff]
    %v37 = vld [vmem:[%s1 + $0x40] sm:$0xff]
    %v38 = vld [vmem:[%s1 + $0x48] sm:$0xff]
    %v39 = vld [vmem:[%s1 + $0x50] sm:$0xff]
    %v40 = vld [vmem:[%s1 + $0x58] sm:$0xff]
    %v41 = vld [vmem:[%s1 + $0x60] sm:$0xff]
    %v42 = vld [vmem:[%s1 + $0x68] sm:$0xff]
    %v43 = vld [vmem:[%s1 + $0x70] sm:$0xff]
    %v44 = vld [vmem:[%s1 + $0x78] sm:$0xff]
    %v45 = vld [vmem:[%s1 + $0x80] sm:$0xff]
    %v46 = vld [vmem:[%s1 + $0x88] sm:$0xff]
    %v47 = vld [vmem:[%s1 + $0x90] sm:$0xff]
    %v48 = vld [vmem:[%s1 + $0x98] sm:$0xff]
    %v49 = vld [vmem:[%s1 + $0xa0] sm:$0xff]
    %v50 = vld [vmem:[%s1 + $0xa8] sm:$0xff]
    %v51 = vld [vmem:[%s1 + $0xb0] sm:$0xff]
    %v52 = vld [vmem:[%s1 + $0xb8] sm:$0xff]
    %v53 = vld [vmem:[%s1 + $0xc0] sm:$0xff]
    %v54 = vld [vmem:[%s1 + $0xc8] sm:$0xff]
    %v55 = vld [vmem:[%s1 + $0xd0] sm:$0xff]
    %v56 = vld [vmem:[%s1 + $0xd8] sm:$0xff]
    %v57 = vld [vmem:[%s1 + $0xe0] sm:$0xff]
    %v58 = vld [vmem:[%s1 + $0xe8] sm:$0xff]
    %v59 = vld [vmem:[%s1 + $0xf0] sm:$0xff]
    %v60 = vld [vmem:[%s1 + $0xf8] sm:$0xff]
    %v61 = vld [vmem:[%s1 + $0x100] sm:$0xff]
    %v62 = vld [vmem:[%s1 + $0x108] sm:$0xff]
    %v63 = vld [vmem:[%s1 + $0x110] sm:$0xff]
    %v64 = vld [vmem:[%s1 + $0x118] sm:$0xff]
    %v65 = vld [vmem:[%s1 + $0x120] sm:$0xff]
    %v66 = vld [vmem:[%s1 + $0x128] sm:$0xff]
    %v67 = vld [vmem:[%s1 + $0x130] sm:$0xff]
    %v68 = vld [vmem:[%s1 + $0x138] sm:$0xff]
    %v69 = vld [vmem:[%s1 + $0x140] sm:$0xff]
    %v70 = vld [vmem:[%s1 + $0x148] sm:$0xff]
    %v71 = vld [vmem:[%s1 + $0x150] sm:$0xff]
    %v72 = vld [vmem:[%s1 + $0x158] sm:$0xff]
    %v73 = vld [vmem:[%s1 + $0x160] sm:$0xff]
    %v74 = vld [vmem:[%s1 + $0x168] sm:$0xff]
    %v75 = vld [vmem:[%s1 + $0x170] sm:$0xff]
    %v76 = vld [vmem:[%s1 + $0x178] sm:$0xff]
    %v77 = vld [vmem:[%s1 + $0x180] sm:$0xff]
    %v78 = vld [vmem:[%s1 + $0x188] sm:$0xff]
    %v79 = vld [vmem:[%s1 + $0x190] sm:$0xff]
    %v80 = vld [vmem:[%s1 + $0x198] sm:$0xff]
    %v81 = vld [vmem:[%s1 + $0x1a0] sm:$0xff]
    %v82 = vld [vmem:[%s1 + $0x1a8] sm:$0xff]
    %v83 = vld [vmem:[%s1 + $0x1b0] sm:$0xff]
    %v84 = vld [vmem:[%s1 + $0x1b8] sm:$0xff]
    %v85 = vld [vmem:[%s1 + $0x1c0] sm:$0xff]
    %v86 = vld [vmem:[%s1 + $0x1c8] sm:$0xff]
    %v87 = vld [vmem:[%s1 + $0x1d0] sm:$0xff]
    %v88 = vld [vmem:[%s1 + $0x1d8] sm:$0xff]
    %v89 = vld [vmem:[%s1 + $0x1e0] sm:$0xff]
    %v90 = vld [vmem:[%s1 + $0x1e8] sm:$0xff]
    %v91 = vld [vmem:[%s1 + $0x1f0] sm:$0xff]
    %v92 = vld [vmem:[%s1 + $0x1f8] sm:$0xff]
    %v93 = vld [vmem:[%s1 + $0x200] sm:$0xff]
    %v94 = vld [vmem:[%s1 + $0x208] sm:$0xff]
    %v95 = vld [vmem:[%s1 + $0x210] sm:$0xff]
    %v96 = vld [vmem:[%s1 + $0x218] sm:$0xff]
    %v97 = vld [vmem:[%s1 + $0x220] sm:$0xff]
    %v98 = vld [vmem:[%s1 + $0x228] sm:$0xff]
    %v99 = vld [vmem:[%s1 + $0x230] sm:$0xff]
    %v100 = vld [vmem:[%s1 + $0x238] sm:$0xff]
    %v101 = vld [vmem:[%s1 + $0x240] sm:$0xff]
    %v102 = vld [vmem:[%s1 + $0x248] sm:$0xff]
    %v103 = vld [vmem:[%s1 + $0x250] sm:$0xff]
    %v104 = vld [vmem:[%s1 + $0x258] sm:$0xff]
    %v105 = vld [vmem:[%s1 + $0x260] sm:$0xff]
    %v106 = vld [vmem:[%s1 + $0x268] sm:$0xff]
    %v107 = vld [vmem:[%s1 + $0x270] sm:$0xff]
    %v108 = vld [vmem:[%s1 + $0x278] sm:$0xff]
    %v109 = vld [vmem:[%s1 + $0x280] sm:$0xff]
    %v110 = vld [vmem:[%s1 + $0x288] sm:$0xff]
    %v111 = vld [vmem:[%s1 + $0x290] sm:$0xff]
    %v112 = vld [vmem:[%s1 + $0x298] sm:$0xff]
    %v113 = vld [vmem:[%s1 + $0x2a0] sm:$0xff]
    %v114 = vld [vmem:[%s1 + $0x2a8] sm:$0xff]
    %v115 = vld [vmem:[%s1 + $0x2b0] sm:$0xff]
    %v116 = vld [vmem:[%s1 + $0x2b8] sm:$0xff]
    %v117 = vld [vmem:[%s1 + $0x2c0] sm:$0xff]
    %v118 = vld [vmem:[%s1 + $0x2c8] sm:$0xff]
    %v119 = vld [vmem:[%s1 + $0x2d0] sm:$0xff]
    %v120 = vld [vmem:[%s1 + $0x2d8] sm:$0xff]
    %v121 = vld [vmem:[%s1 + $0x2e0] sm:$0xff]
    %v122 = vld [vmem:[%s1 + $0x2e8] sm:$0xff]
    %v123 = vld [vmem:[%s1 + $0x2f0] sm:$0xff]
    %v124 = vld [vmem:[%s1 + $0x2f8] sm:$0xff]
    %v125 = vld [vmem:[%s1 + $0x300] sm:$0xff]
    %v126 = vld [vmem:[%s1 + $0x308] sm:$0xff]
    %v127 = vld [vmem:[%s1 + $0x310] sm:$0xff]
    %v128 = vld [vmem:[%s1 + $0x318] sm:$0xff]
    %v129 = vld [vmem:[%s1 + $0x320] sm:$0xff]
    %v130 = vld [vmem:[%s1 + $0x328] sm:$0xff]
    %v131 = vld [vmem:[%s1 + $0x330] sm:$0xff]
    %v132 = vld [vmem:[%s1 + $0x338] sm:$0xff]
    %v133 = vld [vmem:[%s1 + $0x340] sm:$0xff]
    %v134 = vld [vmem:[%s1 + $0x348] sm:$0xff]
    %v135 = vld [vmem:[%s1 + $0x350] sm:$0xff]
    %v136 = vld [vmem:[%s1 + $0x358] sm:$0xff]
    %v137 = vld [vmem:[%s2] sm:$0x1]
    %v139 = vperm.slane %v137, 0
    %143 = vst [vmem:[#allocation1] ss:$4 sm:$0xff] %v27
    %s144 = scalar_lea.vmem [#allocation1], 32
    %145 = vst [vmem:[%s144] ss:$4 sm:$0xff] %v28
    %v146 = vld.sshfl [vmem:[#allocation1] sm:$0xff pattern:$0x73625140]
    %v147 = vld.sshfl [vmem:[#allocation1 + $0x8] sm:$0xff pattern:$0x73625140]
    %v148 = vld.sshfl [vmem:[#allocation1 + $0x10] sm:$0xff pattern:$0x73625140]
    %v149 = vld.sshfl [vmem:[#allocation1 + $0x18] sm:$0xff pattern:$0x73625140]
    %v150 = vld.sshfl [vmem:[#allocation1 + $0x20] sm:$0xff pattern:$0x73625140]
    %v151 = vld.sshfl [vmem:[#allocation1 + $0x28] sm:$0xff pattern:$0x73625140]
    %v152 = vld.sshfl [vmem:[#allocation1 + $0x30] sm:$0xff pattern:$0x73625140]
    %vm159 = vcmask 785408
    %v160 = vsel %vm159, %v152, 0
    %162 = vmatpush.msra.mxu0 %v44
    %163 = vmatpush.msra.mxu0 %v43
    %164 = vmatpush.msra.mxu0 %v42
    %165 = vmatpush.msra.mxu0 %v41
    %166 = vmatpush.msra.mxu0 %v40
    %167 = vmatpush.msra.mxu0 %v39
    %168 = vmatpush.msra.mxu0 %v38
    %169 = vmatpush.msra.mxu0 %v37
    %170 = vmatpush.msra.mxu0 %v36
    %171 = vmatpush.msra.mxu0 %v35
    %172 = vmatpush.msra.mxu0 %v34
    %173 = vmatpush.msra.mxu0 %v33
    %174 = vmatpush.msra.mxu0 %v32
    %175 = vmatpush.msra.mxu0 %v31
    %176 = vmatpush.msra.mxu0 %v30
    %177 = vmatpush.msra.mxu0 %v29
    %178 = vmatmul.f32.gmra.mxu0 %v146
    %v179 = vpop.f32.mrf.mxu0
    %v180 = vadd.f32 %v139, %v179
    %181 = vdwg.mxu0
    %182 = vmatpush.msra.mxu0 %v60
    %183 = vmatpush.msra.mxu0 %v59
    %184 = vmatpush.msra.mxu0 %v58
    %185 = vmatpush.msra.mxu0 %v57
    %186 = vmatpush.msra.mxu0 %v56
    %187 = vmatpush.msra.mxu0 %v55
    %188 = vmatpush.msra.mxu0 %v54
    %189 = vmatpush.msra.mxu0 %v53
    %190 = vmatpush.msra.mxu0 %v52
    %191 = vmatpush.msra.mxu0 %v51
    %192 = vmatpush.msra.mxu0 %v50
    %193 = vmatpush.msra.mxu0 %v49
    %194 = vmatpush.msra.mxu0 %v48
    %195 = vmatpush.msra.mxu0 %v47
    %196 = vmatpush.msra.mxu0 %v46
    %197 = vmatpush.msra.mxu0 %v45
    %198 = vmatmul.f32.gmra.mxu0 %v147
    %v199 = vpop.f32.mrf.mxu0
    %v200 = vadd.f32 %v180, %v199
    %201 = vdwg.mxu0
    %202 = vmatpush.msra.mxu0 %v76
    %203 = vmatpush.msra.mxu0 %v75
    %204 = vmatpush.msra.mxu0 %v74
    %205 = vmatpush.msra.mxu0 %v73
    %206 = vmatpush.msra.mxu0 %v72
    %207 = vmatpush.msra.mxu0 %v71
    %208 = vmatpush.msra.mxu0 %v70
    %209 = vmatpush.msra.mxu0 %v69
    %210 = vmatpush.msra.mxu0 %v68
    %211 = vmatpush.msra.mxu0 %v67
    %212 = vmatpush.msra.mxu0 %v66
    %213 = vmatpush.msra.mxu0 %v65
    %214 = vmatpush.msra.mxu0 %v64
    %215 = vmatpush.msra.mxu0 %v63
    %216 = vmatpush.msra.mxu0 %v62
    %217 = vmatpush.msra.mxu0 %v61
    %218 = vmatmul.f32.gmra.mxu0 %v148
    %v219 = vpop.f32.mrf.mxu0
    %v220 = vadd.f32 %v200, %v219
    %221 = vdwg.mxu0
    %222 = vmatpush.msra.mxu0 %v92
    %223 = vmatpush.msra.mxu0 %v91
    %224 = vmatpush.msra.mxu0 %v90
    %225 = vmatpush.msra.mxu0 %v89
    %226 = vmatpush.msra.mxu0 %v88
    %227 = vmatpush.msra.mxu0 %v87
    %228 = vmatpush.msra.mxu0 %v86
    %229 = vmatpush.msra.mxu0 %v85
    %230 = vmatpush.msra.mxu0 %v84
    %231 = vmatpush.msra.mxu0 %v83
    %232 = vmatpush.msra.mxu0 %v82
    %233 = vmatpush.msra.mxu0 %v81
    %234 = vmatpush.msra.mxu0 %v80
    %235 = vmatpush.msra.mxu0 %v79
    %236 = vmatpush.msra.mxu0 %v78
    %237 = vmatpush.msra.mxu0 %v77
    %238 = vmatmul.f32.gmra.mxu0 %v149
    %v239 = vpop.f32.mrf.mxu0
    %v240 = vadd.f32 %v220, %v239
    %241 = vdwg.mxu0
    %242 = vmatpush.msra.mxu0 %v108
    %243 = vmatpush.msra.mxu0 %v107
    %244 = vmatpush.msra.mxu0 %v106
    %245 = vmatpush.msra.mxu0 %v105
    %246 = vmatpush.msra.mxu0 %v104
    %247 = vmatpush.msra.mxu0 %v103
    %248 = vmatpush.msra.mxu0 %v102
    %249 = vmatpush.msra.mxu0 %v101
    %250 = vmatpush.msra.mxu0 %v100
    %251 = vmatpush.msra.mxu0 %v99
    %252 = vmatpush.msra.mxu0 %v98
    %253 = vmatpush.msra.mxu0 %v97
    %254 = vmatpush.msra.mxu0 %v96
    %255 = vmatpush.msra.mxu0 %v95
    %256 = vmatpush.msra.mxu0 %v94
    %257 = vmatpush.msra.mxu0 %v93
    %258 = vmatmul.f32.gmra.mxu0 %v150
    %v259 = vpop.f32.mrf.mxu0
    %v260 = vadd.f32 %v240, %v259
    %261 = vdwg.mxu0
    %262 = vmatpush.msra.mxu0 %v124
    %263 = vmatpush.msra.mxu0 %v123
    %264 = vmatpush.msra.mxu0 %v122
    %265 = vmatpush.msra.mxu0 %v121
    %266 = vmatpush.msra.mxu0 %v120
    %267 = vmatpush.msra.mxu0 %v119
    %268 = vmatpush.msra.mxu0 %v118
    %269 = vmatpush.msra.mxu0 %v117
    %270 = vmatpush.msra.mxu0 %v116
    %271 = vmatpush.msra.mxu0 %v115
    %272 = vmatpush.msra.mxu0 %v114
    %273 = vmatpush.msra.mxu0 %v113
    %274 = vmatpush.msra.mxu0 %v112
    %275 = vmatpush.msra.mxu0 %v111
    %276 = vmatpush.msra.mxu0 %v110
    %277 = vmatpush.msra.mxu0 %v109
    %278 = vmatmul.f32.gmra.mxu0 %v151
    %v279 = vpop.f32.mrf.mxu0
    %v280 = vadd.f32 %v260, %v279
    %281 = vdwg.mxu0
    %282 = vmatpush.msra.mxu0 0.0
    %283 = vmatpush.msra.mxu0 0.0
    %284 = vmatpush.msra.mxu0 0.0
    %285 = vmatpush.msra.mxu0 0.0
    %286 = vmatpush.msra.mxu0 %v136
    %287 = vmatpush.msra.mxu0 %v135
    %288 = vmatpush.msra.mxu0 %v134
    %289 = vmatpush.msra.mxu0 %v133
    %290 = vmatpush.msra.mxu0 %v132
    %291 = vmatpush.msra.mxu0 %v131
    %292 = vmatpush.msra.mxu0 %v130
    %293 = vmatpush.msra.mxu0 %v129
    %294 = vmatpush.msra.mxu0 %v128
    %295 = vmatpush.msra.mxu0 %v127
    %296 = vmatpush.msra.mxu0 %v126
    %297 = vmatpush.msra.mxu0 %v125
    %298 = vmatmul.f32.gmra.mxu0 %v160
    %v299 = vpop.f32.mrf.mxu0
    %v300 = vadd.f32 %v280, %v299
    %301 = vdwg.mxu0
    %vm302 = vcmp.gt.f32.partialorder %v300, 0.0
    %v303 = vmin.f32 %v300, 0.0
    %v304 = vmul.f32 %v303, 1.442695
    %v305 = vpow.pop %v304
    %v306 = vsub.f32 %v305, 1.0
    %v307 = vsel %vm302, %v300, %v306
    %v308 = vld [vmem:[%s3] sm:$0xff]
    %v309 = vld [vmem:[%s3 + $0x8] sm:$0xff]
    %v310 = vld [vmem:[%s4] sm:$0x1]
    %v312 = vperm.slane %v310, 0
    %vm314 = vcmask 130048
    %v316 = vsel %vm314, %v307, 0
    %318 = vmatpush.msra.mxu0 0.0
    %319 = vmatpush.msra.mxu0 0.0
    %320 = vmatpush.msra.mxu0 0.0
    %321 = vmatpush.msra.mxu0 0.0
    %322 = vmatpush.msra.mxu0 0.0
    %323 = vmatpush.msra.mxu0 0.0
    %324 = vmatpush.msra.mxu0 0.0
    %325 = vmatpush.msra.mxu0 0.0
    %326 = vmatpush.msra.mxu0 0.0
    %327 = vmatpush.msra.mxu0 0.0
    %328 = vmatpush.msra.mxu0 0.0
    %329 = vmatpush.msra.mxu0 0.0
    %330 = vmatpush.msra.mxu0 0.0
    %331 = vmatpush.msra.mxu0 0.0
    %332 = vmatpush.msra.mxu0 %v309
    %333 = vmatpush.msra.mxu0 %v308
    %334 = vmatmul.f32.gmra.mxu0 %v316
    %v335 = vpop.f32.mrf.mxu0
    %v336 = vadd.f32 %v312, %v335
    %337 = vdwg.mxu0
    %v338 = vmax.f32 %v336, 0.0
    %v339 = vld [vmem:[%s5] sm:$0xff]
    %v340 = vld [vmem:[%s5 + $0x8] sm:$0xff]
    %v341 = vld [vmem:[%s5 + $0x10] sm:$0xff]
    %v342 = vld [vmem:[%s5 + $0x18] sm:$0xff]
    %v343 = vld [vmem:[%s6] sm:$0x1]
    %v345 = vperm.slane %v343, 0
    %vm347 = vcmask 261120
    %v349 = vsel %vm347, %v338, 0
    %351 = vmatpush.msra.mxu0 0.0
    %352 = vmatpush.msra.mxu0 0.0
    %353 = vmatpush.msra.mxu0 0.0
    %354 = vmatpush.msra.mxu0 0.0
    %355 = vmatpush.msra.mxu0 0.0
    %356 = vmatpush.msra.mxu0 0.0
    %357 = vmatpush.msra.mxu0 0.0
    %358 = vmatpush.msra.mxu0 0.0
    %359 = vmatpush.msra.mxu0 0.0
    %360 = vmatpush.msra.mxu0 0.0
    %361 = vmatpush.msra.mxu0 0.0
    %362 = vmatpush.msra.mxu0 0.0
    %363 = vmatpush.msra.mxu0 %v342
    %364 = vmatpush.msra.mxu0 %v341
    %365 = vmatpush.msra.mxu0 %v340
    %366 = vmatpush.msra.mxu0 %v339
    %367 = vmatmul.f32.gmra.mxu0 %v349
    %v368 = vpop.f32.mrf.mxu0
    %v369 = vadd.f32 %v345, %v368
    %370 = vdwg.mxu0
    %vm371 = vcmask 9216
    %372 = vst.msk [vmem:[#allocation2] sm:$0x3] %vm371, %v369
    // Predicated region
    $region30: #{encoder_classifier_forward.7} parent=1 // pred_check
      _
    $region31: #{encoder_classifier_forward.7} parent=1 // pred_check_branch
      %374 = sbr.rel (0) target = $region33
    $region32: #{encoder_classifier_forward.7} parent=1 // pred_region
      %376 = vsyncadd [#allocation3], 0
      %s378 = sshll.u32 [#allocation2], 4
      %s379 = int_to_ptr.vmem [resolvable:$true] %s378
      %s380 = sshll.u32 %s7, 4
      %s381 = int_to_ptr.hbm [resolvable:$true] %s380
      %383 = dma.vmem_to_hbm [thread:$0]  %s379, 32, %s381, [#allocation3]
    $region33: #{encoder_classifier_forward.7} parent=1 // pred_fallthru
      _
    // Predicated region
    $region34: #{encoder_classifier_forward.7} parent=1 // pred_check
      _
    $region35: #{encoder_classifier_forward.7} parent=1 // pred_check_branch
      %385 = sbr.rel (0) target = $region37
    $region36: #{encoder_classifier_forward.7} parent=1 // pred_region
      %387 = dma.done [#allocation3], 32
    $region37: #{encoder_classifier_forward.7} parent=1 // pred_fallthru
      _
    %388 = vsyncpa [#allocation3], 1

</llo_original>
